<compile_context>
chip_gen: v6e
topology: v6e:2x2x1
jax: 0.10.0
libtpu: 0.0.40
codegen_flags: <defaults>
</compile_context>

<pallas_src>
import functools

import jax
import jax.numpy as jnp
from jax import lax
from jax.experimental import pallas as pl
from jax.experimental.pallas import tpu as pltpu

CH = 64                 # per-image (padded) channel width
LANES = 2 * CH          # two images packed along the 128 lanes
EPS = 1e-5              # PyTorch BatchNorm2d default eps
ACT_DT = jnp.bfloat16   # activation / weight dtype fed to the MXU (f32 accumulate)


def _round_up(x, m):
    return (x + m - 1) // m * m


def _pathnet_kernel(x_ref, w_ref, b_ref, mask_ref, out_ref, buf_ref, *,
                    n_layers, chunks, shifts, lead, hwp):
    """All 21 conv3x3 + folded-BN + activation layers for one lane-packed pair.

    x_ref:    (R, 128)          bf16  layer-0 input, flat padded layout
    w_ref:    (L*9, 128, 128)   bf16  block-diag folded taps (VMEM resident)
    b_ref:    (L, 128)          f32   folded biases (VMEM resident)
    mask_ref: (R, 1)            f32   1.0 on interior pixels, 0.0 on halo rows
    out_ref:  (R, 128)          f32   written by the peeled final (clamp) layer
    buf_ref:  (2, R, 128)       bf16  ping-pong activations (never leave VMEM)
    """
    R = x_ref.shape[0]
    tail = R - lead - hwp

    # slot 0 <- input (its lead/tail pad rows are already zero from host padding);
    # slot 1 only needs its lead/tail pad rows zeroed: every layer fully
    # overwrites the interior rows with a masked store.
    buf_ref[0, :, :] = x_ref[...]
    buf_ref[1, pl.ds(0, lead), :] = jnp.zeros((lead, LANES), buf_ref.dtype)
    buf_ref[1, pl.ds(lead + hwp, tail), :] = jnp.zeros((tail, LANES), buf_ref.dtype)

    def layer_body(l, carry):                       # layers 0 .. L-2 (ReLU)
        src = buf_ref.at[lax.rem(l, 2)]
        dst = buf_ref.at[1 - lax.rem(l, 2)]
        bias = b_ref[pl.ds(l, 1), :]                # (1, 128) f32, hoisted
        wb = l * 9
        for base, rows in chunks:                   # static unroll (few chunks)
            acc = jnp.zeros((rows, LANES), jnp.float32)
            for t, s in enumerate(shifts):          # static unroll: 9 taps
                acc = acc + jnp.dot(src[pl.ds(base + s, rows), :],
                                    w_ref[wb + t],
                                    preferred_element_type=jnp.float32)
            msk = mask_ref[pl.ds(base, rows), :]
            r = jnp.maximum(acc + bias, 0.0) * msk  # ReLU, halo rows stay 0
            dst[pl.ds(base, rows), :] = r.astype(buf_ref.dtype)
        return carry

    lax.fori_loop(0, n_layers - 1, layer_body, 0)

    # Peeled final layer: clamp(0, 1) straight to HBM output (lane-dense f32).
    # No halo masking needed -- the wrapper slices the halo off.
    src = buf_ref.at[(n_layers - 1) % 2]
    bias = b_ref[pl.ds(n_layers - 1, 1), :]
    wb = (n_layers - 1) * 9
    for base, rows in chunks:
        acc = jnp.zeros((rows, LANES), jnp.float32)
        for t, s in enumerate(shifts):
            acc = acc + jnp.dot(src[pl.ds(base + s, rows), :],
                                w_ref[wb + t],
                                preferred_element_type=jnp.float32)
        out_ref[pl.ds(base, rows), :] = jnp.clip(acc + bias, 0.0, 1.0
                                                 ).astype(out_ref.dtype)


def _fold_layer(p):
    """Fold eval-mode BN into the conv, pad channels to CH, and duplicate into a
    block-diagonal (9, 128, 128) tap matrix for the two lane-packed images.
    NOTE: weights here are HWIO (3,3,cin,cout); real PyTorch OIHW checkpoints
    must be permuted (2,3,1,0) first."""
    cin, cout = p["w"].shape[2], p["w"].shape[3]
    scale = p["gamma"] * lax.rsqrt(p["var"] + EPS)
    w_eff = p["w"] * scale[None, None, None, :]
    b_eff = (p["b"] - p["mean"]) * scale + p["beta"]
    w9 = jnp.pad(w_eff.reshape(9, cin, cout), ((0, 0), (0, CH - cin), (0, CH - cout)))
    b9 = jnp.pad(b_eff, (0, CH - cout))
    wbd = jnp.zeros((9, LANES, LANES), w9.dtype)
    wbd = wbd.at[:, :CH, :CH].set(w9).at[:, CH:, CH:].set(w9)
    bbd = jnp.concatenate([b9, b9])                  # (128,)
    return wbd, bbd


@jax.jit
def pathnet_forward(x_nchw, layers):
    N, cin0, H, W = x_nchw.shape
    Hp, Wp = H + 2, W + 2
    HWp = Hp * Wp
    lead = _round_up(Wp + 1, 8)                # front pad rows >= max tap shift
    R = _round_up(lead + HWp + Wp + 1, 8)      # total rows incl. tail pad
    n_layers = len(layers)
    n_pairs = -(-N // 2)
    N2 = 2 * n_pairs

    # layer-0 input -> lane-packed flat padded bf16 layout (n_pairs, R, 128)
    x = jnp.transpose(x_nchw, (0, 2, 3, 1)).astype(jnp.float32)
    x = jnp.pad(x, ((0, N2 - N), (1, 1), (1, 1), (0, CH - cin0)))
    x = x.reshape(N2, HWp, CH)
    x = jnp.pad(x, ((0, 0), (lead, R - lead - HWp), (0, 0)))
    x = (x.reshape(n_pairs, 2, R, CH).transpose(0, 2, 1, 3)
          .reshape(n_pairs, R, LANES).astype(ACT_DT))

    # folded + block-diagonal weight / bias stacks (whole network, VMEM resident)
    ws, bs = zip(*(_fold_layer(p) for p in layers))
    w_all = jnp.concatenate([w.astype(ACT_DT) for w in ws], axis=0)  # (L*9,128,128)
    b_all = jnp.stack(bs).astype(jnp.float32)                        # (L, 128)

    # interior mask in the flat layout (shared by every image pair / layer)
    r = jnp.arange(R)
    loc = r - lead
    hp, wp = loc // Wp, loc % Wp
    interior = ((loc >= 0) & (loc < HWp) &
                (hp >= 1) & (hp <= H) & (wp >= 1) & (wp <= W))
    mask = interior.astype(jnp.float32).reshape(R, 1)

    # 8-sublane-aligned row chunks covering the padded interior [lead, lead+HWp)
    n_chunks = max(1, -(-HWp // 256))
    per = _round_up(-(-HWp // n_chunks), 8)
    chunks, base, left = [], lead, HWp
    while left > 0:
        rows = min(per, left)
        chunks.append((base, rows))
        base += rows
        left -= rows
    chunks = tuple(chunks)
    shifts = tuple((dy - 1) * Wp + (dx - 1) for dy in range(3) for dx in range(3))

    kernel = functools.partial(_pathnet_kernel, n_layers=n_layers, chunks=chunks,
                               shifts=shifts, lead=lead, hwp=HWp)

    out = pl.pallas_call(
        kernel,
        out_shape=jax.ShapeDtypeStruct((n_pairs, R, LANES), jnp.float32),
        grid_spec=pltpu.PrefetchScalarGridSpec(
            num_scalar_prefetch=0,
            grid=(n_pairs,),
            in_specs=[
                pl.BlockSpec((None, R, LANES), lambda n: (n, 0, 0)),            # x
                pl.BlockSpec((n_layers * 9, LANES, LANES), lambda n: (0, 0, 0)),  # W
                pl.BlockSpec((n_layers, LANES), lambda n: (0, 0)),              # bias
                pl.BlockSpec((R, 1), lambda n: (0, 0)),                         # mask
            ],
            out_specs=pl.BlockSpec((None, R, LANES), lambda n: (n, 0, 0)),
            scratch_shapes=[pltpu.VMEM((2, R, LANES), ACT_DT)],
        ),
        compiler_params=pltpu.CompilerParams(
            dimension_semantics=("parallel",),
            vmem_limit_bytes=32 * 1024 * 1024),
    )(x, w_all, b_all, mask)

    # unpack lanes, strip lead/tail rows and spatial halo, keep real out channel
    y = (out.reshape(n_pairs, R, 2, CH).transpose(0, 2, 1, 3)
            .reshape(N2, R, CH))[:N, lead:lead + HWp, :]
    y = y.reshape(N, Hp, Wp, CH)[:, 1:1 + H, 1:1 + W, :1]
    return jnp.transpose(y, (0, 3, 1, 2))          # NCHW: (N, 1, H, W)


def init_params(key):
    """Deterministic synthetic parameters matching PathNet's layer shapes (HWIO)."""
    cins = [2] + [64] * 19 + [64]
    couts = [64] * 20 + [1]
    layers = []
    for cin, cout in zip(cins, couts):
        key, kw, kb, kg, kbe, km, kv = jax.random.split(key, 7)
        layers.append(dict(
            w=jax.random.normal(kw, (3, 3, cin, cout), jnp.float32) * 0.05,
            b=jax.random.normal(kb, (cout,), jnp.float32) * 0.05,
            gamma=1.0 + 0.1 * jax.random.normal(kg, (cout,), jnp.float32),
            beta=0.1 * jax.random.normal(kbe, (cout,), jnp.float32),
            mean=0.1 * jax.random.normal(km, (cout,), jnp.float32),
            var=1.0 + 0.1 * jnp.abs(jax.random.normal(kv, (cout,), jnp.float32)),
        ))
    return layers


if __name__ == "__main__":
    key = jax.random.PRNGKey(0)
    key, kx = jax.random.split(key)
    x = jax.random.normal(kx, (2, 2, 16, 16), jnp.float32)   # NCHW, 2 input channels
    params = init_params(key)

    out = pathnet_forward(x, params)
    out = jax.block_until_ready(out)
    assert out.shape == (2, 1, 16, 16)
    assert bool(jnp.all(out >= 0.0)) and bool(jnp.all(out <= 1.0))
    print("KERNEL_OK")
</pallas_src>

<mosaic_0001>
module attributes {stable_mosaic.version = 11 : i64} {
  func.func @_pathnet_kernel(%arg0: i32, %arg1: memref<1x368x128xbf16, #tpu.memory_space<vmem>>, %arg2: memref<189x128x128xbf16, #tpu.memory_space<vmem>>, %arg3: memref<21x128xf32, #tpu.memory_space<vmem>>, %arg4: memref<368x1xf32, #tpu.memory_space<vmem>>, %arg5: memref<1x368x128xf32, #tpu.memory_space<vmem>>, %arg6: memref<2x368x128xbf16, #tpu.memory_space<vmem>>) attributes {dimension_semantics = [#tpu.dimension_semantics<parallel>], iteration_bounds = array<i64: 1>, scalar_prefetch = 0 : i64, scratch_operands = 1 : i64, tpu.core_type = #tpu.core_type<tc>, window_params = [{transform_indices = @transform_0, window_bounds = array<i64: 1, 368, 128>}, {pipeline_mode = #tpu.pipeline_mode<synchronous>, transform_indices = @transform_1, window_bounds = array<i64: 189, 128, 128>}, {pipeline_mode = #tpu.pipeline_mode<synchronous>, transform_indices = @transform_2, window_bounds = array<i64: 21, 128>}, {pipeline_mode = #tpu.pipeline_mode<synchronous>, transform_indices = @transform_3, window_bounds = array<i64: 368, 1>}, {transform_indices = @transform_4, window_bounds = array<i64: 1, 368, 128>}]} {
    %c0 = arith.constant 0 : index
    %c0_0 = arith.constant 0 : index
    %c0_1 = arith.constant 0 : index
    %0 = vector.load %arg1[%c0, %c0_0, %c0_1] : memref<1x368x128xbf16, #tpu.memory_space<vmem>>, vector<1x368x128xbf16>
    %1 = vector.shape_cast %0 : vector<1x368x128xbf16> to vector<368x128xbf16>
    %c0_2 = arith.constant 0 : index
    %c0_3 = arith.constant 0 : index
    %c0_4 = arith.constant 0 : index
    %2 = vector.load %arg6[%c0_2, %c0_3, %c0_4] : memref<2x368x128xbf16, #tpu.memory_space<vmem>>, vector<1x368x128xbf16>
    %3 = vector.shape_cast %2 : vector<1x368x128xbf16> to vector<368x128xbf16>
    %4 = vector.shape_cast %1 : vector<368x128xbf16> to vector<1x368x128xbf16>
    tpu.vector_store %arg6[%c0_2, %c0_3, %c0_4], %4 {strides = array<i32>} : memref<2x368x128xbf16, #tpu.memory_space<vmem>>, vector<1x368x128xbf16>,
    %cst = arith.constant 0.000000e+00 : bf16
    %5 = vector.broadcast %cst : bf16 to vector<24x128xbf16>
    %c1 = arith.constant 1 : index
    %c0_5 = arith.constant 0 : index
    %c0_6 = arith.constant 0 : index
    %6 = vector.load %arg6[%c1, %c0_5, %c0_6] : memref<2x368x128xbf16, #tpu.memory_space<vmem>>, vector<1x24x128xbf16>
    %7 = vector.shape_cast %6 : vector<1x24x128xbf16> to vector<24x128xbf16>
    %8 = vector.shape_cast %5 : vector<24x128xbf16> to vector<1x24x128xbf16>
    tpu.vector_store %arg6[%c1, %c0_5, %c0_6], %8 {strides = array<i32>} : memref<2x368x128xbf16, #tpu.memory_space<vmem>>, vector<1x24x128xbf16>,
    %cst_7 = arith.constant 0.000000e+00 : bf16
    %9 = vector.broadcast %cst_7 : bf16 to vector<20x128xbf16>
    %c1_8 = arith.constant 1 : index
    %c348 = arith.constant 348 : index
    %c0_9 = arith.constant 0 : index
    %10 = vector.load %arg6[%c1_8, %c348, %c0_9] : memref<2x368x128xbf16, #tpu.memory_space<vmem>>, vector<1x20x128xbf16>
    %11 = vector.shape_cast %10 : vector<1x20x128xbf16> to vector<20x128xbf16>
    %12 = vector.shape_cast %9 : vector<20x128xbf16> to vector<1x20x128xbf16>
    tpu.vector_store %arg6[%c1_8, %c348, %c0_9], %12 {strides = array<i32>} : memref<2x368x128xbf16, #tpu.memory_space<vmem>>, vector<1x20x128xbf16>,
    %c0_i32 = arith.constant 0 : i32
    %c20_i32 = arith.constant 20 : i32
    %13 = arith.addi %c0_i32, %c20_i32 : i32
    %c1_i32 = arith.constant 1 : i32
    scf.for %arg7 = %c0_i32 to %13 step %c1_i32  : i32 {
      %c2_i32 = arith.constant 2 : i32
      %161 = arith.remsi %arg7, %c2_i32 : i32
      %c2_i32_159 = arith.constant 2 : i32
      %162 = arith.remsi %arg7, %c2_i32_159 : i32
      %c1_i32_160 = arith.constant 1 : i32
      %163 = arith.subi %c1_i32_160, %162 : i32
      %164 = arith.index_cast %arg7 : i32 to index
      %c0_161 = arith.constant 0 : index
      %165 = vector.load %arg3[%164, %c0_161] : memref<21x128xf32, #tpu.memory_space<vmem>>, vector<1x128xf32>
      %c9_i32 = arith.constant 9 : i32
      %166 = arith.muli %arg7, %c9_i32 : i32
      %cst_162 = arith.constant 0.000000e+00 : f32
      %167 = vector.broadcast %cst_162 : f32 to vector<168x128xf32>
      %c0_i32_163 = arith.constant 0 : i32
      %c0_i32_164 = arith.constant 0 : i32
      %168 = tpu.memref_slice %arg6[%161, %c0_i32_163, %c0_i32_164] : memref<2x368x128xbf16, #tpu.memory_space<vmem>> -> memref<1x368x128xbf16, #tpu.memory_space<vmem>>
      %169 = tpu.memref_squeeze %168 : memref<1x368x128xbf16, #tpu.memory_space<vmem>> -> memref<368x128xbf16, #tpu.memory_space<vmem>>
      %c5_165 = arith.constant 5 : index
      %c0_166 = arith.constant 0 : index
      %170 = vector.load %169[%c5_165, %c0_166] : memref<368x128xbf16, #tpu.memory_space<vmem>>, vector<168x128xbf16>
      %c0_i32_167 = arith.constant 0 : i32
      %171 = arith.addi %166, %c0_i32_167 : i32
      %172 = arith.index_cast %171 : i32 to index
      %c0_168 = arith.constant 0 : index
      %c0_169 = arith.constant 0 : index
      %173 = vector.load %arg2[%172, %c0_168, %c0_169] : memref<189x128x128xbf16, #tpu.memory_space<vmem>>, vector<1x128x128xbf16>
      %174 = vector.shape_cast %173 : vector<1x128x128xbf16> to vector<128x128xbf16>
      %cst_170 = arith.constant dense<0.000000e+00> : vector<168x128xf32>
      %175 = tpu.matmul %170, %174, %cst_170 {dimension_numbers = #tpu.dot_dimension_numbers<[1], [0], [0], [1], [0, 0, 1, 1], [], []>} : vector<168x128xbf16>, vector<128x128xbf16>, vector<168x128xf32> -> vector<168x128xf32>
      %176 = arith.addf %167, %175 : vector<168x128xf32>
      %c0_i32_171 = arith.constant 0 : i32
      %c0_i32_172 = arith.constant 0 : i32
      %177 = tpu.memref_slice %arg6[%161, %c0_i32_171, %c0_i32_172] : memref<2x368x128xbf16, #tpu.memory_space<vmem>> -> memref<1x368x128xbf16, #tpu.memory_space<vmem>>
      %178 = tpu.memref_squeeze %177 : memref<1x368x128xbf16, #tpu.memory_space<vmem>> -> memref<368x128xbf16, #tpu.memory_space<vmem>>
      %c6_173 = arith.constant 6 : index
      %c0_174 = arith.constant 0 : index
      %179 = vector.load %178[%c6_173, %c0_174] : memref<368x128xbf16, #tpu.memory_space<vmem>>, vector<168x128xbf16>
      %c1_i32_175 = arith.constant 1 : i32
      %180 = arith.addi %166, %c1_i32_175 : i32
      %181 = arith.index_cast %180 : i32 to index
      %c0_176 = arith.constant 0 : index
      %c0_177 = arith.constant 0 : index
      %182 = vector.load %arg2[%181, %c0_176, %c0_177] : memref<189x128x128xbf16, #tpu.memory_space<vmem>>, vector<1x128x128xbf16>
      %183 = vector.shape_cast %182 : vector<1x128x128xbf16> to vector<128x128xbf16>
      %cst_178 = arith.constant dense<0.000000e+00> : vector<168x128xf32>
      %184 = tpu.matmul %179, %183, %cst_178 {dimension_numbers = #tpu.dot_dimension_numbers<[1], [0], [0], [1], [0, 0, 1, 1], [], []>} : vector<168x128xbf16>, vector<128x128xbf16>, vector<168x128xf32> -> vector<168x128xf32>
      %185 = arith.addf %176, %184 : vector<168x128xf32>
      %c0_i32_179 = arith.constant 0 : i32
      %c0_i32_180 = arith.constant 0 : i32
      %186 = tpu.memref_slice %arg6[%161, %c0_i32_179, %c0_i32_180] : memref<2x368x128xbf16, #tpu.memory_space<vmem>> -> memref<1x368x128xbf16, #tpu.memory_space<vmem>>
      %187 = tpu.memref_squeeze %186 : memref<1x368x128xbf16, #tpu.memory_space<vmem>> -> memref<368x128xbf16, #tpu.memory_space<vmem>>
      %c7_181 = arith.constant 7 : index
      %c0_182 = arith.constant 0 : index
      %188 = vector.load %187[%c7_181, %c0_182] : memref<368x128xbf16, #tpu.memory_space<vmem>>, vector<168x128xbf16>
      %c2_i32_183 = arith.constant 2 : i32
      %189 = arith.addi %166, %c2_i32_183 : i32
      %190 = arith.index_cast %189 : i32 to index
      %c0_184 = arith.constant 0 : index
      %c0_185 = arith.constant 0 : index
      %191 = vector.load %arg2[%190, %c0_184, %c0_185] : memref<189x128x128xbf16, #tpu.memory_space<vmem>>, vector<1x128x128xbf16>
      %192 = vector.shape_cast %191 : vector<1x128x128xbf16> to vector<128x128xbf16>
      %cst_186 = arith.constant dense<0.000000e+00> : vector<168x128xf32>
      %193 = tpu.matmul %188, %192, %cst_186 {dimension_numbers = #tpu.dot_dimension_numbers<[1], [0], [0], [1], [0, 0, 1, 1], [], []>} : vector<168x128xbf16>, vector<128x128xbf16>, vector<168x128xf32> -> vector<168x128xf32>
      %194 = arith.addf %185, %193 : vector<168x128xf32>
      %c0_i32_187 = arith.constant 0 : i32
      %c0_i32_188 = arith.constant 0 : i32
      %195 = tpu.memref_slice %arg6[%161, %c0_i32_187, %c0_i32_188] : memref<2x368x128xbf16, #tpu.memory_space<vmem>> -> memref<1x368x128xbf16, #tpu.memory_space<vmem>>
      %196 = tpu.memref_squeeze %195 : memref<1x368x128xbf16, #tpu.memory_space<vmem>> -> memref<368x128xbf16, #tpu.memory_space<vmem>>
      %c23_189 = arith.constant 23 : index
      %c0_190 = arith.constant 0 : index
      %197 = vector.load %196[%c23_189, %c0_190] : memref<368x128xbf16, #tpu.memory_space<vmem>>, vector<168x128xbf16>
      %c3_i32 = arith.constant 3 : i32
      %198 = arith.addi %166, %c3_i32 : i32
      %199 = arith.index_cast %198 : i32 to index
      %c0_191 = arith.constant 0 : index
      %c0_192 = arith.constant 0 : index
      %200 = vector.load %arg2[%199, %c0_191, %c0_192] : memref<189x128x128xbf16, #tpu.memory_space<vmem>>, vector<1x128x128xbf16>
      %201 = vector.shape_cast %200 : vector<1x128x128xbf16> to vector<128x128xbf16>
      %cst_193 = arith.constant dense<0.000000e+00> : vector<168x128xf32>
      %202 = tpu.matmul %197, %201, %cst_193 {dimension_numbers = #tpu.dot_dimension_numbers<[1], [0], [0], [1], [0, 0, 1, 1], [], []>} : vector<168x128xbf16>, vector<128x128xbf16>, vector<168x128xf32> -> vector<168x128xf32>
      %203 = arith.addf %194, %202 : vector<168x128xf32>
      %c0_i32_194 = arith.constant 0 : i32
      %c0_i32_195 = arith.constant 0 : i32
      %204 = tpu.memref_slice %arg6[%161, %c0_i32_194, %c0_i32_195] : memref<2x368x128xbf16, #tpu.memory_space<vmem>> -> memref<1x368x128xbf16, #tpu.memory_space<vmem>>
      %205 = tpu.memref_squeeze %204 : memref<1x368x128xbf16, #tpu.memory_space<vmem>> -> memref<368x128xbf16, #tpu.memory_space<vmem>>
      %c24_196 = arith.constant 24 : index
      %c0_197 = arith.constant 0 : index
      %206 = vector.load %205[%c24_196, %c0_197] : memref<368x128xbf16, #tpu.memory_space<vmem>>, vector<168x128xbf16>
      %c4_i32 = arith.constant 4 : i32
      %207 = arith.addi %166, %c4_i32 : i32
      %208 = arith.index_cast %207 : i32 to index
      %c0_198 = arith.constant 0 : index
      %c0_199 = arith.constant 0 : index
      %209 = vector.load %arg2[%208, %c0_198, %c0_199] : memref<189x128x128xbf16, #tpu.memory_space<vmem>>, vector<1x128x128xbf16>
      %210 = vector.shape_cast %209 : vector<1x128x128xbf16> to vector<128x128xbf16>
      %cst_200 = arith.constant dense<0.000000e+00> : vector<168x128xf32>
      %211 = tpu.matmul %206, %210, %cst_200 {dimension_numbers = #tpu.dot_dimension_numbers<[1], [0], [0], [1], [0, 0, 1, 1], [], []>} : vector<168x128xbf16>, vector<128x128xbf16>, vector<168x128xf32> -> vector<168x128xf32>
      %212 = arith.addf %203, %211 : vector<168x128xf32>
      %c0_i32_201 = arith.constant 0 : i32
      %c0_i32_202 = arith.constant 0 : i32
      %213 = tpu.memref_slice %arg6[%161, %c0_i32_201, %c0_i32_202] : memref<2x368x128xbf16, #tpu.memory_space<vmem>> -> memref<1x368x128xbf16, #tpu.memory_space<vmem>>
      %214 = tpu.memref_squeeze %213 : memref<1x368x128xbf16, #tpu.memory_space<vmem>> -> memref<368x128xbf16, #tpu.memory_space<vmem>>
      %c25_203 = arith.constant 25 : index
      %c0_204 = arith.constant 0 : index
      %215 = vector.load %214[%c25_203, %c0_204] : memref<368x128xbf16, #tpu.memory_space<vmem>>, vector<168x128xbf16>
      %c5_i32 = arith.constant 5 : i32
      %216 = arith.addi %166, %c5_i32 : i32
      %217 = arith.index_cast %216 : i32 to index
      %c0_205 = arith.constant 0 : index
      %c0_206 = arith.constant 0 : index
      %218 = vector.load %arg2[%217, %c0_205, %c0_206] : memref<189x128x128xbf16, #tpu.memory_space<vmem>>, vector<1x128x128xbf16>
      %219 = vector.shape_cast %218 : vector<1x128x128xbf16> to vector<128x128xbf16>
      %cst_207 = arith.constant dense<0.000000e+00> : vector<168x128xf32>
      %220 = tpu.matmul %215, %219, %cst_207 {dimension_numbers = #tpu.dot_dimension_numbers<[1], [0], [0], [1], [0, 0, 1, 1], [], []>} : vector<168x128xbf16>, vector<128x128xbf16>, vector<168x128xf32> -> vector<168x128xf32>
      %221 = arith.addf %212, %220 : vector<168x128xf32>
      %c0_i32_208 = arith.constant 0 : i32
      %c0_i32_209 = arith.constant 0 : i32
      %222 = tpu.memref_slice %arg6[%161, %c0_i32_208, %c0_i32_209] : memref<2x368x128xbf16, #tpu.memory_space<vmem>> -> memref<1x368x128xbf16, #tpu.memory_space<vmem>>
      %223 = tpu.memref_squeeze %222 : memref<1x368x128xbf16, #tpu.memory_space<vmem>> -> memref<368x128xbf16, #tpu.memory_space<vmem>>
      %c41_210 = arith.constant 41 : index
      %c0_211 = arith.constant 0 : index
      %224 = vector.load %223[%c41_210, %c0_211] : memref<368x128xbf16, #tpu.memory_space<vmem>>, vector<168x128xbf16>
      %c6_i32 = arith.constant 6 : i32
      %225 = arith.addi %166, %c6_i32 : i32
      %226 = arith.index_cast %225 : i32 to index
      %c0_212 = arith.constant 0 : index
      %c0_213 = arith.constant 0 : index
      %227 = vector.load %arg2[%226, %c0_212, %c0_213] : memref<189x128x128xbf16, #tpu.memory_space<vmem>>, vector<1x128x128xbf16>
      %228 = vector.shape_cast %227 : vector<1x128x128xbf16> to vector<128x128xbf16>
      %cst_214 = arith.constant dense<0.000000e+00> : vector<168x128xf32>
      %229 = tpu.matmul %224, %228, %cst_214 {dimension_numbers = #tpu.dot_dimension_numbers<[1], [0], [0], [1], [0, 0, 1, 1], [], []>} : vector<168x128xbf16>, vector<128x128xbf16>, vector<168x128xf32> -> vector<168x128xf32>
      %230 = arith.addf %221, %229 : vector<168x128xf32>
      %c0_i32_215 = arith.constant 0 : i32
      %c0_i32_216 = arith.constant 0 : i32
      %231 = tpu.memref_slice %arg6[%161, %c0_i32_215, %c0_i32_216] : memref<2x368x128xbf16, #tpu.memory_space<vmem>> -> memref<1x368x128xbf16, #tpu.memory_space<vmem>>
      %232 = tpu.memref_squeeze %231 : memref<1x368x128xbf16, #tpu.memory_space<vmem>> -> memref<368x128xbf16, #tpu.memory_space<vmem>>
      %c42_217 = arith.constant 42 : index
      %c0_218 = arith.constant 0 : index
      %233 = vector.load %232[%c42_217, %c0_218] : memref<368x128xbf16, #tpu.memory_space<vmem>>, vector<168x128xbf16>
      %c7_i32 = arith.constant 7 : i32
      %234 = arith.addi %166, %c7_i32 : i32
      %235 = arith.index_cast %234 : i32 to index
      %c0_219 = arith.constant 0 : index
      %c0_220 = arith.constant 0 : index
      %236 = vector.load %arg2[%235, %c0_219, %c0_220] : memref<189x128x128xbf16, #tpu.memory_space<vmem>>, vector<1x128x128xbf16>
      %237 = vector.shape_cast %236 : vector<1x128x128xbf16> to vector<128x128xbf16>
      %cst_221 = arith.constant dense<0.000000e+00> : vector<168x128xf32>
      %238 = tpu.matmul %233, %237, %cst_221 {dimension_numbers = #tpu.dot_dimension_numbers<[1], [0], [0], [1], [0, 0, 1, 1], [], []>} : vector<168x128xbf16>, vector<128x128xbf16>, vector<168x128xf32> -> vector<168x128xf32>
      %239 = arith.addf %230, %238 : vector<168x128xf32>
      %c0_i32_222 = arith.constant 0 : i32
      %c0_i32_223 = arith.constant 0 : i32
      %240 = tpu.memref_slice %arg6[%161, %c0_i32_222, %c0_i32_223] : memref<2x368x128xbf16, #tpu.memory_space<vmem>> -> memref<1x368x128xbf16, #tpu.memory_space<vmem>>
      %241 = tpu.memref_squeeze %240 : memref<1x368x128xbf16, #tpu.memory_space<vmem>> -> memref<368x128xbf16, #tpu.memory_space<vmem>>
      %c43_224 = arith.constant 43 : index
      %c0_225 = arith.constant 0 : index
      %242 = vector.load %241[%c43_224, %c0_225] : memref<368x128xbf16, #tpu.memory_space<vmem>>, vector<168x128xbf16>
      %c8_i32 = arith.constant 8 : i32
      %243 = arith.addi %166, %c8_i32 : i32
      %244 = arith.index_cast %243 : i32 to index
      %c0_226 = arith.constant 0 : index
      %c0_227 = arith.constant 0 : index
      %245 = vector.load %arg2[%244, %c0_226, %c0_227] : memref<189x128x128xbf16, #tpu.memory_space<vmem>>, vector<1x128x128xbf16>
      %246 = vector.shape_cast %245 : vector<1x128x128xbf16> to vector<128x128xbf16>
      %cst_228 = arith.constant dense<0.000000e+00> : vector<168x128xf32>
      %247 = tpu.matmul %242, %246, %cst_228 {dimension_numbers = #tpu.dot_dimension_numbers<[1], [0], [0], [1], [0, 0, 1, 1], [], []>} : vector<168x128xbf16>, vector<128x128xbf16>, vector<168x128xf32> -> vector<168x128xf32>
      %248 = arith.addf %239, %247 : vector<168x128xf32>
      %c24_229 = arith.constant 24 : index
      %c0_230 = arith.constant 0 : index
      %249 = vector.load %arg4[%c24_229, %c0_230] : memref<368x1xf32, #tpu.memory_space<vmem>>, vector<168x1xf32>
      %250 = vector.broadcast %165 : vector<1x128xf32> to vector<168x128xf32>
      %251 = arith.addf %248, %250 : vector<168x128xf32>
      %cst_231 = arith.constant 0.000000e+00 : f32
      %252 = vector.broadcast %cst_231 : f32 to vector<168x128xf32>
      %253 = arith.maximumf %251, %252 : vector<168x128xf32>
      %254 = vector.broadcast %249 : vector<168x1xf32> to vector<168x128xf32>
      %255 = arith.mulf %253, %254 : vector<168x128xf32>
      %256 = arith.truncf %255 : vector<168x128xf32> to vector<168x128xbf16>
      %c0_i32_232 = arith.constant 0 : i32
      %c0_i32_233 = arith.constant 0 : i32
      %257 = tpu.memref_slice %arg6[%163, %c0_i32_232, %c0_i32_233] : memref<2x368x128xbf16, #tpu.memory_space<vmem>> -> memref<1x368x128xbf16, #tpu.memory_space<vmem>>
      %258 = tpu.memref_squeeze %257 : memref<1x368x128xbf16, #tpu.memory_space<vmem>> -> memref<368x128xbf16, #tpu.memory_space<vmem>>
      %c24_234 = arith.constant 24 : index
      %c0_235 = arith.constant 0 : index
      %259 = vector.load %258[%c24_234, %c0_235] : memref<368x128xbf16, #tpu.memory_space<vmem>>, vector<168x128xbf16>
      tpu.vector_store %258[%c24_234, %c0_235], %256 {strides = array<i32>} : memref<368x128xbf16, #tpu.memory_space<vmem>>, vector<168x128xbf16>,
      %cst_236 = arith.constant 0.000000e+00 : f32
      %260 = vector.broadcast %cst_236 : f32 to vector<156x128xf32>
      %c0_i32_237 = arith.constant 0 : i32
      %c0_i32_238 = arith.constant 0 : i32
      %261 = tpu.memref_slice %arg6[%161, %c0_i32_237, %c0_i32_238] : memref<2x368x128xbf16, #tpu.memory_space<vmem>> -> memref<1x368x128xbf16, #tpu.memory_space<vmem>>
      %262 = tpu.memref_squeeze %261 : memref<1x368x128xbf16, #tpu.memory_space<vmem>> -> memref<368x128xbf16, #tpu.memory_space<vmem>>
      %c173_239 = arith.constant 173 : index
      %c0_240 = arith.constant 0 : index
      %263 = vector.load %262[%c173_239, %c0_240] : memref<368x128xbf16, #tpu.memory_space<vmem>>, vector<156x128xbf16>
      %c0_i32_241 = arith.constant 0 : i32
      %264 = arith.addi %166, %c0_i32_241 : i32
      %265 = arith.index_cast %264 : i32 to index
      %c0_242 = arith.constant 0 : index
      %c0_243 = arith.constant 0 : index
      %266 = vector.load %arg2[%265, %c0_242, %c0_243] : memref<189x128x128xbf16, #tpu.memory_space<vmem>>, vector<1x128x128xbf16>
      %267 = vector.shape_cast %266 : vector<1x128x128xbf16> to vector<128x128xbf16>
      %cst_244 = arith.constant dense<0.000000e+00> : vector<156x128xf32>
      %268 = tpu.matmul %263, %267, %cst_244 {dimension_numbers = #tpu.dot_dimension_numbers<[1], [0], [0], [1], [0, 0, 1, 1], [], []>} : vector<156x128xbf16>, vector<128x128xbf16>, vector<156x128xf32> -> vector<156x128xf32>
      %269 = arith.addf %260, %268 : vector<156x128xf32>
      %c0_i32_245 = arith.constant 0 : i32
      %c0_i32_246 = arith.constant 0 : i32
      %270 = tpu.memref_slice %arg6[%161, %c0_i32_245, %c0_i32_246] : memref<2x368x128xbf16, #tpu.memory_space<vmem>> -> memref<1x368x128xbf16, #tpu.memory_space<vmem>>
      %271 = tpu.memref_squeeze %270 : memref<1x368x128xbf16, #tpu.memory_space<vmem>> -> memref<368x128xbf16, #tpu.memory_space<vmem>>
      %c174_247 = arith.constant 174 : index
      %c0_248 = arith.constant 0 : index
      %272 = vector.load %271[%c174_247, %c0_248] : memref<368x128xbf16, #tpu.memory_space<vmem>>, vector<156x128xbf16>
      %c1_i32_249 = arith.constant 1 : i32
      %273 = arith.addi %166, %c1_i32_249 : i32
      %274 = arith.index_cast %273 : i32 to index
      %c0_250 = arith.constant 0 : index
      %c0_251 = arith.constant 0 : index
      %275 = vector.load %arg2[%274, %c0_250, %c0_251] : memref<189x128x128xbf16, #tpu.memory_space<vmem>>, vector<1x128x128xbf16>
      %276 = vector.shape_cast %275 : vector<1x128x128xbf16> to vector<128x128xbf16>
      %cst_252 = arith.constant dense<0.000000e+00> : vector<156x128xf32>
      %277 = tpu.matmul %272, %276, %cst_252 {dimension_numbers = #tpu.dot_dimension_numbers<[1], [0], [0], [1], [0, 0, 1, 1], [], []>} : vector<156x128xbf16>, vector<128x128xbf16>, vector<156x128xf32> -> vector<156x128xf32>
      %278 = arith.addf %269, %277 : vector<156x128xf32>
      %c0_i32_253 = arith.constant 0 : i32
      %c0_i32_254 = arith.constant 0 : i32
      %279 = tpu.memref_slice %arg6[%161, %c0_i32_253, %c0_i32_254] : memref<2x368x128xbf16, #tpu.memory_space<vmem>> -> memref<1x368x128xbf16, #tpu.memory_space<vmem>>
      %280 = tpu.memref_squeeze %279 : memref<1x368x128xbf16, #tpu.memory_space<vmem>> -> memref<368x128xbf16, #tpu.memory_space<vmem>>
      %c175_255 = arith.constant 175 : index
      %c0_256 = arith.constant 0 : index
      %281 = vector.load %280[%c175_255, %c0_256] : memref<368x128xbf16, #tpu.memory_space<vmem>>, vector<156x128xbf16>
      %c2_i32_257 = arith.constant 2 : i32
      %282 = arith.addi %166, %c2_i32_257 : i32
      %283 = arith.index_cast %282 : i32 to index
      %c0_258 = arith.constant 0 : index
      %c0_259 = arith.constant 0 : index
      %284 = vector.load %arg2[%283, %c0_258, %c0_259] : memref<189x128x128xbf16, #tpu.memory_space<vmem>>, vector<1x128x128xbf16>
      %285 = vector.shape_cast %284 : vector<1x128x128xbf16> to vector<128x128xbf16>
      %cst_260 = arith.constant dense<0.000000e+00> : vector<156x128xf32>
      %286 = tpu.matmul %281, %285, %cst_260 {dimension_numbers = #tpu.dot_dimension_numbers<[1], [0], [0], [1], [0, 0, 1, 1], [], []>} : vector<156x128xbf16>, vector<128x128xbf16>, vector<156x128xf32> -> vector<156x128xf32>
      %287 = arith.addf %278, %286 : vector<156x128xf32>
      %c0_i32_261 = arith.constant 0 : i32
      %c0_i32_262 = arith.constant 0 : i32
      %288 = tpu.memref_slice %arg6[%161, %c0_i32_261, %c0_i32_262] : memref<2x368x128xbf16, #tpu.memory_space<vmem>> -> memref<1x368x128xbf16, #tpu.memory_space<vmem>>
      %289 = tpu.memref_squeeze %288 : memref<1x368x128xbf16, #tpu.memory_space<vmem>> -> memref<368x128xbf16, #tpu.memory_space<vmem>>
      %c191_263 = arith.constant 191 : index
      %c0_264 = arith.constant 0 : index
      %290 = vector.load %289[%c191_263, %c0_264] : memref<368x128xbf16, #tpu.memory_space<vmem>>, vector<156x128xbf16>
      %c3_i32_265 = arith.constant 3 : i32
      %291 = arith.addi %166, %c3_i32_265 : i32
      %292 = arith.index_cast %291 : i32 to index
      %c0_266 = arith.constant 0 : index
      %c0_267 = arith.constant 0 : index
      %293 = vector.load %arg2[%292, %c0_266, %c0_267] : memref<189x128x128xbf16, #tpu.memory_space<vmem>>, vector<1x128x128xbf16>
      %294 = vector.shape_cast %293 : vector<1x128x128xbf16> to vector<128x128xbf16>
      %cst_268 = arith.constant dense<0.000000e+00> : vector<156x128xf32>
      %295 = tpu.matmul %290, %294, %cst_268 {dimension_numbers = #tpu.dot_dimension_numbers<[1], [0], [0], [1], [0, 0, 1, 1], [], []>} : vector<156x128xbf16>, vector<128x128xbf16>, vector<156x128xf32> -> vector<156x128xf32>
      %296 = arith.addf %287, %295 : vector<156x128xf32>
      %c0_i32_269 = arith.constant 0 : i32
      %c0_i32_270 = arith.constant 0 : i32
      %297 = tpu.memref_slice %arg6[%161, %c0_i32_269, %c0_i32_270] : memref<2x368x128xbf16, #tpu.memory_space<vmem>> -> memref<1x368x128xbf16, #tpu.memory_space<vmem>>
      %298 = tpu.memref_squeeze %297 : memref<1x368x128xbf16, #tpu.memory_space<vmem>> -> memref<368x128xbf16, #tpu.memory_space<vmem>>
      %c192_271 = arith.constant 192 : index
      %c0_272 = arith.constant 0 : index
      %299 = vector.load %298[%c192_271, %c0_272] : memref<368x128xbf16, #tpu.memory_space<vmem>>, vector<156x128xbf16>
      %c4_i32_273 = arith.constant 4 : i32
      %300 = arith.addi %166, %c4_i32_273 : i32
      %301 = arith.index_cast %300 : i32 to index
      %c0_274 = arith.constant 0 : index
      %c0_275 = arith.constant 0 : index
      %302 = vector.load %arg2[%301, %c0_274, %c0_275] : memref<189x128x128xbf16, #tpu.memory_space<vmem>>, vector<1x128x128xbf16>
      %303 = vector.shape_cast %302 : vector<1x128x128xbf16> to vector<128x128xbf16>
      %cst_276 = arith.constant dense<0.000000e+00> : vector<156x128xf32>
      %304 = tpu.matmul %299, %303, %cst_276 {dimension_numbers = #tpu.dot_dimension_numbers<[1], [0], [0], [1], [0, 0, 1, 1], [], []>} : vector<156x128xbf16>, vector<128x128xbf16>, vector<156x128xf32> -> vector<156x128xf32>
      %305 = arith.addf %296, %304 : vector<156x128xf32>
      %c0_i32_277 = arith.constant 0 : i32
      %c0_i32_278 = arith.constant 0 : i32
      %306 = tpu.memref_slice %arg6[%161, %c0_i32_277, %c0_i32_278] : memref<2x368x128xbf16, #tpu.memory_space<vmem>> -> memref<1x368x128xbf16, #tpu.memory_space<vmem>>
      %307 = tpu.memref_squeeze %306 : memref<1x368x128xbf16, #tpu.memory_space<vmem>> -> memref<368x128xbf16, #tpu.memory_space<vmem>>
      %c193_279 = arith.constant 193 : index
      %c0_280 = arith.constant 0 : index
      %308 = vector.load %307[%c193_279, %c0_280] : memref<368x128xbf16, #tpu.memory_space<vmem>>, vector<156x128xbf16>
      %c5_i32_281 = arith.constant 5 : i32
      %309 = arith.addi %166, %c5_i32_281 : i32
      %310 = arith.index_cast %309 : i32 to index
      %c0_282 = arith.constant 0 : index
      %c0_283 = arith.constant 0 : index
      %311 = vector.load %arg2[%310, %c0_282, %c0_283] : memref<189x128x128xbf16, #tpu.memory_space<vmem>>, vector<1x128x128xbf16>
      %312 = vector.shape_cast %311 : vector<1x128x128xbf16> to vector<128x128xbf16>
      %cst_284 = arith.constant dense<0.000000e+00> : vector<156x128xf32>
      %313 = tpu.matmul %308, %312, %cst_284 {dimension_numbers = #tpu.dot_dimension_numbers<[1], [0], [0], [1], [0, 0, 1, 1], [], []>} : vector<156x128xbf16>, vector<128x128xbf16>, vector<156x128xf32> -> vector<156x128xf32>
      %314 = arith.addf %305, %313 : vector<156x128xf32>
      %c0_i32_285 = arith.constant 0 : i32
      %c0_i32_286 = arith.constant 0 : i32
      %315 = tpu.memref_slice %arg6[%161, %c0_i32_285, %c0_i32_286] : memref<2x368x128xbf16, #tpu.memory_space<vmem>> -> memref<1x368x128xbf16, #tpu.memory_space<vmem>>
      %316 = tpu.memref_squeeze %315 : memref<1x368x128xbf16, #tpu.memory_space<vmem>> -> memref<368x128xbf16, #tpu.memory_space<vmem>>
      %c209_287 = arith.constant 209 : index
      %c0_288 = arith.constant 0 : index
      %317 = vector.load %316[%c209_287, %c0_288] : memref<368x128xbf16, #tpu.memory_space<vmem>>, vector<156x128xbf16>
      %c6_i32_289 = arith.constant 6 : i32
      %318 = arith.addi %166, %c6_i32_289 : i32
      %319 = arith.index_cast %318 : i32 to index
      %c0_290 = arith.constant 0 : index
      %c0_291 = arith.constant 0 : index
      %320 = vector.load %arg2[%319, %c0_290, %c0_291] : memref<189x128x128xbf16, #tpu.memory_space<vmem>>, vector<1x128x128xbf16>
      %321 = vector.shape_cast %320 : vector<1x128x128xbf16> to vector<128x128xbf16>
      %cst_292 = arith.constant dense<0.000000e+00> : vector<156x128xf32>
      %322 = tpu.matmul %317, %321, %cst_292 {dimension_numbers = #tpu.dot_dimension_numbers<[1], [0], [0], [1], [0, 0, 1, 1], [], []>} : vector<156x128xbf16>, vector<128x128xbf16>, vector<156x128xf32> -> vector<156x128xf32>
      %323 = arith.addf %314, %322 : vector<156x128xf32>
      %c0_i32_293 = arith.constant 0 : i32
      %c0_i32_294 = arith.constant 0 : i32
      %324 = tpu.memref_slice %arg6[%161, %c0_i32_293, %c0_i32_294] : memref<2x368x128xbf16, #tpu.memory_space<vmem>> -> memref<1x368x128xbf16, #tpu.memory_space<vmem>>
      %325 = tpu.memref_squeeze %324 : memref<1x368x128xbf16, #tpu.memory_space<vmem>> -> memref<368x128xbf16, #tpu.memory_space<vmem>>
      %c210_295 = arith.constant 210 : index
      %c0_296 = arith.constant 0 : index
      %326 = vector.load %325[%c210_295, %c0_296] : memref<368x128xbf16, #tpu.memory_space<vmem>>, vector<156x128xbf16>
      %c7_i32_297 = arith.constant 7 : i32
      %327 = arith.addi %166, %c7_i32_297 : i32
      %328 = arith.index_cast %327 : i32 to index
      %c0_298 = arith.constant 0 : index
      %c0_299 = arith.constant 0 : index
      %329 = vector.load %arg2[%328, %c0_298, %c0_299] : memref<189x128x128xbf16, #tpu.memory_space<vmem>>, vector<1x128x128xbf16>
      %330 = vector.shape_cast %329 : vector<1x128x128xbf16> to vector<128x128xbf16>
      %cst_300 = arith.constant dense<0.000000e+00> : vector<156x128xf32>
      %331 = tpu.matmul %326, %330, %cst_300 {dimension_numbers = #tpu.dot_dimension_numbers<[1], [0], [0], [1], [0, 0, 1, 1], [], []>} : vector<156x128xbf16>, vector<128x128xbf16>, vector<156x128xf32> -> vector<156x128xf32>
      %332 = arith.addf %323, %331 : vector<156x128xf32>
      %c0_i32_301 = arith.constant 0 : i32
      %c0_i32_302 = arith.constant 0 : i32
      %333 = tpu.memref_slice %arg6[%161, %c0_i32_301, %c0_i32_302] : memref<2x368x128xbf16, #tpu.memory_space<vmem>> -> memref<1x368x128xbf16, #tpu.memory_space<vmem>>
      %334 = tpu.memref_squeeze %333 : memref<1x368x128xbf16, #tpu.memory_space<vmem>> -> memref<368x128xbf16, #tpu.memory_space<vmem>>
      %c211_303 = arith.constant 211 : index
      %c0_304 = arith.constant 0 : index
      %335 = vector.load %334[%c211_303, %c0_304] : memref<368x128xbf16, #tpu.memory_space<vmem>>, vector<156x128xbf16>
      %c8_i32_305 = arith.constant 8 : i32
      %336 = arith.addi %166, %c8_i32_305 : i32
      %337 = arith.index_cast %336 : i32 to index
      %c0_306 = arith.constant 0 : index
      %c0_307 = arith.constant 0 : index
      %338 = vector.load %arg2[%337, %c0_306, %c0_307] : memref<189x128x128xbf16, #tpu.memory_space<vmem>>, vector<1x128x128xbf16>
      %339 = vector.shape_cast %338 : vector<1x128x128xbf16> to vector<128x128xbf16>
      %cst_308 = arith.constant dense<0.000000e+00> : vector<156x128xf32>
      %340 = tpu.matmul %335, %339, %cst_308 {dimension_numbers = #tpu.dot_dimension_numbers<[1], [0], [0], [1], [0, 0, 1, 1], [], []>} : vector<156x128xbf16>, vector<128x128xbf16>, vector<156x128xf32> -> vector<156x128xf32>
      %341 = arith.addf %332, %340 : vector<156x128xf32>
      %c192_309 = arith.constant 192 : index
      %c0_310 = arith.constant 0 : index
      %342 = vector.load %arg4[%c192_309, %c0_310] : memref<368x1xf32, #tpu.memory_space<vmem>>, vector<156x1xf32>
      %343 = vector.broadcast %165 : vector<1x128xf32> to vector<156x128xf32>
      %344 = arith.addf %341, %343 : vector<156x128xf32>
      %cst_311 = arith.constant 0.000000e+00 : f32
      %345 = vector.broadcast %cst_311 : f32 to vector<156x128xf32>
      %346 = arith.maximumf %344, %345 : vector<156x128xf32>
      %347 = vector.broadcast %342 : vector<156x1xf32> to vector<156x128xf32>
      %348 = arith.mulf %346, %347 : vector<156x128xf32>
      %349 = arith.truncf %348 : vector<156x128xf32> to vector<156x128xbf16>
      %c0_i32_312 = arith.constant 0 : i32
      %c0_i32_313 = arith.constant 0 : i32
      %350 = tpu.memref_slice %arg6[%163, %c0_i32_312, %c0_i32_313] : memref<2x368x128xbf16, #tpu.memory_space<vmem>> -> memref<1x368x128xbf16, #tpu.memory_space<vmem>>
      %351 = tpu.memref_squeeze %350 : memref<1x368x128xbf16, #tpu.memory_space<vmem>> -> memref<368x128xbf16, #tpu.memory_space<vmem>>
      %c192_314 = arith.constant 192 : index
      %c0_315 = arith.constant 0 : index
      %352 = vector.load %351[%c192_314, %c0_315] : memref<368x128xbf16, #tpu.memory_space<vmem>>, vector<156x128xbf16>
      tpu.vector_store %351[%c192_314, %c0_315], %349 {strides = array<i32>} : memref<368x128xbf16, #tpu.memory_space<vmem>>, vector<156x128xbf16>,
    }
    %c20_i32_10 = arith.constant 20 : i32
    %c20 = arith.constant 20 : index
    %c0_11 = arith.constant 0 : index
    %14 = vector.load %arg3[%c20, %c0_11] : memref<21x128xf32, #tpu.memory_space<vmem>>, vector<1x128xf32>
    %cst_12 = arith.constant 0.000000e+00 : f32
    %15 = vector.broadcast %cst_12 : f32 to vector<168x128xf32>
    %c0_i32_13 = arith.constant 0 : i32
    %c0_i32_14 = arith.constant 0 : i32
    %c0_i32_15 = arith.constant 0 : i32
    %16 = tpu.memref_slice %arg6[%c0_i32_13, %c0_i32_14, %c0_i32_15] : memref<2x368x128xbf16, #tpu.memory_space<vmem>> -> memref<1x368x128xbf16, #tpu.memory_space<vmem>>
    %17 = tpu.memref_squeeze %16 : memref<1x368x128xbf16, #tpu.memory_space<vmem>> -> memref<368x128xbf16, #tpu.memory_space<vmem>>
    %c5 = arith.constant 5 : index
    %c0_16 = arith.constant 0 : index
    %18 = vector.load %17[%c5, %c0_16] : memref<368x128xbf16, #tpu.memory_space<vmem>>, vector<168x128xbf16>
    %c180 = arith.constant 180 : index
    %c0_17 = arith.constant 0 : index
    %c0_18 = arith.constant 0 : index
    %19 = vector.load %arg2[%c180, %c0_17, %c0_18] : memref<189x128x128xbf16, #tpu.memory_space<vmem>>, vector<1x128x128xbf16>
    %20 = vector.shape_cast %19 : vector<1x128x128xbf16> to vector<128x128xbf16>
    %cst_19 = arith.constant dense<0.000000e+00> : vector<168x128xf32>
    %21 = tpu.matmul %18, %20, %cst_19 {dimension_numbers = #tpu.dot_dimension_numbers<[1], [0], [0], [1], [0, 0, 1, 1], [], []>} : vector<168x128xbf16>, vector<128x128xbf16>, vector<168x128xf32> -> vector<168x128xf32>
    %22 = arith.addf %15, %21 : vector<168x128xf32>
    %c0_i32_20 = arith.constant 0 : i32
    %c0_i32_21 = arith.constant 0 : i32
    %c0_i32_22 = arith.constant 0 : i32
    %23 = tpu.memref_slice %arg6[%c0_i32_20, %c0_i32_21, %c0_i32_22] : memref<2x368x128xbf16, #tpu.memory_space<vmem>> -> memref<1x368x128xbf16, #tpu.memory_space<vmem>>
    %24 = tpu.memref_squeeze %23 : memref<1x368x128xbf16, #tpu.memory_space<vmem>> -> memref<368x128xbf16, #tpu.memory_space<vmem>>
    %c6 = arith.constant 6 : index
    %c0_23 = arith.constant 0 : index
    %25 = vector.load %24[%c6, %c0_23] : memref<368x128xbf16, #tpu.memory_space<vmem>>, vector<168x128xbf16>
    %c181 = arith.constant 181 : index
    %c0_24 = arith.constant 0 : index
    %c0_25 = arith.constant 0 : index
    %26 = vector.load %arg2[%c181, %c0_24, %c0_25] : memref<189x128x128xbf16, #tpu.memory_space<vmem>>, vector<1x128x128xbf16>
    %27 = vector.shape_cast %26 : vector<1x128x128xbf16> to vector<128x128xbf16>
    %cst_26 = arith.constant dense<0.000000e+00> : vector<168x128xf32>
    %28 = tpu.matmul %25, %27, %cst_26 {dimension_numbers = #tpu.dot_dimension_numbers<[1], [0], [0], [1], [0, 0, 1, 1], [], []>} : vector<168x128xbf16>, vector<128x128xbf16>, vector<168x128xf32> -> vector<168x128xf32>
    %29 = arith.addf %22, %28 : vector<168x128xf32>
    %c0_i32_27 = arith.constant 0 : i32
    %c0_i32_28 = arith.constant 0 : i32
    %c0_i32_29 = arith.constant 0 : i32
    %30 = tpu.memref_slice %arg6[%c0_i32_27, %c0_i32_28, %c0_i32_29] : memref<2x368x128xbf16, #tpu.memory_space<vmem>> -> memref<1x368x128xbf16, #tpu.memory_space<vmem>>
    %31 = tpu.memref_squeeze %30 : memref<1x368x128xbf16, #tpu.memory_space<vmem>> -> memref<368x128xbf16, #tpu.memory_space<vmem>>
    %c7 = arith.constant 7 : index
    %c0_30 = arith.constant 0 : index
    %32 = vector.load %31[%c7, %c0_30] : memref<368x128xbf16, #tpu.memory_space<vmem>>, vector<168x128xbf16>
    %c182 = arith.constant 182 : index
    %c0_31 = arith.constant 0 : index
    %c0_32 = arith.constant 0 : index
    %33 = vector.load %arg2[%c182, %c0_31, %c0_32] : memref<189x128x128xbf16, #tpu.memory_space<vmem>>, vector<1x128x128xbf16>
    %34 = vector.shape_cast %33 : vector<1x128x128xbf16> to vector<128x128xbf16>
    %cst_33 = arith.constant dense<0.000000e+00> : vector<168x128xf32>
    %35 = tpu.matmul %32, %34, %cst_33 {dimension_numbers = #tpu.dot_dimension_numbers<[1], [0], [0], [1], [0, 0, 1, 1], [], []>} : vector<168x128xbf16>, vector<128x128xbf16>, vector<168x128xf32> -> vector<168x128xf32>
    %36 = arith.addf %29, %35 : vector<168x128xf32>
    %c0_i32_34 = arith.constant 0 : i32
    %c0_i32_35 = arith.constant 0 : i32
    %c0_i32_36 = arith.constant 0 : i32
    %37 = tpu.memref_slice %arg6[%c0_i32_34, %c0_i32_35, %c0_i32_36] : memref<2x368x128xbf16, #tpu.memory_space<vmem>> -> memref<1x368x128xbf16, #tpu.memory_space<vmem>>
    %38 = tpu.memref_squeeze %37 : memref<1x368x128xbf16, #tpu.memory_space<vmem>> -> memref<368x128xbf16, #tpu.memory_space<vmem>>
    %c23 = arith.constant 23 : index
    %c0_37 = arith.constant 0 : index
    %39 = vector.load %38[%c23, %c0_37] : memref<368x128xbf16, #tpu.memory_space<vmem>>, vector<168x128xbf16>
    %c183 = arith.constant 183 : index
    %c0_38 = arith.constant 0 : index
    %c0_39 = arith.constant 0 : index
    %40 = vector.load %arg2[%c183, %c0_38, %c0_39] : memref<189x128x128xbf16, #tpu.memory_space<vmem>>, vector<1x128x128xbf16>
    %41 = vector.shape_cast %40 : vector<1x128x128xbf16> to vector<128x128xbf16>
    %cst_40 = arith.constant dense<0.000000e+00> : vector<168x128xf32>
    %42 = tpu.matmul %39, %41, %cst_40 {dimension_numbers = #tpu.dot_dimension_numbers<[1], [0], [0], [1], [0, 0, 1, 1], [], []>} : vector<168x128xbf16>, vector<128x128xbf16>, vector<168x128xf32> -> vector<168x128xf32>
    %43 = arith.addf %36, %42 : vector<168x128xf32>
    %c0_i32_41 = arith.constant 0 : i32
    %c0_i32_42 = arith.constant 0 : i32
    %c0_i32_43 = arith.constant 0 : i32
    %44 = tpu.memref_slice %arg6[%c0_i32_41, %c0_i32_42, %c0_i32_43] : memref<2x368x128xbf16, #tpu.memory_space<vmem>> -> memref<1x368x128xbf16, #tpu.memory_space<vmem>>
    %45 = tpu.memref_squeeze %44 : memref<1x368x128xbf16, #tpu.memory_space<vmem>> -> memref<368x128xbf16, #tpu.memory_space<vmem>>
    %c24 = arith.constant 24 : index
    %c0_44 = arith.constant 0 : index
    %46 = vector.load %45[%c24, %c0_44] : memref<368x128xbf16, #tpu.memory_space<vmem>>, vector<168x128xbf16>
    %c184 = arith.constant 184 : index
    %c0_45 = arith.constant 0 : index
    %c0_46 = arith.constant 0 : index
    %47 = vector.load %arg2[%c184, %c0_45, %c0_46] : memref<189x128x128xbf16, #tpu.memory_space<vmem>>, vector<1x128x128xbf16>
    %48 = vector.shape_cast %47 : vector<1x128x128xbf16> to vector<128x128xbf16>
    %cst_47 = arith.constant dense<0.000000e+00> : vector<168x128xf32>
    %49 = tpu.matmul %46, %48, %cst_47 {dimension_numbers = #tpu.dot_dimension_numbers<[1], [0], [0], [1], [0, 0, 1, 1], [], []>} : vector<168x128xbf16>, vector<128x128xbf16>, vector<168x128xf32> -> vector<168x128xf32>
    %50 = arith.addf %43, %49 : vector<168x128xf32>
    %c0_i32_48 = arith.constant 0 : i32
    %c0_i32_49 = arith.constant 0 : i32
    %c0_i32_50 = arith.constant 0 : i32
    %51 = tpu.memref_slice %arg6[%c0_i32_48, %c0_i32_49, %c0_i32_50] : memref<2x368x128xbf16, #tpu.memory_space<vmem>> -> memref<1x368x128xbf16, #tpu.memory_space<vmem>>
    %52 = tpu.memref_squeeze %51 : memref<1x368x128xbf16, #tpu.memory_space<vmem>> -> memref<368x128xbf16, #tpu.memory_space<vmem>>
    %c25 = arith.constant 25 : index
    %c0_51 = arith.constant 0 : index
    %53 = vector.load %52[%c25, %c0_51] : memref<368x128xbf16, #tpu.memory_space<vmem>>, vector<168x128xbf16>
    %c185 = arith.constant 185 : index
    %c0_52 = arith.constant 0 : index
    %c0_53 = arith.constant 0 : index
    %54 = vector.load %arg2[%c185, %c0_52, %c0_53] : memref<189x128x128xbf16, #tpu.memory_space<vmem>>, vector<1x128x128xbf16>
    %55 = vector.shape_cast %54 : vector<1x128x128xbf16> to vector<128x128xbf16>
    %cst_54 = arith.constant dense<0.000000e+00> : vector<168x128xf32>
    %56 = tpu.matmul %53, %55, %cst_54 {dimension_numbers = #tpu.dot_dimension_numbers<[1], [0], [0], [1], [0, 0, 1, 1], [], []>} : vector<168x128xbf16>, vector<128x128xbf16>, vector<168x128xf32> -> vector<168x128xf32>
    %57 = arith.addf %50, %56 : vector<168x128xf32>
    %c0_i32_55 = arith.constant 0 : i32
    %c0_i32_56 = arith.constant 0 : i32
    %c0_i32_57 = arith.constant 0 : i32
    %58 = tpu.memref_slice %arg6[%c0_i32_55, %c0_i32_56, %c0_i32_57] : memref<2x368x128xbf16, #tpu.memory_space<vmem>> -> memref<1x368x128xbf16, #tpu.memory_space<vmem>>
    %59 = tpu.memref_squeeze %58 : memref<1x368x128xbf16, #tpu.memory_space<vmem>> -> memref<368x128xbf16, #tpu.memory_space<vmem>>
    %c41 = arith.constant 41 : index
    %c0_58 = arith.constant 0 : index
    %60 = vector.load %59[%c41, %c0_58] : memref<368x128xbf16, #tpu.memory_space<vmem>>, vector<168x128xbf16>
    %c186 = arith.constant 186 : index
    %c0_59 = arith.constant 0 : index
    %c0_60 = arith.constant 0 : index
    %61 = vector.load %arg2[%c186, %c0_59, %c0_60] : memref<189x128x128xbf16, #tpu.memory_space<vmem>>, vector<1x128x128xbf16>
    %62 = vector.shape_cast %61 : vector<1x128x128xbf16> to vector<128x128xbf16>
    %cst_61 = arith.constant dense<0.000000e+00> : vector<168x128xf32>
    %63 = tpu.matmul %60, %62, %cst_61 {dimension_numbers = #tpu.dot_dimension_numbers<[1], [0], [0], [1], [0, 0, 1, 1], [], []>} : vector<168x128xbf16>, vector<128x128xbf16>, vector<168x128xf32> -> vector<168x128xf32>
    %64 = arith.addf %57, %63 : vector<168x128xf32>
    %c0_i32_62 = arith.constant 0 : i32
    %c0_i32_63 = arith.constant 0 : i32
    %c0_i32_64 = arith.constant 0 : i32
    %65 = tpu.memref_slice %arg6[%c0_i32_62, %c0_i32_63, %c0_i32_64] : memref<2x368x128xbf16, #tpu.memory_space<vmem>> -> memref<1x368x128xbf16, #tpu.memory_space<vmem>>
    %66 = tpu.memref_squeeze %65 : memref<1x368x128xbf16, #tpu.memory_space<vmem>> -> memref<368x128xbf16, #tpu.memory_space<vmem>>
    %c42 = arith.constant 42 : index
    %c0_65 = arith.constant 0 : index
    %67 = vector.load %66[%c42, %c0_65] : memref<368x128xbf16, #tpu.memory_space<vmem>>, vector<168x128xbf16>
    %c187 = arith.constant 187 : index
    %c0_66 = arith.constant 0 : index
    %c0_67 = arith.constant 0 : index
    %68 = vector.load %arg2[%c187, %c0_66, %c0_67] : memref<189x128x128xbf16, #tpu.memory_space<vmem>>, vector<1x128x128xbf16>
    %69 = vector.shape_cast %68 : vector<1x128x128xbf16> to vector<128x128xbf16>
    %cst_68 = arith.constant dense<0.000000e+00> : vector<168x128xf32>
    %70 = tpu.matmul %67, %69, %cst_68 {dimension_numbers = #tpu.dot_dimension_numbers<[1], [0], [0], [1], [0, 0, 1, 1], [], []>} : vector<168x128xbf16>, vector<128x128xbf16>, vector<168x128xf32> -> vector<168x128xf32>
    %71 = arith.addf %64, %70 : vector<168x128xf32>
    %c0_i32_69 = arith.constant 0 : i32
    %c0_i32_70 = arith.constant 0 : i32
    %c0_i32_71 = arith.constant 0 : i32
    %72 = tpu.memref_slice %arg6[%c0_i32_69, %c0_i32_70, %c0_i32_71] : memref<2x368x128xbf16, #tpu.memory_space<vmem>> -> memref<1x368x128xbf16, #tpu.memory_space<vmem>>
    %73 = tpu.memref_squeeze %72 : memref<1x368x128xbf16, #tpu.memory_space<vmem>> -> memref<368x128xbf16, #tpu.memory_space<vmem>>
    %c43 = arith.constant 43 : index
    %c0_72 = arith.constant 0 : index
    %74 = vector.load %73[%c43, %c0_72] : memref<368x128xbf16, #tpu.memory_space<vmem>>, vector<168x128xbf16>
    %c188 = arith.constant 188 : index
    %c0_73 = arith.constant 0 : index
    %c0_74 = arith.constant 0 : index
    %75 = vector.load %arg2[%c188, %c0_73, %c0_74] : memref<189x128x128xbf16, #tpu.memory_space<vmem>>, vector<1x128x128xbf16>
    %76 = vector.shape_cast %75 : vector<1x128x128xbf16> to vector<128x128xbf16>
    %cst_75 = arith.constant dense<0.000000e+00> : vector<168x128xf32>
    %77 = tpu.matmul %74, %76, %cst_75 {dimension_numbers = #tpu.dot_dimension_numbers<[1], [0], [0], [1], [0, 0, 1, 1], [], []>} : vector<168x128xbf16>, vector<128x128xbf16>, vector<168x128xf32> -> vector<168x128xf32>
    %78 = arith.addf %71, %77 : vector<168x128xf32>
    %79 = vector.broadcast %14 : vector<1x128xf32> to vector<168x128xf32>
    %80 = arith.addf %78, %79 : vector<168x128xf32>
    %cst_76 = arith.constant 0.000000e+00 : f32
    %cst_77 = arith.constant 1.000000e+00 : f32
    %81 = vector.broadcast %cst_76 : f32 to vector<168x128xf32>
    %82 = arith.maximumf %81, %80 : vector<168x128xf32>
    %83 = vector.broadcast %cst_77 : f32 to vector<168x128xf32>
    %84 = arith.minimumf %83, %82 : vector<168x128xf32>
    %c0_78 = arith.constant 0 : index
    %c24_79 = arith.constant 24 : index
    %c0_80 = arith.constant 0 : index
    %85 = vector.load %arg5[%c0_78, %c24_79, %c0_80] : memref<1x368x128xf32, #tpu.memory_space<vmem>>, vector<1x168x128xf32>
    %86 = vector.shape_cast %85 : vector<1x168x128xf32> to vector<168x128xf32>
    %87 = vector.shape_cast %84 : vector<168x128xf32> to vector<1x168x128xf32>
    tpu.vector_store %arg5[%c0_78, %c24_79, %c0_80], %87 {strides = array<i32>} : memref<1x368x128xf32, #tpu.memory_space<vmem>>, vector<1x168x128xf32>,
    %cst_81 = arith.constant 0.000000e+00 : f32
    %88 = vector.broadcast %cst_81 : f32 to vector<156x128xf32>
    %c0_i32_82 = arith.constant 0 : i32
    %c0_i32_83 = arith.constant 0 : i32
    %c0_i32_84 = arith.constant 0 : i32
    %89 = tpu.memref_slice %arg6[%c0_i32_82, %c0_i32_83, %c0_i32_84] : memref<2x368x128xbf16, #tpu.memory_space<vmem>> -> memref<1x368x128xbf16, #tpu.memory_space<vmem>>
    %90 = tpu.memref_squeeze %89 : memref<1x368x128xbf16, #tpu.memory_space<vmem>> -> memref<368x128xbf16, #tpu.memory_space<vmem>>
    %c173 = arith.constant 173 : index
    %c0_85 = arith.constant 0 : index
    %91 = vector.load %90[%c173, %c0_85] : memref<368x128xbf16, #tpu.memory_space<vmem>>, vector<156x128xbf16>
    %c180_86 = arith.constant 180 : index
    %c0_87 = arith.constant 0 : index
    %c0_88 = arith.constant 0 : index
    %92 = vector.load %arg2[%c180_86, %c0_87, %c0_88] : memref<189x128x128xbf16, #tpu.memory_space<vmem>>, vector<1x128x128xbf16>
    %93 = vector.shape_cast %92 : vector<1x128x128xbf16> to vector<128x128xbf16>
    %cst_89 = arith.constant dense<0.000000e+00> : vector<156x128xf32>
    %94 = tpu.matmul %91, %93, %cst_89 {dimension_numbers = #tpu.dot_dimension_numbers<[1], [0], [0], [1], [0, 0, 1, 1], [], []>} : vector<156x128xbf16>, vector<128x128xbf16>, vector<156x128xf32> -> vector<156x128xf32>
    %95 = arith.addf %88, %94 : vector<156x128xf32>
    %c0_i32_90 = arith.constant 0 : i32
    %c0_i32_91 = arith.constant 0 : i32
    %c0_i32_92 = arith.constant 0 : i32
    %96 = tpu.memref_slice %arg6[%c0_i32_90, %c0_i32_91, %c0_i32_92] : memref<2x368x128xbf16, #tpu.memory_space<vmem>> -> memref<1x368x128xbf16, #tpu.memory_space<vmem>>
    %97 = tpu.memref_squeeze %96 : memref<1x368x128xbf16, #tpu.memory_space<vmem>> -> memref<368x128xbf16, #tpu.memory_space<vmem>>
    %c174 = arith.constant 174 : index
    %c0_93 = arith.constant 0 : index
    %98 = vector.load %97[%c174, %c0_93] : memref<368x128xbf16, #tpu.memory_space<vmem>>, vector<156x128xbf16>
    %c181_94 = arith.constant 181 : index
    %c0_95 = arith.constant 0 : index
    %c0_96 = arith.constant 0 : index
    %99 = vector.load %arg2[%c181_94, %c0_95, %c0_96] : memref<189x128x128xbf16, #tpu.memory_space<vmem>>, vector<1x128x128xbf16>
    %100 = vector.shape_cast %99 : vector<1x128x128xbf16> to vector<128x128xbf16>
    %cst_97 = arith.constant dense<0.000000e+00> : vector<156x128xf32>
    %101 = tpu.matmul %98, %100, %cst_97 {dimension_numbers = #tpu.dot_dimension_numbers<[1], [0], [0], [1], [0, 0, 1, 1], [], []>} : vector<156x128xbf16>, vector<128x128xbf16>, vector<156x128xf32> -> vector<156x128xf32>
    %102 = arith.addf %95, %101 : vector<156x128xf32>
    %c0_i32_98 = arith.constant 0 : i32
    %c0_i32_99 = arith.constant 0 : i32
    %c0_i32_100 = arith.constant 0 : i32
    %103 = tpu.memref_slice %arg6[%c0_i32_98, %c0_i32_99, %c0_i32_100] : memref<2x368x128xbf16, #tpu.memory_space<vmem>> -> memref<1x368x128xbf16, #tpu.memory_space<vmem>>
    %104 = tpu.memref_squeeze %103 : memref<1x368x128xbf16, #tpu.memory_space<vmem>> -> memref<368x128xbf16, #tpu.memory_space<vmem>>
    %c175 = arith.constant 175 : index
    %c0_101 = arith.constant 0 : index
    %105 = vector.load %104[%c175, %c0_101] : memref<368x128xbf16, #tpu.memory_space<vmem>>, vector<156x128xbf16>
    %c182_102 = arith.constant 182 : index
    %c0_103 = arith.constant 0 : index
    %c0_104 = arith.constant 0 : index
    %106 = vector.load %arg2[%c182_102, %c0_103, %c0_104] : memref<189x128x128xbf16, #tpu.memory_space<vmem>>, vector<1x128x128xbf16>
    %107 = vector.shape_cast %106 : vector<1x128x128xbf16> to vector<128x128xbf16>
    %cst_105 = arith.constant dense<0.000000e+00> : vector<156x128xf32>
    %108 = tpu.matmul %105, %107, %cst_105 {dimension_numbers = #tpu.dot_dimension_numbers<[1], [0], [0], [1], [0, 0, 1, 1], [], []>} : vector<156x128xbf16>, vector<128x128xbf16>, vector<156x128xf32> -> vector<156x128xf32>
    %109 = arith.addf %102, %108 : vector<156x128xf32>
    %c0_i32_106 = arith.constant 0 : i32
    %c0_i32_107 = arith.constant 0 : i32
    %c0_i32_108 = arith.constant 0 : i32
    %110 = tpu.memref_slice %arg6[%c0_i32_106, %c0_i32_107, %c0_i32_108] : memref<2x368x128xbf16, #tpu.memory_space<vmem>> -> memref<1x368x128xbf16, #tpu.memory_space<vmem>>
    %111 = tpu.memref_squeeze %110 : memref<1x368x128xbf16, #tpu.memory_space<vmem>> -> memref<368x128xbf16, #tpu.memory_space<vmem>>
    %c191 = arith.constant 191 : index
    %c0_109 = arith.constant 0 : index
    %112 = vector.load %111[%c191, %c0_109] : memref<368x128xbf16, #tpu.memory_space<vmem>>, vector<156x128xbf16>
    %c183_110 = arith.constant 183 : index
    %c0_111 = arith.constant 0 : index
    %c0_112 = arith.constant 0 : index
    %113 = vector.load %arg2[%c183_110, %c0_111, %c0_112] : memref<189x128x128xbf16, #tpu.memory_space<vmem>>, vector<1x128x128xbf16>
    %114 = vector.shape_cast %113 : vector<1x128x128xbf16> to vector<128x128xbf16>
    %cst_113 = arith.constant dense<0.000000e+00> : vector<156x128xf32>
    %115 = tpu.matmul %112, %114, %cst_113 {dimension_numbers = #tpu.dot_dimension_numbers<[1], [0], [0], [1], [0, 0, 1, 1], [], []>} : vector<156x128xbf16>, vector<128x128xbf16>, vector<156x128xf32> -> vector<156x128xf32>
    %116 = arith.addf %109, %115 : vector<156x128xf32>
    %c0_i32_114 = arith.constant 0 : i32
    %c0_i32_115 = arith.constant 0 : i32
    %c0_i32_116 = arith.constant 0 : i32
    %117 = tpu.memref_slice %arg6[%c0_i32_114, %c0_i32_115, %c0_i32_116] : memref<2x368x128xbf16, #tpu.memory_space<vmem>> -> memref<1x368x128xbf16, #tpu.memory_space<vmem>>
    %118 = tpu.memref_squeeze %117 : memref<1x368x128xbf16, #tpu.memory_space<vmem>> -> memref<368x128xbf16, #tpu.memory_space<vmem>>
    %c192 = arith.constant 192 : index
    %c0_117 = arith.constant 0 : index
    %119 = vector.load %118[%c192, %c0_117] : memref<368x128xbf16, #tpu.memory_space<vmem>>, vector<156x128xbf16>
    %c184_118 = arith.constant 184 : index
    %c0_119 = arith.constant 0 : index
    %c0_120 = arith.constant 0 : index
    %120 = vector.load %arg2[%c184_118, %c0_119, %c0_120] : memref<189x128x128xbf16, #tpu.memory_space<vmem>>, vector<1x128x128xbf16>
    %121 = vector.shape_cast %120 : vector<1x128x128xbf16> to vector<128x128xbf16>
    %cst_121 = arith.constant dense<0.000000e+00> : vector<156x128xf32>
    %122 = tpu.matmul %119, %121, %cst_121 {dimension_numbers = #tpu.dot_dimension_numbers<[1], [0], [0], [1], [0, 0, 1, 1], [], []>} : vector<156x128xbf16>, vector<128x128xbf16>, vector<156x128xf32> -> vector<156x128xf32>
    %123 = arith.addf %116, %122 : vector<156x128xf32>
    %c0_i32_122 = arith.constant 0 : i32
    %c0_i32_123 = arith.constant 0 : i32
    %c0_i32_124 = arith.constant 0 : i32
    %124 = tpu.memref_slice %arg6[%c0_i32_122, %c0_i32_123, %c0_i32_124] : memref<2x368x128xbf16, #tpu.memory_space<vmem>> -> memref<1x368x128xbf16, #tpu.memory_space<vmem>>
    %125 = tpu.memref_squeeze %124 : memref<1x368x128xbf16, #tpu.memory_space<vmem>> -> memref<368x128xbf16, #tpu.memory_space<vmem>>
    %c193 = arith.constant 193 : index
    %c0_125 = arith.constant 0 : index
    %126 = vector.load %125[%c193, %c0_125] : memref<368x128xbf16, #tpu.memory_space<vmem>>, vector<156x128xbf16>
    %c185_126 = arith.constant 185 : index
    %c0_127 = arith.constant 0 : index
    %c0_128 = arith.constant 0 : index
    %127 = vector.load %arg2[%c185_126, %c0_127, %c0_128] : memref<189x128x128xbf16, #tpu.memory_space<vmem>>, vector<1x128x128xbf16>
    %128 = vector.shape_cast %127 : vector<1x128x128xbf16> to vector<128x128xbf16>
    %cst_129 = arith.constant dense<0.000000e+00> : vector<156x128xf32>
    %129 = tpu.matmul %126, %128, %cst_129 {dimension_numbers = #tpu.dot_dimension_numbers<[1], [0], [0], [1], [0, 0, 1, 1], [], []>} : vector<156x128xbf16>, vector<128x128xbf16>, vector<156x128xf32> -> vector<156x128xf32>
    %130 = arith.addf %123, %129 : vector<156x128xf32>
    %c0_i32_130 = arith.constant 0 : i32
    %c0_i32_131 = arith.constant 0 : i32
    %c0_i32_132 = arith.constant 0 : i32
    %131 = tpu.memref_slice %arg6[%c0_i32_130, %c0_i32_131, %c0_i32_132] : memref<2x368x128xbf16, #tpu.memory_space<vmem>> -> memref<1x368x128xbf16, #tpu.memory_space<vmem>>
    %132 = tpu.memref_squeeze %131 : memref<1x368x128xbf16, #tpu.memory_space<vmem>> -> memref<368x128xbf16, #tpu.memory_space<vmem>>
    %c209 = arith.constant 209 : index
    %c0_133 = arith.constant 0 : index
    %133 = vector.load %132[%c209, %c0_133] : memref<368x128xbf16, #tpu.memory_space<vmem>>, vector<156x128xbf16>
    %c186_134 = arith.constant 186 : index
    %c0_135 = arith.constant 0 : index
    %c0_136 = arith.constant 0 : index
    %134 = vector.load %arg2[%c186_134, %c0_135, %c0_136] : memref<189x128x128xbf16, #tpu.memory_space<vmem>>, vector<1x128x128xbf16>
    %135 = vector.shape_cast %134 : vector<1x128x128xbf16> to vector<128x128xbf16>
    %cst_137 = arith.constant dense<0.000000e+00> : vector<156x128xf32>
    %136 = tpu.matmul %133, %135, %cst_137 {dimension_numbers = #tpu.dot_dimension_numbers<[1], [0], [0], [1], [0, 0, 1, 1], [], []>} : vector<156x128xbf16>, vector<128x128xbf16>, vector<156x128xf32> -> vector<156x128xf32>
    %137 = arith.addf %130, %136 : vector<156x128xf32>
    %c0_i32_138 = arith.constant 0 : i32
    %c0_i32_139 = arith.constant 0 : i32
    %c0_i32_140 = arith.constant 0 : i32
    %138 = tpu.memref_slice %arg6[%c0_i32_138, %c0_i32_139, %c0_i32_140] : memref<2x368x128xbf16, #tpu.memory_space<vmem>> -> memref<1x368x128xbf16, #tpu.memory_space<vmem>>
    %139 = tpu.memref_squeeze %138 : memref<1x368x128xbf16, #tpu.memory_space<vmem>> -> memref<368x128xbf16, #tpu.memory_space<vmem>>
    %c210 = arith.constant 210 : index
    %c0_141 = arith.constant 0 : index
    %140 = vector.load %139[%c210, %c0_141] : memref<368x128xbf16, #tpu.memory_space<vmem>>, vector<156x128xbf16>
    %c187_142 = arith.constant 187 : index
    %c0_143 = arith.constant 0 : index
    %c0_144 = arith.constant 0 : index
    %141 = vector.load %arg2[%c187_142, %c0_143, %c0_144] : memref<189x128x128xbf16, #tpu.memory_space<vmem>>, vector<1x128x128xbf16>
    %142 = vector.shape_cast %141 : vector<1x128x128xbf16> to vector<128x128xbf16>
    %cst_145 = arith.constant dense<0.000000e+00> : vector<156x128xf32>
    %143 = tpu.matmul %140, %142, %cst_145 {dimension_numbers = #tpu.dot_dimension_numbers<[1], [0], [0], [1], [0, 0, 1, 1], [], []>} : vector<156x128xbf16>, vector<128x128xbf16>, vector<156x128xf32> -> vector<156x128xf32>
    %144 = arith.addf %137, %143 : vector<156x128xf32>
    %c0_i32_146 = arith.constant 0 : i32
    %c0_i32_147 = arith.constant 0 : i32
    %c0_i32_148 = arith.constant 0 : i32
    %145 = tpu.memref_slice %arg6[%c0_i32_146, %c0_i32_147, %c0_i32_148] : memref<2x368x128xbf16, #tpu.memory_space<vmem>> -> memref<1x368x128xbf16, #tpu.memory_space<vmem>>
    %146 = tpu.memref_squeeze %145 : memref<1x368x128xbf16, #tpu.memory_space<vmem>> -> memref<368x128xbf16, #tpu.memory_space<vmem>>
    %c211 = arith.constant 211 : index
    %c0_149 = arith.constant 0 : index
    %147 = vector.load %146[%c211, %c0_149] : memref<368x128xbf16, #tpu.memory_space<vmem>>, vector<156x128xbf16>
    %c188_150 = arith.constant 188 : index
    %c0_151 = arith.constant 0 : index
    %c0_152 = arith.constant 0 : index
    %148 = vector.load %arg2[%c188_150, %c0_151, %c0_152] : memref<189x128x128xbf16, #tpu.memory_space<vmem>>, vector<1x128x128xbf16>
    %149 = vector.shape_cast %148 : vector<1x128x128xbf16> to vector<128x128xbf16>
    %cst_153 = arith.constant dense<0.000000e+00> : vector<156x128xf32>
    %150 = tpu.matmul %147, %149, %cst_153 {dimension_numbers = #tpu.dot_dimension_numbers<[1], [0], [0], [1], [0, 0, 1, 1], [], []>} : vector<156x128xbf16>, vector<128x128xbf16>, vector<156x128xf32> -> vector<156x128xf32>
    %151 = arith.addf %144, %150 : vector<156x128xf32>
    %152 = vector.broadcast %14 : vector<1x128xf32> to vector<156x128xf32>
    %153 = arith.addf %151, %152 : vector<156x128xf32>
    %cst_154 = arith.constant 0.000000e+00 : f32
    %cst_155 = arith.constant 1.000000e+00 : f32
    %154 = vector.broadcast %cst_154 : f32 to vector<156x128xf32>
    %155 = arith.maximumf %154, %153 : vector<156x128xf32>
    %156 = vector.broadcast %cst_155 : f32 to vector<156x128xf32>
    %157 = arith.minimumf %156, %155 : vector<156x128xf32>
    %c0_156 = arith.constant 0 : index
    %c192_157 = arith.constant 192 : index
    %c0_158 = arith.constant 0 : index
    %158 = vector.load %arg5[%c0_156, %c192_157, %c0_158] : memref<1x368x128xf32, #tpu.memory_space<vmem>>, vector<1x156x128xf32>
    %159 = vector.shape_cast %158 : vector<1x156x128xf32> to vector<156x128xf32>
    %160 = vector.shape_cast %157 : vector<156x128xf32> to vector<1x156x128xf32>
    tpu.vector_store %arg5[%c0_156, %c192_157, %c0_158], %160 {strides = array<i32>} : memref<1x368x128xf32, #tpu.memory_space<vmem>>, vector<1x156x128xf32>,
    return
  }
  func.func @transform_0(%arg0: i32) -> (i32, i32, i32) {
    %c0_i32 = arith.constant 0 : i32
    %c0_i32_0 = arith.constant 0 : i32
    %c0_i32_1 = arith.constant 0 : i32
    return %arg0, %c0_i32, %c0_i32_0 : i32, i32, i32
  }
  func.func @transform_1(%arg0: i32) -> (i32, i32, i32) {
    %c0_i32 = arith.constant 0 : i32
    %c0_i32_0 = arith.constant 0 : i32
    %c0_i32_1 = arith.constant 0 : i32
    %c0_i32_2 = arith.constant 0 : i32
    return %c0_i32, %c0_i32_0, %c0_i32_1 : i32, i32, i32
  }
  func.func @transform_2(%arg0: i32) -> (i32, i32) {
    %c0_i32 = arith.constant 0 : i32
    %c0_i32_0 = arith.constant 0 : i32
    %c0_i32_1 = arith.constant 0 : i32
    return %c0_i32, %c0_i32_0 : i32, i32
  }
  func.func @transform_3(%arg0: i32) -> (i32, i32) {
    %c0_i32 = arith.constant 0 : i32
    %c0_i32_0 = arith.constant 0 : i32
    %c0_i32_1 = arith.constant 0 : i32
    return %c0_i32, %c0_i32_0 : i32, i32
  }
  func.func @transform_4(%arg0: i32) -> (i32, i32, i32) {
    %c0_i32 = arith.constant 0 : i32
    %c0_i32_0 = arith.constant 0 : i32
    %c0_i32_1 = arith.constant 0 : i32
    return %arg0, %c0_i32, %c0_i32_0 : i32, i32, i32
  }
}

</mosaic_0001>

<llo_original>
// kernel: pathnet_forward.1
$region0: #{pathnet_forward.1}
  #allocation0 [shape = 'u32[]', space=smem, size = 0x4, offset = 0x4, fixed_abs, tag = 'smem constant byte address 0x4 - core index']
  #allocation1 [shape = 'u32[144,128]{1,0:T(1,128)}', space=vmem, size = 0x12000, scoped, tag = 'internal scratch']
  #allocation2 [shape = 'bf16[2,368,128]{2,1,0:T(8,128)(2,1)}', space=vmem, size = 0x2e000, scoped, tag = 'scratch operand']
  %s0 = inlined_call_operand.vmem [shape: bf16[1,368,128], index: 0, kind: input, shape index: {}]
  %s1 = inlined_call_operand.vmem [shape: bf16[189,128,128], index: 1, kind: input, shape index: {}]
  %s2 = inlined_call_operand.vmem [shape: f32[21,128], index: 2, kind: input, shape index: {}]
  %s3 = inlined_call_operand.vmem [shape: f32[368,1], index: 3, kind: input, shape index: {}]
  %s4 = inlined_call_operand.vmem [shape: f32[1,368,128], index: 4, kind: output, shape index: {}]
  %s5 = sld [smem:[#allocation0]]
  $region33: #{pathnet_forward.1} parent=0
    _
  %s7 = ssub.s32 1, %s5
  %s8 = scalar_select 0, %s7, %s5
  // Predicated region
  $region2: #{pathnet_forward.1} parent=0 // pred_check
    _
  $region3: #{pathnet_forward.1} parent=0 // pred_check_branch
    %10 = sbr.rel (0) target = $region5
  $region4: #{pathnet_forward.1} parent=0 // pred_region
    _
  $region5: #{pathnet_forward.1} parent=0 // pred_fallthru
    _
  // Predicated region
  $region6: #{pathnet_forward.1} parent=0 // pred_check
    _
  $region7: #{pathnet_forward.1} parent=0 // pred_check_branch
    %12 = sbr.rel (0) target = $region9
  $region8: #{pathnet_forward.1} parent=0 // pred_region
    _
  $region9: #{pathnet_forward.1} parent=0 // pred_fallthru
    _
  // Predicated region
  $region10: #{pathnet_forward.1} parent=0 // pred_check
    _
  $region11: #{pathnet_forward.1} parent=0 // pred_check_branch
    %14 = sbr.rel (0) target = $region13
  $region12: #{pathnet_forward.1} parent=0 // pred_region
    _
  $region13: #{pathnet_forward.1} parent=0 // pred_fallthru
    _
  // Predicated region
  $region14: #{pathnet_forward.1} parent=0 // pred_check
    _
  $region15: #{pathnet_forward.1} parent=0 // pred_check_branch
    %16 = sbr.rel (0) target = $region17
  $region16: #{pathnet_forward.1} parent=0 // pred_region
    _
  $region17: #{pathnet_forward.1} parent=0 // pred_fallthru
    _
  %v18 = vld [vmem:[%s0] sm:$0xf]
  %v19 = vld [vmem:[%s0 + $0x4] sm:$0xf]
  %v20 = vld [vmem:[%s0 + $0x8] sm:$0xf]
  %v21 = vld [vmem:[%s0 + $0xc] sm:$0xf]
  %v22 = vld [vmem:[%s0 + $0x10] sm:$0xf]
  %v23 = vld [vmem:[%s0 + $0x14] sm:$0xf]
  %v24 = vld [vmem:[%s0 + $0x18] sm:$0xf]
  %v25 = vld [vmem:[%s0 + $0x1c] sm:$0xf]
  %v26 = vld [vmem:[%s0 + $0x20] sm:$0xf]
  %v27 = vld [vmem:[%s0 + $0x24] sm:$0xf]
  %v28 = vld [vmem:[%s0 + $0x28] sm:$0xf]
  %v29 = vld [vmem:[%s0 + $0x2c] sm:$0xf]
  %v30 = vld [vmem:[%s0 + $0x30] sm:$0xf]
  %v31 = vld [vmem:[%s0 + $0x34] sm:$0xf]
  %v32 = vld [vmem:[%s0 + $0x38] sm:$0xf]
  %v33 = vld [vmem:[%s0 + $0x3c] sm:$0xf]
  %v34 = vld [vmem:[%s0 + $0x40] sm:$0xf]
  %v35 = vld [vmem:[%s0 + $0x44] sm:$0xf]
  %v36 = vld [vmem:[%s0 + $0x48] sm:$0xf]
  %v37 = vld [vmem:[%s0 + $0x4c] sm:$0xf]
  %v38 = vld [vmem:[%s0 + $0x50] sm:$0xf]
  %v39 = vld [vmem:[%s0 + $0x54] sm:$0xf]
  %v40 = vld [vmem:[%s0 + $0x58] sm:$0xf]
  %v41 = vld [vmem:[%s0 + $0x5c] sm:$0xf]
  %v42 = vld [vmem:[%s0 + $0x60] sm:$0xf]
  %v43 = vld [vmem:[%s0 + $0x64] sm:$0xf]
  %v44 = vld [vmem:[%s0 + $0x68] sm:$0xf]
  %v45 = vld [vmem:[%s0 + $0x6c] sm:$0xf]
  %v46 = vld [vmem:[%s0 + $0x70] sm:$0xf]
  %v47 = vld [vmem:[%s0 + $0x74] sm:$0xf]
  %v48 = vld [vmem:[%s0 + $0x78] sm:$0xf]
  %v49 = vld [vmem:[%s0 + $0x7c] sm:$0xf]
  %v50 = vld [vmem:[%s0 + $0x80] sm:$0xf]
  %v51 = vld [vmem:[%s0 + $0x84] sm:$0xf]
  %v52 = vld [vmem:[%s0 + $0x88] sm:$0xf]
  %v53 = vld [vmem:[%s0 + $0x8c] sm:$0xf]
  %v54 = vld [vmem:[%s0 + $0x90] sm:$0xf]
  %v55 = vld [vmem:[%s0 + $0x94] sm:$0xf]
  %v56 = vld [vmem:[%s0 + $0x98] sm:$0xf]
  %v57 = vld [vmem:[%s0 + $0x9c] sm:$0xf]
  %v58 = vld [vmem:[%s0 + $0xa0] sm:$0xf]
  %v59 = vld [vmem:[%s0 + $0xa4] sm:$0xf]
  %v60 = vld [vmem:[%s0 + $0xa8] sm:$0xf]
  %v61 = vld [vmem:[%s0 + $0xac] sm:$0xf]
  %v62 = vld [vmem:[%s0 + $0xb0] sm:$0xf]
  %v63 = vld [vmem:[%s0 + $0xb4] sm:$0xf]
  %64 = vst [vmem:[#allocation2] sm:$0xf] %v18
  %65 = vst [vmem:[#allocation2 + $0x4] sm:$0xf] %v19
  %66 = vst [vmem:[#allocation2 + $0x8] sm:$0xf] %v20
  %67 = vst [vmem:[#allocation2 + $0xc] sm:$0xf] %v21
  %68 = vst [vmem:[#allocation2 + $0x10] sm:$0xf] %v22
  %69 = vst [vmem:[#allocation2 + $0x14] sm:$0xf] %v23
  %70 = vst [vmem:[#allocation2 + $0x18] sm:$0xf] %v24
  %71 = vst [vmem:[#allocation2 + $0x1c] sm:$0xf] %v25
  %72 = vst [vmem:[#allocation2 + $0x20] sm:$0xf] %v26
  %73 = vst [vmem:[#allocation2 + $0x24] sm:$0xf] %v27
  %74 = vst [vmem:[#allocation2 + $0x28] sm:$0xf] %v28
  %75 = vst [vmem:[#allocation2 + $0x2c] sm:$0xf] %v29
  %76 = vst [vmem:[#allocation2 + $0x30] sm:$0xf] %v30
  %77 = vst [vmem:[#allocation2 + $0x34] sm:$0xf] %v31
  %78 = vst [vmem:[#allocation2 + $0x38] sm:$0xf] %v32
  %79 = vst [vmem:[#allocation2 + $0x3c] sm:$0xf] %v33
  %80 = vst [vmem:[#allocation2 + $0x40] sm:$0xf] %v34
  %81 = vst [vmem:[#allocation2 + $0x44] sm:$0xf] %v35
  %82 = vst [vmem:[#allocation2 + $0x48] sm:$0xf] %v36
  %83 = vst [vmem:[#allocation2 + $0x4c] sm:$0xf] %v37
  %84 = vst [vmem:[#allocation2 + $0x50] sm:$0xf] %v38
  %85 = vst [vmem:[#allocation2 + $0x54] sm:$0xf] %v39
  %86 = vst [vmem:[#allocation2 + $0x58] sm:$0xf] %v40
  %87 = vst [vmem:[#allocation2 + $0x5c] sm:$0xf] %v41
  %88 = vst [vmem:[#allocation2 + $0x60] sm:$0xf] %v42
  %89 = vst [vmem:[#allocation2 + $0x64] sm:$0xf] %v43
  %90 = vst [vmem:[#allocation2 + $0x68] sm:$0xf] %v44
  %91 = vst [vmem:[#allocation2 + $0x6c] sm:$0xf] %v45
  %92 = vst [vmem:[#allocation2 + $0x70] sm:$0xf] %v46
  %93 = vst [vmem:[#allocation2 + $0x74] sm:$0xf] %v47
  %94 = vst [vmem:[#allocation2 + $0x78] sm:$0xf] %v48
  %95 = vst [vmem:[#allocation2 + $0x7c] sm:$0xf] %v49
  %96 = vst [vmem:[#allocation2 + $0x80] sm:$0xf] %v50
  %97 = vst [vmem:[#allocation2 + $0x84] sm:$0xf] %v51
  %98 = vst [vmem:[#allocation2 + $0x88] sm:$0xf] %v52
  %99 = vst [vmem:[#allocation2 + $0x8c] sm:$0xf] %v53
  %100 = vst [vmem:[#allocation2 + $0x90] sm:$0xf] %v54
  %101 = vst [vmem:[#allocation2 + $0x94] sm:$0xf] %v55
  %102 = vst [vmem:[#allocation2 + $0x98] sm:$0xf] %v56
  %103 = vst [vmem:[#allocation2 + $0x9c] sm:$0xf] %v57
  %104 = vst [vmem:[#allocation2 + $0xa0] sm:$0xf] %v58
  %105 = vst [vmem:[#allocation2 + $0xa4] sm:$0xf] %v59
  %106 = vst [vmem:[#allocation2 + $0xa8] sm:$0xf] %v60
  %107 = vst [vmem:[#allocation2 + $0xac] sm:$0xf] %v61
  %108 = vst [vmem:[#allocation2 + $0xb0] sm:$0xf] %v62
  %109 = vst [vmem:[#allocation2 + $0xb4] sm:$0xf] %v63
  %s110 = scalar_lea.vmem [#allocation2], 184
  %111 = vst [vmem:[%s110] sm:$0xf] 0
  %112 = vst [vmem:[%s110 + $0x4] sm:$0xf] 0
  %113 = vst [vmem:[%s110 + $0x8] sm:$0xf] 0
  %114 = vst [vmem:[%s110 + $0xac] sm:$0xc] 0
  %115 = vst [vmem:[%s110 + $0xb0] sm:$0xf] 0
  %116 = vst [vmem:[%s110 + $0xb4] sm:$0xf] 0
  loop: start=0, step=1, limit=20
  $region18: #{pathnet_forward.1} parent=0 // loop_pre_header
    _
  $region19: #{pathnet_forward.1} parent=0 // loop_header
    %s118 = sphi 0, %s122
    %p119 = scmp.ge.s32.totalorder %s118, 20
  $region20: #{pathnet_forward.1} parent=0 // loop_header_branch
    %121 = sbr.rel (%p119) target = $region24
  $region21: #{pathnet_forward.1} parent=0 // loop_body
    %p123 = scmp.lt.s32.totalorder %s118, 0
    %s124 = ssub.s32 0, %s118
    %s125 = scalar_select %p123, %s124, %s118
    %s126 = sand.u32 %s125, 1
    %s127 = ssub.s32 0, %s126
    %s128 = scalar_select %p123, %s127, %s126
    %s129 = ssub.s32 1, %s128
    %s130 = scalar_lea.vmem %s2, %s118
    %v131 = vld [vmem:[%s130] sm:$0x1]
    %s132 = smul.u32 %s118, 9
    %s133 = smul.u32 %s128, 46
    %s134 = smul.addr %s133, 4
    %s135 = scalar_lea.vmem [#allocation2], %s134
    %v136 = vld [vmem:[%s135] sm:$0xc]
    %v137 = vld [vmem:[%s135 + $0x4] sm:$0xf]
    %v138 = vld [vmem:[%s135 + $0x8] sm:$0xf]
    %v139 = vld [vmem:[%s135 + $0xc] sm:$0xf]
    %v140 = vld [vmem:[%s135 + $0x10] sm:$0xf]
    %v141 = vld [vmem:[%s135 + $0x14] sm:$0xf]
    %v142 = vld [vmem:[%s135 + $0x18] sm:$0xf]
    %v143 = vld [vmem:[%s135 + $0x1c] sm:$0xf]
    %v144 = vld [vmem:[%s135 + $0x20] sm:$0xf]
    %v145 = vld [vmem:[%s135 + $0x24] sm:$0xf]
    %v146 = vld [vmem:[%s135 + $0x28] sm:$0xf]
    %v147 = vld [vmem:[%s135 + $0x2c] sm:$0xf]
    %v148 = vld [vmem:[%s135 + $0x30] sm:$0xf]
    %v149 = vld [vmem:[%s135 + $0x34] sm:$0xf]
    %v150 = vld [vmem:[%s135 + $0x38] sm:$0xf]
    %v151 = vld [vmem:[%s135 + $0x3c] sm:$0xf]
    %v152 = vld [vmem:[%s135 + $0x40] sm:$0xf]
    %v153 = vld [vmem:[%s135 + $0x44] sm:$0xf]
    %v154 = vld [vmem:[%s135 + $0x48] sm:$0xf]
    %v155 = vld [vmem:[%s135 + $0x4c] sm:$0xf]
    %v156 = vld [vmem:[%s135 + $0x50] sm:$0xf]
    %v157 = vld [vmem:[%s135 + $0x54] sm:$0x7]
    %s158 = smul.u32 %s132, 16
    %s159 = smul.addr %s158, 4
    %s160 = scalar_lea.vmem %s1, %s159
    %v161 = vld [vmem:[%s160] sm:$0xf]
    %v162 = vld [vmem:[%s160 + $0x4] sm:$0xf]
    %v163 = vld [vmem:[%s160 + $0x8] sm:$0xf]
    %v164 = vld [vmem:[%s160 + $0xc] sm:$0xf]
    %v165 = vld [vmem:[%s160 + $0x10] sm:$0xf]
    %v166 = vld [vmem:[%s160 + $0x14] sm:$0xf]
    %v167 = vld [vmem:[%s160 + $0x18] sm:$0xf]
    %v168 = vld [vmem:[%s160 + $0x1c] sm:$0xf]
    %v169 = vld [vmem:[%s160 + $0x20] sm:$0xf]
    %v170 = vld [vmem:[%s160 + $0x24] sm:$0xf]
    %v171 = vld [vmem:[%s160 + $0x28] sm:$0xf]
    %v172 = vld [vmem:[%s160 + $0x2c] sm:$0xf]
    %v173 = vld [vmem:[%s160 + $0x30] sm:$0xf]
    %v174 = vld [vmem:[%s160 + $0x34] sm:$0xf]
    %v175 = vld [vmem:[%s160 + $0x38] sm:$0xf]
    %v176 = vld [vmem:[%s160 + $0x3c] sm:$0xf]
    %v177 = vld [vmem:[%s135] sm:$0x8]
    %s178 = sadd.s32 %s132, 1
    %s179 = smul.u32 %s178, 16
    %s180 = smul.addr %s179, 4
    %s181 = scalar_lea.vmem %s1, %s180
    %v182 = vld [vmem:[%s181] sm:$0xf]
    %v183 = vld [vmem:[%s181 + $0x4] sm:$0xf]
    %v184 = vld [vmem:[%s181 + $0x8] sm:$0xf]
    %v185 = vld [vmem:[%s181 + $0xc] sm:$0xf]
    %v186 = vld [vmem:[%s181 + $0x10] sm:$0xf]
    %v187 = vld [vmem:[%s181 + $0x14] sm:$0xf]
    %v188 = vld [vmem:[%s181 + $0x18] sm:$0xf]
    %v189 = vld [vmem:[%s181 + $0x1c] sm:$0xf]
    %v190 = vld [vmem:[%s181 + $0x20] sm:$0xf]
    %v191 = vld [vmem:[%s181 + $0x24] sm:$0xf]
    %v192 = vld [vmem:[%s181 + $0x28] sm:$0xf]
    %v193 = vld [vmem:[%s181 + $0x2c] sm:$0xf]
    %v194 = vld [vmem:[%s181 + $0x30] sm:$0xf]
    %v195 = vld [vmem:[%s181 + $0x34] sm:$0xf]
    %v196 = vld [vmem:[%s181 + $0x38] sm:$0xf]
    %v197 = vld [vmem:[%s181 + $0x3c] sm:$0xf]
    %v220 = vunpack.c.l.b16 %v177
    %v221 = vunpack.c.l.b16 %v137
    %v222 = vunpack.c.l.b16 %v138
    %v223 = vunpack.c.l.b16 %v139
    %v224 = vunpack.c.l.b16 %v140
    %v225 = vunpack.c.l.b16 %v141
    %v226 = vunpack.c.l.b16 %v142
    %v227 = vunpack.c.l.b16 %v143
    %v228 = vunpack.c.l.b16 %v144
    %v229 = vunpack.c.l.b16 %v145
    %v230 = vunpack.c.l.b16 %v146
    %v231 = vunpack.c.l.b16 %v147
    %v232 = vunpack.c.l.b16 %v148
    %v233 = vunpack.c.l.b16 %v149
    %v234 = vunpack.c.l.b16 %v150
    %v235 = vunpack.c.l.b16 %v151
    %v236 = vunpack.c.l.b16 %v152
    %v237 = vunpack.c.l.b16 %v153
    %v238 = vunpack.c.l.b16 %v154
    %v239 = vunpack.c.l.b16 %v155
    %v240 = vunpack.c.l.b16 %v156
    %v241 = vunpack.c.l.b16 %v157
    %v242 = vpack.c.b16 %v221, %v220
    %v243 = vpack.c.b16 %v223, %v222
    %v244 = vpack.c.b16 %v225, %v224
    %v245 = vpack.c.b16 %v227, %v226
    %v246 = vpack.c.b16 %v229, %v228
    %v247 = vpack.c.b16 %v231, %v230
    %v248 = vpack.c.b16 %v233, %v232
    %v249 = vpack.c.b16 %v235, %v234
    %v250 = vpack.c.b16 %v237, %v236
    %v251 = vpack.c.b16 %v239, %v238
    %v252 = vpack.c.b16 %v241, %v240
    %vm253 = vcmask 1044480
    %v254 = vrot.slane %v242, 3
    %v255 = vrot.slane %v243, 3
    %v256 = vsel %vm253, %v254, %v255
    %v257 = vrot.slane %v244, 3
    %v258 = vsel %vm253, %v255, %v257
    %v259 = vrot.slane %v245, 3
    %v260 = vsel %vm253, %v257, %v259
    %v261 = vrot.slane %v246, 3
    %v262 = vsel %vm253, %v259, %v261
    %v263 = vrot.slane %v247, 3
    %v264 = vsel %vm253, %v261, %v263
    %v265 = vrot.slane %v248, 3
    %v266 = vsel %vm253, %v263, %v265
    %v267 = vrot.slane %v249, 3
    %v268 = vsel %vm253, %v265, %v267
    %v269 = vrot.slane %v250, 3
    %v270 = vsel %vm253, %v267, %v269
    %v271 = vrot.slane %v251, 3
    %v272 = vsel %vm253, %v269, %v271
    %v273 = vrot.slane %v252, 3
    %v274 = vsel %vm253, %v271, %v273
    %v302 = vunpack.c.l.b16 %v182
    %v303 = vunpack.c.l.b16 %v183
    %v304 = vunpack.c.l.b16 %v184
    %v305 = vunpack.c.l.b16 %v185
    %v306 = vunpack.c.l.b16 %v186
    %v307 = vunpack.c.l.b16 %v187
    %v308 = vunpack.c.l.b16 %v188
    %v309 = vunpack.c.l.b16 %v189
    %v310 = vunpack.c.l.b16 %v190
    %v311 = vunpack.c.l.b16 %v191
    %v312 = vunpack.c.l.b16 %v192
    %v313 = vunpack.c.l.b16 %v193
    %v314 = vunpack.c.l.b16 %v194
    %v315 = vunpack.c.l.b16 %v195
    %v316 = vunpack.c.l.b16 %v196
    %v317 = vunpack.c.l.b16 %v197
    %v318 = vpack.c.b16 %v303, %v302
    %v319 = vpack.c.b16 %v305, %v304
    %v320 = vpack.c.b16 %v307, %v306
    %v321 = vpack.c.b16 %v309, %v308
    %v322 = vpack.c.b16 %v311, %v310
    %v323 = vpack.c.b16 %v313, %v312
    %v324 = vpack.c.b16 %v315, %v314
    %v325 = vpack.c.b16 %v317, %v316
    %334 = vmatprep.subr.bf16.mxu0 0
    %335 = vmatpush1.bf16.msra.mxu0 %v325
    %336 = vmatprep.subr.bf16.mxu0 0
    %337 = vmatpush1.bf16.msra.mxu0 %v324
    %338 = vmatprep.subr.bf16.mxu0 0
    %339 = vmatpush1.bf16.msra.mxu0 %v323
    %340 = vmatprep.subr.bf16.mxu0 0
    %341 = vmatpush1.bf16.msra.mxu0 %v322
    %342 = vmatprep.subr.bf16.mxu0 0
    %343 = vmatpush1.bf16.msra.mxu0 %v321
    %344 = vmatprep.subr.bf16.mxu0 0
    %345 = vmatpush1.bf16.msra.mxu0 %v320
    %346 = vmatprep.subr.bf16.mxu0 0
    %347 = vmatpush1.bf16.msra.mxu0 %v319
    %348 = vmatprep.subr.bf16.mxu0 0
    %349 = vmatpush1.bf16.msra.mxu0 %v318
    %350 = vmatprep.subr.bf16.mxu0 0
    %351 = vmatpush2.bf16.msra.mxu0 0
    %352 = vmatprep.subr.bf16.mxu0 0
    %353 = vmatpush2.bf16.msra.mxu0 0
    %354 = vmatprep.subr.bf16.mxu0 0
    %355 = vmatpush2.bf16.msra.mxu0 0
    %356 = vmatprep.subr.bf16.mxu0 0
    %357 = vmatpush2.bf16.msra.mxu0 0
    %358 = vmatprep.subr.bf16.mxu0 0
    %359 = vmatpush2.bf16.msra.mxu0 0
    %360 = vmatprep.subr.bf16.mxu0 0
    %361 = vmatpush2.bf16.msra.mxu0 0
    %362 = vmatprep.subr.bf16.mxu0 0
    %363 = vmatpush2.bf16.msra.mxu0 0
    %364 = vmatprep.subr.bf16.mxu0 0
    %365 = vmatpush2.bf16.msra.mxu0 0
    %366 = vmatprep.mubr.bf16.mxu0 0
    %367 = vmatmul.mubr.bf16.gmra.mxu0 %v256
    %v368 = vpop.f32.mrf.mxu0
    %v369 = vadd.f32 0.0, %v368
    %v370 = vpop.f32.mrf.mxu0
    %v371 = vpop.f32.mrf.mxu0
    %v372 = vadd.f32 0.0, %v371
    %v373 = vpop.f32.mrf.mxu0
    %374 = vmatprep.mubr.bf16.mxu0 0
    %375 = vmatmul.mubr.bf16.gmra.mxu0 %v258
    %v376 = vpop.f32.mrf.mxu0
    %v377 = vadd.f32 0.0, %v376
    %v378 = vpop.f32.mrf.mxu0
    %v379 = vpop.f32.mrf.mxu0
    %v380 = vadd.f32 0.0, %v379
    %v381 = vpop.f32.mrf.mxu0
    %382 = vmatprep.mubr.bf16.mxu0 0
    %383 = vmatmul.mubr.bf16.gmra.mxu0 %v260
    %v384 = vpop.f32.mrf.mxu0
    %v385 = vadd.f32 0.0, %v384
    %v386 = vpop.f32.mrf.mxu0
    %v387 = vpop.f32.mrf.mxu0
    %v388 = vadd.f32 0.0, %v387
    %v389 = vpop.f32.mrf.mxu0
    %390 = vmatprep.mubr.bf16.mxu0 0
    %391 = vmatmul.mubr.bf16.gmra.mxu0 %v262
    %v392 = vpop.f32.mrf.mxu0
    %v393 = vadd.f32 0.0, %v392
    %v394 = vpop.f32.mrf.mxu0
    %v395 = vpop.f32.mrf.mxu0
    %v396 = vadd.f32 0.0, %v395
    %v397 = vpop.f32.mrf.mxu0
    %398 = vmatprep.mubr.bf16.mxu0 0
    %399 = vmatmul.mubr.bf16.gmra.mxu0 %v264
    %v400 = vpop.f32.mrf.mxu0
    %v401 = vadd.f32 0.0, %v400
    %v402 = vpop.f32.mrf.mxu0
    %v403 = vpop.f32.mrf.mxu0
    %v404 = vadd.f32 0.0, %v403
    %v405 = vpop.f32.mrf.mxu0
    %406 = vmatprep.mubr.bf16.mxu0 0
    %407 = vmatmul.mubr.bf16.gmra.mxu0 %v266
    %v408 = vpop.f32.mrf.mxu0
    %v409 = vadd.f32 0.0, %v408
    %v410 = vpop.f32.mrf.mxu0
    %v411 = vpop.f32.mrf.mxu0
    %v412 = vadd.f32 0.0, %v411
    %v413 = vpop.f32.mrf.mxu0
    %414 = vmatprep.mubr.bf16.mxu0 0
    %415 = vmatmul.mubr.bf16.gmra.mxu0 %v268
    %v416 = vpop.f32.mrf.mxu0
    %v417 = vadd.f32 0.0, %v416
    %v418 = vpop.f32.mrf.mxu0
    %v419 = vpop.f32.mrf.mxu0
    %v420 = vadd.f32 0.0, %v419
    %v421 = vpop.f32.mrf.mxu0
    %422 = vmatprep.mubr.bf16.mxu0 0
    %423 = vmatmul.mubr.bf16.gmra.mxu0 %v270
    %v424 = vpop.f32.mrf.mxu0
    %v425 = vadd.f32 0.0, %v424
    %v426 = vpop.f32.mrf.mxu0
    %v427 = vpop.f32.mrf.mxu0
    %v428 = vadd.f32 0.0, %v427
    %v429 = vpop.f32.mrf.mxu0
    %430 = vmatprep.mubr.bf16.mxu0 0
    %431 = vmatmul.mubr.bf16.gmra.mxu0 %v272
    %v432 = vpop.f32.mrf.mxu0
    %v433 = vadd.f32 0.0, %v432
    %v434 = vpop.f32.mrf.mxu0
    %v435 = vpop.f32.mrf.mxu0
    %v436 = vadd.f32 0.0, %v435
    %v437 = vpop.f32.mrf.mxu0
    %438 = vmatprep.mubr.bf16.mxu0 0
    %439 = vmatmul.mubr.bf16.gmra.mxu0 %v274
    %v440 = vpop.f32.mrf.mxu0
    %v441 = vadd.f32 0.0, %v440
    %v442 = vpop.f32.mrf.mxu0
    %v443 = vpop.f32.mrf.mxu0
    %v444 = vadd.f32 0.0, %v443
    %v445 = vpop.f32.mrf.mxu0
    %446 = vmatprep.mubr.bf16.mxu0 0
    %447 = vmatmul.mubr.bf16.gmra.mxu0 %v273
    %v448 = vpop.f32.mrf.mxu0
    %v449 = vadd.f32 0.0, %v448
    %v450 = vpop.f32.mrf.mxu0
    %v451 = vpop.f32.mrf.mxu0
    %v452 = vpop.f32.mrf.mxu0
    %453 = vdwg.mxu0
    %v455 = vunpack.c.l.b16 %v136
    %v456 = vpack.c.b16 %v221, %v455
    %vm457 = vsmask.f32 5376
    %v459 = vshrl.u32 %v456, 16
    %v461 = vrot.slane %v459, 2
    %v462 = vshll.u32 %v456, 16
    %v464 = vrot.slane %v462, 3
    %v465 = vor.u32 %v461, %v464
    %v467 = vshrl.u32 %v243, 16
    %v469 = vrot.slane %v467, 2
    %v470 = vshll.u32 %v243, 16
    %v472 = vrot.slane %v470, 3
    %v473 = vor.u32 %v469, %v472
    %v474 = vsel %vm457, %v465, %v473
    %v476 = vshrl.u32 %v244, 16
    %v478 = vrot.slane %v476, 2
    %v479 = vshll.u32 %v244, 16
    %v481 = vrot.slane %v479, 3
    %v482 = vor.u32 %v478, %v481
    %v483 = vsel %vm457, %v473, %v482
    %v485 = vshrl.u32 %v245, 16
    %v487 = vrot.slane %v485, 2
    %v488 = vshll.u32 %v245, 16
    %v490 = vrot.slane %v488, 3
    %v491 = vor.u32 %v487, %v490
    %v492 = vsel %vm457, %v482, %v491
    %v494 = vshrl.u32 %v246, 16
    %v496 = vrot.slane %v494, 2
    %v497 = vshll.u32 %v246, 16
    %v499 = vrot.slane %v497, 3
    %v500 = vor.u32 %v496, %v499
    %v501 = vsel %vm457, %v491, %v500
    %v503 = vshrl.u32 %v247, 16
    %v505 = vrot.slane %v503, 2
    %v506 = vshll.u32 %v247, 16
    %v508 = vrot.slane %v506, 3
    %v509 = vor.u32 %v505, %v508
    %v510 = vsel %vm457, %v500, %v509
    %v512 = vshrl.u32 %v248, 16
    %v514 = vrot.slane %v512, 2
    %v515 = vshll.u32 %v248, 16
    %v517 = vrot.slane %v515, 3
    %v518 = vor.u32 %v514, %v517
    %v519 = vsel %vm457, %v509, %v518
    %v521 = vshrl.u32 %v249, 16
    %v523 = vrot.slane %v521, 2
    %v524 = vshll.u32 %v249, 16
    %v526 = vrot.slane %v524, 3
    %v527 = vor.u32 %v523, %v526
    %v528 = vsel %vm457, %v518, %v527
    %v530 = vshrl.u32 %v250, 16
    %v532 = vrot.slane %v530, 2
    %v533 = vshll.u32 %v250, 16
    %v535 = vrot.slane %v533, 3
    %v536 = vor.u32 %v532, %v535
    %v537 = vsel %vm457, %v527, %v536
    %v539 = vshrl.u32 %v251, 16
    %v541 = vrot.slane %v539, 2
    %v542 = vshll.u32 %v251, 16
    %v544 = vrot.slane %v542, 3
    %v545 = vor.u32 %v541, %v544
    %v546 = vsel %vm457, %v536, %v545
    %v548 = vshrl.u32 %v252, 16
    %v550 = vrot.slane %v548, 2
    %v551 = vshll.u32 %v252, 16
    %v553 = vrot.slane %v551, 3
    %v554 = vor.u32 %v550, %v553
    %v555 = vsel %vm457, %v545, %v554
    %v583 = vunpack.c.l.b16 %v161
    %v584 = vunpack.c.l.b16 %v162
    %v585 = vunpack.c.l.b16 %v163
    %v586 = vunpack.c.l.b16 %v164
    %v587 = vunpack.c.l.b16 %v165
    %v588 = vunpack.c.l.b16 %v166
    %v589 = vunpack.c.l.b16 %v167
    %v590 = vunpack.c.l.b16 %v168
    %v591 = vunpack.c.l.b16 %v169
    %v592 = vunpack.c.l.b16 %v170
    %v593 = vunpack.c.l.b16 %v171
    %v594 = vunpack.c.l.b16 %v172
    %v595 = vunpack.c.l.b16 %v173
    %v596 = vunpack.c.l.b16 %v174
    %v597 = vunpack.c.l.b16 %v175
    %v598 = vunpack.c.l.b16 %v176
    %v599 = vpack.c.b16 %v584, %v583
    %v600 = vpack.c.b16 %v586, %v585
    %v601 = vpack.c.b16 %v588, %v587
    %v602 = vpack.c.b16 %v590, %v589
    %v603 = vpack.c.b16 %v592, %v591
    %v604 = vpack.c.b16 %v594, %v593
    %v605 = vpack.c.b16 %v596, %v595
    %v606 = vpack.c.b16 %v598, %v597
    %615 = vmatprep.subr.bf16.mxu0 0
    %616 = vmatpush1.bf16.msra.mxu0 %v606
    %617 = vmatprep.subr.bf16.mxu0 0
    %618 = vmatpush1.bf16.msra.mxu0 %v605
    %619 = vmatprep.subr.bf16.mxu0 0
    %620 = vmatpush1.bf16.msra.mxu0 %v604
    %621 = vmatprep.subr.bf16.mxu0 0
    %622 = vmatpush1.bf16.msra.mxu0 %v603
    %623 = vmatprep.subr.bf16.mxu0 0
    %624 = vmatpush1.bf16.msra.mxu0 %v602
    %625 = vmatprep.subr.bf16.mxu0 0
    %626 = vmatpush1.bf16.msra.mxu0 %v601
    %627 = vmatprep.subr.bf16.mxu0 0
    %628 = vmatpush1.bf16.msra.mxu0 %v600
    %629 = vmatprep.subr.bf16.mxu0 0
    %630 = vmatpush1.bf16.msra.mxu0 %v599
    %631 = vmatprep.subr.bf16.mxu0 0
    %632 = vmatpush2.bf16.msra.mxu0 0
    %633 = vmatprep.subr.bf16.mxu0 0
    %634 = vmatpush2.bf16.msra.mxu0 0
    %635 = vmatprep.subr.bf16.mxu0 0
    %636 = vmatpush2.bf16.msra.mxu0 0
    %637 = vmatprep.subr.bf16.mxu0 0
    %638 = vmatpush2.bf16.msra.mxu0 0
    %639 = vmatprep.subr.bf16.mxu0 0
    %640 = vmatpush2.bf16.msra.mxu0 0
    %641 = vmatprep.subr.bf16.mxu0 0
    %642 = vmatpush2.bf16.msra.mxu0 0
    %643 = vmatprep.subr.bf16.mxu0 0
    %644 = vmatpush2.bf16.msra.mxu0 0
    %645 = vmatprep.subr.bf16.mxu0 0
    %646 = vmatpush2.bf16.msra.mxu0 0
    %647 = vmatprep.mubr.bf16.mxu0 0
    %648 = vmatmul.mubr.bf16.gmra.mxu0 %v474
    %v649 = vpop.f32.mrf.mxu0
    %v650 = vadd.f32 %v369, %v649
    %v651 = vpop.f32.mrf.mxu0
    %v652 = vpop.f32.mrf.mxu0
    %v653 = vadd.f32 %v372, %v652
    %v654 = vpop.f32.mrf.mxu0
    %655 = vmatprep.mubr.bf16.mxu0 0
    %656 = vmatmul.mubr.bf16.gmra.mxu0 %v483
    %v657 = vpop.f32.mrf.mxu0
    %v658 = vadd.f32 %v377, %v657
    %v659 = vpop.f32.mrf.mxu0
    %v660 = vpop.f32.mrf.mxu0
    %v661 = vadd.f32 %v380, %v660
    %v662 = vpop.f32.mrf.mxu0
    %663 = vmatprep.mubr.bf16.mxu0 0
    %664 = vmatmul.mubr.bf16.gmra.mxu0 %v492
    %v665 = vpop.f32.mrf.mxu0
    %v666 = vadd.f32 %v385, %v665
    %v667 = vpop.f32.mrf.mxu0
    %v668 = vpop.f32.mrf.mxu0
    %v669 = vadd.f32 %v388, %v668
    %v670 = vpop.f32.mrf.mxu0
    %671 = vmatprep.mubr.bf16.mxu0 0
    %672 = vmatmul.mubr.bf16.gmra.mxu0 %v501
    %v673 = vpop.f32.mrf.mxu0
    %v674 = vadd.f32 %v393, %v673
    %v675 = vpop.f32.mrf.mxu0
    %v676 = vpop.f32.mrf.mxu0
    %v677 = vadd.f32 %v396, %v676
    %v678 = vpop.f32.mrf.mxu0
    %679 = vmatprep.mubr.bf16.mxu0 0
    %680 = vmatmul.mubr.bf16.gmra.mxu0 %v510
    %v681 = vpop.f32.mrf.mxu0
    %v682 = vadd.f32 %v401, %v681
    %v683 = vpop.f32.mrf.mxu0
    %v684 = vpop.f32.mrf.mxu0
    %v685 = vadd.f32 %v404, %v684
    %v686 = vpop.f32.mrf.mxu0
    %687 = vmatprep.mubr.bf16.mxu0 0
    %688 = vmatmul.mubr.bf16.gmra.mxu0 %v519
    %v689 = vpop.f32.mrf.mxu0
    %v690 = vadd.f32 %v409, %v689
    %v691 = vpop.f32.mrf.mxu0
    %v692 = vpop.f32.mrf.mxu0
    %v693 = vadd.f32 %v412, %v692
    %v694 = vpop.f32.mrf.mxu0
    %695 = vmatprep.mubr.bf16.mxu0 0
    %696 = vmatmul.mubr.bf16.gmra.mxu0 %v528
    %v697 = vpop.f32.mrf.mxu0
    %v698 = vadd.f32 %v417, %v697
    %v699 = vpop.f32.mrf.mxu0
    %v700 = vpop.f32.mrf.mxu0
    %v701 = vadd.f32 %v420, %v700
    %v702 = vpop.f32.mrf.mxu0
    %703 = vmatprep.mubr.bf16.mxu0 0
    %704 = vmatmul.mubr.bf16.gmra.mxu0 %v537
    %v705 = vpop.f32.mrf.mxu0
    %v706 = vadd.f32 %v425, %v705
    %v707 = vpop.f32.mrf.mxu0
    %v708 = vpop.f32.mrf.mxu0
    %v709 = vadd.f32 %v428, %v708
    %v710 = vpop.f32.mrf.mxu0
    %711 = vmatprep.mubr.bf16.mxu0 0
    %712 = vmatmul.mubr.bf16.gmra.mxu0 %v546
    %v713 = vpop.f32.mrf.mxu0
    %v714 = vadd.f32 %v433, %v713
    %v715 = vpop.f32.mrf.mxu0
    %v716 = vpop.f32.mrf.mxu0
    %v717 = vadd.f32 %v436, %v716
    %v718 = vpop.f32.mrf.mxu0
    %719 = vmatprep.mubr.bf16.mxu0 0
    %720 = vmatmul.mubr.bf16.gmra.mxu0 %v555
    %v721 = vpop.f32.mrf.mxu0
    %v722 = vadd.f32 %v441, %v721
    %v723 = vpop.f32.mrf.mxu0
    %v724 = vpop.f32.mrf.mxu0
    %v725 = vadd.f32 %v444, %v724
    %v726 = vpop.f32.mrf.mxu0
    %727 = vmatprep.mubr.bf16.mxu0 0
    %728 = vmatmul.mubr.bf16.gmra.mxu0 %v554
    %v729 = vpop.f32.mrf.mxu0
    %v730 = vadd.f32 %v449, %v729
    %v731 = vpop.f32.mrf.mxu0
    %v732 = vpop.f32.mrf.mxu0
    %v733 = vpop.f32.mrf.mxu0
    %734 = vdwg.mxu0
    %v735 = vld [vmem:[%s135 + $0x54] sm:$0xf]
    %s736 = sadd.s32 %s132, 2
    %s737 = smul.u32 %s736, 16
    %s738 = smul.addr %s737, 4
    %s739 = scalar_lea.vmem %s1, %s738
    %v740 = vld [vmem:[%s739] sm:$0xf]
    %v741 = vld [vmem:[%s739 + $0x4] sm:$0xf]
    %v742 = vld [vmem:[%s739 + $0x8] sm:$0xf]
    %v743 = vld [vmem:[%s739 + $0xc] sm:$0xf]
    %v744 = vld [vmem:[%s739 + $0x10] sm:$0xf]
    %v745 = vld [vmem:[%s739 + $0x14] sm:$0xf]
    %v746 = vld [vmem:[%s739 + $0x18] sm:$0xf]
    %v747 = vld [vmem:[%s739 + $0x1c] sm:$0xf]
    %v748 = vld [vmem:[%s739 + $0x20] sm:$0xf]
    %v749 = vld [vmem:[%s739 + $0x24] sm:$0xf]
    %v750 = vld [vmem:[%s739 + $0x28] sm:$0xf]
    %v751 = vld [vmem:[%s739 + $0x2c] sm:$0xf]
    %v752 = vld [vmem:[%s739 + $0x30] sm:$0xf]
    %v753 = vld [vmem:[%s739 + $0x34] sm:$0xf]
    %v754 = vld [vmem:[%s739 + $0x38] sm:$0xf]
    %v755 = vld [vmem:[%s739 + $0x3c] sm:$0xf]
    %v757 = vunpack.c.l.b16 %v735
    %v758 = vpack.c.b16 %v757, %v240
    %vm759 = vsmask.f32 4352
    %v761 = vshrl.u32 %v242, 16
    %v763 = vrot.slane %v761, 3
    %v764 = vshll.u32 %v242, 16
    %v766 = vrot.slane %v764, 4
    %v767 = vor.u32 %v763, %v766
    %v768 = vrot.slane %v467, 3
    %v769 = vrot.slane %v470, 4
    %v770 = vor.u32 %v768, %v769
    %v771 = vsel %vm759, %v767, %v770
    %v772 = vrot.slane %v476, 3
    %v773 = vrot.slane %v479, 4
    %v774 = vor.u32 %v772, %v773
    %v775 = vsel %vm759, %v770, %v774
    %v776 = vrot.slane %v485, 3
    %v777 = vrot.slane %v488, 4
    %v778 = vor.u32 %v776, %v777
    %v779 = vsel %vm759, %v774, %v778
    %v780 = vrot.slane %v494, 3
    %v781 = vrot.slane %v497, 4
    %v782 = vor.u32 %v780, %v781
    %v783 = vsel %vm759, %v778, %v782
    %v784 = vrot.slane %v503, 3
    %v785 = vrot.slane %v506, 4
    %v786 = vor.u32 %v784, %v785
    %v787 = vsel %vm759, %v782, %v786
    %v788 = vrot.slane %v512, 3
    %v789 = vrot.slane %v515, 4
    %v790 = vor.u32 %v788, %v789
    %v791 = vsel %vm759, %v786, %v790
    %v792 = vrot.slane %v521, 3
    %v793 = vrot.slane %v524, 4
    %v794 = vor.u32 %v792, %v793
    %v795 = vsel %vm759, %v790, %v794
    %v796 = vrot.slane %v530, 3
    %v797 = vrot.slane %v533, 4
    %v798 = vor.u32 %v796, %v797
    %v799 = vsel %vm759, %v794, %v798
    %v800 = vrot.slane %v539, 3
    %v801 = vrot.slane %v542, 4
    %v802 = vor.u32 %v800, %v801
    %v803 = vsel %vm759, %v798, %v802
    %v805 = vshrl.u32 %v758, 16
    %v807 = vrot.slane %v805, 3
    %v808 = vshll.u32 %v758, 16
    %v810 = vrot.slane %v808, 4
    %v811 = vor.u32 %v807, %v810
    %v812 = vsel %vm759, %v802, %v811
    %v840 = vunpack.c.l.b16 %v740
    %v841 = vunpack.c.l.b16 %v741
    %v842 = vunpack.c.l.b16 %v742
    %v843 = vunpack.c.l.b16 %v743
    %v844 = vunpack.c.l.b16 %v744
    %v845 = vunpack.c.l.b16 %v745
    %v846 = vunpack.c.l.b16 %v746
    %v847 = vunpack.c.l.b16 %v747
    %v848 = vunpack.c.l.b16 %v748
    %v849 = vunpack.c.l.b16 %v749
    %v850 = vunpack.c.l.b16 %v750
    %v851 = vunpack.c.l.b16 %v751
    %v852 = vunpack.c.l.b16 %v752
    %v853 = vunpack.c.l.b16 %v753
    %v854 = vunpack.c.l.b16 %v754
    %v855 = vunpack.c.l.b16 %v755
    %v856 = vpack.c.b16 %v841, %v840
    %v857 = vpack.c.b16 %v843, %v842
    %v858 = vpack.c.b16 %v845, %v844
    %v859 = vpack.c.b16 %v847, %v846
    %v860 = vpack.c.b16 %v849, %v848
    %v861 = vpack.c.b16 %v851, %v850
    %v862 = vpack.c.b16 %v853, %v852
    %v863 = vpack.c.b16 %v855, %v854
    %872 = vmatprep.subr.bf16.mxu0 0
    %873 = vmatpush1.bf16.msra.mxu0 %v863
    %874 = vmatprep.subr.bf16.mxu0 0
    %875 = vmatpush1.bf16.msra.mxu0 %v862
    %876 = vmatprep.subr.bf16.mxu0 0
    %877 = vmatpush1.bf16.msra.mxu0 %v861
    %878 = vmatprep.subr.bf16.mxu0 0
    %879 = vmatpush1.bf16.msra.mxu0 %v860
    %880 = vmatprep.subr.bf16.mxu0 0
    %881 = vmatpush1.bf16.msra.mxu0 %v859
    %882 = vmatprep.subr.bf16.mxu0 0
    %883 = vmatpush1.bf16.msra.mxu0 %v858
    %884 = vmatprep.subr.bf16.mxu0 0
    %885 = vmatpush1.bf16.msra.mxu0 %v857
    %886 = vmatprep.subr.bf16.mxu0 0
    %887 = vmatpush1.bf16.msra.mxu0 %v856
    %888 = vmatprep.subr.bf16.mxu0 0
    %889 = vmatpush2.bf16.msra.mxu0 0
    %890 = vmatprep.subr.bf16.mxu0 0
    %891 = vmatpush2.bf16.msra.mxu0 0
    %892 = vmatprep.subr.bf16.mxu0 0
    %893 = vmatpush2.bf16.msra.mxu0 0
    %894 = vmatprep.subr.bf16.mxu0 0
    %895 = vmatpush2.bf16.msra.mxu0 0
    %896 = vmatprep.subr.bf16.mxu0 0
    %897 = vmatpush2.bf16.msra.mxu0 0
    %898 = vmatprep.subr.bf16.mxu0 0
    %899 = vmatpush2.bf16.msra.mxu0 0
    %900 = vmatprep.subr.bf16.mxu0 0
    %901 = vmatpush2.bf16.msra.mxu0 0
    %902 = vmatprep.subr.bf16.mxu0 0
    %903 = vmatpush2.bf16.msra.mxu0 0
    %904 = vmatprep.mubr.bf16.mxu0 0
    %905 = vmatmul.mubr.bf16.gmra.mxu0 %v771
    %v906 = vpop.f32.mrf.mxu0
    %v907 = vadd.f32 0.0, %v906
    %v908 = vpop.f32.mrf.mxu0
    %v909 = vpop.f32.mrf.mxu0
    %v910 = vadd.f32 0.0, %v909
    %v911 = vpop.f32.mrf.mxu0
    %912 = vmatprep.mubr.bf16.mxu0 0
    %913 = vmatmul.mubr.bf16.gmra.mxu0 %v775
    %v914 = vpop.f32.mrf.mxu0
    %v915 = vadd.f32 0.0, %v914
    %v916 = vpop.f32.mrf.mxu0
    %v917 = vpop.f32.mrf.mxu0
    %v918 = vadd.f32 0.0, %v917
    %v919 = vpop.f32.mrf.mxu0
    %920 = vmatprep.mubr.bf16.mxu0 0
    %921 = vmatmul.mubr.bf16.gmra.mxu0 %v779
    %v922 = vpop.f32.mrf.mxu0
    %v923 = vadd.f32 0.0, %v922
    %v924 = vpop.f32.mrf.mxu0
    %v925 = vpop.f32.mrf.mxu0
    %v926 = vadd.f32 0.0, %v925
    %v927 = vpop.f32.mrf.mxu0
    %928 = vmatprep.mubr.bf16.mxu0 0
    %929 = vmatmul.mubr.bf16.gmra.mxu0 %v783
    %v930 = vpop.f32.mrf.mxu0
    %v931 = vadd.f32 0.0, %v930
    %v932 = vpop.f32.mrf.mxu0
    %v933 = vpop.f32.mrf.mxu0
    %v934 = vadd.f32 0.0, %v933
    %v935 = vpop.f32.mrf.mxu0
    %936 = vmatprep.mubr.bf16.mxu0 0
    %937 = vmatmul.mubr.bf16.gmra.mxu0 %v787
    %v938 = vpop.f32.mrf.mxu0
    %v939 = vadd.f32 0.0, %v938
    %v940 = vpop.f32.mrf.mxu0
    %v941 = vpop.f32.mrf.mxu0
    %v942 = vadd.f32 0.0, %v941
    %v943 = vpop.f32.mrf.mxu0
    %944 = vmatprep.mubr.bf16.mxu0 0
    %945 = vmatmul.mubr.bf16.gmra.mxu0 %v791
    %v946 = vpop.f32.mrf.mxu0
    %v947 = vadd.f32 0.0, %v946
    %v948 = vpop.f32.mrf.mxu0
    %v949 = vpop.f32.mrf.mxu0
    %v950 = vadd.f32 0.0, %v949
    %v951 = vpop.f32.mrf.mxu0
    %952 = vmatprep.mubr.bf16.mxu0 0
    %953 = vmatmul.mubr.bf16.gmra.mxu0 %v795
    %v954 = vpop.f32.mrf.mxu0
    %v955 = vadd.f32 0.0, %v954
    %v956 = vpop.f32.mrf.mxu0
    %v957 = vpop.f32.mrf.mxu0
    %v958 = vadd.f32 0.0, %v957
    %v959 = vpop.f32.mrf.mxu0
    %960 = vmatprep.mubr.bf16.mxu0 0
    %961 = vmatmul.mubr.bf16.gmra.mxu0 %v799
    %v962 = vpop.f32.mrf.mxu0
    %v963 = vadd.f32 0.0, %v962
    %v964 = vpop.f32.mrf.mxu0
    %v965 = vpop.f32.mrf.mxu0
    %v966 = vadd.f32 0.0, %v965
    %v967 = vpop.f32.mrf.mxu0
    %968 = vmatprep.mubr.bf16.mxu0 0
    %969 = vmatmul.mubr.bf16.gmra.mxu0 %v803
    %v970 = vpop.f32.mrf.mxu0
    %v971 = vadd.f32 0.0, %v970
    %v972 = vpop.f32.mrf.mxu0
    %v973 = vpop.f32.mrf.mxu0
    %v974 = vadd.f32 0.0, %v973
    %v975 = vpop.f32.mrf.mxu0
    %976 = vmatprep.mubr.bf16.mxu0 0
    %977 = vmatmul.mubr.bf16.gmra.mxu0 %v812
    %v978 = vpop.f32.mrf.mxu0
    %v979 = vadd.f32 0.0, %v978
    %v980 = vpop.f32.mrf.mxu0
    %v981 = vpop.f32.mrf.mxu0
    %v982 = vadd.f32 0.0, %v981
    %v983 = vpop.f32.mrf.mxu0
    %984 = vmatprep.mubr.bf16.mxu0 0
    %985 = vmatmul.mubr.bf16.gmra.mxu0 %v811
    %v986 = vpop.f32.mrf.mxu0
    %v987 = vadd.f32 0.0, %v986
    %v988 = vpop.f32.mrf.mxu0
    %v989 = vpop.f32.mrf.mxu0
    %v990 = vpop.f32.mrf.mxu0
    %991 = vdwg.mxu0
    %v992 = vadd.f32 %v650, %v907
    %v993 = vadd.f32 %v653, %v910
    %v994 = vadd.f32 %v658, %v915
    %v995 = vadd.f32 %v661, %v918
    %v996 = vadd.f32 %v666, %v923
    %v997 = vadd.f32 %v669, %v926
    %v998 = vadd.f32 %v674, %v931
    %v999 = vadd.f32 %v677, %v934
    %v1000 = vadd.f32 %v682, %v939
    %v1001 = vadd.f32 %v685, %v942
    %v1002 = vadd.f32 %v690, %v947
    %v1003 = vadd.f32 %v693, %v950
    %v1004 = vadd.f32 %v698, %v955
    %v1005 = vadd.f32 %v701, %v958
    %v1006 = vadd.f32 %v706, %v963
    %v1007 = vadd.f32 %v709, %v966
    %v1008 = vadd.f32 %v714, %v971
    %v1009 = vadd.f32 %v717, %v974
    %v1010 = vadd.f32 %v722, %v979
    %v1011 = vadd.f32 %v725, %v982
    %v1012 = vadd.f32 %v730, %v987
    %v1013 = vld [vmem:[%s135 + $0x8] sm:$0x8]
    %v1014 = vld [vmem:[%s135 + $0xc] sm:$0xf]
    %v1015 = vld [vmem:[%s135 + $0x10] sm:$0xf]
    %v1016 = vld [vmem:[%s135 + $0x14] sm:$0xf]
    %v1017 = vld [vmem:[%s135 + $0x18] sm:$0xf]
    %v1018 = vld [vmem:[%s135 + $0x1c] sm:$0xf]
    %v1019 = vld [vmem:[%s135 + $0x20] sm:$0xf]
    %v1020 = vld [vmem:[%s135 + $0x24] sm:$0xf]
    %v1021 = vld [vmem:[%s135 + $0x28] sm:$0xf]
    %v1022 = vld [vmem:[%s135 + $0x2c] sm:$0xf]
    %v1023 = vld [vmem:[%s135 + $0x30] sm:$0xf]
    %v1024 = vld [vmem:[%s135 + $0x34] sm:$0xf]
    %v1025 = vld [vmem:[%s135 + $0x38] sm:$0xf]
    %v1026 = vld [vmem:[%s135 + $0x3c] sm:$0xf]
    %v1027 = vld [vmem:[%s135 + $0x40] sm:$0xf]
    %v1028 = vld [vmem:[%s135 + $0x44] sm:$0xf]
    %v1029 = vld [vmem:[%s135 + $0x48] sm:$0xf]
    %v1030 = vld [vmem:[%s135 + $0x4c] sm:$0xf]
    %v1031 = vld [vmem:[%s135 + $0x50] sm:$0xf]
    %v1032 = vld [vmem:[%s135 + $0x54] sm:$0xf]
    %v1033 = vld [vmem:[%s135 + $0x58] sm:$0xf]
    %v1034 = vld [vmem:[%s135 + $0x5c] sm:$0xf]
    %s1035 = sadd.s32 %s132, 3
    %s1036 = smul.u32 %s1035, 16
    %s1037 = smul.addr %s1036, 4
    %s1038 = scalar_lea.vmem %s1, %s1037
    %v1039 = vld [vmem:[%s1038] sm:$0xf]
    %v1040 = vld [vmem:[%s1038 + $0x4] sm:$0xf]
    %v1041 = vld [vmem:[%s1038 + $0x8] sm:$0xf]
    %v1042 = vld [vmem:[%s1038 + $0xc] sm:$0xf]
    %v1043 = vld [vmem:[%s1038 + $0x10] sm:$0xf]
    %v1044 = vld [vmem:[%s1038 + $0x14] sm:$0xf]
    %v1045 = vld [vmem:[%s1038 + $0x18] sm:$0xf]
    %v1046 = vld [vmem:[%s1038 + $0x1c] sm:$0xf]
    %v1047 = vld [vmem:[%s1038 + $0x20] sm:$0xf]
    %v1048 = vld [vmem:[%s1038 + $0x24] sm:$0xf]
    %v1049 = vld [vmem:[%s1038 + $0x28] sm:$0xf]
    %v1050 = vld [vmem:[%s1038 + $0x2c] sm:$0xf]
    %v1051 = vld [vmem:[%s1038 + $0x30] sm:$0xf]
    %v1052 = vld [vmem:[%s1038 + $0x34] sm:$0xf]
    %v1053 = vld [vmem:[%s1038 + $0x38] sm:$0xf]
    %v1054 = vld [vmem:[%s1038 + $0x3c] sm:$0xf]
    %v1077 = vunpack.c.l.b16 %v1013
    %v1078 = vunpack.c.l.b16 %v1014
    %v1079 = vunpack.c.l.b16 %v1015
    %v1080 = vunpack.c.l.b16 %v1016
    %v1081 = vunpack.c.l.b16 %v1017
    %v1082 = vunpack.c.l.b16 %v1018
    %v1083 = vunpack.c.l.b16 %v1019
    %v1084 = vunpack.c.l.b16 %v1020
    %v1085 = vunpack.c.l.b16 %v1021
    %v1086 = vunpack.c.l.b16 %v1022
    %v1087 = vunpack.c.l.b16 %v1023
    %v1088 = vunpack.c.l.b16 %v1024
    %v1089 = vunpack.c.l.b16 %v1025
    %v1090 = vunpack.c.l.b16 %v1026
    %v1091 = vunpack.c.l.b16 %v1027
    %v1092 = vunpack.c.l.b16 %v1028
    %v1093 = vunpack.c.l.b16 %v1029
    %v1094 = vunpack.c.l.b16 %v1030
    %v1095 = vunpack.c.l.b16 %v1031
    %v1096 = vunpack.c.l.b16 %v1032
    %v1097 = vunpack.c.l.b16 %v1033
    %v1098 = vunpack.c.l.b16 %v1034
    %v1099 = vpack.c.b16 %v1078, %v1077
    %v1100 = vpack.c.b16 %v1080, %v1079
    %v1101 = vpack.c.b16 %v1082, %v1081
    %v1102 = vpack.c.b16 %v1084, %v1083
    %v1103 = vpack.c.b16 %v1086, %v1085
    %v1104 = vpack.c.b16 %v1088, %v1087
    %v1105 = vpack.c.b16 %v1090, %v1089
    %v1106 = vpack.c.b16 %v1092, %v1091
    %v1107 = vpack.c.b16 %v1094, %v1093
    %v1108 = vpack.c.b16 %v1096, %v1095
    %v1109 = vpack.c.b16 %v1098, %v1097
    %v1111 = vshrl.u32 %v1099, 16
    %v1113 = vrot.slane %v1111, 3
    %v1114 = vshll.u32 %v1099, 16
    %v1116 = vrot.slane %v1114, 4
    %v1117 = vor.u32 %v1113, %v1116
    %v1119 = vshrl.u32 %v1100, 16
    %v1121 = vrot.slane %v1119, 3
    %v1122 = vshll.u32 %v1100, 16
    %v1124 = vrot.slane %v1122, 4
    %v1125 = vor.u32 %v1121, %v1124
    %v1126 = vsel %vm759, %v1117, %v1125
    %v1128 = vshrl.u32 %v1101, 16
    %v1130 = vrot.slane %v1128, 3
    %v1131 = vshll.u32 %v1101, 16
    %v1133 = vrot.slane %v1131, 4
    %v1134 = vor.u32 %v1130, %v1133
    %v1135 = vsel %vm759, %v1125, %v1134
    %v1137 = vshrl.u32 %v1102, 16
    %v1139 = vrot.slane %v1137, 3
    %v1140 = vshll.u32 %v1102, 16
    %v1142 = vrot.slane %v1140, 4
    %v1143 = vor.u32 %v1139, %v1142
    %v1144 = vsel %vm759, %v1134, %v1143
    %v1146 = vshrl.u32 %v1103, 16
    %v1148 = vrot.slane %v1146, 3
    %v1149 = vshll.u32 %v1103, 16
    %v1151 = vrot.slane %v1149, 4
    %v1152 = vor.u32 %v1148, %v1151
    %v1153 = vsel %vm759, %v1143, %v1152
    %v1155 = vshrl.u32 %v1104, 16
    %v1157 = vrot.slane %v1155, 3
    %v1158 = vshll.u32 %v1104, 16
    %v1160 = vrot.slane %v1158, 4
    %v1161 = vor.u32 %v1157, %v1160
    %v1162 = vsel %vm759, %v1152, %v1161
    %v1164 = vshrl.u32 %v1105, 16
    %v1166 = vrot.slane %v1164, 3
    %v1167 = vshll.u32 %v1105, 16
    %v1169 = vrot.slane %v1167, 4
    %v1170 = vor.u32 %v1166, %v1169
    %v1171 = vsel %vm759, %v1161, %v1170
    %v1173 = vshrl.u32 %v1106, 16
    %v1175 = vrot.slane %v1173, 3
    %v1176 = vshll.u32 %v1106, 16
    %v1178 = vrot.slane %v1176, 4
    %v1179 = vor.u32 %v1175, %v1178
    %v1180 = vsel %vm759, %v1170, %v1179
    %v1182 = vshrl.u32 %v1107, 16
    %v1184 = vrot.slane %v1182, 3
    %v1185 = vshll.u32 %v1107, 16
    %v1187 = vrot.slane %v1185, 4
    %v1188 = vor.u32 %v1184, %v1187
    %v1189 = vsel %vm759, %v1179, %v1188
    %v1191 = vshrl.u32 %v1108, 16
    %v1193 = vrot.slane %v1191, 3
    %v1194 = vshll.u32 %v1108, 16
    %v1196 = vrot.slane %v1194, 4
    %v1197 = vor.u32 %v1193, %v1196
    %v1198 = vsel %vm759, %v1188, %v1197
    %v1200 = vshrl.u32 %v1109, 16
    %v1202 = vrot.slane %v1200, 3
    %v1203 = vshll.u32 %v1109, 16
    %v1205 = vrot.slane %v1203, 4
    %v1206 = vor.u32 %v1202, %v1205
    %v1207 = vsel %vm759, %v1197, %v1206
    %v1235 = vunpack.c.l.b16 %v1039
    %v1236 = vunpack.c.l.b16 %v1040
    %v1237 = vunpack.c.l.b16 %v1041
    %v1238 = vunpack.c.l.b16 %v1042
    %v1239 = vunpack.c.l.b16 %v1043
    %v1240 = vunpack.c.l.b16 %v1044
    %v1241 = vunpack.c.l.b16 %v1045
    %v1242 = vunpack.c.l.b16 %v1046
    %v1243 = vunpack.c.l.b16 %v1047
    %v1244 = vunpack.c.l.b16 %v1048
    %v1245 = vunpack.c.l.b16 %v1049
    %v1246 = vunpack.c.l.b16 %v1050
    %v1247 = vunpack.c.l.b16 %v1051
    %v1248 = vunpack.c.l.b16 %v1052
    %v1249 = vunpack.c.l.b16 %v1053
    %v1250 = vunpack.c.l.b16 %v1054
    %v1251 = vpack.c.b16 %v1236, %v1235
    %v1252 = vpack.c.b16 %v1238, %v1237
    %v1253 = vpack.c.b16 %v1240, %v1239
    %v1254 = vpack.c.b16 %v1242, %v1241
    %v1255 = vpack.c.b16 %v1244, %v1243
    %v1256 = vpack.c.b16 %v1246, %v1245
    %v1257 = vpack.c.b16 %v1248, %v1247
    %v1258 = vpack.c.b16 %v1250, %v1249
    %1267 = vmatprep.subr.bf16.mxu0 0
    %1268 = vmatpush1.bf16.msra.mxu0 %v1258
    %1269 = vmatprep.subr.bf16.mxu0 0
    %1270 = vmatpush1.bf16.msra.mxu0 %v1257
    %1271 = vmatprep.subr.bf16.mxu0 0
    %1272 = vmatpush1.bf16.msra.mxu0 %v1256
    %1273 = vmatprep.subr.bf16.mxu0 0
    %1274 = vmatpush1.bf16.msra.mxu0 %v1255
    %1275 = vmatprep.subr.bf16.mxu0 0
    %1276 = vmatpush1.bf16.msra.mxu0 %v1254
    %1277 = vmatprep.subr.bf16.mxu0 0
    %1278 = vmatpush1.bf16.msra.mxu0 %v1253
    %1279 = vmatprep.subr.bf16.mxu0 0
    %1280 = vmatpush1.bf16.msra.mxu0 %v1252
    %1281 = vmatprep.subr.bf16.mxu0 0
    %1282 = vmatpush1.bf16.msra.mxu0 %v1251
    %1283 = vmatprep.subr.bf16.mxu0 0
    %1284 = vmatpush2.bf16.msra.mxu0 0
    %1285 = vmatprep.subr.bf16.mxu0 0
    %1286 = vmatpush2.bf16.msra.mxu0 0
    %1287 = vmatprep.subr.bf16.mxu0 0
    %1288 = vmatpush2.bf16.msra.mxu0 0
    %1289 = vmatprep.subr.bf16.mxu0 0
    %1290 = vmatpush2.bf16.msra.mxu0 0
    %1291 = vmatprep.subr.bf16.mxu0 0
    %1292 = vmatpush2.bf16.msra.mxu0 0
    %1293 = vmatprep.subr.bf16.mxu0 0
    %1294 = vmatpush2.bf16.msra.mxu0 0
    %1295 = vmatprep.subr.bf16.mxu0 0
    %1296 = vmatpush2.bf16.msra.mxu0 0
    %1297 = vmatprep.subr.bf16.mxu0 0
    %1298 = vmatpush2.bf16.msra.mxu0 0
    %1299 = vmatprep.mubr.bf16.mxu0 0
    %1300 = vmatmul.mubr.bf16.gmra.mxu0 %v1126
    %v1301 = vpop.f32.mrf.mxu0
    %v1302 = vadd.f32 0.0, %v1301
    %v1303 = vpop.f32.mrf.mxu0
    %v1304 = vpop.f32.mrf.mxu0
    %v1305 = vadd.f32 0.0, %v1304
    %v1306 = vpop.f32.mrf.mxu0
    %1307 = vmatprep.mubr.bf16.mxu0 0
    %1308 = vmatmul.mubr.bf16.gmra.mxu0 %v1135
    %v1309 = vpop.f32.mrf.mxu0
    %v1310 = vadd.f32 0.0, %v1309
    %v1311 = vpop.f32.mrf.mxu0
    %v1312 = vpop.f32.mrf.mxu0
    %v1313 = vadd.f32 0.0, %v1312
    %v1314 = vpop.f32.mrf.mxu0
    %1315 = vmatprep.mubr.bf16.mxu0 0
    %1316 = vmatmul.mubr.bf16.gmra.mxu0 %v1144
    %v1317 = vpop.f32.mrf.mxu0
    %v1318 = vadd.f32 0.0, %v1317
    %v1319 = vpop.f32.mrf.mxu0
    %v1320 = vpop.f32.mrf.mxu0
    %v1321 = vadd.f32 0.0, %v1320
    %v1322 = vpop.f32.mrf.mxu0
    %1323 = vmatprep.mubr.bf16.mxu0 0
    %1324 = vmatmul.mubr.bf16.gmra.mxu0 %v1153
    %v1325 = vpop.f32.mrf.mxu0
    %v1326 = vadd.f32 0.0, %v1325
    %v1327 = vpop.f32.mrf.mxu0
    %v1328 = vpop.f32.mrf.mxu0
    %v1329 = vadd.f32 0.0, %v1328
    %v1330 = vpop.f32.mrf.mxu0
    %1331 = vmatprep.mubr.bf16.mxu0 0
    %1332 = vmatmul.mubr.bf16.gmra.mxu0 %v1162
    %v1333 = vpop.f32.mrf.mxu0
    %v1334 = vadd.f32 0.0, %v1333
    %v1335 = vpop.f32.mrf.mxu0
    %v1336 = vpop.f32.mrf.mxu0
    %v1337 = vadd.f32 0.0, %v1336
    %v1338 = vpop.f32.mrf.mxu0
    %1339 = vmatprep.mubr.bf16.mxu0 0
    %1340 = vmatmul.mubr.bf16.gmra.mxu0 %v1171
    %v1341 = vpop.f32.mrf.mxu0
    %v1342 = vadd.f32 0.0, %v1341
    %v1343 = vpop.f32.mrf.mxu0
    %v1344 = vpop.f32.mrf.mxu0
    %v1345 = vadd.f32 0.0, %v1344
    %v1346 = vpop.f32.mrf.mxu0
    %1347 = vmatprep.mubr.bf16.mxu0 0
    %1348 = vmatmul.mubr.bf16.gmra.mxu0 %v1180
    %v1349 = vpop.f32.mrf.mxu0
    %v1350 = vadd.f32 0.0, %v1349
    %v1351 = vpop.f32.mrf.mxu0
    %v1352 = vpop.f32.mrf.mxu0
    %v1353 = vadd.f32 0.0, %v1352
    %v1354 = vpop.f32.mrf.mxu0
    %1355 = vmatprep.mubr.bf16.mxu0 0
    %1356 = vmatmul.mubr.bf16.gmra.mxu0 %v1189
    %v1357 = vpop.f32.mrf.mxu0
    %v1358 = vadd.f32 0.0, %v1357
    %v1359 = vpop.f32.mrf.mxu0
    %v1360 = vpop.f32.mrf.mxu0
    %v1361 = vadd.f32 0.0, %v1360
    %v1362 = vpop.f32.mrf.mxu0
    %1363 = vmatprep.mubr.bf16.mxu0 0
    %1364 = vmatmul.mubr.bf16.gmra.mxu0 %v1198
    %v1365 = vpop.f32.mrf.mxu0
    %v1366 = vadd.f32 0.0, %v1365
    %v1367 = vpop.f32.mrf.mxu0
    %v1368 = vpop.f32.mrf.mxu0
    %v1369 = vadd.f32 0.0, %v1368
    %v1370 = vpop.f32.mrf.mxu0
    %1371 = vmatprep.mubr.bf16.mxu0 0
    %1372 = vmatmul.mubr.bf16.gmra.mxu0 %v1207
    %v1373 = vpop.f32.mrf.mxu0
    %v1374 = vadd.f32 0.0, %v1373
    %v1375 = vpop.f32.mrf.mxu0
    %v1376 = vpop.f32.mrf.mxu0
    %v1377 = vadd.f32 0.0, %v1376
    %v1378 = vpop.f32.mrf.mxu0
    %1379 = vmatprep.mubr.bf16.mxu0 0
    %1380 = vmatmul.mubr.bf16.gmra.mxu0 %v1206
    %v1381 = vpop.f32.mrf.mxu0
    %v1382 = vadd.f32 0.0, %v1381
    %v1383 = vpop.f32.mrf.mxu0
    %v1384 = vpop.f32.mrf.mxu0
    %v1385 = vpop.f32.mrf.mxu0
    %1386 = vdwg.mxu0
    %v1387 = vadd.f32 %v992, %v1302
    %v1388 = vadd.f32 %v993, %v1305
    %v1389 = vadd.f32 %v994, %v1310
    %v1390 = vadd.f32 %v995, %v1313
    %v1391 = vadd.f32 %v996, %v1318
    %v1392 = vadd.f32 %v997, %v1321
    %v1393 = vadd.f32 %v998, %v1326
    %v1394 = vadd.f32 %v999, %v1329
    %v1395 = vadd.f32 %v1000, %v1334
    %v1396 = vadd.f32 %v1001, %v1337
    %v1397 = vadd.f32 %v1002, %v1342
    %v1398 = vadd.f32 %v1003, %v1345
    %v1399 = vadd.f32 %v1004, %v1350
    %v1400 = vadd.f32 %v1005, %v1353
    %v1401 = vadd.f32 %v1006, %v1358
    %v1402 = vadd.f32 %v1007, %v1361
    %v1403 = vadd.f32 %v1008, %v1366
    %v1404 = vadd.f32 %v1009, %v1369
    %v1405 = vadd.f32 %v1010, %v1374
    %v1406 = vadd.f32 %v1011, %v1377
    %v1407 = vadd.f32 %v1012, %v1382
    %s1408 = sadd.s32 %s132, 4
    %s1409 = smul.u32 %s1408, 16
    %s1410 = smul.addr %s1409, 4
    %s1411 = scalar_lea.vmem %s1, %s1410
    %v1412 = vld [vmem:[%s1411] sm:$0xf]
    %v1413 = vld [vmem:[%s1411 + $0x4] sm:$0xf]
    %v1414 = vld [vmem:[%s1411 + $0x8] sm:$0xf]
    %v1415 = vld [vmem:[%s1411 + $0xc] sm:$0xf]
    %v1416 = vld [vmem:[%s1411 + $0x10] sm:$0xf]
    %v1417 = vld [vmem:[%s1411 + $0x14] sm:$0xf]
    %v1418 = vld [vmem:[%s1411 + $0x18] sm:$0xf]
    %v1419 = vld [vmem:[%s1411 + $0x1c] sm:$0xf]
    %v1420 = vld [vmem:[%s1411 + $0x20] sm:$0xf]
    %v1421 = vld [vmem:[%s1411 + $0x24] sm:$0xf]
    %v1422 = vld [vmem:[%s1411 + $0x28] sm:$0xf]
    %v1423 = vld [vmem:[%s1411 + $0x2c] sm:$0xf]
    %v1424 = vld [vmem:[%s1411 + $0x30] sm:$0xf]
    %v1425 = vld [vmem:[%s1411 + $0x34] sm:$0xf]
    %v1426 = vld [vmem:[%s1411 + $0x38] sm:$0xf]
    %v1427 = vld [vmem:[%s1411 + $0x3c] sm:$0xf]
    %v1428 = vpack.c.b16 %v1079, %v1078
    %v1429 = vpack.c.b16 %v1081, %v1080
    %v1430 = vpack.c.b16 %v1083, %v1082
    %v1431 = vpack.c.b16 %v1085, %v1084
    %v1432 = vpack.c.b16 %v1087, %v1086
    %v1433 = vpack.c.b16 %v1089, %v1088
    %v1434 = vpack.c.b16 %v1091, %v1090
    %v1435 = vpack.c.b16 %v1093, %v1092
    %v1436 = vpack.c.b16 %v1095, %v1094
    %v1437 = vpack.c.b16 %v1097, %v1096
    %v1438 = vpack.c.b16 %v1098, %v1098
    %v1466 = vunpack.c.l.b16 %v1412
    %v1467 = vunpack.c.l.b16 %v1413
    %v1468 = vunpack.c.l.b16 %v1414
    %v1469 = vunpack.c.l.b16 %v1415
    %v1470 = vunpack.c.l.b16 %v1416
    %v1471 = vunpack.c.l.b16 %v1417
    %v1472 = vunpack.c.l.b16 %v1418
    %v1473 = vunpack.c.l.b16 %v1419
    %v1474 = vunpack.c.l.b16 %v1420
    %v1475 = vunpack.c.l.b16 %v1421
    %v1476 = vunpack.c.l.b16 %v1422
    %v1477 = vunpack.c.l.b16 %v1423
    %v1478 = vunpack.c.l.b16 %v1424
    %v1479 = vunpack.c.l.b16 %v1425
    %v1480 = vunpack.c.l.b16 %v1426
    %v1481 = vunpack.c.l.b16 %v1427
    %v1482 = vpack.c.b16 %v1467, %v1466
    %v1483 = vpack.c.b16 %v1469, %v1468
    %v1484 = vpack.c.b16 %v1471, %v1470
    %v1485 = vpack.c.b16 %v1473, %v1472
    %v1486 = vpack.c.b16 %v1475, %v1474
    %v1487 = vpack.c.b16 %v1477, %v1476
    %v1488 = vpack.c.b16 %v1479, %v1478
    %v1489 = vpack.c.b16 %v1481, %v1480
    %1498 = vmatprep.subr.bf16.mxu0 0
    %1499 = vmatpush1.bf16.msra.mxu0 %v1489
    %1500 = vmatprep.subr.bf16.mxu0 0
    %1501 = vmatpush1.bf16.msra.mxu0 %v1488
    %1502 = vmatprep.subr.bf16.mxu0 0
    %1503 = vmatpush1.bf16.msra.mxu0 %v1487
    %1504 = vmatprep.subr.bf16.mxu0 0
    %1505 = vmatpush1.bf16.msra.mxu0 %v1486
    %1506 = vmatprep.subr.bf16.mxu0 0
    %1507 = vmatpush1.bf16.msra.mxu0 %v1485
    %1508 = vmatprep.subr.bf16.mxu0 0
    %1509 = vmatpush1.bf16.msra.mxu0 %v1484
    %1510 = vmatprep.subr.bf16.mxu0 0
    %1511 = vmatpush1.bf16.msra.mxu0 %v1483
    %1512 = vmatprep.subr.bf16.mxu0 0
    %1513 = vmatpush1.bf16.msra.mxu0 %v1482
    %1514 = vmatprep.subr.bf16.mxu0 0
    %1515 = vmatpush2.bf16.msra.mxu0 0
    %1516 = vmatprep.subr.bf16.mxu0 0
    %1517 = vmatpush2.bf16.msra.mxu0 0
    %1518 = vmatprep.subr.bf16.mxu0 0
    %1519 = vmatpush2.bf16.msra.mxu0 0
    %1520 = vmatprep.subr.bf16.mxu0 0
    %1521 = vmatpush2.bf16.msra.mxu0 0
    %1522 = vmatprep.subr.bf16.mxu0 0
    %1523 = vmatpush2.bf16.msra.mxu0 0
    %1524 = vmatprep.subr.bf16.mxu0 0
    %1525 = vmatpush2.bf16.msra.mxu0 0
    %1526 = vmatprep.subr.bf16.mxu0 0
    %1527 = vmatpush2.bf16.msra.mxu0 0
    %1528 = vmatprep.subr.bf16.mxu0 0
    %1529 = vmatpush2.bf16.msra.mxu0 0
    %1530 = vmatprep.mubr.bf16.mxu0 0
    %1531 = vmatmul.mubr.bf16.gmra.mxu0 %v1428
    %v1532 = vpop.f32.mrf.mxu0
    %v1533 = vadd.f32 0.0, %v1532
    %v1534 = vpop.f32.mrf.mxu0
    %v1535 = vpop.f32.mrf.mxu0
    %v1536 = vadd.f32 0.0, %v1535
    %v1537 = vpop.f32.mrf.mxu0
    %1538 = vmatprep.mubr.bf16.mxu0 0
    %1539 = vmatmul.mubr.bf16.gmra.mxu0 %v1429
    %v1540 = vpop.f32.mrf.mxu0
    %v1541 = vadd.f32 0.0, %v1540
    %v1542 = vpop.f32.mrf.mxu0
    %v1543 = vpop.f32.mrf.mxu0
    %v1544 = vadd.f32 0.0, %v1543
    %v1545 = vpop.f32.mrf.mxu0
    %1546 = vmatprep.mubr.bf16.mxu0 0
    %1547 = vmatmul.mubr.bf16.gmra.mxu0 %v1430
    %v1548 = vpop.f32.mrf.mxu0
    %v1549 = vadd.f32 0.0, %v1548
    %v1550 = vpop.f32.mrf.mxu0
    %v1551 = vpop.f32.mrf.mxu0
    %v1552 = vadd.f32 0.0, %v1551
    %v1553 = vpop.f32.mrf.mxu0
    %1554 = vmatprep.mubr.bf16.mxu0 0
    %1555 = vmatmul.mubr.bf16.gmra.mxu0 %v1431
    %v1556 = vpop.f32.mrf.mxu0
    %v1557 = vadd.f32 0.0, %v1556
    %v1558 = vpop.f32.mrf.mxu0
    %v1559 = vpop.f32.mrf.mxu0
    %v1560 = vadd.f32 0.0, %v1559
    %v1561 = vpop.f32.mrf.mxu0
    %1562 = vmatprep.mubr.bf16.mxu0 0
    %1563 = vmatmul.mubr.bf16.gmra.mxu0 %v1432
    %v1564 = vpop.f32.mrf.mxu0
    %v1565 = vadd.f32 0.0, %v1564
    %v1566 = vpop.f32.mrf.mxu0
    %v1567 = vpop.f32.mrf.mxu0
    %v1568 = vadd.f32 0.0, %v1567
    %v1569 = vpop.f32.mrf.mxu0
    %1570 = vmatprep.mubr.bf16.mxu0 0
    %1571 = vmatmul.mubr.bf16.gmra.mxu0 %v1433
    %v1572 = vpop.f32.mrf.mxu0
    %v1573 = vadd.f32 0.0, %v1572
    %v1574 = vpop.f32.mrf.mxu0
    %v1575 = vpop.f32.mrf.mxu0
    %v1576 = vadd.f32 0.0, %v1575
    %v1577 = vpop.f32.mrf.mxu0
    %1578 = vmatprep.mubr.bf16.mxu0 0
    %1579 = vmatmul.mubr.bf16.gmra.mxu0 %v1434
    %v1580 = vpop.f32.mrf.mxu0
    %v1581 = vadd.f32 0.0, %v1580
    %v1582 = vpop.f32.mrf.mxu0
    %v1583 = vpop.f32.mrf.mxu0
    %v1584 = vadd.f32 0.0, %v1583
    %v1585 = vpop.f32.mrf.mxu0
    %1586 = vmatprep.mubr.bf16.mxu0 0
    %1587 = vmatmul.mubr.bf16.gmra.mxu0 %v1435
    %v1588 = vpop.f32.mrf.mxu0
    %v1589 = vadd.f32 0.0, %v1588
    %v1590 = vpop.f32.mrf.mxu0
    %v1591 = vpop.f32.mrf.mxu0
    %v1592 = vadd.f32 0.0, %v1591
    %v1593 = vpop.f32.mrf.mxu0
    %1594 = vmatprep.mubr.bf16.mxu0 0
    %1595 = vmatmul.mubr.bf16.gmra.mxu0 %v1436
    %v1596 = vpop.f32.mrf.mxu0
    %v1597 = vadd.f32 0.0, %v1596
    %v1598 = vpop.f32.mrf.mxu0
    %v1599 = vpop.f32.mrf.mxu0
    %v1600 = vadd.f32 0.0, %v1599
    %v1601 = vpop.f32.mrf.mxu0
    %1602 = vmatprep.mubr.bf16.mxu0 0
    %1603 = vmatmul.mubr.bf16.gmra.mxu0 %v1437
    %v1604 = vpop.f32.mrf.mxu0
    %v1605 = vadd.f32 0.0, %v1604
    %v1606 = vpop.f32.mrf.mxu0
    %v1607 = vpop.f32.mrf.mxu0
    %v1608 = vadd.f32 0.0, %v1607
    %v1609 = vpop.f32.mrf.mxu0
    %1610 = vmatprep.mubr.bf16.mxu0 0
    %1611 = vmatmul.mubr.bf16.gmra.mxu0 %v1438
    %v1612 = vpop.f32.mrf.mxu0
    %v1613 = vadd.f32 0.0, %v1612
    %v1614 = vpop.f32.mrf.mxu0
    %v1615 = vpop.f32.mrf.mxu0
    %v1616 = vpop.f32.mrf.mxu0
    %1617 = vdwg.mxu0
    %v1618 = vadd.f32 %v1387, %v1533
    %v1619 = vadd.f32 %v1388, %v1536
    %v1620 = vadd.f32 %v1389, %v1541
    %v1621 = vadd.f32 %v1390, %v1544
    %v1622 = vadd.f32 %v1391, %v1549
    %v1623 = vadd.f32 %v1392, %v1552
    %v1624 = vadd.f32 %v1393, %v1557
    %v1625 = vadd.f32 %v1394, %v1560
    %v1626 = vadd.f32 %v1395, %v1565
    %v1627 = vadd.f32 %v1396, %v1568
    %v1628 = vadd.f32 %v1397, %v1573
    %v1629 = vadd.f32 %v1398, %v1576
    %v1630 = vadd.f32 %v1399, %v1581
    %v1631 = vadd.f32 %v1400, %v1584
    %v1632 = vadd.f32 %v1401, %v1589
    %v1633 = vadd.f32 %v1402, %v1592
    %v1634 = vadd.f32 %v1403, %v1597
    %v1635 = vadd.f32 %v1404, %v1600
    %v1636 = vadd.f32 %v1405, %v1605
    %v1637 = vadd.f32 %v1406, %v1608
    %v1638 = vadd.f32 %v1407, %v1613
    %v1639 = vld [vmem:[%s135 + $0xc] sm:$0xf]
    %v1640 = vld [vmem:[%s135 + $0x10] sm:$0xf]
    %v1641 = vld [vmem:[%s135 + $0x14] sm:$0xf]
    %v1642 = vld [vmem:[%s135 + $0x18] sm:$0xf]
    %v1643 = vld [vmem:[%s135 + $0x1c] sm:$0xf]
    %v1644 = vld [vmem:[%s135 + $0x20] sm:$0xf]
    %v1645 = vld [vmem:[%s135 + $0x24] sm:$0xf]
    %v1646 = vld [vmem:[%s135 + $0x28] sm:$0xf]
    %v1647 = vld [vmem:[%s135 + $0x2c] sm:$0xf]
    %v1648 = vld [vmem:[%s135 + $0x30] sm:$0xf]
    %v1649 = vld [vmem:[%s135 + $0x34] sm:$0xf]
    %v1650 = vld [vmem:[%s135 + $0x38] sm:$0xf]
    %v1651 = vld [vmem:[%s135 + $0x3c] sm:$0xf]
    %v1652 = vld [vmem:[%s135 + $0x40] sm:$0xf]
    %v1653 = vld [vmem:[%s135 + $0x44] sm:$0xf]
    %v1654 = vld [vmem:[%s135 + $0x48] sm:$0xf]
    %v1655 = vld [vmem:[%s135 + $0x4c] sm:$0xf]
    %v1656 = vld [vmem:[%s135 + $0x50] sm:$0xf]
    %v1657 = vld [vmem:[%s135 + $0x54] sm:$0xf]
    %v1658 = vld [vmem:[%s135 + $0x58] sm:$0xf]
    %v1659 = vld [vmem:[%s135 + $0x5c] sm:$0xf]
    %v1660 = vld [vmem:[%s135 + $0x60] sm:$0x1]
    %s1661 = sadd.s32 %s132, 5
    %s1662 = smul.u32 %s1661, 16
    %s1663 = smul.addr %s1662, 4
    %s1664 = scalar_lea.vmem %s1, %s1663
    %v1665 = vld [vmem:[%s1664] sm:$0xf]
    %v1666 = vld [vmem:[%s1664 + $0x4] sm:$0xf]
    %v1667 = vld [vmem:[%s1664 + $0x8] sm:$0xf]
    %v1668 = vld [vmem:[%s1664 + $0xc] sm:$0xf]
    %v1669 = vld [vmem:[%s1664 + $0x10] sm:$0xf]
    %v1670 = vld [vmem:[%s1664 + $0x14] sm:$0xf]
    %v1671 = vld [vmem:[%s1664 + $0x18] sm:$0xf]
    %v1672 = vld [vmem:[%s1664 + $0x1c] sm:$0xf]
    %v1673 = vld [vmem:[%s1664 + $0x20] sm:$0xf]
    %v1674 = vld [vmem:[%s1664 + $0x24] sm:$0xf]
    %v1675 = vld [vmem:[%s1664 + $0x28] sm:$0xf]
    %v1676 = vld [vmem:[%s1664 + $0x2c] sm:$0xf]
    %v1677 = vld [vmem:[%s1664 + $0x30] sm:$0xf]
    %v1678 = vld [vmem:[%s1664 + $0x34] sm:$0xf]
    %v1679 = vld [vmem:[%s1664 + $0x38] sm:$0xf]
    %v1680 = vld [vmem:[%s1664 + $0x3c] sm:$0xf]
    %v1703 = vunpack.c.l.b16 %v1639
    %v1704 = vunpack.c.l.b16 %v1640
    %v1705 = vunpack.c.l.b16 %v1641
    %v1706 = vunpack.c.l.b16 %v1642
    %v1707 = vunpack.c.l.b16 %v1643
    %v1708 = vunpack.c.l.b16 %v1644
    %v1709 = vunpack.c.l.b16 %v1645
    %v1710 = vunpack.c.l.b16 %v1646
    %v1711 = vunpack.c.l.b16 %v1647
    %v1712 = vunpack.c.l.b16 %v1648
    %v1713 = vunpack.c.l.b16 %v1649
    %v1714 = vunpack.c.l.b16 %v1650
    %v1715 = vunpack.c.l.b16 %v1651
    %v1716 = vunpack.c.l.b16 %v1652
    %v1717 = vunpack.c.l.b16 %v1653
    %v1718 = vunpack.c.l.b16 %v1654
    %v1719 = vunpack.c.l.b16 %v1655
    %v1720 = vunpack.c.l.b16 %v1656
    %v1721 = vunpack.c.l.b16 %v1657
    %v1722 = vunpack.c.l.b16 %v1658
    %v1723 = vunpack.c.l.b16 %v1659
    %v1724 = vunpack.c.l.b16 %v1660
    %v1725 = vpack.c.b16 %v1704, %v1703
    %v1726 = vpack.c.b16 %v1706, %v1705
    %v1727 = vpack.c.b16 %v1708, %v1707
    %v1728 = vpack.c.b16 %v1710, %v1709
    %v1729 = vpack.c.b16 %v1712, %v1711
    %v1730 = vpack.c.b16 %v1714, %v1713
    %v1731 = vpack.c.b16 %v1716, %v1715
    %v1732 = vpack.c.b16 %v1718, %v1717
    %v1733 = vpack.c.b16 %v1720, %v1719
    %v1734 = vpack.c.b16 %v1722, %v1721
    %v1735 = vpack.c.b16 %v1724, %v1723
    %vm1736 = vsmask.f32 7424
    %v1738 = vshrl.u32 %v1725, 16
    %v1740 = vshll.u32 %v1725, 16
    %v1742 = vrot.slane %v1740, 1
    %v1743 = vor.u32 %v1738, %v1742
    %v1745 = vshll.u32 %v1726, 16
    %v1747 = vrot.slane %v1745, 1
    %v1748 = vsel %vm1736, %v1743, %v1747
    %v1749 = vshrl.u32 %v1726, 16
    %v1751 = vor.u32 %v1749, %v1747
    %v1753 = vshll.u32 %v1727, 16
    %v1755 = vrot.slane %v1753, 1
    %v1756 = vsel %vm1736, %v1751, %v1755
    %v1757 = vshrl.u32 %v1727, 16
    %v1759 = vor.u32 %v1757, %v1755
    %v1761 = vshll.u32 %v1728, 16
    %v1763 = vrot.slane %v1761, 1
    %v1764 = vsel %vm1736, %v1759, %v1763
    %v1765 = vshrl.u32 %v1728, 16
    %v1767 = vor.u32 %v1765, %v1763
    %v1769 = vshll.u32 %v1729, 16
    %v1771 = vrot.slane %v1769, 1
    %v1772 = vsel %vm1736, %v1767, %v1771
    %v1773 = vshrl.u32 %v1729, 16
    %v1775 = vor.u32 %v1773, %v1771
    %v1777 = vshll.u32 %v1730, 16
    %v1779 = vrot.slane %v1777, 1
    %v1780 = vsel %vm1736, %v1775, %v1779
    %v1781 = vshrl.u32 %v1730, 16
    %v1783 = vor.u32 %v1781, %v1779
    %v1785 = vshll.u32 %v1731, 16
    %v1787 = vrot.slane %v1785, 1
    %v1788 = vsel %vm1736, %v1783, %v1787
    %v1789 = vshrl.u32 %v1731, 16
    %v1791 = vor.u32 %v1789, %v1787
    %v1793 = vshll.u32 %v1732, 16
    %v1795 = vrot.slane %v1793, 1
    %v1796 = vsel %vm1736, %v1791, %v1795
    %v1797 = vshrl.u32 %v1732, 16
    %v1799 = vor.u32 %v1797, %v1795
    %v1801 = vshll.u32 %v1733, 16
    %v1803 = vrot.slane %v1801, 1
    %v1804 = vsel %vm1736, %v1799, %v1803
    %v1805 = vshrl.u32 %v1733, 16
    %v1807 = vor.u32 %v1805, %v1803
    %v1809 = vshll.u32 %v1734, 16
    %v1811 = vrot.slane %v1809, 1
    %v1812 = vsel %vm1736, %v1807, %v1811
    %v1813 = vshrl.u32 %v1734, 16
    %v1815 = vor.u32 %v1813, %v1811
    %v1817 = vshll.u32 %v1735, 16
    %v1819 = vrot.slane %v1817, 1
    %v1820 = vsel %vm1736, %v1815, %v1819
    %v1821 = vshrl.u32 %v1735, 16
    %v1823 = vor.u32 %v1821, %v1819
    %v1851 = vunpack.c.l.b16 %v1665
    %v1852 = vunpack.c.l.b16 %v1666
    %v1853 = vunpack.c.l.b16 %v1667
    %v1854 = vunpack.c.l.b16 %v1668
    %v1855 = vunpack.c.l.b16 %v1669
    %v1856 = vunpack.c.l.b16 %v1670
    %v1857 = vunpack.c.l.b16 %v1671
    %v1858 = vunpack.c.l.b16 %v1672
    %v1859 = vunpack.c.l.b16 %v1673
    %v1860 = vunpack.c.l.b16 %v1674
    %v1861 = vunpack.c.l.b16 %v1675
    %v1862 = vunpack.c.l.b16 %v1676
    %v1863 = vunpack.c.l.b16 %v1677
    %v1864 = vunpack.c.l.b16 %v1678
    %v1865 = vunpack.c.l.b16 %v1679
    %v1866 = vunpack.c.l.b16 %v1680
    %v1867 = vpack.c.b16 %v1852, %v1851
    %v1868 = vpack.c.b16 %v1854, %v1853
    %v1869 = vpack.c.b16 %v1856, %v1855
    %v1870 = vpack.c.b16 %v1858, %v1857
    %v1871 = vpack.c.b16 %v1860, %v1859
    %v1872 = vpack.c.b16 %v1862, %v1861
    %v1873 = vpack.c.b16 %v1864, %v1863
    %v1874 = vpack.c.b16 %v1866, %v1865
    %1883 = vmatprep.subr.bf16.mxu0 0
    %1884 = vmatpush1.bf16.msra.mxu0 %v1874
    %1885 = vmatprep.subr.bf16.mxu0 0
    %1886 = vmatpush1.bf16.msra.mxu0 %v1873
    %1887 = vmatprep.subr.bf16.mxu0 0
    %1888 = vmatpush1.bf16.msra.mxu0 %v1872
    %1889 = vmatprep.subr.bf16.mxu0 0
    %1890 = vmatpush1.bf16.msra.mxu0 %v1871
    %1891 = vmatprep.subr.bf16.mxu0 0
    %1892 = vmatpush1.bf16.msra.mxu0 %v1870
    %1893 = vmatprep.subr.bf16.mxu0 0
    %1894 = vmatpush1.bf16.msra.mxu0 %v1869
    %1895 = vmatprep.subr.bf16.mxu0 0
    %1896 = vmatpush1.bf16.msra.mxu0 %v1868
    %1897 = vmatprep.subr.bf16.mxu0 0
    %1898 = vmatpush1.bf16.msra.mxu0 %v1867
    %1899 = vmatprep.subr.bf16.mxu0 0
    %1900 = vmatpush2.bf16.msra.mxu0 0
    %1901 = vmatprep.subr.bf16.mxu0 0
    %1902 = vmatpush2.bf16.msra.mxu0 0
    %1903 = vmatprep.subr.bf16.mxu0 0
    %1904 = vmatpush2.bf16.msra.mxu0 0
    %1905 = vmatprep.subr.bf16.mxu0 0
    %1906 = vmatpush2.bf16.msra.mxu0 0
    %1907 = vmatprep.subr.bf16.mxu0 0
    %1908 = vmatpush2.bf16.msra.mxu0 0
    %1909 = vmatprep.subr.bf16.mxu0 0
    %1910 = vmatpush2.bf16.msra.mxu0 0
    %1911 = vmatprep.subr.bf16.mxu0 0
    %1912 = vmatpush2.bf16.msra.mxu0 0
    %1913 = vmatprep.subr.bf16.mxu0 0
    %1914 = vmatpush2.bf16.msra.mxu0 0
    %1915 = vmatprep.mubr.bf16.mxu0 0
    %1916 = vmatmul.mubr.bf16.gmra.mxu0 %v1748
    %v1917 = vpop.f32.mrf.mxu0
    %v1918 = vadd.f32 0.0, %v1917
    %v1919 = vpop.f32.mrf.mxu0
    %v1920 = vpop.f32.mrf.mxu0
    %v1921 = vadd.f32 0.0, %v1920
    %v1922 = vpop.f32.mrf.mxu0
    %1923 = vmatprep.mubr.bf16.mxu0 0
    %1924 = vmatmul.mubr.bf16.gmra.mxu0 %v1756
    %v1925 = vpop.f32.mrf.mxu0
    %v1926 = vadd.f32 0.0, %v1925
    %v1927 = vpop.f32.mrf.mxu0
    %v1928 = vpop.f32.mrf.mxu0
    %v1929 = vadd.f32 0.0, %v1928
    %v1930 = vpop.f32.mrf.mxu0
    %1931 = vmatprep.mubr.bf16.mxu0 0
    %1932 = vmatmul.mubr.bf16.gmra.mxu0 %v1764
    %v1933 = vpop.f32.mrf.mxu0
    %v1934 = vadd.f32 0.0, %v1933
    %v1935 = vpop.f32.mrf.mxu0
    %v1936 = vpop.f32.mrf.mxu0
    %v1937 = vadd.f32 0.0, %v1936
    %v1938 = vpop.f32.mrf.mxu0
    %1939 = vmatprep.mubr.bf16.mxu0 0
    %1940 = vmatmul.mubr.bf16.gmra.mxu0 %v1772
    %v1941 = vpop.f32.mrf.mxu0
    %v1942 = vadd.f32 0.0, %v1941
    %v1943 = vpop.f32.mrf.mxu0
    %v1944 = vpop.f32.mrf.mxu0
    %v1945 = vadd.f32 0.0, %v1944
    %v1946 = vpop.f32.mrf.mxu0
    %1947 = vmatprep.mubr.bf16.mxu0 0
    %1948 = vmatmul.mubr.bf16.gmra.mxu0 %v1780
    %v1949 = vpop.f32.mrf.mxu0
    %v1950 = vadd.f32 0.0, %v1949
    %v1951 = vpop.f32.mrf.mxu0
    %v1952 = vpop.f32.mrf.mxu0
    %v1953 = vadd.f32 0.0, %v1952
    %v1954 = vpop.f32.mrf.mxu0
    %1955 = vmatprep.mubr.bf16.mxu0 0
    %1956 = vmatmul.mubr.bf16.gmra.mxu0 %v1788
    %v1957 = vpop.f32.mrf.mxu0
    %v1958 = vadd.f32 0.0, %v1957
    %v1959 = vpop.f32.mrf.mxu0
    %v1960 = vpop.f32.mrf.mxu0
    %v1961 = vadd.f32 0.0, %v1960
    %v1962 = vpop.f32.mrf.mxu0
    %1963 = vmatprep.mubr.bf16.mxu0 0
    %1964 = vmatmul.mubr.bf16.gmra.mxu0 %v1796
    %v1965 = vpop.f32.mrf.mxu0
    %v1966 = vadd.f32 0.0, %v1965
    %v1967 = vpop.f32.mrf.mxu0
    %v1968 = vpop.f32.mrf.mxu0
    %v1969 = vadd.f32 0.0, %v1968
    %v1970 = vpop.f32.mrf.mxu0
    %1971 = vmatprep.mubr.bf16.mxu0 0
    %1972 = vmatmul.mubr.bf16.gmra.mxu0 %v1804
    %v1973 = vpop.f32.mrf.mxu0
    %v1974 = vadd.f32 0.0, %v1973
    %v1975 = vpop.f32.mrf.mxu0
    %v1976 = vpop.f32.mrf.mxu0
    %v1977 = vadd.f32 0.0, %v1976
    %v1978 = vpop.f32.mrf.mxu0
    %1979 = vmatprep.mubr.bf16.mxu0 0
    %1980 = vmatmul.mubr.bf16.gmra.mxu0 %v1812
    %v1981 = vpop.f32.mrf.mxu0
    %v1982 = vadd.f32 0.0, %v1981
    %v1983 = vpop.f32.mrf.mxu0
    %v1984 = vpop.f32.mrf.mxu0
    %v1985 = vadd.f32 0.0, %v1984
    %v1986 = vpop.f32.mrf.mxu0
    %1987 = vmatprep.mubr.bf16.mxu0 0
    %1988 = vmatmul.mubr.bf16.gmra.mxu0 %v1820
    %v1989 = vpop.f32.mrf.mxu0
    %v1990 = vadd.f32 0.0, %v1989
    %v1991 = vpop.f32.mrf.mxu0
    %v1992 = vpop.f32.mrf.mxu0
    %v1993 = vadd.f32 0.0, %v1992
    %v1994 = vpop.f32.mrf.mxu0
    %1995 = vmatprep.mubr.bf16.mxu0 0
    %1996 = vmatmul.mubr.bf16.gmra.mxu0 %v1823
    %v1997 = vpop.f32.mrf.mxu0
    %v1998 = vadd.f32 0.0, %v1997
    %v1999 = vpop.f32.mrf.mxu0
    %v2000 = vpop.f32.mrf.mxu0
    %v2001 = vpop.f32.mrf.mxu0
    %2002 = vdwg.mxu0
    %v2003 = vadd.f32 %v1618, %v1918
    %v2004 = vadd.f32 %v1619, %v1921
    %v2005 = vadd.f32 %v1620, %v1926
    %v2006 = vadd.f32 %v1621, %v1929
    %v2007 = vadd.f32 %v1622, %v1934
    %v2008 = vadd.f32 %v1623, %v1937
    %v2009 = vadd.f32 %v1624, %v1942
    %v2010 = vadd.f32 %v1625, %v1945
    %v2011 = vadd.f32 %v1626, %v1950
    %v2012 = vadd.f32 %v1627, %v1953
    %v2013 = vadd.f32 %v1628, %v1958
    %v2014 = vadd.f32 %v1629, %v1961
    %v2015 = vadd.f32 %v1630, %v1966
    %v2016 = vadd.f32 %v1631, %v1969
    %v2017 = vadd.f32 %v1632, %v1974
    %v2018 = vadd.f32 %v1633, %v1977
    %v2019 = vadd.f32 %v1634, %v1982
    %v2020 = vadd.f32 %v1635, %v1985
    %v2021 = vadd.f32 %v1636, %v1990
    %v2022 = vadd.f32 %v1637, %v1993
    %v2023 = vadd.f32 %v1638, %v1998
    %v2024 = vld [vmem:[%s135 + $0x14] sm:$0xf]
    %v2025 = vld [vmem:[%s135 + $0x18] sm:$0xf]
    %v2026 = vld [vmem:[%s135 + $0x1c] sm:$0xf]
    %v2027 = vld [vmem:[%s135 + $0x20] sm:$0xf]
    %v2028 = vld [vmem:[%s135 + $0x24] sm:$0xf]
    %v2029 = vld [vmem:[%s135 + $0x28] sm:$0xf]
    %v2030 = vld [vmem:[%s135 + $0x2c] sm:$0xf]
    %v2031 = vld [vmem:[%s135 + $0x30] sm:$0xf]
    %v2032 = vld [vmem:[%s135 + $0x34] sm:$0xf]
    %v2033 = vld [vmem:[%s135 + $0x38] sm:$0xf]
    %v2034 = vld [vmem:[%s135 + $0x3c] sm:$0xf]
    %v2035 = vld [vmem:[%s135 + $0x40] sm:$0xf]
    %v2036 = vld [vmem:[%s135 + $0x44] sm:$0xf]
    %v2037 = vld [vmem:[%s135 + $0x48] sm:$0xf]
    %v2038 = vld [vmem:[%s135 + $0x4c] sm:$0xf]
    %v2039 = vld [vmem:[%s135 + $0x50] sm:$0xf]
    %v2040 = vld [vmem:[%s135 + $0x54] sm:$0xf]
    %v2041 = vld [vmem:[%s135 + $0x58] sm:$0xf]
    %v2042 = vld [vmem:[%s135 + $0x5c] sm:$0xf]
    %v2043 = vld [vmem:[%s135 + $0x60] sm:$0xf]
    %v2044 = vld [vmem:[%s135 + $0x64] sm:$0xf]
    %v2045 = vld [vmem:[%s135 + $0x68] sm:$0x1]
    %s2046 = sadd.s32 %s132, 6
    %s2047 = smul.u32 %s2046, 16
    %s2048 = smul.addr %s2047, 4
    %s2049 = scalar_lea.vmem %s1, %s2048
    %v2050 = vld [vmem:[%s2049] sm:$0xf]
    %v2051 = vld [vmem:[%s2049 + $0x4] sm:$0xf]
    %v2052 = vld [vmem:[%s2049 + $0x8] sm:$0xf]
    %v2053 = vld [vmem:[%s2049 + $0xc] sm:$0xf]
    %v2054 = vld [vmem:[%s2049 + $0x10] sm:$0xf]
    %v2055 = vld [vmem:[%s2049 + $0x14] sm:$0xf]
    %v2056 = vld [vmem:[%s2049 + $0x18] sm:$0xf]
    %v2057 = vld [vmem:[%s2049 + $0x1c] sm:$0xf]
    %v2058 = vld [vmem:[%s2049 + $0x20] sm:$0xf]
    %v2059 = vld [vmem:[%s2049 + $0x24] sm:$0xf]
    %v2060 = vld [vmem:[%s2049 + $0x28] sm:$0xf]
    %v2061 = vld [vmem:[%s2049 + $0x2c] sm:$0xf]
    %v2062 = vld [vmem:[%s2049 + $0x30] sm:$0xf]
    %v2063 = vld [vmem:[%s2049 + $0x34] sm:$0xf]
    %v2064 = vld [vmem:[%s2049 + $0x38] sm:$0xf]
    %v2065 = vld [vmem:[%s2049 + $0x3c] sm:$0xf]
    %v2088 = vunpack.c.l.b16 %v2024
    %v2089 = vunpack.c.l.b16 %v2025
    %v2090 = vunpack.c.l.b16 %v2026
    %v2091 = vunpack.c.l.b16 %v2027
    %v2092 = vunpack.c.l.b16 %v2028
    %v2093 = vunpack.c.l.b16 %v2029
    %v2094 = vunpack.c.l.b16 %v2030
    %v2095 = vunpack.c.l.b16 %v2031
    %v2096 = vunpack.c.l.b16 %v2032
    %v2097 = vunpack.c.l.b16 %v2033
    %v2098 = vunpack.c.l.b16 %v2034
    %v2099 = vunpack.c.l.b16 %v2035
    %v2100 = vunpack.c.l.b16 %v2036
    %v2101 = vunpack.c.l.b16 %v2037
    %v2102 = vunpack.c.l.b16 %v2038
    %v2103 = vunpack.c.l.b16 %v2039
    %v2104 = vunpack.c.l.b16 %v2040
    %v2105 = vunpack.c.l.b16 %v2041
    %v2106 = vunpack.c.l.b16 %v2042
    %v2107 = vunpack.c.l.b16 %v2043
    %v2108 = vunpack.c.l.b16 %v2044
    %v2109 = vunpack.c.l.b16 %v2045
    %v2110 = vpack.c.b16 %v2089, %v2088
    %v2111 = vpack.c.b16 %v2091, %v2090
    %v2112 = vpack.c.b16 %v2093, %v2092
    %v2113 = vpack.c.b16 %v2095, %v2094
    %v2114 = vpack.c.b16 %v2097, %v2096
    %v2115 = vpack.c.b16 %v2099, %v2098
    %v2116 = vpack.c.b16 %v2101, %v2100
    %v2117 = vpack.c.b16 %v2103, %v2102
    %v2118 = vpack.c.b16 %v2105, %v2104
    %v2119 = vpack.c.b16 %v2107, %v2106
    %v2120 = vpack.c.b16 %v2109, %v2108
    %v2122 = vshrl.u32 %v2110, 16
    %v2124 = vshll.u32 %v2110, 16
    %v2126 = vrot.slane %v2124, 1
    %v2127 = vor.u32 %v2122, %v2126
    %v2129 = vshll.u32 %v2111, 16
    %v2131 = vrot.slane %v2129, 1
    %v2132 = vsel %vm1736, %v2127, %v2131
    %v2133 = vshrl.u32 %v2111, 16
    %v2135 = vor.u32 %v2133, %v2131
    %v2137 = vshll.u32 %v2112, 16
    %v2139 = vrot.slane %v2137, 1
    %v2140 = vsel %vm1736, %v2135, %v2139
    %v2141 = vshrl.u32 %v2112, 16
    %v2143 = vor.u32 %v2141, %v2139
    %v2145 = vshll.u32 %v2113, 16
    %v2147 = vrot.slane %v2145, 1
    %v2148 = vsel %vm1736, %v2143, %v2147
    %v2149 = vshrl.u32 %v2113, 16
    %v2151 = vor.u32 %v2149, %v2147
    %v2153 = vshll.u32 %v2114, 16
    %v2155 = vrot.slane %v2153, 1
    %v2156 = vsel %vm1736, %v2151, %v2155
    %v2157 = vshrl.u32 %v2114, 16
    %v2159 = vor.u32 %v2157, %v2155
    %v2161 = vshll.u32 %v2115, 16
    %v2163 = vrot.slane %v2161, 1
    %v2164 = vsel %vm1736, %v2159, %v2163
    %v2165 = vshrl.u32 %v2115, 16
    %v2167 = vor.u32 %v2165, %v2163
    %v2169 = vshll.u32 %v2116, 16
    %v2171 = vrot.slane %v2169, 1
    %v2172 = vsel %vm1736, %v2167, %v2171
    %v2173 = vshrl.u32 %v2116, 16
    %v2175 = vor.u32 %v2173, %v2171
    %v2177 = vshll.u32 %v2117, 16
    %v2179 = vrot.slane %v2177, 1
    %v2180 = vsel %vm1736, %v2175, %v2179
    %v2181 = vshrl.u32 %v2117, 16
    %v2183 = vor.u32 %v2181, %v2179
    %v2185 = vshll.u32 %v2118, 16
    %v2187 = vrot.slane %v2185, 1
    %v2188 = vsel %vm1736, %v2183, %v2187
    %v2189 = vshrl.u32 %v2118, 16
    %v2191 = vor.u32 %v2189, %v2187
    %v2193 = vshll.u32 %v2119, 16
    %v2195 = vrot.slane %v2193, 1
    %v2196 = vsel %vm1736, %v2191, %v2195
    %v2197 = vshrl.u32 %v2119, 16
    %v2199 = vor.u32 %v2197, %v2195
    %v2201 = vshll.u32 %v2120, 16
    %v2203 = vrot.slane %v2201, 1
    %v2204 = vsel %vm1736, %v2199, %v2203
    %v2205 = vshrl.u32 %v2120, 16
    %v2207 = vor.u32 %v2205, %v2203
    %v2235 = vunpack.c.l.b16 %v2050
    %v2236 = vunpack.c.l.b16 %v2051
    %v2237 = vunpack.c.l.b16 %v2052
    %v2238 = vunpack.c.l.b16 %v2053
    %v2239 = vunpack.c.l.b16 %v2054
    %v2240 = vunpack.c.l.b16 %v2055
    %v2241 = vunpack.c.l.b16 %v2056
    %v2242 = vunpack.c.l.b16 %v2057
    %v2243 = vunpack.c.l.b16 %v2058
    %v2244 = vunpack.c.l.b16 %v2059
    %v2245 = vunpack.c.l.b16 %v2060
    %v2246 = vunpack.c.l.b16 %v2061
    %v2247 = vunpack.c.l.b16 %v2062
    %v2248 = vunpack.c.l.b16 %v2063
    %v2249 = vunpack.c.l.b16 %v2064
    %v2250 = vunpack.c.l.b16 %v2065
    %v2251 = vpack.c.b16 %v2236, %v2235
    %v2252 = vpack.c.b16 %v2238, %v2237
    %v2253 = vpack.c.b16 %v2240, %v2239
    %v2254 = vpack.c.b16 %v2242, %v2241
    %v2255 = vpack.c.b16 %v2244, %v2243
    %v2256 = vpack.c.b16 %v2246, %v2245
    %v2257 = vpack.c.b16 %v2248, %v2247
    %v2258 = vpack.c.b16 %v2250, %v2249
    %2267 = vmatprep.subr.bf16.mxu0 0
    %2268 = vmatpush1.bf16.msra.mxu0 %v2258
    %2269 = vmatprep.subr.bf16.mxu0 0
    %2270 = vmatpush1.bf16.msra.mxu0 %v2257
    %2271 = vmatprep.subr.bf16.mxu0 0
    %2272 = vmatpush1.bf16.msra.mxu0 %v2256
    %2273 = vmatprep.subr.bf16.mxu0 0
    %2274 = vmatpush1.bf16.msra.mxu0 %v2255
    %2275 = vmatprep.subr.bf16.mxu0 0
    %2276 = vmatpush1.bf16.msra.mxu0 %v2254
    %2277 = vmatprep.subr.bf16.mxu0 0
    %2278 = vmatpush1.bf16.msra.mxu0 %v2253
    %2279 = vmatprep.subr.bf16.mxu0 0
    %2280 = vmatpush1.bf16.msra.mxu0 %v2252
    %2281 = vmatprep.subr.bf16.mxu0 0
    %2282 = vmatpush1.bf16.msra.mxu0 %v2251
    %2283 = vmatprep.subr.bf16.mxu0 0
    %2284 = vmatpush2.bf16.msra.mxu0 0
    %2285 = vmatprep.subr.bf16.mxu0 0
    %2286 = vmatpush2.bf16.msra.mxu0 0
    %2287 = vmatprep.subr.bf16.mxu0 0
    %2288 = vmatpush2.bf16.msra.mxu0 0
    %2289 = vmatprep.subr.bf16.mxu0 0
    %2290 = vmatpush2.bf16.msra.mxu0 0
    %2291 = vmatprep.subr.bf16.mxu0 0
    %2292 = vmatpush2.bf16.msra.mxu0 0
    %2293 = vmatprep.subr.bf16.mxu0 0
    %2294 = vmatpush2.bf16.msra.mxu0 0
    %2295 = vmatprep.subr.bf16.mxu0 0
    %2296 = vmatpush2.bf16.msra.mxu0 0
    %2297 = vmatprep.subr.bf16.mxu0 0
    %2298 = vmatpush2.bf16.msra.mxu0 0
    %2299 = vmatprep.mubr.bf16.mxu0 0
    %2300 = vmatmul.mubr.bf16.gmra.mxu0 %v2132
    %v2301 = vpop.f32.mrf.mxu0
    %v2302 = vadd.f32 0.0, %v2301
    %v2303 = vpop.f32.mrf.mxu0
    %v2304 = vpop.f32.mrf.mxu0
    %v2305 = vadd.f32 0.0, %v2304
    %v2306 = vpop.f32.mrf.mxu0
    %2307 = vmatprep.mubr.bf16.mxu0 0
    %2308 = vmatmul.mubr.bf16.gmra.mxu0 %v2140
    %v2309 = vpop.f32.mrf.mxu0
    %v2310 = vadd.f32 0.0, %v2309
    %v2311 = vpop.f32.mrf.mxu0
    %v2312 = vpop.f32.mrf.mxu0
    %v2313 = vadd.f32 0.0, %v2312
    %v2314 = vpop.f32.mrf.mxu0
    %2315 = vmatprep.mubr.bf16.mxu0 0
    %2316 = vmatmul.mubr.bf16.gmra.mxu0 %v2148
    %v2317 = vpop.f32.mrf.mxu0
    %v2318 = vadd.f32 0.0, %v2317
    %v2319 = vpop.f32.mrf.mxu0
    %v2320 = vpop.f32.mrf.mxu0
    %v2321 = vadd.f32 0.0, %v2320
    %v2322 = vpop.f32.mrf.mxu0
    %2323 = vmatprep.mubr.bf16.mxu0 0
    %2324 = vmatmul.mubr.bf16.gmra.mxu0 %v2156
    %v2325 = vpop.f32.mrf.mxu0
    %v2326 = vadd.f32 0.0, %v2325
    %v2327 = vpop.f32.mrf.mxu0
    %v2328 = vpop.f32.mrf.mxu0
    %v2329 = vadd.f32 0.0, %v2328
    %v2330 = vpop.f32.mrf.mxu0
    %2331 = vmatprep.mubr.bf16.mxu0 0
    %2332 = vmatmul.mubr.bf16.gmra.mxu0 %v2164
    %v2333 = vpop.f32.mrf.mxu0
    %v2334 = vadd.f32 0.0, %v2333
    %v2335 = vpop.f32.mrf.mxu0
    %v2336 = vpop.f32.mrf.mxu0
    %v2337 = vadd.f32 0.0, %v2336
    %v2338 = vpop.f32.mrf.mxu0
    %2339 = vmatprep.mubr.bf16.mxu0 0
    %2340 = vmatmul.mubr.bf16.gmra.mxu0 %v2172
    %v2341 = vpop.f32.mrf.mxu0
    %v2342 = vadd.f32 0.0, %v2341
    %v2343 = vpop.f32.mrf.mxu0
    %v2344 = vpop.f32.mrf.mxu0
    %v2345 = vadd.f32 0.0, %v2344
    %v2346 = vpop.f32.mrf.mxu0
    %2347 = vmatprep.mubr.bf16.mxu0 0
    %2348 = vmatmul.mubr.bf16.gmra.mxu0 %v2180
    %v2349 = vpop.f32.mrf.mxu0
    %v2350 = vadd.f32 0.0, %v2349
    %v2351 = vpop.f32.mrf.mxu0
    %v2352 = vpop.f32.mrf.mxu0
    %v2353 = vadd.f32 0.0, %v2352
    %v2354 = vpop.f32.mrf.mxu0
    %2355 = vmatprep.mubr.bf16.mxu0 0
    %2356 = vmatmul.mubr.bf16.gmra.mxu0 %v2188
    %v2357 = vpop.f32.mrf.mxu0
    %v2358 = vadd.f32 0.0, %v2357
    %v2359 = vpop.f32.mrf.mxu0
    %v2360 = vpop.f32.mrf.mxu0
    %v2361 = vadd.f32 0.0, %v2360
    %v2362 = vpop.f32.mrf.mxu0
    %2363 = vmatprep.mubr.bf16.mxu0 0
    %2364 = vmatmul.mubr.bf16.gmra.mxu0 %v2196
    %v2365 = vpop.f32.mrf.mxu0
    %v2366 = vadd.f32 0.0, %v2365
    %v2367 = vpop.f32.mrf.mxu0
    %v2368 = vpop.f32.mrf.mxu0
    %v2369 = vadd.f32 0.0, %v2368
    %v2370 = vpop.f32.mrf.mxu0
    %2371 = vmatprep.mubr.bf16.mxu0 0
    %2372 = vmatmul.mubr.bf16.gmra.mxu0 %v2204
    %v2373 = vpop.f32.mrf.mxu0
    %v2374 = vadd.f32 0.0, %v2373
    %v2375 = vpop.f32.mrf.mxu0
    %v2376 = vpop.f32.mrf.mxu0
    %v2377 = vadd.f32 0.0, %v2376
    %v2378 = vpop.f32.mrf.mxu0
    %2379 = vmatprep.mubr.bf16.mxu0 0
    %2380 = vmatmul.mubr.bf16.gmra.mxu0 %v2207
    %v2381 = vpop.f32.mrf.mxu0
    %v2382 = vadd.f32 0.0, %v2381
    %v2383 = vpop.f32.mrf.mxu0
    %v2384 = vpop.f32.mrf.mxu0
    %v2385 = vpop.f32.mrf.mxu0
    %2386 = vdwg.mxu0
    %v2387 = vadd.f32 %v2003, %v2302
    %v2388 = vadd.f32 %v2004, %v2305
    %v2389 = vadd.f32 %v2005, %v2310
    %v2390 = vadd.f32 %v2006, %v2313
    %v2391 = vadd.f32 %v2007, %v2318
    %v2392 = vadd.f32 %v2008, %v2321
    %v2393 = vadd.f32 %v2009, %v2326
    %v2394 = vadd.f32 %v2010, %v2329
    %v2395 = vadd.f32 %v2011, %v2334
    %v2396 = vadd.f32 %v2012, %v2337
    %v2397 = vadd.f32 %v2013, %v2342
    %v2398 = vadd.f32 %v2014, %v2345
    %v2399 = vadd.f32 %v2015, %v2350
    %v2400 = vadd.f32 %v2016, %v2353
    %v2401 = vadd.f32 %v2017, %v2358
    %v2402 = vadd.f32 %v2018, %v2361
    %v2403 = vadd.f32 %v2019, %v2366
    %v2404 = vadd.f32 %v2020, %v2369
    %v2405 = vadd.f32 %v2021, %v2374
    %v2406 = vadd.f32 %v2022, %v2377
    %v2407 = vadd.f32 %v2023, %v2382
    %v2408 = vld [vmem:[%s135 + $0x14] sm:$0xe]
    %s2409 = sadd.s32 %s132, 7
    %s2410 = smul.u32 %s2409, 16
    %s2411 = smul.addr %s2410, 4
    %s2412 = scalar_lea.vmem %s1, %s2411
    %v2413 = vld [vmem:[%s2412] sm:$0xf]
    %v2414 = vld [vmem:[%s2412 + $0x4] sm:$0xf]
    %v2415 = vld [vmem:[%s2412 + $0x8] sm:$0xf]
    %v2416 = vld [vmem:[%s2412 + $0xc] sm:$0xf]
    %v2417 = vld [vmem:[%s2412 + $0x10] sm:$0xf]
    %v2418 = vld [vmem:[%s2412 + $0x14] sm:$0xf]
    %v2419 = vld [vmem:[%s2412 + $0x18] sm:$0xf]
    %v2420 = vld [vmem:[%s2412 + $0x1c] sm:$0xf]
    %v2421 = vld [vmem:[%s2412 + $0x20] sm:$0xf]
    %v2422 = vld [vmem:[%s2412 + $0x24] sm:$0xf]
    %v2423 = vld [vmem:[%s2412 + $0x28] sm:$0xf]
    %v2424 = vld [vmem:[%s2412 + $0x2c] sm:$0xf]
    %v2425 = vld [vmem:[%s2412 + $0x30] sm:$0xf]
    %v2426 = vld [vmem:[%s2412 + $0x34] sm:$0xf]
    %v2427 = vld [vmem:[%s2412 + $0x38] sm:$0xf]
    %v2428 = vld [vmem:[%s2412 + $0x3c] sm:$0xf]
    %v2430 = vunpack.c.l.b16 %v2408
    %v2431 = vpack.c.b16 %v2089, %v2430
    %vm2432 = vcmask 1046528
    %v2433 = vrot.slane %v2431, 1
    %v2434 = vrot.slane %v2111, 1
    %v2435 = vsel %vm2432, %v2433, %v2434
    %v2436 = vrot.slane %v2112, 1
    %v2437 = vsel %vm2432, %v2434, %v2436
    %v2438 = vrot.slane %v2113, 1
    %v2439 = vsel %vm2432, %v2436, %v2438
    %v2440 = vrot.slane %v2114, 1
    %v2441 = vsel %vm2432, %v2438, %v2440
    %v2442 = vrot.slane %v2115, 1
    %v2443 = vsel %vm2432, %v2440, %v2442
    %v2444 = vrot.slane %v2116, 1
    %v2445 = vsel %vm2432, %v2442, %v2444
    %v2446 = vrot.slane %v2117, 1
    %v2447 = vsel %vm2432, %v2444, %v2446
    %v2448 = vrot.slane %v2118, 1
    %v2449 = vsel %vm2432, %v2446, %v2448
    %v2450 = vrot.slane %v2119, 1
    %v2451 = vsel %vm2432, %v2448, %v2450
    %v2452 = vrot.slane %v2120, 1
    %v2453 = vsel %vm2432, %v2450, %v2452
    %v2481 = vunpack.c.l.b16 %v2413
    %v2482 = vunpack.c.l.b16 %v2414
    %v2483 = vunpack.c.l.b16 %v2415
    %v2484 = vunpack.c.l.b16 %v2416
    %v2485 = vunpack.c.l.b16 %v2417
    %v2486 = vunpack.c.l.b16 %v2418
    %v2487 = vunpack.c.l.b16 %v2419
    %v2488 = vunpack.c.l.b16 %v2420
    %v2489 = vunpack.c.l.b16 %v2421
    %v2490 = vunpack.c.l.b16 %v2422
    %v2491 = vunpack.c.l.b16 %v2423
    %v2492 = vunpack.c.l.b16 %v2424
    %v2493 = vunpack.c.l.b16 %v2425
    %v2494 = vunpack.c.l.b16 %v2426
    %v2495 = vunpack.c.l.b16 %v2427
    %v2496 = vunpack.c.l.b16 %v2428
    %v2497 = vpack.c.b16 %v2482, %v2481
    %v2498 = vpack.c.b16 %v2484, %v2483
    %v2499 = vpack.c.b16 %v2486, %v2485
    %v2500 = vpack.c.b16 %v2488, %v2487
    %v2501 = vpack.c.b16 %v2490, %v2489
    %v2502 = vpack.c.b16 %v2492, %v2491
    %v2503 = vpack.c.b16 %v2494, %v2493
    %v2504 = vpack.c.b16 %v2496, %v2495
    %2513 = vmatprep.subr.bf16.mxu0 0
    %2514 = vmatpush1.bf16.msra.mxu0 %v2504
    %2515 = vmatprep.subr.bf16.mxu0 0
    %2516 = vmatpush1.bf16.msra.mxu0 %v2503
    %2517 = vmatprep.subr.bf16.mxu0 0
    %2518 = vmatpush1.bf16.msra.mxu0 %v2502
    %2519 = vmatprep.subr.bf16.mxu0 0
    %2520 = vmatpush1.bf16.msra.mxu0 %v2501
    %2521 = vmatprep.subr.bf16.mxu0 0
    %2522 = vmatpush1.bf16.msra.mxu0 %v2500
    %2523 = vmatprep.subr.bf16.mxu0 0
    %2524 = vmatpush1.bf16.msra.mxu0 %v2499
    %2525 = vmatprep.subr.bf16.mxu0 0
    %2526 = vmatpush1.bf16.msra.mxu0 %v2498
    %2527 = vmatprep.subr.bf16.mxu0 0
    %2528 = vmatpush1.bf16.msra.mxu0 %v2497
    %2529 = vmatprep.subr.bf16.mxu0 0
    %2530 = vmatpush2.bf16.msra.mxu0 0
    %2531 = vmatprep.subr.bf16.mxu0 0
    %2532 = vmatpush2.bf16.msra.mxu0 0
    %2533 = vmatprep.subr.bf16.mxu0 0
    %2534 = vmatpush2.bf16.msra.mxu0 0
    %2535 = vmatprep.subr.bf16.mxu0 0
    %2536 = vmatpush2.bf16.msra.mxu0 0
    %2537 = vmatprep.subr.bf16.mxu0 0
    %2538 = vmatpush2.bf16.msra.mxu0 0
    %2539 = vmatprep.subr.bf16.mxu0 0
    %2540 = vmatpush2.bf16.msra.mxu0 0
    %2541 = vmatprep.subr.bf16.mxu0 0
    %2542 = vmatpush2.bf16.msra.mxu0 0
    %2543 = vmatprep.subr.bf16.mxu0 0
    %2544 = vmatpush2.bf16.msra.mxu0 0
    %2545 = vmatprep.mubr.bf16.mxu0 0
    %2546 = vmatmul.mubr.bf16.gmra.mxu0 %v2435
    %v2547 = vpop.f32.mrf.mxu0
    %v2548 = vadd.f32 0.0, %v2547
    %v2549 = vpop.f32.mrf.mxu0
    %v2550 = vpop.f32.mrf.mxu0
    %v2551 = vadd.f32 0.0, %v2550
    %v2552 = vpop.f32.mrf.mxu0
    %2553 = vmatprep.mubr.bf16.mxu0 0
    %2554 = vmatmul.mubr.bf16.gmra.mxu0 %v2437
    %v2555 = vpop.f32.mrf.mxu0
    %v2556 = vadd.f32 0.0, %v2555
    %v2557 = vpop.f32.mrf.mxu0
    %v2558 = vpop.f32.mrf.mxu0
    %v2559 = vadd.f32 0.0, %v2558
    %v2560 = vpop.f32.mrf.mxu0
    %2561 = vmatprep.mubr.bf16.mxu0 0
    %2562 = vmatmul.mubr.bf16.gmra.mxu0 %v2439
    %v2563 = vpop.f32.mrf.mxu0
    %v2564 = vadd.f32 0.0, %v2563
    %v2565 = vpop.f32.mrf.mxu0
    %v2566 = vpop.f32.mrf.mxu0
    %v2567 = vadd.f32 0.0, %v2566
    %v2568 = vpop.f32.mrf.mxu0
    %2569 = vmatprep.mubr.bf16.mxu0 0
    %2570 = vmatmul.mubr.bf16.gmra.mxu0 %v2441
    %v2571 = vpop.f32.mrf.mxu0
    %v2572 = vadd.f32 0.0, %v2571
    %v2573 = vpop.f32.mrf.mxu0
    %v2574 = vpop.f32.mrf.mxu0
    %v2575 = vadd.f32 0.0, %v2574
    %v2576 = vpop.f32.mrf.mxu0
    %2577 = vmatprep.mubr.bf16.mxu0 0
    %2578 = vmatmul.mubr.bf16.gmra.mxu0 %v2443
    %v2579 = vpop.f32.mrf.mxu0
    %v2580 = vadd.f32 0.0, %v2579
    %v2581 = vpop.f32.mrf.mxu0
    %v2582 = vpop.f32.mrf.mxu0
    %v2583 = vadd.f32 0.0, %v2582
    %v2584 = vpop.f32.mrf.mxu0
    %2585 = vmatprep.mubr.bf16.mxu0 0
    %2586 = vmatmul.mubr.bf16.gmra.mxu0 %v2445
    %v2587 = vpop.f32.mrf.mxu0
    %v2588 = vadd.f32 0.0, %v2587
    %v2589 = vpop.f32.mrf.mxu0
    %v2590 = vpop.f32.mrf.mxu0
    %v2591 = vadd.f32 0.0, %v2590
    %v2592 = vpop.f32.mrf.mxu0
    %2593 = vmatprep.mubr.bf16.mxu0 0
    %2594 = vmatmul.mubr.bf16.gmra.mxu0 %v2447
    %v2595 = vpop.f32.mrf.mxu0
    %v2596 = vadd.f32 0.0, %v2595
    %v2597 = vpop.f32.mrf.mxu0
    %v2598 = vpop.f32.mrf.mxu0
    %v2599 = vadd.f32 0.0, %v2598
    %v2600 = vpop.f32.mrf.mxu0
    %2601 = vmatprep.mubr.bf16.mxu0 0
    %2602 = vmatmul.mubr.bf16.gmra.mxu0 %v2449
    %v2603 = vpop.f32.mrf.mxu0
    %v2604 = vadd.f32 0.0, %v2603
    %v2605 = vpop.f32.mrf.mxu0
    %v2606 = vpop.f32.mrf.mxu0
    %v2607 = vadd.f32 0.0, %v2606
    %v2608 = vpop.f32.mrf.mxu0
    %2609 = vmatprep.mubr.bf16.mxu0 0
    %2610 = vmatmul.mubr.bf16.gmra.mxu0 %v2451
    %v2611 = vpop.f32.mrf.mxu0
    %v2612 = vadd.f32 0.0, %v2611
    %v2613 = vpop.f32.mrf.mxu0
    %v2614 = vpop.f32.mrf.mxu0
    %v2615 = vadd.f32 0.0, %v2614
    %v2616 = vpop.f32.mrf.mxu0
    %2617 = vmatprep.mubr.bf16.mxu0 0
    %2618 = vmatmul.mubr.bf16.gmra.mxu0 %v2453
    %v2619 = vpop.f32.mrf.mxu0
    %v2620 = vadd.f32 0.0, %v2619
    %v2621 = vpop.f32.mrf.mxu0
    %v2622 = vpop.f32.mrf.mxu0
    %v2623 = vadd.f32 0.0, %v2622
    %v2624 = vpop.f32.mrf.mxu0
    %2625 = vmatprep.mubr.bf16.mxu0 0
    %2626 = vmatmul.mubr.bf16.gmra.mxu0 %v2452
    %v2627 = vpop.f32.mrf.mxu0
    %v2628 = vadd.f32 0.0, %v2627
    %v2629 = vpop.f32.mrf.mxu0
    %v2630 = vpop.f32.mrf.mxu0
    %v2631 = vpop.f32.mrf.mxu0
    %2632 = vdwg.mxu0
    %v2633 = vadd.f32 %v2387, %v2548
    %v2634 = vadd.f32 %v2388, %v2551
    %v2635 = vadd.f32 %v2389, %v2556
    %v2636 = vadd.f32 %v2390, %v2559
    %v2637 = vadd.f32 %v2391, %v2564
    %v2638 = vadd.f32 %v2392, %v2567
    %v2639 = vadd.f32 %v2393, %v2572
    %v2640 = vadd.f32 %v2394, %v2575
    %v2641 = vadd.f32 %v2395, %v2580
    %v2642 = vadd.f32 %v2396, %v2583
    %v2643 = vadd.f32 %v2397, %v2588
    %v2644 = vadd.f32 %v2398, %v2591
    %v2645 = vadd.f32 %v2399, %v2596
    %v2646 = vadd.f32 %v2400, %v2599
    %v2647 = vadd.f32 %v2401, %v2604
    %v2648 = vadd.f32 %v2402, %v2607
    %v2649 = vadd.f32 %v2403, %v2612
    %v2650 = vadd.f32 %v2404, %v2615
    %v2651 = vadd.f32 %v2405, %v2620
    %v2652 = vadd.f32 %v2406, %v2623
    %v2653 = vadd.f32 %v2407, %v2628
    %v2654 = vld [vmem:[%s135 + $0x68] sm:$0x3]
    %s2655 = sadd.s32 %s132, 8
    %s2656 = smul.u32 %s2655, 16
    %s2657 = smul.addr %s2656, 4
    %s2658 = scalar_lea.vmem %s1, %s2657
    %v2659 = vld [vmem:[%s2658] sm:$0xf]
    %v2660 = vld [vmem:[%s2658 + $0x4] sm:$0xf]
    %v2661 = vld [vmem:[%s2658 + $0x8] sm:$0xf]
    %v2662 = vld [vmem:[%s2658 + $0xc] sm:$0xf]
    %v2663 = vld [vmem:[%s2658 + $0x10] sm:$0xf]
    %v2664 = vld [vmem:[%s2658 + $0x14] sm:$0xf]
    %v2665 = vld [vmem:[%s2658 + $0x18] sm:$0xf]
    %v2666 = vld [vmem:[%s2658 + $0x1c] sm:$0xf]
    %v2667 = vld [vmem:[%s2658 + $0x20] sm:$0xf]
    %v2668 = vld [vmem:[%s2658 + $0x24] sm:$0xf]
    %v2669 = vld [vmem:[%s2658 + $0x28] sm:$0xf]
    %v2670 = vld [vmem:[%s2658 + $0x2c] sm:$0xf]
    %v2671 = vld [vmem:[%s2658 + $0x30] sm:$0xf]
    %v2672 = vld [vmem:[%s2658 + $0x34] sm:$0xf]
    %v2673 = vld [vmem:[%s2658 + $0x38] sm:$0xf]
    %v2674 = vld [vmem:[%s2658 + $0x3c] sm:$0xf]
    %v2676 = vunpack.c.l.b16 %v2654
    %v2677 = vpack.c.b16 %v2676, %v2108
    %vm2678 = vsmask.f32 6400
    %v2680 = vshrl.u32 %v2431, 16
    %v2682 = vrot.slane %v2680, 1
    %v2683 = vshll.u32 %v2431, 16
    %v2685 = vrot.slane %v2683, 2
    %v2686 = vor.u32 %v2682, %v2685
    %v2687 = vrot.slane %v2133, 1
    %v2688 = vrot.slane %v2129, 2
    %v2689 = vor.u32 %v2687, %v2688
    %v2690 = vsel %vm2678, %v2686, %v2689
    %v2691 = vrot.slane %v2141, 1
    %v2692 = vrot.slane %v2137, 2
    %v2693 = vor.u32 %v2691, %v2692
    %v2694 = vsel %vm2678, %v2689, %v2693
    %v2695 = vrot.slane %v2149, 1
    %v2696 = vrot.slane %v2145, 2
    %v2697 = vor.u32 %v2695, %v2696
    %v2698 = vsel %vm2678, %v2693, %v2697
    %v2699 = vrot.slane %v2157, 1
    %v2700 = vrot.slane %v2153, 2
    %v2701 = vor.u32 %v2699, %v2700
    %v2702 = vsel %vm2678, %v2697, %v2701
    %v2703 = vrot.slane %v2165, 1
    %v2704 = vrot.slane %v2161, 2
    %v2705 = vor.u32 %v2703, %v2704
    %v2706 = vsel %vm2678, %v2701, %v2705
    %v2707 = vrot.slane %v2173, 1
    %v2708 = vrot.slane %v2169, 2
    %v2709 = vor.u32 %v2707, %v2708
    %v2710 = vsel %vm2678, %v2705, %v2709
    %v2711 = vrot.slane %v2181, 1
    %v2712 = vrot.slane %v2177, 2
    %v2713 = vor.u32 %v2711, %v2712
    %v2714 = vsel %vm2678, %v2709, %v2713
    %v2715 = vrot.slane %v2189, 1
    %v2716 = vrot.slane %v2185, 2
    %v2717 = vor.u32 %v2715, %v2716
    %v2718 = vsel %vm2678, %v2713, %v2717
    %v2719 = vrot.slane %v2197, 1
    %v2720 = vrot.slane %v2193, 2
    %v2721 = vor.u32 %v2719, %v2720
    %v2722 = vsel %vm2678, %v2717, %v2721
    %v2724 = vshrl.u32 %v2677, 16
    %v2726 = vrot.slane %v2724, 1
    %v2727 = vshll.u32 %v2677, 16
    %v2729 = vrot.slane %v2727, 2
    %v2730 = vor.u32 %v2726, %v2729
    %v2731 = vsel %vm2678, %v2721, %v2730
    %v2759 = vunpack.c.l.b16 %v2659
    %v2760 = vunpack.c.l.b16 %v2660
    %v2761 = vunpack.c.l.b16 %v2661
    %v2762 = vunpack.c.l.b16 %v2662
    %v2763 = vunpack.c.l.b16 %v2663
    %v2764 = vunpack.c.l.b16 %v2664
    %v2765 = vunpack.c.l.b16 %v2665
    %v2766 = vunpack.c.l.b16 %v2666
    %v2767 = vunpack.c.l.b16 %v2667
    %v2768 = vunpack.c.l.b16 %v2668
    %v2769 = vunpack.c.l.b16 %v2669
    %v2770 = vunpack.c.l.b16 %v2670
    %v2771 = vunpack.c.l.b16 %v2671
    %v2772 = vunpack.c.l.b16 %v2672
    %v2773 = vunpack.c.l.b16 %v2673
    %v2774 = vunpack.c.l.b16 %v2674
    %v2775 = vpack.c.b16 %v2760, %v2759
    %v2776 = vpack.c.b16 %v2762, %v2761
    %v2777 = vpack.c.b16 %v2764, %v2763
    %v2778 = vpack.c.b16 %v2766, %v2765
    %v2779 = vpack.c.b16 %v2768, %v2767
    %v2780 = vpack.c.b16 %v2770, %v2769
    %v2781 = vpack.c.b16 %v2772, %v2771
    %v2782 = vpack.c.b16 %v2774, %v2773
    %2791 = vmatprep.subr.bf16.mxu0 0
    %2792 = vmatpush1.bf16.msra.mxu0 %v2782
    %2793 = vmatprep.subr.bf16.mxu0 0
    %2794 = vmatpush1.bf16.msra.mxu0 %v2781
    %2795 = vmatprep.subr.bf16.mxu0 0
    %2796 = vmatpush1.bf16.msra.mxu0 %v2780
    %2797 = vmatprep.subr.bf16.mxu0 0
    %2798 = vmatpush1.bf16.msra.mxu0 %v2779
    %2799 = vmatprep.subr.bf16.mxu0 0
    %2800 = vmatpush1.bf16.msra.mxu0 %v2778
    %2801 = vmatprep.subr.bf16.mxu0 0
    %2802 = vmatpush1.bf16.msra.mxu0 %v2777
    %2803 = vmatprep.subr.bf16.mxu0 0
    %2804 = vmatpush1.bf16.msra.mxu0 %v2776
    %2805 = vmatprep.subr.bf16.mxu0 0
    %2806 = vmatpush1.bf16.msra.mxu0 %v2775
    %2807 = vmatprep.subr.bf16.mxu0 0
    %2808 = vmatpush2.bf16.msra.mxu0 0
    %2809 = vmatprep.subr.bf16.mxu0 0
    %2810 = vmatpush2.bf16.msra.mxu0 0
    %2811 = vmatprep.subr.bf16.mxu0 0
    %2812 = vmatpush2.bf16.msra.mxu0 0
    %2813 = vmatprep.subr.bf16.mxu0 0
    %2814 = vmatpush2.bf16.msra.mxu0 0
    %2815 = vmatprep.subr.bf16.mxu0 0
    %2816 = vmatpush2.bf16.msra.mxu0 0
    %2817 = vmatprep.subr.bf16.mxu0 0
    %2818 = vmatpush2.bf16.msra.mxu0 0
    %2819 = vmatprep.subr.bf16.mxu0 0
    %2820 = vmatpush2.bf16.msra.mxu0 0
    %2821 = vmatprep.subr.bf16.mxu0 0
    %2822 = vmatpush2.bf16.msra.mxu0 0
    %2823 = vmatprep.mubr.bf16.mxu0 0
    %2824 = vmatmul.mubr.bf16.gmra.mxu0 %v2690
    %v2825 = vpop.f32.mrf.mxu0
    %v2826 = vadd.f32 0.0, %v2825
    %v2827 = vpop.f32.mrf.mxu0
    %v2828 = vpop.f32.mrf.mxu0
    %v2829 = vadd.f32 0.0, %v2828
    %v2830 = vpop.f32.mrf.mxu0
    %2831 = vmatprep.mubr.bf16.mxu0 0
    %2832 = vmatmul.mubr.bf16.gmra.mxu0 %v2694
    %v2833 = vpop.f32.mrf.mxu0
    %v2834 = vadd.f32 0.0, %v2833
    %v2835 = vpop.f32.mrf.mxu0
    %v2836 = vpop.f32.mrf.mxu0
    %v2837 = vadd.f32 0.0, %v2836
    %v2838 = vpop.f32.mrf.mxu0
    %2839 = vmatprep.mubr.bf16.mxu0 0
    %2840 = vmatmul.mubr.bf16.gmra.mxu0 %v2698
    %v2841 = vpop.f32.mrf.mxu0
    %v2842 = vadd.f32 0.0, %v2841
    %v2843 = vpop.f32.mrf.mxu0
    %v2844 = vpop.f32.mrf.mxu0
    %v2845 = vadd.f32 0.0, %v2844
    %v2846 = vpop.f32.mrf.mxu0
    %2847 = vmatprep.mubr.bf16.mxu0 0
    %2848 = vmatmul.mubr.bf16.gmra.mxu0 %v2702
    %v2849 = vpop.f32.mrf.mxu0
    %v2850 = vadd.f32 0.0, %v2849
    %v2851 = vpop.f32.mrf.mxu0
    %v2852 = vpop.f32.mrf.mxu0
    %v2853 = vadd.f32 0.0, %v2852
    %v2854 = vpop.f32.mrf.mxu0
    %2855 = vmatprep.mubr.bf16.mxu0 0
    %2856 = vmatmul.mubr.bf16.gmra.mxu0 %v2706
    %v2857 = vpop.f32.mrf.mxu0
    %v2858 = vadd.f32 0.0, %v2857
    %v2859 = vpop.f32.mrf.mxu0
    %v2860 = vpop.f32.mrf.mxu0
    %v2861 = vadd.f32 0.0, %v2860
    %v2862 = vpop.f32.mrf.mxu0
    %2863 = vmatprep.mubr.bf16.mxu0 0
    %2864 = vmatmul.mubr.bf16.gmra.mxu0 %v2710
    %v2865 = vpop.f32.mrf.mxu0
    %v2866 = vadd.f32 0.0, %v2865
    %v2867 = vpop.f32.mrf.mxu0
    %v2868 = vpop.f32.mrf.mxu0
    %v2869 = vadd.f32 0.0, %v2868
    %v2870 = vpop.f32.mrf.mxu0
    %2871 = vmatprep.mubr.bf16.mxu0 0
    %2872 = vmatmul.mubr.bf16.gmra.mxu0 %v2714
    %v2873 = vpop.f32.mrf.mxu0
    %v2874 = vadd.f32 0.0, %v2873
    %v2875 = vpop.f32.mrf.mxu0
    %v2876 = vpop.f32.mrf.mxu0
    %v2877 = vadd.f32 0.0, %v2876
    %v2878 = vpop.f32.mrf.mxu0
    %2879 = vmatprep.mubr.bf16.mxu0 0
    %2880 = vmatmul.mubr.bf16.gmra.mxu0 %v2718
    %v2881 = vpop.f32.mrf.mxu0
    %v2882 = vadd.f32 0.0, %v2881
    %v2883 = vpop.f32.mrf.mxu0
    %v2884 = vpop.f32.mrf.mxu0
    %v2885 = vadd.f32 0.0, %v2884
    %v2886 = vpop.f32.mrf.mxu0
    %2887 = vmatprep.mubr.bf16.mxu0 0
    %2888 = vmatmul.mubr.bf16.gmra.mxu0 %v2722
    %v2889 = vpop.f32.mrf.mxu0
    %v2890 = vadd.f32 0.0, %v2889
    %v2891 = vpop.f32.mrf.mxu0
    %v2892 = vpop.f32.mrf.mxu0
    %v2893 = vadd.f32 0.0, %v2892
    %v2894 = vpop.f32.mrf.mxu0
    %2895 = vmatprep.mubr.bf16.mxu0 0
    %2896 = vmatmul.mubr.bf16.gmra.mxu0 %v2731
    %v2897 = vpop.f32.mrf.mxu0
    %v2898 = vadd.f32 0.0, %v2897
    %v2899 = vpop.f32.mrf.mxu0
    %v2900 = vpop.f32.mrf.mxu0
    %v2901 = vadd.f32 0.0, %v2900
    %v2902 = vpop.f32.mrf.mxu0
    %2903 = vmatprep.mubr.bf16.mxu0 0
    %2904 = vmatmul.mubr.bf16.gmra.mxu0 %v2730
    %v2905 = vpop.f32.mrf.mxu0
    %v2906 = vadd.f32 0.0, %v2905
    %v2907 = vpop.f32.mrf.mxu0
    %v2908 = vpop.f32.mrf.mxu0
    %v2909 = vpop.f32.mrf.mxu0
    %2910 = vdwg.mxu0
    %v2911 = vadd.f32 %v2633, %v2826
    %v2912 = vadd.f32 %v2634, %v2829
    %v2913 = vadd.f32 %v2635, %v2834
    %v2914 = vadd.f32 %v2636, %v2837
    %v2915 = vadd.f32 %v2637, %v2842
    %v2916 = vadd.f32 %v2638, %v2845
    %v2917 = vadd.f32 %v2639, %v2850
    %v2918 = vadd.f32 %v2640, %v2853
    %v2919 = vadd.f32 %v2641, %v2858
    %v2920 = vadd.f32 %v2642, %v2861
    %v2921 = vadd.f32 %v2643, %v2866
    %v2922 = vadd.f32 %v2644, %v2869
    %v2923 = vadd.f32 %v2645, %v2874
    %v2924 = vadd.f32 %v2646, %v2877
    %v2925 = vadd.f32 %v2647, %v2882
    %v2926 = vadd.f32 %v2648, %v2885
    %v2927 = vadd.f32 %v2649, %v2890
    %v2928 = vadd.f32 %v2650, %v2893
    %v2929 = vadd.f32 %v2651, %v2898
    %v2930 = vadd.f32 %v2652, %v2901
    %v2931 = vadd.f32 %v2653, %v2906
    %v2932 = vld [vmem:[%s3 + $0x18] sm:$0xff]
    %v2933 = vld [vmem:[%s3 + $0x20] sm:$0xff]
    %v2934 = vld [vmem:[%s3 + $0x28] sm:$0xff]
    %v2935 = vld [vmem:[%s3 + $0x30] sm:$0xff]
    %v2936 = vld [vmem:[%s3 + $0x38] sm:$0xff]
    %v2937 = vld [vmem:[%s3 + $0x40] sm:$0xff]
    %v2938 = vld [vmem:[%s3 + $0x48] sm:$0xff]
    %v2939 = vld [vmem:[%s3 + $0x50] sm:$0xff]
    %v2940 = vld [vmem:[%s3 + $0x58] sm:$0xff]
    %v2941 = vld [vmem:[%s3 + $0x60] sm:$0xff]
    %v2942 = vld [vmem:[%s3 + $0x68] sm:$0xff]
    %v2943 = vld [vmem:[%s3 + $0x70] sm:$0xff]
    %v2944 = vld [vmem:[%s3 + $0x78] sm:$0xff]
    %v2945 = vld [vmem:[%s3 + $0x80] sm:$0xff]
    %v2946 = vld [vmem:[%s3 + $0x88] sm:$0xff]
    %v2947 = vld [vmem:[%s3 + $0x90] sm:$0xff]
    %v2948 = vld [vmem:[%s3 + $0x98] sm:$0xff]
    %v2949 = vld [vmem:[%s3 + $0xa0] sm:$0xff]
    %v2950 = vld [vmem:[%s3 + $0xa8] sm:$0xff]
    %v2951 = vld [vmem:[%s3 + $0xb0] sm:$0xff]
    %v2952 = vld [vmem:[%s3 + $0xb8] sm:$0xff]
    %v2953 = vlaneseq
    %v2954 = vshrl.u32 %v2953, 7
    %v2955 = vsub.s32 0, %v2954
    %v2956 = vrot.slane %v131, %v2955
    %v2957 = vadd.f32 %v2911, %v2956
    %v2958 = vadd.f32 %v2912, %v2956
    %v2959 = vadd.f32 %v2913, %v2956
    %v2960 = vadd.f32 %v2914, %v2956
    %v2961 = vadd.f32 %v2915, %v2956
    %v2962 = vadd.f32 %v2916, %v2956
    %v2963 = vadd.f32 %v2917, %v2956
    %v2964 = vadd.f32 %v2918, %v2956
    %v2965 = vadd.f32 %v2919, %v2956
    %v2966 = vadd.f32 %v2920, %v2956
    %v2967 = vadd.f32 %v2921, %v2956
    %v2968 = vadd.f32 %v2922, %v2956
    %v2969 = vadd.f32 %v2923, %v2956
    %v2970 = vadd.f32 %v2924, %v2956
    %v2971 = vadd.f32 %v2925, %v2956
    %v2972 = vadd.f32 %v2926, %v2956
    %v2973 = vadd.f32 %v2927, %v2956
    %v2974 = vadd.f32 %v2928, %v2956
    %v2975 = vadd.f32 %v2929, %v2956
    %v2976 = vadd.f32 %v2930, %v2956
    %v2977 = vadd.f32 %v2931, %v2956
    %v2978 = vmax.f32 %v2957, 0.0
    %v2979 = vmax.f32 %v2958, 0.0
    %v2980 = vmax.f32 %v2959, 0.0
    %v2981 = vmax.f32 %v2960, 0.0
    %v2982 = vmax.f32 %v2961, 0.0
    %v2983 = vmax.f32 %v2962, 0.0
    %v2984 = vmax.f32 %v2963, 0.0
    %v2985 = vmax.f32 %v2964, 0.0
    %v2986 = vmax.f32 %v2965, 0.0
    %v2987 = vmax.f32 %v2966, 0.0
    %v2988 = vmax.f32 %v2967, 0.0
    %v2989 = vmax.f32 %v2968, 0.0
    %v2990 = vmax.f32 %v2969, 0.0
    %v2991 = vmax.f32 %v2970, 0.0
    %v2992 = vmax.f32 %v2971, 0.0
    %v2993 = vmax.f32 %v2972, 0.0
    %v2994 = vmax.f32 %v2973, 0.0
    %v2995 = vmax.f32 %v2974, 0.0
    %v2996 = vmax.f32 %v2975, 0.0
    %v2997 = vmax.f32 %v2976, 0.0
    %v2998 = vmax.f32 %v2977, 0.0
    %3000 = vset.pattern.permute.xlu0 0
    %3001 = vperm.xlu0 %3000, %v2932
    %v3002 = vpop.permute.xlu0 %3001
    %3005 = vset.pattern.permute.xlu0 0
    %3006 = vperm.xlu0 %3005, %v2933
    %v3007 = vpop.permute.xlu0 %3006
    %3010 = vset.pattern.permute.xlu0 0
    %3011 = vperm.xlu0 %3010, %v2934
    %v3012 = vpop.permute.xlu0 %3011
    %3015 = vset.pattern.permute.xlu0 0
    %3016 = vperm.xlu0 %3015, %v2935
    %v3017 = vpop.permute.xlu0 %3016
    %3020 = vset.pattern.permute.xlu0 0
    %3021 = vperm.xlu0 %3020, %v2936
    %v3022 = vpop.permute.xlu0 %3021
    %3025 = vset.pattern.permute.xlu0 0
    %3026 = vperm.xlu0 %3025, %v2937
    %v3027 = vpop.permute.xlu0 %3026
    %3030 = vset.pattern.permute.xlu0 0
    %3031 = vperm.xlu0 %3030, %v2938
    %v3032 = vpop.permute.xlu0 %3031
    %3035 = vset.pattern.permute.xlu0 0
    %3036 = vperm.xlu0 %3035, %v2939
    %v3037 = vpop.permute.xlu0 %3036
    %3040 = vset.pattern.permute.xlu0 0
    %3041 = vperm.xlu0 %3040, %v2940
    %v3042 = vpop.permute.xlu0 %3041
    %3045 = vset.pattern.permute.xlu0 0
    %3046 = vperm.xlu0 %3045, %v2941
    %v3047 = vpop.permute.xlu0 %3046
    %3050 = vset.pattern.permute.xlu0 0
    %3051 = vperm.xlu0 %3050, %v2942
    %v3052 = vpop.permute.xlu0 %3051
    %3055 = vset.pattern.permute.xlu0 0
    %3056 = vperm.xlu0 %3055, %v2943
    %v3057 = vpop.permute.xlu0 %3056
    %3060 = vset.pattern.permute.xlu0 0
    %3061 = vperm.xlu0 %3060, %v2944
    %v3062 = vpop.permute.xlu0 %3061
    %3065 = vset.pattern.permute.xlu0 0
    %3066 = vperm.xlu0 %3065, %v2945
    %v3067 = vpop.permute.xlu0 %3066
    %3070 = vset.pattern.permute.xlu0 0
    %3071 = vperm.xlu0 %3070, %v2946
    %v3072 = vpop.permute.xlu0 %3071
    %3075 = vset.pattern.permute.xlu0 0
    %3076 = vperm.xlu0 %3075, %v2947
    %v3077 = vpop.permute.xlu0 %3076
    %3080 = vset.pattern.permute.xlu0 0
    %3081 = vperm.xlu0 %3080, %v2948
    %v3082 = vpop.permute.xlu0 %3081
    %3085 = vset.pattern.permute.xlu0 0
    %3086 = vperm.xlu0 %3085, %v2949
    %v3087 = vpop.permute.xlu0 %3086
    %3090 = vset.pattern.permute.xlu0 0
    %3091 = vperm.xlu0 %3090, %v2950
    %v3092 = vpop.permute.xlu0 %3091
    %3095 = vset.pattern.permute.xlu0 0
    %3096 = vperm.xlu0 %3095, %v2951
    %v3097 = vpop.permute.xlu0 %3096
    %3100 = vset.pattern.permute.xlu0 0
    %3101 = vperm.xlu0 %3100, %v2952
    %v3102 = vpop.permute.xlu0 %3101
    %v3104 = vmul.f32 %v2978, %v3002
    %v3105 = vmul.f32 %v2979, %v3007
    %v3106 = vmul.f32 %v2980, %v3012
    %v3107 = vmul.f32 %v2981, %v3017
    %v3108 = vmul.f32 %v2982, %v3022
    %v3109 = vmul.f32 %v2983, %v3027
    %v3110 = vmul.f32 %v2984, %v3032
    %v3111 = vmul.f32 %v2985, %v3037
    %v3112 = vmul.f32 %v2986, %v3042
    %v3113 = vmul.f32 %v2987, %v3047
    %v3114 = vmul.f32 %v2988, %v3052
    %v3115 = vmul.f32 %v2989, %v3057
    %v3116 = vmul.f32 %v2990, %v3062
    %v3117 = vmul.f32 %v2991, %v3067
    %v3118 = vmul.f32 %v2992, %v3072
    %v3119 = vmul.f32 %v2993, %v3077
    %v3120 = vmul.f32 %v2994, %v3082
    %v3121 = vmul.f32 %v2995, %v3087
    %v3122 = vmul.f32 %v2996, %v3092
    %v3123 = vmul.f32 %v2997, %v3097
    %v3124 = vmul.f32 %v2998, %v3102
    %v3125 = vpack.c.bf16 %v3105, %v3104
    %v3126 = vpack.c.bf16 %v3107, %v3106
    %v3127 = vpack.c.bf16 %v3109, %v3108
    %v3128 = vpack.c.bf16 %v3111, %v3110
    %v3129 = vpack.c.bf16 %v3113, %v3112
    %v3130 = vpack.c.bf16 %v3115, %v3114
    %v3131 = vpack.c.bf16 %v3117, %v3116
    %v3132 = vpack.c.bf16 %v3119, %v3118
    %v3133 = vpack.c.bf16 %v3121, %v3120
    %v3134 = vpack.c.bf16 %v3123, %v3122
    %v3135 = vpack.c.bf16 %v3124, %v3124
    %s3136 = smul.u32 %s129, 46
    %s3137 = smul.addr %s3136, 4
    %s3138 = scalar_lea.vmem [#allocation2], %s3137
    %v3150 = vunpack.c.l.b16 %v3125
    %v3151 = vunpack.c.h.b16 %v3125
    %v3152 = vunpack.c.l.b16 %v3126
    %v3153 = vunpack.c.h.b16 %v3126
    %v3154 = vunpack.c.l.b16 %v3127
    %v3155 = vunpack.c.h.b16 %v3127
    %v3156 = vunpack.c.l.b16 %v3128
    %v3157 = vunpack.c.h.b16 %v3128
    %v3158 = vunpack.c.l.b16 %v3129
    %v3159 = vunpack.c.h.b16 %v3129
    %v3160 = vunpack.c.l.b16 %v3130
    %v3161 = vunpack.c.h.b16 %v3130
    %v3162 = vunpack.c.l.b16 %v3131
    %v3163 = vunpack.c.h.b16 %v3131
    %v3164 = vunpack.c.l.b16 %v3132
    %v3165 = vunpack.c.h.b16 %v3132
    %v3166 = vunpack.c.l.b16 %v3133
    %v3167 = vunpack.c.h.b16 %v3133
    %v3168 = vunpack.c.l.b16 %v3134
    %v3169 = vunpack.c.h.b16 %v3134
    %v3170 = vunpack.c.l.b16 %v3135
    %v3171 = vpack.c.b16 %v3150, %v3150
    %v3172 = vpack.c.b16 %v3151, %v3151
    %v3173 = vpack.c.b16 %v3152, %v3152
    %v3174 = vpack.c.b16 %v3153, %v3153
    %v3175 = vpack.c.b16 %v3154, %v3154
    %v3176 = vpack.c.b16 %v3155, %v3155
    %v3177 = vpack.c.b16 %v3156, %v3156
    %v3178 = vpack.c.b16 %v3157, %v3157
    %v3179 = vpack.c.b16 %v3158, %v3158
    %v3180 = vpack.c.b16 %v3159, %v3159
    %v3181 = vpack.c.b16 %v3160, %v3160
    %v3182 = vpack.c.b16 %v3161, %v3161
    %v3183 = vpack.c.b16 %v3162, %v3162
    %v3184 = vpack.c.b16 %v3163, %v3163
    %v3185 = vpack.c.b16 %v3164, %v3164
    %v3186 = vpack.c.b16 %v3165, %v3165
    %v3187 = vpack.c.b16 %v3166, %v3166
    %v3188 = vpack.c.b16 %v3167, %v3167
    %v3189 = vpack.c.b16 %v3168, %v3168
    %v3190 = vpack.c.b16 %v3169, %v3169
    %v3191 = vpack.c.b16 %v3170, %v3170
    %3213 = vst [vmem:[%s3138 + $0xc] sm:$0xf] %v3171
    %3214 = vst [vmem:[%s3138 + $0x10] sm:$0xf] %v3172
    %3215 = vst [vmem:[%s3138 + $0x14] sm:$0xf] %v3173
    %3216 = vst [vmem:[%s3138 + $0x18] sm:$0xf] %v3174
    %3217 = vst [vmem:[%s3138 + $0x1c] sm:$0xf] %v3175
    %3218 = vst [vmem:[%s3138 + $0x20] sm:$0xf] %v3176
    %3219 = vst [vmem:[%s3138 + $0x24] sm:$0xf] %v3177
    %3220 = vst [vmem:[%s3138 + $0x28] sm:$0xf] %v3178
    %3221 = vst [vmem:[%s3138 + $0x2c] sm:$0xf] %v3179
    %3222 = vst [vmem:[%s3138 + $0x30] sm:$0xf] %v3180
    %3223 = vst [vmem:[%s3138 + $0x34] sm:$0xf] %v3181
    %3224 = vst [vmem:[%s3138 + $0x38] sm:$0xf] %v3182
    %3225 = vst [vmem:[%s3138 + $0x3c] sm:$0xf] %v3183
    %3226 = vst [vmem:[%s3138 + $0x40] sm:$0xf] %v3184
    %3227 = vst [vmem:[%s3138 + $0x44] sm:$0xf] %v3185
    %3228 = vst [vmem:[%s3138 + $0x48] sm:$0xf] %v3186
    %3229 = vst [vmem:[%s3138 + $0x4c] sm:$0xf] %v3187
    %3230 = vst [vmem:[%s3138 + $0x50] sm:$0xf] %v3188
    %3231 = vst [vmem:[%s3138 + $0x54] sm:$0xf] %v3189
    %3232 = vst [vmem:[%s3138 + $0x58] sm:$0xf] %v3190
    %3233 = vst [vmem:[%s3138 + $0x5c] sm:$0xf] %v3191
    %v3234 = vld [vmem:[%s135 + $0x54] sm:$0xc]
    %v3235 = vld [vmem:[%s135 + $0x58] sm:$0xf]
    %v3236 = vld [vmem:[%s135 + $0x5c] sm:$0xf]
    %v3237 = vld [vmem:[%s135 + $0x60] sm:$0xf]
    %v3238 = vld [vmem:[%s135 + $0x64] sm:$0xf]
    %v3239 = vld [vmem:[%s135 + $0x68] sm:$0xf]
    %v3240 = vld [vmem:[%s135 + $0x6c] sm:$0xf]
    %v3241 = vld [vmem:[%s135 + $0x70] sm:$0xf]
    %v3242 = vld [vmem:[%s135 + $0x74] sm:$0xf]
    %v3243 = vld [vmem:[%s135 + $0x78] sm:$0xf]
    %v3244 = vld [vmem:[%s135 + $0x7c] sm:$0xf]
    %v3245 = vld [vmem:[%s135 + $0x80] sm:$0xf]
    %v3246 = vld [vmem:[%s135 + $0x84] sm:$0xf]
    %v3247 = vld [vmem:[%s135 + $0x88] sm:$0xf]
    %v3248 = vld [vmem:[%s135 + $0x8c] sm:$0xf]
    %v3249 = vld [vmem:[%s135 + $0x90] sm:$0xf]
    %v3250 = vld [vmem:[%s135 + $0x94] sm:$0xf]
    %v3251 = vld [vmem:[%s135 + $0x98] sm:$0xf]
    %v3252 = vld [vmem:[%s135 + $0x9c] sm:$0xf]
    %v3253 = vld [vmem:[%s135 + $0xa0] sm:$0xf]
    %v3254 = vld [vmem:[%s135 + $0xa4] sm:$0x1]
    %v3255 = vld [vmem:[%s160] sm:$0xf]
    %v3256 = vld [vmem:[%s160 + $0x4] sm:$0xf]
    %v3257 = vld [vmem:[%s160 + $0x8] sm:$0xf]
    %v3258 = vld [vmem:[%s160 + $0xc] sm:$0xf]
    %v3259 = vld [vmem:[%s160 + $0x10] sm:$0xf]
    %v3260 = vld [vmem:[%s160 + $0x14] sm:$0xf]
    %v3261 = vld [vmem:[%s160 + $0x18] sm:$0xf]
    %v3262 = vld [vmem:[%s160 + $0x1c] sm:$0xf]
    %v3263 = vld [vmem:[%s160 + $0x20] sm:$0xf]
    %v3264 = vld [vmem:[%s160 + $0x24] sm:$0xf]
    %v3265 = vld [vmem:[%s160 + $0x28] sm:$0xf]
    %v3266 = vld [vmem:[%s160 + $0x2c] sm:$0xf]
    %v3267 = vld [vmem:[%s160 + $0x30] sm:$0xf]
    %v3268 = vld [vmem:[%s160 + $0x34] sm:$0xf]
    %v3269 = vld [vmem:[%s160 + $0x38] sm:$0xf]
    %v3270 = vld [vmem:[%s160 + $0x3c] sm:$0xf]
    %v3271 = vld [vmem:[%s135 + $0x54] sm:$0x8]
    %v3272 = vld [vmem:[%s181] sm:$0xf]
    %v3273 = vld [vmem:[%s181 + $0x4] sm:$0xf]
    %v3274 = vld [vmem:[%s181 + $0x8] sm:$0xf]
    %v3275 = vld [vmem:[%s181 + $0xc] sm:$0xf]
    %v3276 = vld [vmem:[%s181 + $0x10] sm:$0xf]
    %v3277 = vld [vmem:[%s181 + $0x14] sm:$0xf]
    %v3278 = vld [vmem:[%s181 + $0x18] sm:$0xf]
    %v3279 = vld [vmem:[%s181 + $0x1c] sm:$0xf]
    %v3280 = vld [vmem:[%s181 + $0x20] sm:$0xf]
    %v3281 = vld [vmem:[%s181 + $0x24] sm:$0xf]
    %v3282 = vld [vmem:[%s181 + $0x28] sm:$0xf]
    %v3283 = vld [vmem:[%s181 + $0x2c] sm:$0xf]
    %v3284 = vld [vmem:[%s181 + $0x30] sm:$0xf]
    %v3285 = vld [vmem:[%s181 + $0x34] sm:$0xf]
    %v3286 = vld [vmem:[%s181 + $0x38] sm:$0xf]
    %v3287 = vld [vmem:[%s181 + $0x3c] sm:$0xf]
    %v3309 = vunpack.c.l.b16 %v3271
    %v3310 = vunpack.c.l.b16 %v3235
    %v3311 = vunpack.c.l.b16 %v3236
    %v3312 = vunpack.c.l.b16 %v3237
    %v3313 = vunpack.c.l.b16 %v3238
    %v3314 = vunpack.c.l.b16 %v3239
    %v3315 = vunpack.c.l.b16 %v3240
    %v3316 = vunpack.c.l.b16 %v3241
    %v3317 = vunpack.c.l.b16 %v3242
    %v3318 = vunpack.c.l.b16 %v3243
    %v3319 = vunpack.c.l.b16 %v3244
    %v3320 = vunpack.c.l.b16 %v3245
    %v3321 = vunpack.c.l.b16 %v3246
    %v3322 = vunpack.c.l.b16 %v3247
    %v3323 = vunpack.c.l.b16 %v3248
    %v3324 = vunpack.c.l.b16 %v3249
    %v3325 = vunpack.c.l.b16 %v3250
    %v3326 = vunpack.c.l.b16 %v3251
    %v3327 = vunpack.c.l.b16 %v3252
    %v3328 = vunpack.c.l.b16 %v3253
    %v3329 = vunpack.c.l.b16 %v3254
    %v3330 = vpack.c.b16 %v3310, %v3309
    %v3331 = vpack.c.b16 %v3312, %v3311
    %v3332 = vpack.c.b16 %v3314, %v3313
    %v3333 = vpack.c.b16 %v3316, %v3315
    %v3334 = vpack.c.b16 %v3318, %v3317
    %v3335 = vpack.c.b16 %v3320, %v3319
    %v3336 = vpack.c.b16 %v3322, %v3321
    %v3337 = vpack.c.b16 %v3324, %v3323
    %v3338 = vpack.c.b16 %v3326, %v3325
    %v3339 = vpack.c.b16 %v3328, %v3327
    %v3340 = vpack.c.b16 %v3329, %v3329
    %v3341 = vrot.slane %v3330, 3
    %v3342 = vrot.slane %v3331, 3
    %v3343 = vsel %vm253, %v3341, %v3342
    %v3344 = vrot.slane %v3332, 3
    %v3345 = vsel %vm253, %v3342, %v3344
    %v3346 = vrot.slane %v3333, 3
    %v3347 = vsel %vm253, %v3344, %v3346
    %v3348 = vrot.slane %v3334, 3
    %v3349 = vsel %vm253, %v3346, %v3348
    %v3350 = vrot.slane %v3335, 3
    %v3351 = vsel %vm253, %v3348, %v3350
    %v3352 = vrot.slane %v3336, 3
    %v3353 = vsel %vm253, %v3350, %v3352
    %v3354 = vrot.slane %v3337, 3
    %v3355 = vsel %vm253, %v3352, %v3354
    %v3356 = vrot.slane %v3338, 3
    %v3357 = vsel %vm253, %v3354, %v3356
    %v3358 = vrot.slane %v3339, 3
    %v3359 = vsel %vm253, %v3356, %v3358
    %v3360 = vrot.slane %v3340, 3
    %v3361 = vsel %vm253, %v3358, %v3360
    %v3388 = vunpack.c.l.b16 %v3272
    %v3389 = vunpack.c.l.b16 %v3273
    %v3390 = vunpack.c.l.b16 %v3274
    %v3391 = vunpack.c.l.b16 %v3275
    %v3392 = vunpack.c.l.b16 %v3276
    %v3393 = vunpack.c.l.b16 %v3277
    %v3394 = vunpack.c.l.b16 %v3278
    %v3395 = vunpack.c.l.b16 %v3279
    %v3396 = vunpack.c.l.b16 %v3280
    %v3397 = vunpack.c.l.b16 %v3281
    %v3398 = vunpack.c.l.b16 %v3282
    %v3399 = vunpack.c.l.b16 %v3283
    %v3400 = vunpack.c.l.b16 %v3284
    %v3401 = vunpack.c.l.b16 %v3285
    %v3402 = vunpack.c.l.b16 %v3286
    %v3403 = vunpack.c.l.b16 %v3287
    %v3404 = vpack.c.b16 %v3389, %v3388
    %v3405 = vpack.c.b16 %v3391, %v3390
    %v3406 = vpack.c.b16 %v3393, %v3392
    %v3407 = vpack.c.b16 %v3395, %v3394
    %v3408 = vpack.c.b16 %v3397, %v3396
    %v3409 = vpack.c.b16 %v3399, %v3398
    %v3410 = vpack.c.b16 %v3401, %v3400
    %v3411 = vpack.c.b16 %v3403, %v3402
    %3420 = vmatprep.subr.bf16.mxu0 0
    %3421 = vmatpush1.bf16.msra.mxu0 %v3411
    %3422 = vmatprep.subr.bf16.mxu0 0
    %3423 = vmatpush1.bf16.msra.mxu0 %v3410
    %3424 = vmatprep.subr.bf16.mxu0 0
    %3425 = vmatpush1.bf16.msra.mxu0 %v3409
    %3426 = vmatprep.subr.bf16.mxu0 0
    %3427 = vmatpush1.bf16.msra.mxu0 %v3408
    %3428 = vmatprep.subr.bf16.mxu0 0
    %3429 = vmatpush1.bf16.msra.mxu0 %v3407
    %3430 = vmatprep.subr.bf16.mxu0 0
    %3431 = vmatpush1.bf16.msra.mxu0 %v3406
    %3432 = vmatprep.subr.bf16.mxu0 0
    %3433 = vmatpush1.bf16.msra.mxu0 %v3405
    %3434 = vmatprep.subr.bf16.mxu0 0
    %3435 = vmatpush1.bf16.msra.mxu0 %v3404
    %3436 = vmatprep.subr.bf16.mxu0 0
    %3437 = vmatpush2.bf16.msra.mxu0 0
    %3438 = vmatprep.subr.bf16.mxu0 0
    %3439 = vmatpush2.bf16.msra.mxu0 0
    %3440 = vmatprep.subr.bf16.mxu0 0
    %3441 = vmatpush2.bf16.msra.mxu0 0
    %3442 = vmatprep.subr.bf16.mxu0 0
    %3443 = vmatpush2.bf16.msra.mxu0 0
    %3444 = vmatprep.subr.bf16.mxu0 0
    %3445 = vmatpush2.bf16.msra.mxu0 0
    %3446 = vmatprep.subr.bf16.mxu0 0
    %3447 = vmatpush2.bf16.msra.mxu0 0
    %3448 = vmatprep.subr.bf16.mxu0 0
    %3449 = vmatpush2.bf16.msra.mxu0 0
    %3450 = vmatprep.subr.bf16.mxu0 0
    %3451 = vmatpush2.bf16.msra.mxu0 0
    %3452 = vmatprep.mubr.bf16.mxu0 0
    %3453 = vmatmul.mubr.bf16.gmra.mxu0 %v3343
    %v3454 = vpop.f32.mrf.mxu0
    %v3455 = vadd.f32 0.0, %v3454
    %v3456 = vpop.f32.mrf.mxu0
    %v3457 = vpop.f32.mrf.mxu0
    %v3458 = vadd.f32 0.0, %v3457
    %v3459 = vpop.f32.mrf.mxu0
    %3460 = vmatprep.mubr.bf16.mxu0 0
    %3461 = vmatmul.mubr.bf16.gmra.mxu0 %v3345
    %v3462 = vpop.f32.mrf.mxu0
    %v3463 = vadd.f32 0.0, %v3462
    %v3464 = vpop.f32.mrf.mxu0
    %v3465 = vpop.f32.mrf.mxu0
    %v3466 = vadd.f32 0.0, %v3465
    %v3467 = vpop.f32.mrf.mxu0
    %3468 = vmatprep.mubr.bf16.mxu0 0
    %3469 = vmatmul.mubr.bf16.gmra.mxu0 %v3347
    %v3470 = vpop.f32.mrf.mxu0
    %v3471 = vadd.f32 0.0, %v3470
    %v3472 = vpop.f32.mrf.mxu0
    %v3473 = vpop.f32.mrf.mxu0
    %v3474 = vadd.f32 0.0, %v3473
    %v3475 = vpop.f32.mrf.mxu0
    %3476 = vmatprep.mubr.bf16.mxu0 0
    %3477 = vmatmul.mubr.bf16.gmra.mxu0 %v3349
    %v3478 = vpop.f32.mrf.mxu0
    %v3479 = vadd.f32 0.0, %v3478
    %v3480 = vpop.f32.mrf.mxu0
    %v3481 = vpop.f32.mrf.mxu0
    %v3482 = vadd.f32 0.0, %v3481
    %v3483 = vpop.f32.mrf.mxu0
    %3484 = vmatprep.mubr.bf16.mxu0 0
    %3485 = vmatmul.mubr.bf16.gmra.mxu0 %v3351
    %v3486 = vpop.f32.mrf.mxu0
    %v3487 = vadd.f32 0.0, %v3486
    %v3488 = vpop.f32.mrf.mxu0
    %v3489 = vpop.f32.mrf.mxu0
    %v3490 = vadd.f32 0.0, %v3489
    %v3491 = vpop.f32.mrf.mxu0
    %3492 = vmatprep.mubr.bf16.mxu0 0
    %3493 = vmatmul.mubr.bf16.gmra.mxu0 %v3353
    %v3494 = vpop.f32.mrf.mxu0
    %v3495 = vadd.f32 0.0, %v3494
    %v3496 = vpop.f32.mrf.mxu0
    %v3497 = vpop.f32.mrf.mxu0
    %v3498 = vadd.f32 0.0, %v3497
    %v3499 = vpop.f32.mrf.mxu0
    %3500 = vmatprep.mubr.bf16.mxu0 0
    %3501 = vmatmul.mubr.bf16.gmra.mxu0 %v3355
    %v3502 = vpop.f32.mrf.mxu0
    %v3503 = vadd.f32 0.0, %v3502
    %v3504 = vpop.f32.mrf.mxu0
    %v3505 = vpop.f32.mrf.mxu0
    %v3506 = vadd.f32 0.0, %v3505
    %v3507 = vpop.f32.mrf.mxu0
    %3508 = vmatprep.mubr.bf16.mxu0 0
    %3509 = vmatmul.mubr.bf16.gmra.mxu0 %v3357
    %v3510 = vpop.f32.mrf.mxu0
    %v3511 = vadd.f32 0.0, %v3510
    %v3512 = vpop.f32.mrf.mxu0
    %v3513 = vpop.f32.mrf.mxu0
    %v3514 = vadd.f32 0.0, %v3513
    %v3515 = vpop.f32.mrf.mxu0
    %3516 = vmatprep.mubr.bf16.mxu0 0
    %3517 = vmatmul.mubr.bf16.gmra.mxu0 %v3359
    %v3518 = vpop.f32.mrf.mxu0
    %v3519 = vadd.f32 0.0, %v3518
    %v3520 = vpop.f32.mrf.mxu0
    %v3521 = vpop.f32.mrf.mxu0
    %v3522 = vadd.f32 0.0, %v3521
    %v3523 = vpop.f32.mrf.mxu0
    %3524 = vmatprep.mubr.bf16.mxu0 0
    %3525 = vmatmul.mubr.bf16.gmra.mxu0 %v3361
    %v3526 = vpop.f32.mrf.mxu0
    %v3527 = vadd.f32 0.0, %v3526
    %v3528 = vpop.f32.mrf.mxu0
    %v3529 = vpop.f32.mrf.mxu0
    %v3530 = vadd.f32 0.0, %v3529
    %v3531 = vpop.f32.mrf.mxu0
    %3532 = vdwg.mxu0
    %v3534 = vunpack.c.l.b16 %v3234
    %v3535 = vpack.c.b16 %v3310, %v3534
    %v3537 = vshrl.u32 %v3535, 16
    %v3539 = vrot.slane %v3537, 2
    %v3540 = vshll.u32 %v3535, 16
    %v3542 = vrot.slane %v3540, 3
    %v3543 = vor.u32 %v3539, %v3542
    %v3545 = vshrl.u32 %v3331, 16
    %v3547 = vrot.slane %v3545, 2
    %v3548 = vshll.u32 %v3331, 16
    %v3550 = vrot.slane %v3548, 3
    %v3551 = vor.u32 %v3547, %v3550
    %v3552 = vsel %vm457, %v3543, %v3551
    %v3554 = vshrl.u32 %v3332, 16
    %v3556 = vrot.slane %v3554, 2
    %v3557 = vshll.u32 %v3332, 16
    %v3559 = vrot.slane %v3557, 3
    %v3560 = vor.u32 %v3556, %v3559
    %v3561 = vsel %vm457, %v3551, %v3560
    %v3563 = vshrl.u32 %v3333, 16
    %v3565 = vrot.slane %v3563, 2
    %v3566 = vshll.u32 %v3333, 16
    %v3568 = vrot.slane %v3566, 3
    %v3569 = vor.u32 %v3565, %v3568
    %v3570 = vsel %vm457, %v3560, %v3569
    %v3572 = vshrl.u32 %v3334, 16
    %v3574 = vrot.slane %v3572, 2
    %v3575 = vshll.u32 %v3334, 16
    %v3577 = vrot.slane %v3575, 3
    %v3578 = vor.u32 %v3574, %v3577
    %v3579 = vsel %vm457, %v3569, %v3578
    %v3581 = vshrl.u32 %v3335, 16
    %v3583 = vrot.slane %v3581, 2
    %v3584 = vshll.u32 %v3335, 16
    %v3586 = vrot.slane %v3584, 3
    %v3587 = vor.u32 %v3583, %v3586
    %v3588 = vsel %vm457, %v3578, %v3587
    %v3590 = vshrl.u32 %v3336, 16
    %v3592 = vrot.slane %v3590, 2
    %v3593 = vshll.u32 %v3336, 16
    %v3595 = vrot.slane %v3593, 3
    %v3596 = vor.u32 %v3592, %v3595
    %v3597 = vsel %vm457, %v3587, %v3596
    %v3599 = vshrl.u32 %v3337, 16
    %v3601 = vrot.slane %v3599, 2
    %v3602 = vshll.u32 %v3337, 16
    %v3604 = vrot.slane %v3602, 3
    %v3605 = vor.u32 %v3601, %v3604
    %v3606 = vsel %vm457, %v3596, %v3605
    %v3608 = vshrl.u32 %v3338, 16
    %v3610 = vrot.slane %v3608, 2
    %v3611 = vshll.u32 %v3338, 16
    %v3613 = vrot.slane %v3611, 3
    %v3614 = vor.u32 %v3610, %v3613
    %v3615 = vsel %vm457, %v3605, %v3614
    %v3617 = vshrl.u32 %v3339, 16
    %v3619 = vrot.slane %v3617, 2
    %v3620 = vshll.u32 %v3339, 16
    %v3622 = vrot.slane %v3620, 3
    %v3623 = vor.u32 %v3619, %v3622
    %v3624 = vsel %vm457, %v3614, %v3623
    %v3626 = vshll.u32 %v3340, 16
    %v3628 = vrot.slane %v3626, 3
    %v3629 = vsel %vm457, %v3623, %v3628
    %v3656 = vunpack.c.l.b16 %v3255
    %v3657 = vunpack.c.l.b16 %v3256
    %v3658 = vunpack.c.l.b16 %v3257
    %v3659 = vunpack.c.l.b16 %v3258
    %v3660 = vunpack.c.l.b16 %v3259
    %v3661 = vunpack.c.l.b16 %v3260
    %v3662 = vunpack.c.l.b16 %v3261
    %v3663 = vunpack.c.l.b16 %v3262
    %v3664 = vunpack.c.l.b16 %v3263
    %v3665 = vunpack.c.l.b16 %v3264
    %v3666 = vunpack.c.l.b16 %v3265
    %v3667 = vunpack.c.l.b16 %v3266
    %v3668 = vunpack.c.l.b16 %v3267
    %v3669 = vunpack.c.l.b16 %v3268
    %v3670 = vunpack.c.l.b16 %v3269
    %v3671 = vunpack.c.l.b16 %v3270
    %v3672 = vpack.c.b16 %v3657, %v3656
    %v3673 = vpack.c.b16 %v3659, %v3658
    %v3674 = vpack.c.b16 %v3661, %v3660
    %v3675 = vpack.c.b16 %v3663, %v3662
    %v3676 = vpack.c.b16 %v3665, %v3664
    %v3677 = vpack.c.b16 %v3667, %v3666
    %v3678 = vpack.c.b16 %v3669, %v3668
    %v3679 = vpack.c.b16 %v3671, %v3670
    %3688 = vmatprep.subr.bf16.mxu0 0
    %3689 = vmatpush1.bf16.msra.mxu0 %v3679
    %3690 = vmatprep.subr.bf16.mxu0 0
    %3691 = vmatpush1.bf16.msra.mxu0 %v3678
    %3692 = vmatprep.subr.bf16.mxu0 0
    %3693 = vmatpush1.bf16.msra.mxu0 %v3677
    %3694 = vmatprep.subr.bf16.mxu0 0
    %3695 = vmatpush1.bf16.msra.mxu0 %v3676
    %3696 = vmatprep.subr.bf16.mxu0 0
    %3697 = vmatpush1.bf16.msra.mxu0 %v3675
    %3698 = vmatprep.subr.bf16.mxu0 0
    %3699 = vmatpush1.bf16.msra.mxu0 %v3674
    %3700 = vmatprep.subr.bf16.mxu0 0
    %3701 = vmatpush1.bf16.msra.mxu0 %v3673
    %3702 = vmatprep.subr.bf16.mxu0 0
    %3703 = vmatpush1.bf16.msra.mxu0 %v3672
    %3704 = vmatprep.subr.bf16.mxu0 0
    %3705 = vmatpush2.bf16.msra.mxu0 0
    %3706 = vmatprep.subr.bf16.mxu0 0
    %3707 = vmatpush2.bf16.msra.mxu0 0
    %3708 = vmatprep.subr.bf16.mxu0 0
    %3709 = vmatpush2.bf16.msra.mxu0 0
    %3710 = vmatprep.subr.bf16.mxu0 0
    %3711 = vmatpush2.bf16.msra.mxu0 0
    %3712 = vmatprep.subr.bf16.mxu0 0
    %3713 = vmatpush2.bf16.msra.mxu0 0
    %3714 = vmatprep.subr.bf16.mxu0 0
    %3715 = vmatpush2.bf16.msra.mxu0 0
    %3716 = vmatprep.subr.bf16.mxu0 0
    %3717 = vmatpush2.bf16.msra.mxu0 0
    %3718 = vmatprep.subr.bf16.mxu0 0
    %3719 = vmatpush2.bf16.msra.mxu0 0
    %3720 = vmatprep.mubr.bf16.mxu0 0
    %3721 = vmatmul.mubr.bf16.gmra.mxu0 %v3552
    %v3722 = vpop.f32.mrf.mxu0
    %v3723 = vadd.f32 %v3455, %v3722
    %v3724 = vpop.f32.mrf.mxu0
    %v3725 = vpop.f32.mrf.mxu0
    %v3726 = vadd.f32 %v3458, %v3725
    %v3727 = vpop.f32.mrf.mxu0
    %3728 = vmatprep.mubr.bf16.mxu0 0
    %3729 = vmatmul.mubr.bf16.gmra.mxu0 %v3561
    %v3730 = vpop.f32.mrf.mxu0
    %v3731 = vadd.f32 %v3463, %v3730
    %v3732 = vpop.f32.mrf.mxu0
    %v3733 = vpop.f32.mrf.mxu0
    %v3734 = vadd.f32 %v3466, %v3733
    %v3735 = vpop.f32.mrf.mxu0
    %3736 = vmatprep.mubr.bf16.mxu0 0
    %3737 = vmatmul.mubr.bf16.gmra.mxu0 %v3570
    %v3738 = vpop.f32.mrf.mxu0
    %v3739 = vadd.f32 %v3471, %v3738
    %v3740 = vpop.f32.mrf.mxu0
    %v3741 = vpop.f32.mrf.mxu0
    %v3742 = vadd.f32 %v3474, %v3741
    %v3743 = vpop.f32.mrf.mxu0
    %3744 = vmatprep.mubr.bf16.mxu0 0
    %3745 = vmatmul.mubr.bf16.gmra.mxu0 %v3579
    %v3746 = vpop.f32.mrf.mxu0
    %v3747 = vadd.f32 %v3479, %v3746
    %v3748 = vpop.f32.mrf.mxu0
    %v3749 = vpop.f32.mrf.mxu0
    %v3750 = vadd.f32 %v3482, %v3749
    %v3751 = vpop.f32.mrf.mxu0
    %3752 = vmatprep.mubr.bf16.mxu0 0
    %3753 = vmatmul.mubr.bf16.gmra.mxu0 %v3588
    %v3754 = vpop.f32.mrf.mxu0
    %v3755 = vadd.f32 %v3487, %v3754
    %v3756 = vpop.f32.mrf.mxu0
    %v3757 = vpop.f32.mrf.mxu0
    %v3758 = vadd.f32 %v3490, %v3757
    %v3759 = vpop.f32.mrf.mxu0
    %3760 = vmatprep.mubr.bf16.mxu0 0
    %3761 = vmatmul.mubr.bf16.gmra.mxu0 %v3597
    %v3762 = vpop.f32.mrf.mxu0
    %v3763 = vadd.f32 %v3495, %v3762
    %v3764 = vpop.f32.mrf.mxu0
    %v3765 = vpop.f32.mrf.mxu0
    %v3766 = vadd.f32 %v3498, %v3765
    %v3767 = vpop.f32.mrf.mxu0
    %3768 = vmatprep.mubr.bf16.mxu0 0
    %3769 = vmatmul.mubr.bf16.gmra.mxu0 %v3606
    %v3770 = vpop.f32.mrf.mxu0
    %v3771 = vadd.f32 %v3503, %v3770
    %v3772 = vpop.f32.mrf.mxu0
    %v3773 = vpop.f32.mrf.mxu0
    %v3774 = vadd.f32 %v3506, %v3773
    %v3775 = vpop.f32.mrf.mxu0
    %3776 = vmatprep.mubr.bf16.mxu0 0
    %3777 = vmatmul.mubr.bf16.gmra.mxu0 %v3615
    %v3778 = vpop.f32.mrf.mxu0
    %v3779 = vadd.f32 %v3511, %v3778
    %v3780 = vpop.f32.mrf.mxu0
    %v3781 = vpop.f32.mrf.mxu0
    %v3782 = vadd.f32 %v3514, %v3781
    %v3783 = vpop.f32.mrf.mxu0
    %3784 = vmatprep.mubr.bf16.mxu0 0
    %3785 = vmatmul.mubr.bf16.gmra.mxu0 %v3624
    %v3786 = vpop.f32.mrf.mxu0
    %v3787 = vadd.f32 %v3519, %v3786
    %v3788 = vpop.f32.mrf.mxu0
    %v3789 = vpop.f32.mrf.mxu0
    %v3790 = vadd.f32 %v3522, %v3789
    %v3791 = vpop.f32.mrf.mxu0
    %3792 = vmatprep.mubr.bf16.mxu0 0
    %3793 = vmatmul.mubr.bf16.gmra.mxu0 %v3629
    %v3794 = vpop.f32.mrf.mxu0
    %v3795 = vadd.f32 %v3527, %v3794
    %v3796 = vpop.f32.mrf.mxu0
    %v3797 = vpop.f32.mrf.mxu0
    %v3798 = vadd.f32 %v3530, %v3797
    %v3799 = vpop.f32.mrf.mxu0
    %3800 = vdwg.mxu0
    %v3801 = vld [vmem:[%s135 + $0xa4] sm:$0x3]
    %v3802 = vld [vmem:[%s739] sm:$0xf]
    %v3803 = vld [vmem:[%s739 + $0x4] sm:$0xf]
    %v3804 = vld [vmem:[%s739 + $0x8] sm:$0xf]
    %v3805 = vld [vmem:[%s739 + $0xc] sm:$0xf]
    %v3806 = vld [vmem:[%s739 + $0x10] sm:$0xf]
    %v3807 = vld [vmem:[%s739 + $0x14] sm:$0xf]
    %v3808 = vld [vmem:[%s739 + $0x18] sm:$0xf]
    %v3809 = vld [vmem:[%s739 + $0x1c] sm:$0xf]
    %v3810 = vld [vmem:[%s739 + $0x20] sm:$0xf]
    %v3811 = vld [vmem:[%s739 + $0x24] sm:$0xf]
    %v3812 = vld [vmem:[%s739 + $0x28] sm:$0xf]
    %v3813 = vld [vmem:[%s739 + $0x2c] sm:$0xf]
    %v3814 = vld [vmem:[%s739 + $0x30] sm:$0xf]
    %v3815 = vld [vmem:[%s739 + $0x34] sm:$0xf]
    %v3816 = vld [vmem:[%s739 + $0x38] sm:$0xf]
    %v3817 = vld [vmem:[%s739 + $0x3c] sm:$0xf]
    %v3819 = vunpack.c.l.b16 %v3801
    %v3820 = vpack.c.b16 %v3819, %v3819
    %v3822 = vshrl.u32 %v3330, 16
    %v3824 = vrot.slane %v3822, 3
    %v3825 = vshll.u32 %v3330, 16
    %v3827 = vrot.slane %v3825, 4
    %v3828 = vor.u32 %v3824, %v3827
    %v3829 = vrot.slane %v3545, 3
    %v3830 = vrot.slane %v3548, 4
    %v3831 = vor.u32 %v3829, %v3830
    %v3832 = vsel %vm759, %v3828, %v3831
    %v3833 = vrot.slane %v3554, 3
    %v3834 = vrot.slane %v3557, 4
    %v3835 = vor.u32 %v3833, %v3834
    %v3836 = vsel %vm759, %v3831, %v3835
    %v3837 = vrot.slane %v3563, 3
    %v3838 = vrot.slane %v3566, 4
    %v3839 = vor.u32 %v3837, %v3838
    %v3840 = vsel %vm759, %v3835, %v3839
    %v3841 = vrot.slane %v3572, 3
    %v3842 = vrot.slane %v3575, 4
    %v3843 = vor.u32 %v3841, %v3842
    %v3844 = vsel %vm759, %v3839, %v3843
    %v3845 = vrot.slane %v3581, 3
    %v3846 = vrot.slane %v3584, 4
    %v3847 = vor.u32 %v3845, %v3846
    %v3848 = vsel %vm759, %v3843, %v3847
    %v3849 = vrot.slane %v3590, 3
    %v3850 = vrot.slane %v3593, 4
    %v3851 = vor.u32 %v3849, %v3850
    %v3852 = vsel %vm759, %v3847, %v3851
    %v3853 = vrot.slane %v3599, 3
    %v3854 = vrot.slane %v3602, 4
    %v3855 = vor.u32 %v3853, %v3854
    %v3856 = vsel %vm759, %v3851, %v3855
    %v3857 = vrot.slane %v3608, 3
    %v3858 = vrot.slane %v3611, 4
    %v3859 = vor.u32 %v3857, %v3858
    %v3860 = vsel %vm759, %v3855, %v3859
    %v3861 = vrot.slane %v3617, 3
    %v3862 = vrot.slane %v3620, 4
    %v3863 = vor.u32 %v3861, %v3862
    %v3864 = vsel %vm759, %v3859, %v3863
    %v3866 = vshrl.u32 %v3820, 16
    %v3868 = vrot.slane %v3866, 3
    %v3869 = vshll.u32 %v3820, 16
    %v3871 = vrot.slane %v3869, 4
    %v3872 = vor.u32 %v3868, %v3871
    %v3873 = vsel %vm759, %v3863, %v3872
    %v3900 = vunpack.c.l.b16 %v3802
    %v3901 = vunpack.c.l.b16 %v3803
    %v3902 = vunpack.c.l.b16 %v3804
    %v3903 = vunpack.c.l.b16 %v3805
    %v3904 = vunpack.c.l.b16 %v3806
    %v3905 = vunpack.c.l.b16 %v3807
    %v3906 = vunpack.c.l.b16 %v3808
    %v3907 = vunpack.c.l.b16 %v3809
    %v3908 = vunpack.c.l.b16 %v3810
    %v3909 = vunpack.c.l.b16 %v3811
    %v3910 = vunpack.c.l.b16 %v3812
    %v3911 = vunpack.c.l.b16 %v3813
    %v3912 = vunpack.c.l.b16 %v3814
    %v3913 = vunpack.c.l.b16 %v3815
    %v3914 = vunpack.c.l.b16 %v3816
    %v3915 = vunpack.c.l.b16 %v3817
    %v3916 = vpack.c.b16 %v3901, %v3900
    %v3917 = vpack.c.b16 %v3903, %v3902
    %v3918 = vpack.c.b16 %v3905, %v3904
    %v3919 = vpack.c.b16 %v3907, %v3906
    %v3920 = vpack.c.b16 %v3909, %v3908
    %v3921 = vpack.c.b16 %v3911, %v3910
    %v3922 = vpack.c.b16 %v3913, %v3912
    %v3923 = vpack.c.b16 %v3915, %v3914
    %3932 = vmatprep.subr.bf16.mxu0 0
    %3933 = vmatpush1.bf16.msra.mxu0 %v3923
    %3934 = vmatprep.subr.bf16.mxu0 0
    %3935 = vmatpush1.bf16.msra.mxu0 %v3922
    %3936 = vmatprep.subr.bf16.mxu0 0
    %3937 = vmatpush1.bf16.msra.mxu0 %v3921
    %3938 = vmatprep.subr.bf16.mxu0 0
    %3939 = vmatpush1.bf16.msra.mxu0 %v3920
    %3940 = vmatprep.subr.bf16.mxu0 0
    %3941 = vmatpush1.bf16.msra.mxu0 %v3919
    %3942 = vmatprep.subr.bf16.mxu0 0
    %3943 = vmatpush1.bf16.msra.mxu0 %v3918
    %3944 = vmatprep.subr.bf16.mxu0 0
    %3945 = vmatpush1.bf16.msra.mxu0 %v3917
    %3946 = vmatprep.subr.bf16.mxu0 0
    %3947 = vmatpush1.bf16.msra.mxu0 %v3916
    %3948 = vmatprep.subr.bf16.mxu0 0
    %3949 = vmatpush2.bf16.msra.mxu0 0
    %3950 = vmatprep.subr.bf16.mxu0 0
    %3951 = vmatpush2.bf16.msra.mxu0 0
    %3952 = vmatprep.subr.bf16.mxu0 0
    %3953 = vmatpush2.bf16.msra.mxu0 0
    %3954 = vmatprep.subr.bf16.mxu0 0
    %3955 = vmatpush2.bf16.msra.mxu0 0
    %3956 = vmatprep.subr.bf16.mxu0 0
    %3957 = vmatpush2.bf16.msra.mxu0 0
    %3958 = vmatprep.subr.bf16.mxu0 0
    %3959 = vmatpush2.bf16.msra.mxu0 0
    %3960 = vmatprep.subr.bf16.mxu0 0
    %3961 = vmatpush2.bf16.msra.mxu0 0
    %3962 = vmatprep.subr.bf16.mxu0 0
    %3963 = vmatpush2.bf16.msra.mxu0 0
    %3964 = vmatprep.mubr.bf16.mxu0 0
    %3965 = vmatmul.mubr.bf16.gmra.mxu0 %v3832
    %v3966 = vpop.f32.mrf.mxu0
    %v3967 = vadd.f32 0.0, %v3966
    %v3968 = vpop.f32.mrf.mxu0
    %v3969 = vpop.f32.mrf.mxu0
    %v3970 = vadd.f32 0.0, %v3969
    %v3971 = vpop.f32.mrf.mxu0
    %3972 = vmatprep.mubr.bf16.mxu0 0
    %3973 = vmatmul.mubr.bf16.gmra.mxu0 %v3836
    %v3974 = vpop.f32.mrf.mxu0
    %v3975 = vadd.f32 0.0, %v3974
    %v3976 = vpop.f32.mrf.mxu0
    %v3977 = vpop.f32.mrf.mxu0
    %v3978 = vadd.f32 0.0, %v3977
    %v3979 = vpop.f32.mrf.mxu0
    %3980 = vmatprep.mubr.bf16.mxu0 0
    %3981 = vmatmul.mubr.bf16.gmra.mxu0 %v3840
    %v3982 = vpop.f32.mrf.mxu0
    %v3983 = vadd.f32 0.0, %v3982
    %v3984 = vpop.f32.mrf.mxu0
    %v3985 = vpop.f32.mrf.mxu0
    %v3986 = vadd.f32 0.0, %v3985
    %v3987 = vpop.f32.mrf.mxu0
    %3988 = vmatprep.mubr.bf16.mxu0 0
    %3989 = vmatmul.mubr.bf16.gmra.mxu0 %v3844
    %v3990 = vpop.f32.mrf.mxu0
    %v3991 = vadd.f32 0.0, %v3990
    %v3992 = vpop.f32.mrf.mxu0
    %v3993 = vpop.f32.mrf.mxu0
    %v3994 = vadd.f32 0.0, %v3993
    %v3995 = vpop.f32.mrf.mxu0
    %3996 = vmatprep.mubr.bf16.mxu0 0
    %3997 = vmatmul.mubr.bf16.gmra.mxu0 %v3848
    %v3998 = vpop.f32.mrf.mxu0
    %v3999 = vadd.f32 0.0, %v3998
    %v4000 = vpop.f32.mrf.mxu0
    %v4001 = vpop.f32.mrf.mxu0
    %v4002 = vadd.f32 0.0, %v4001
    %v4003 = vpop.f32.mrf.mxu0
    %4004 = vmatprep.mubr.bf16.mxu0 0
    %4005 = vmatmul.mubr.bf16.gmra.mxu0 %v3852
    %v4006 = vpop.f32.mrf.mxu0
    %v4007 = vadd.f32 0.0, %v4006
    %v4008 = vpop.f32.mrf.mxu0
    %v4009 = vpop.f32.mrf.mxu0
    %v4010 = vadd.f32 0.0, %v4009
    %v4011 = vpop.f32.mrf.mxu0
    %4012 = vmatprep.mubr.bf16.mxu0 0
    %4013 = vmatmul.mubr.bf16.gmra.mxu0 %v3856
    %v4014 = vpop.f32.mrf.mxu0
    %v4015 = vadd.f32 0.0, %v4014
    %v4016 = vpop.f32.mrf.mxu0
    %v4017 = vpop.f32.mrf.mxu0
    %v4018 = vadd.f32 0.0, %v4017
    %v4019 = vpop.f32.mrf.mxu0
    %4020 = vmatprep.mubr.bf16.mxu0 0
    %4021 = vmatmul.mubr.bf16.gmra.mxu0 %v3860
    %v4022 = vpop.f32.mrf.mxu0
    %v4023 = vadd.f32 0.0, %v4022
    %v4024 = vpop.f32.mrf.mxu0
    %v4025 = vpop.f32.mrf.mxu0
    %v4026 = vadd.f32 0.0, %v4025
    %v4027 = vpop.f32.mrf.mxu0
    %4028 = vmatprep.mubr.bf16.mxu0 0
    %4029 = vmatmul.mubr.bf16.gmra.mxu0 %v3864
    %v4030 = vpop.f32.mrf.mxu0
    %v4031 = vadd.f32 0.0, %v4030
    %v4032 = vpop.f32.mrf.mxu0
    %v4033 = vpop.f32.mrf.mxu0
    %v4034 = vadd.f32 0.0, %v4033
    %v4035 = vpop.f32.mrf.mxu0
    %4036 = vmatprep.mubr.bf16.mxu0 0
    %4037 = vmatmul.mubr.bf16.gmra.mxu0 %v3873
    %v4038 = vpop.f32.mrf.mxu0
    %v4039 = vadd.f32 0.0, %v4038
    %v4040 = vpop.f32.mrf.mxu0
    %v4041 = vpop.f32.mrf.mxu0
    %v4042 = vadd.f32 0.0, %v4041
    %v4043 = vpop.f32.mrf.mxu0
    %4044 = vdwg.mxu0
    %v4045 = vadd.f32 %v3723, %v3967
    %v4046 = vadd.f32 %v3726, %v3970
    %v4047 = vadd.f32 %v3731, %v3975
    %v4048 = vadd.f32 %v3734, %v3978
    %v4049 = vadd.f32 %v3739, %v3983
    %v4050 = vadd.f32 %v3742, %v3986
    %v4051 = vadd.f32 %v3747, %v3991
    %v4052 = vadd.f32 %v3750, %v3994
    %v4053 = vadd.f32 %v3755, %v3999
    %v4054 = vadd.f32 %v3758, %v4002
    %v4055 = vadd.f32 %v3763, %v4007
    %v4056 = vadd.f32 %v3766, %v4010
    %v4057 = vadd.f32 %v3771, %v4015
    %v4058 = vadd.f32 %v3774, %v4018
    %v4059 = vadd.f32 %v3779, %v4023
    %v4060 = vadd.f32 %v3782, %v4026
    %v4061 = vadd.f32 %v3787, %v4031
    %v4062 = vadd.f32 %v3790, %v4034
    %v4063 = vadd.f32 %v3795, %v4039
    %v4064 = vadd.f32 %v3798, %v4042
    %v4065 = vld [vmem:[%s135 + $0x5c] sm:$0x8]
    %v4066 = vld [vmem:[%s135 + $0x60] sm:$0xf]
    %v4067 = vld [vmem:[%s135 + $0x64] sm:$0xf]
    %v4068 = vld [vmem:[%s135 + $0x68] sm:$0xf]
    %v4069 = vld [vmem:[%s135 + $0x6c] sm:$0xf]
    %v4070 = vld [vmem:[%s135 + $0x70] sm:$0xf]
    %v4071 = vld [vmem:[%s135 + $0x74] sm:$0xf]
    %v4072 = vld [vmem:[%s135 + $0x78] sm:$0xf]
    %v4073 = vld [vmem:[%s135 + $0x7c] sm:$0xf]
    %v4074 = vld [vmem:[%s135 + $0x80] sm:$0xf]
    %v4075 = vld [vmem:[%s135 + $0x84] sm:$0xf]
    %v4076 = vld [vmem:[%s135 + $0x88] sm:$0xf]
    %v4077 = vld [vmem:[%s135 + $0x8c] sm:$0xf]
    %v4078 = vld [vmem:[%s135 + $0x90] sm:$0xf]
    %v4079 = vld [vmem:[%s135 + $0x94] sm:$0xf]
    %v4080 = vld [vmem:[%s135 + $0x98] sm:$0xf]
    %v4081 = vld [vmem:[%s135 + $0x9c] sm:$0xf]
    %v4082 = vld [vmem:[%s135 + $0xa0] sm:$0xf]
    %v4083 = vld [vmem:[%s135 + $0xa4] sm:$0xf]
    %v4084 = vld [vmem:[%s135 + $0xa8] sm:$0xf]
    %v4085 = vld [vmem:[%s135 + $0xac] sm:$0x3]
    %v4086 = vld [vmem:[%s1038] sm:$0xf]
    %v4087 = vld [vmem:[%s1038 + $0x4] sm:$0xf]
    %v4088 = vld [vmem:[%s1038 + $0x8] sm:$0xf]
    %v4089 = vld [vmem:[%s1038 + $0xc] sm:$0xf]
    %v4090 = vld [vmem:[%s1038 + $0x10] sm:$0xf]
    %v4091 = vld [vmem:[%s1038 + $0x14] sm:$0xf]
    %v4092 = vld [vmem:[%s1038 + $0x18] sm:$0xf]
    %v4093 = vld [vmem:[%s1038 + $0x1c] sm:$0xf]
    %v4094 = vld [vmem:[%s1038 + $0x20] sm:$0xf]
    %v4095 = vld [vmem:[%s1038 + $0x24] sm:$0xf]
    %v4096 = vld [vmem:[%s1038 + $0x28] sm:$0xf]
    %v4097 = vld [vmem:[%s1038 + $0x2c] sm:$0xf]
    %v4098 = vld [vmem:[%s1038 + $0x30] sm:$0xf]
    %v4099 = vld [vmem:[%s1038 + $0x34] sm:$0xf]
    %v4100 = vld [vmem:[%s1038 + $0x38] sm:$0xf]
    %v4101 = vld [vmem:[%s1038 + $0x3c] sm:$0xf]
    %v4123 = vunpack.c.l.b16 %v4065
    %v4124 = vunpack.c.l.b16 %v4066
    %v4125 = vunpack.c.l.b16 %v4067
    %v4126 = vunpack.c.l.b16 %v4068
    %v4127 = vunpack.c.l.b16 %v4069
    %v4128 = vunpack.c.l.b16 %v4070
    %v4129 = vunpack.c.l.b16 %v4071
    %v4130 = vunpack.c.l.b16 %v4072
    %v4131 = vunpack.c.l.b16 %v4073
    %v4132 = vunpack.c.l.b16 %v4074
    %v4133 = vunpack.c.l.b16 %v4075
    %v4134 = vunpack.c.l.b16 %v4076
    %v4135 = vunpack.c.l.b16 %v4077
    %v4136 = vunpack.c.l.b16 %v4078
    %v4137 = vunpack.c.l.b16 %v4079
    %v4138 = vunpack.c.l.b16 %v4080
    %v4139 = vunpack.c.l.b16 %v4081
    %v4140 = vunpack.c.l.b16 %v4082
    %v4141 = vunpack.c.l.b16 %v4083
    %v4142 = vunpack.c.l.b16 %v4084
    %v4143 = vunpack.c.l.b16 %v4085
    %v4144 = vpack.c.b16 %v4124, %v4123
    %v4145 = vpack.c.b16 %v4126, %v4125
    %v4146 = vpack.c.b16 %v4128, %v4127
    %v4147 = vpack.c.b16 %v4130, %v4129
    %v4148 = vpack.c.b16 %v4132, %v4131
    %v4149 = vpack.c.b16 %v4134, %v4133
    %v4150 = vpack.c.b16 %v4136, %v4135
    %v4151 = vpack.c.b16 %v4138, %v4137
    %v4152 = vpack.c.b16 %v4140, %v4139
    %v4153 = vpack.c.b16 %v4142, %v4141
    %v4154 = vpack.c.b16 %v4143, %v4143
    %v4156 = vshrl.u32 %v4144, 16
    %v4158 = vrot.slane %v4156, 3
    %v4159 = vshll.u32 %v4144, 16
    %v4161 = vrot.slane %v4159, 4
    %v4162 = vor.u32 %v4158, %v4161
    %v4164 = vshrl.u32 %v4145, 16
    %v4166 = vrot.slane %v4164, 3
    %v4167 = vshll.u32 %v4145, 16
    %v4169 = vrot.slane %v4167, 4
    %v4170 = vor.u32 %v4166, %v4169
    %v4171 = vsel %vm759, %v4162, %v4170
    %v4173 = vshrl.u32 %v4146, 16
    %v4175 = vrot.slane %v4173, 3
    %v4176 = vshll.u32 %v4146, 16
    %v4178 = vrot.slane %v4176, 4
    %v4179 = vor.u32 %v4175, %v4178
    %v4180 = vsel %vm759, %v4170, %v4179
    %v4182 = vshrl.u32 %v4147, 16
    %v4184 = vrot.slane %v4182, 3
    %v4185 = vshll.u32 %v4147, 16
    %v4187 = vrot.slane %v4185, 4
    %v4188 = vor.u32 %v4184, %v4187
    %v4189 = vsel %vm759, %v4179, %v4188
    %v4191 = vshrl.u32 %v4148, 16
    %v4193 = vrot.slane %v4191, 3
    %v4194 = vshll.u32 %v4148, 16
    %v4196 = vrot.slane %v4194, 4
    %v4197 = vor.u32 %v4193, %v4196
    %v4198 = vsel %vm759, %v4188, %v4197
    %v4200 = vshrl.u32 %v4149, 16
    %v4202 = vrot.slane %v4200, 3
    %v4203 = vshll.u32 %v4149, 16
    %v4205 = vrot.slane %v4203, 4
    %v4206 = vor.u32 %v4202, %v4205
    %v4207 = vsel %vm759, %v4197, %v4206
    %v4209 = vshrl.u32 %v4150, 16
    %v4211 = vrot.slane %v4209, 3
    %v4212 = vshll.u32 %v4150, 16
    %v4214 = vrot.slane %v4212, 4
    %v4215 = vor.u32 %v4211, %v4214
    %v4216 = vsel %vm759, %v4206, %v4215
    %v4218 = vshrl.u32 %v4151, 16
    %v4220 = vrot.slane %v4218, 3
    %v4221 = vshll.u32 %v4151, 16
    %v4223 = vrot.slane %v4221, 4
    %v4224 = vor.u32 %v4220, %v4223
    %v4225 = vsel %vm759, %v4215, %v4224
    %v4227 = vshrl.u32 %v4152, 16
    %v4229 = vrot.slane %v4227, 3
    %v4230 = vshll.u32 %v4152, 16
    %v4232 = vrot.slane %v4230, 4
    %v4233 = vor.u32 %v4229, %v4232
    %v4234 = vsel %vm759, %v4224, %v4233
    %v4236 = vshrl.u32 %v4153, 16
    %v4238 = vrot.slane %v4236, 3
    %v4239 = vshll.u32 %v4153, 16
    %v4241 = vrot.slane %v4239, 4
    %v4242 = vor.u32 %v4238, %v4241
    %v4243 = vsel %vm759, %v4233, %v4242
    %v4245 = vshrl.u32 %v4154, 16
    %v4247 = vrot.slane %v4245, 3
    %v4248 = vshll.u32 %v4154, 16
    %v4250 = vrot.slane %v4248, 4
    %v4251 = vor.u32 %v4247, %v4250
    %v4252 = vsel %vm759, %v4242, %v4251
    %v4279 = vunpack.c.l.b16 %v4086
    %v4280 = vunpack.c.l.b16 %v4087
    %v4281 = vunpack.c.l.b16 %v4088
    %v4282 = vunpack.c.l.b16 %v4089
    %v4283 = vunpack.c.l.b16 %v4090
    %v4284 = vunpack.c.l.b16 %v4091
    %v4285 = vunpack.c.l.b16 %v4092
    %v4286 = vunpack.c.l.b16 %v4093
    %v4287 = vunpack.c.l.b16 %v4094
    %v4288 = vunpack.c.l.b16 %v4095
    %v4289 = vunpack.c.l.b16 %v4096
    %v4290 = vunpack.c.l.b16 %v4097
    %v4291 = vunpack.c.l.b16 %v4098
    %v4292 = vunpack.c.l.b16 %v4099
    %v4293 = vunpack.c.l.b16 %v4100
    %v4294 = vunpack.c.l.b16 %v4101
    %v4295 = vpack.c.b16 %v4280, %v4279
    %v4296 = vpack.c.b16 %v4282, %v4281
    %v4297 = vpack.c.b16 %v4284, %v4283
    %v4298 = vpack.c.b16 %v4286, %v4285
    %v4299 = vpack.c.b16 %v4288, %v4287
    %v4300 = vpack.c.b16 %v4290, %v4289
    %v4301 = vpack.c.b16 %v4292, %v4291
    %v4302 = vpack.c.b16 %v4294, %v4293
    %4311 = vmatprep.subr.bf16.mxu0 0
    %4312 = vmatpush1.bf16.msra.mxu0 %v4302
    %4313 = vmatprep.subr.bf16.mxu0 0
    %4314 = vmatpush1.bf16.msra.mxu0 %v4301
    %4315 = vmatprep.subr.bf16.mxu0 0
    %4316 = vmatpush1.bf16.msra.mxu0 %v4300
    %4317 = vmatprep.subr.bf16.mxu0 0
    %4318 = vmatpush1.bf16.msra.mxu0 %v4299
    %4319 = vmatprep.subr.bf16.mxu0 0
    %4320 = vmatpush1.bf16.msra.mxu0 %v4298
    %4321 = vmatprep.subr.bf16.mxu0 0
    %4322 = vmatpush1.bf16.msra.mxu0 %v4297
    %4323 = vmatprep.subr.bf16.mxu0 0
    %4324 = vmatpush1.bf16.msra.mxu0 %v4296
    %4325 = vmatprep.subr.bf16.mxu0 0
    %4326 = vmatpush1.bf16.msra.mxu0 %v4295
    %4327 = vmatprep.subr.bf16.mxu0 0
    %4328 = vmatpush2.bf16.msra.mxu0 0
    %4329 = vmatprep.subr.bf16.mxu0 0
    %4330 = vmatpush2.bf16.msra.mxu0 0
    %4331 = vmatprep.subr.bf16.mxu0 0
    %4332 = vmatpush2.bf16.msra.mxu0 0
    %4333 = vmatprep.subr.bf16.mxu0 0
    %4334 = vmatpush2.bf16.msra.mxu0 0
    %4335 = vmatprep.subr.bf16.mxu0 0
    %4336 = vmatpush2.bf16.msra.mxu0 0
    %4337 = vmatprep.subr.bf16.mxu0 0
    %4338 = vmatpush2.bf16.msra.mxu0 0
    %4339 = vmatprep.subr.bf16.mxu0 0
    %4340 = vmatpush2.bf16.msra.mxu0 0
    %4341 = vmatprep.subr.bf16.mxu0 0
    %4342 = vmatpush2.bf16.msra.mxu0 0
    %4343 = vmatprep.mubr.bf16.mxu0 0
    %4344 = vmatmul.mubr.bf16.gmra.mxu0 %v4171
    %v4345 = vpop.f32.mrf.mxu0
    %v4346 = vadd.f32 0.0, %v4345
    %v4347 = vpop.f32.mrf.mxu0
    %v4348 = vpop.f32.mrf.mxu0
    %v4349 = vadd.f32 0.0, %v4348
    %v4350 = vpop.f32.mrf.mxu0
    %4351 = vmatprep.mubr.bf16.mxu0 0
    %4352 = vmatmul.mubr.bf16.gmra.mxu0 %v4180
    %v4353 = vpop.f32.mrf.mxu0
    %v4354 = vadd.f32 0.0, %v4353
    %v4355 = vpop.f32.mrf.mxu0
    %v4356 = vpop.f32.mrf.mxu0
    %v4357 = vadd.f32 0.0, %v4356
    %v4358 = vpop.f32.mrf.mxu0
    %4359 = vmatprep.mubr.bf16.mxu0 0
    %4360 = vmatmul.mubr.bf16.gmra.mxu0 %v4189
    %v4361 = vpop.f32.mrf.mxu0
    %v4362 = vadd.f32 0.0, %v4361
    %v4363 = vpop.f32.mrf.mxu0
    %v4364 = vpop.f32.mrf.mxu0
    %v4365 = vadd.f32 0.0, %v4364
    %v4366 = vpop.f32.mrf.mxu0
    %4367 = vmatprep.mubr.bf16.mxu0 0
    %4368 = vmatmul.mubr.bf16.gmra.mxu0 %v4198
    %v4369 = vpop.f32.mrf.mxu0
    %v4370 = vadd.f32 0.0, %v4369
    %v4371 = vpop.f32.mrf.mxu0
    %v4372 = vpop.f32.mrf.mxu0
    %v4373 = vadd.f32 0.0, %v4372
    %v4374 = vpop.f32.mrf.mxu0
    %4375 = vmatprep.mubr.bf16.mxu0 0
    %4376 = vmatmul.mubr.bf16.gmra.mxu0 %v4207
    %v4377 = vpop.f32.mrf.mxu0
    %v4378 = vadd.f32 0.0, %v4377
    %v4379 = vpop.f32.mrf.mxu0
    %v4380 = vpop.f32.mrf.mxu0
    %v4381 = vadd.f32 0.0, %v4380
    %v4382 = vpop.f32.mrf.mxu0
    %4383 = vmatprep.mubr.bf16.mxu0 0
    %4384 = vmatmul.mubr.bf16.gmra.mxu0 %v4216
    %v4385 = vpop.f32.mrf.mxu0
    %v4386 = vadd.f32 0.0, %v4385
    %v4387 = vpop.f32.mrf.mxu0
    %v4388 = vpop.f32.mrf.mxu0
    %v4389 = vadd.f32 0.0, %v4388
    %v4390 = vpop.f32.mrf.mxu0
    %4391 = vmatprep.mubr.bf16.mxu0 0
    %4392 = vmatmul.mubr.bf16.gmra.mxu0 %v4225
    %v4393 = vpop.f32.mrf.mxu0
    %v4394 = vadd.f32 0.0, %v4393
    %v4395 = vpop.f32.mrf.mxu0
    %v4396 = vpop.f32.mrf.mxu0
    %v4397 = vadd.f32 0.0, %v4396
    %v4398 = vpop.f32.mrf.mxu0
    %4399 = vmatprep.mubr.bf16.mxu0 0
    %4400 = vmatmul.mubr.bf16.gmra.mxu0 %v4234
    %v4401 = vpop.f32.mrf.mxu0
    %v4402 = vadd.f32 0.0, %v4401
    %v4403 = vpop.f32.mrf.mxu0
    %v4404 = vpop.f32.mrf.mxu0
    %v4405 = vadd.f32 0.0, %v4404
    %v4406 = vpop.f32.mrf.mxu0
    %4407 = vmatprep.mubr.bf16.mxu0 0
    %4408 = vmatmul.mubr.bf16.gmra.mxu0 %v4243
    %v4409 = vpop.f32.mrf.mxu0
    %v4410 = vadd.f32 0.0, %v4409
    %v4411 = vpop.f32.mrf.mxu0
    %v4412 = vpop.f32.mrf.mxu0
    %v4413 = vadd.f32 0.0, %v4412
    %v4414 = vpop.f32.mrf.mxu0
    %4415 = vmatprep.mubr.bf16.mxu0 0
    %4416 = vmatmul.mubr.bf16.gmra.mxu0 %v4252
    %v4417 = vpop.f32.mrf.mxu0
    %v4418 = vadd.f32 0.0, %v4417
    %v4419 = vpop.f32.mrf.mxu0
    %v4420 = vpop.f32.mrf.mxu0
    %v4421 = vadd.f32 0.0, %v4420
    %v4422 = vpop.f32.mrf.mxu0
    %4423 = vdwg.mxu0
    %v4424 = vadd.f32 %v4045, %v4346
    %v4425 = vadd.f32 %v4046, %v4349
    %v4426 = vadd.f32 %v4047, %v4354
    %v4427 = vadd.f32 %v4048, %v4357
    %v4428 = vadd.f32 %v4049, %v4362
    %v4429 = vadd.f32 %v4050, %v4365
    %v4430 = vadd.f32 %v4051, %v4370
    %v4431 = vadd.f32 %v4052, %v4373
    %v4432 = vadd.f32 %v4053, %v4378
    %v4433 = vadd.f32 %v4054, %v4381
    %v4434 = vadd.f32 %v4055, %v4386
    %v4435 = vadd.f32 %v4056, %v4389
    %v4436 = vadd.f32 %v4057, %v4394
    %v4437 = vadd.f32 %v4058, %v4397
    %v4438 = vadd.f32 %v4059, %v4402
    %v4439 = vadd.f32 %v4060, %v4405
    %v4440 = vadd.f32 %v4061, %v4410
    %v4441 = vadd.f32 %v4062, %v4413
    %v4442 = vadd.f32 %v4063, %v4418
    %v4443 = vadd.f32 %v4064, %v4421
    %v4444 = vld [vmem:[%s1411] sm:$0xf]
    %v4445 = vld [vmem:[%s1411 + $0x4] sm:$0xf]
    %v4446 = vld [vmem:[%s1411 + $0x8] sm:$0xf]
    %v4447 = vld [vmem:[%s1411 + $0xc] sm:$0xf]
    %v4448 = vld [vmem:[%s1411 + $0x10] sm:$0xf]
    %v4449 = vld [vmem:[%s1411 + $0x14] sm:$0xf]
    %v4450 = vld [vmem:[%s1411 + $0x18] sm:$0xf]
    %v4451 = vld [vmem:[%s1411 + $0x1c] sm:$0xf]
    %v4452 = vld [vmem:[%s1411 + $0x20] sm:$0xf]
    %v4453 = vld [vmem:[%s1411 + $0x24] sm:$0xf]
    %v4454 = vld [vmem:[%s1411 + $0x28] sm:$0xf]
    %v4455 = vld [vmem:[%s1411 + $0x2c] sm:$0xf]
    %v4456 = vld [vmem:[%s1411 + $0x30] sm:$0xf]
    %v4457 = vld [vmem:[%s1411 + $0x34] sm:$0xf]
    %v4458 = vld [vmem:[%s1411 + $0x38] sm:$0xf]
    %v4459 = vld [vmem:[%s1411 + $0x3c] sm:$0xf]
    %v4460 = vpack.c.b16 %v4125, %v4124
    %v4461 = vpack.c.b16 %v4127, %v4126
    %v4462 = vpack.c.b16 %v4129, %v4128
    %v4463 = vpack.c.b16 %v4131, %v4130
    %v4464 = vpack.c.b16 %v4133, %v4132
    %v4465 = vpack.c.b16 %v4135, %v4134
    %v4466 = vpack.c.b16 %v4137, %v4136
    %v4467 = vpack.c.b16 %v4139, %v4138
    %v4468 = vpack.c.b16 %v4141, %v4140
    %v4469 = vpack.c.b16 %v4143, %v4142
    %v4496 = vunpack.c.l.b16 %v4444
    %v4497 = vunpack.c.l.b16 %v4445
    %v4498 = vunpack.c.l.b16 %v4446
    %v4499 = vunpack.c.l.b16 %v4447
    %v4500 = vunpack.c.l.b16 %v4448
    %v4501 = vunpack.c.l.b16 %v4449
    %v4502 = vunpack.c.l.b16 %v4450
    %v4503 = vunpack.c.l.b16 %v4451
    %v4504 = vunpack.c.l.b16 %v4452
    %v4505 = vunpack.c.l.b16 %v4453
    %v4506 = vunpack.c.l.b16 %v4454
    %v4507 = vunpack.c.l.b16 %v4455
    %v4508 = vunpack.c.l.b16 %v4456
    %v4509 = vunpack.c.l.b16 %v4457
    %v4510 = vunpack.c.l.b16 %v4458
    %v4511 = vunpack.c.l.b16 %v4459
    %v4512 = vpack.c.b16 %v4497, %v4496
    %v4513 = vpack.c.b16 %v4499, %v4498
    %v4514 = vpack.c.b16 %v4501, %v4500
    %v4515 = vpack.c.b16 %v4503, %v4502
    %v4516 = vpack.c.b16 %v4505, %v4504
    %v4517 = vpack.c.b16 %v4507, %v4506
    %v4518 = vpack.c.b16 %v4509, %v4508
    %v4519 = vpack.c.b16 %v4511, %v4510
    %4528 = vmatprep.subr.bf16.mxu0 0
    %4529 = vmatpush1.bf16.msra.mxu0 %v4519
    %4530 = vmatprep.subr.bf16.mxu0 0
    %4531 = vmatpush1.bf16.msra.mxu0 %v4518
    %4532 = vmatprep.subr.bf16.mxu0 0
    %4533 = vmatpush1.bf16.msra.mxu0 %v4517
    %4534 = vmatprep.subr.bf16.mxu0 0
    %4535 = vmatpush1.bf16.msra.mxu0 %v4516
    %4536 = vmatprep.subr.bf16.mxu0 0
    %4537 = vmatpush1.bf16.msra.mxu0 %v4515
    %4538 = vmatprep.subr.bf16.mxu0 0
    %4539 = vmatpush1.bf16.msra.mxu0 %v4514
    %4540 = vmatprep.subr.bf16.mxu0 0
    %4541 = vmatpush1.bf16.msra.mxu0 %v4513
    %4542 = vmatprep.subr.bf16.mxu0 0
    %4543 = vmatpush1.bf16.msra.mxu0 %v4512
    %4544 = vmatprep.subr.bf16.mxu0 0
    %4545 = vmatpush2.bf16.msra.mxu0 0
    %4546 = vmatprep.subr.bf16.mxu0 0
    %4547 = vmatpush2.bf16.msra.mxu0 0
    %4548 = vmatprep.subr.bf16.mxu0 0
    %4549 = vmatpush2.bf16.msra.mxu0 0
    %4550 = vmatprep.subr.bf16.mxu0 0
    %4551 = vmatpush2.bf16.msra.mxu0 0
    %4552 = vmatprep.subr.bf16.mxu0 0
    %4553 = vmatpush2.bf16.msra.mxu0 0
    %4554 = vmatprep.subr.bf16.mxu0 0
    %4555 = vmatpush2.bf16.msra.mxu0 0
    %4556 = vmatprep.subr.bf16.mxu0 0
    %4557 = vmatpush2.bf16.msra.mxu0 0
    %4558 = vmatprep.subr.bf16.mxu0 0
    %4559 = vmatpush2.bf16.msra.mxu0 0
    %4560 = vmatprep.mubr.bf16.mxu0 0
    %4561 = vmatmul.mubr.bf16.gmra.mxu0 %v4460
    %v4562 = vpop.f32.mrf.mxu0
    %v4563 = vadd.f32 0.0, %v4562
    %v4564 = vpop.f32.mrf.mxu0
    %v4565 = vpop.f32.mrf.mxu0
    %v4566 = vadd.f32 0.0, %v4565
    %v4567 = vpop.f32.mrf.mxu0
    %4568 = vmatprep.mubr.bf16.mxu0 0
    %4569 = vmatmul.mubr.bf16.gmra.mxu0 %v4461
    %v4570 = vpop.f32.mrf.mxu0
    %v4571 = vadd.f32 0.0, %v4570
    %v4572 = vpop.f32.mrf.mxu0
    %v4573 = vpop.f32.mrf.mxu0
    %v4574 = vadd.f32 0.0, %v4573
    %v4575 = vpop.f32.mrf.mxu0
    %4576 = vmatprep.mubr.bf16.mxu0 0
    %4577 = vmatmul.mubr.bf16.gmra.mxu0 %v4462
    %v4578 = vpop.f32.mrf.mxu0
    %v4579 = vadd.f32 0.0, %v4578
    %v4580 = vpop.f32.mrf.mxu0
    %v4581 = vpop.f32.mrf.mxu0
    %v4582 = vadd.f32 0.0, %v4581
    %v4583 = vpop.f32.mrf.mxu0
    %4584 = vmatprep.mubr.bf16.mxu0 0
    %4585 = vmatmul.mubr.bf16.gmra.mxu0 %v4463
    %v4586 = vpop.f32.mrf.mxu0
    %v4587 = vadd.f32 0.0, %v4586
    %v4588 = vpop.f32.mrf.mxu0
    %v4589 = vpop.f32.mrf.mxu0
    %v4590 = vadd.f32 0.0, %v4589
    %v4591 = vpop.f32.mrf.mxu0
    %4592 = vmatprep.mubr.bf16.mxu0 0
    %4593 = vmatmul.mubr.bf16.gmra.mxu0 %v4464
    %v4594 = vpop.f32.mrf.mxu0
    %v4595 = vadd.f32 0.0, %v4594
    %v4596 = vpop.f32.mrf.mxu0
    %v4597 = vpop.f32.mrf.mxu0
    %v4598 = vadd.f32 0.0, %v4597
    %v4599 = vpop.f32.mrf.mxu0
    %4600 = vmatprep.mubr.bf16.mxu0 0
    %4601 = vmatmul.mubr.bf16.gmra.mxu0 %v4465
    %v4602 = vpop.f32.mrf.mxu0
    %v4603 = vadd.f32 0.0, %v4602
    %v4604 = vpop.f32.mrf.mxu0
    %v4605 = vpop.f32.mrf.mxu0
    %v4606 = vadd.f32 0.0, %v4605
    %v4607 = vpop.f32.mrf.mxu0
    %4608 = vmatprep.mubr.bf16.mxu0 0
    %4609 = vmatmul.mubr.bf16.gmra.mxu0 %v4466
    %v4610 = vpop.f32.mrf.mxu0
    %v4611 = vadd.f32 0.0, %v4610
    %v4612 = vpop.f32.mrf.mxu0
    %v4613 = vpop.f32.mrf.mxu0
    %v4614 = vadd.f32 0.0, %v4613
    %v4615 = vpop.f32.mrf.mxu0
    %4616 = vmatprep.mubr.bf16.mxu0 0
    %4617 = vmatmul.mubr.bf16.gmra.mxu0 %v4467
    %v4618 = vpop.f32.mrf.mxu0
    %v4619 = vadd.f32 0.0, %v4618
    %v4620 = vpop.f32.mrf.mxu0
    %v4621 = vpop.f32.mrf.mxu0
    %v4622 = vadd.f32 0.0, %v4621
    %v4623 = vpop.f32.mrf.mxu0
    %4624 = vmatprep.mubr.bf16.mxu0 0
    %4625 = vmatmul.mubr.bf16.gmra.mxu0 %v4468
    %v4626 = vpop.f32.mrf.mxu0
    %v4627 = vadd.f32 0.0, %v4626
    %v4628 = vpop.f32.mrf.mxu0
    %v4629 = vpop.f32.mrf.mxu0
    %v4630 = vadd.f32 0.0, %v4629
    %v4631 = vpop.f32.mrf.mxu0
    %4632 = vmatprep.mubr.bf16.mxu0 0
    %4633 = vmatmul.mubr.bf16.gmra.mxu0 %v4469
    %v4634 = vpop.f32.mrf.mxu0
    %v4635 = vadd.f32 0.0, %v4634
    %v4636 = vpop.f32.mrf.mxu0
    %v4637 = vpop.f32.mrf.mxu0
    %v4638 = vadd.f32 0.0, %v4637
    %v4639 = vpop.f32.mrf.mxu0
    %4640 = vdwg.mxu0
    %v4641 = vadd.f32 %v4424, %v4563
    %v4642 = vadd.f32 %v4425, %v4566
    %v4643 = vadd.f32 %v4426, %v4571
    %v4644 = vadd.f32 %v4427, %v4574
    %v4645 = vadd.f32 %v4428, %v4579
    %v4646 = vadd.f32 %v4429, %v4582
    %v4647 = vadd.f32 %v4430, %v4587
    %v4648 = vadd.f32 %v4431, %v4590
    %v4649 = vadd.f32 %v4432, %v4595
    %v4650 = vadd.f32 %v4433, %v4598
    %v4651 = vadd.f32 %v4434, %v4603
    %v4652 = vadd.f32 %v4435, %v4606
    %v4653 = vadd.f32 %v4436, %v4611
    %v4654 = vadd.f32 %v4437, %v4614
    %v4655 = vadd.f32 %v4438, %v4619
    %v4656 = vadd.f32 %v4439, %v4622
    %v4657 = vadd.f32 %v4440, %v4627
    %v4658 = vadd.f32 %v4441, %v4630
    %v4659 = vadd.f32 %v4442, %v4635
    %v4660 = vadd.f32 %v4443, %v4638
    %v4661 = vld [vmem:[%s135 + $0xac] sm:$0x7]
    %v4662 = vld [vmem:[%s1664] sm:$0xf]
    %v4663 = vld [vmem:[%s1664 + $0x4] sm:$0xf]
    %v4664 = vld [vmem:[%s1664 + $0x8] sm:$0xf]
    %v4665 = vld [vmem:[%s1664 + $0xc] sm:$0xf]
    %v4666 = vld [vmem:[%s1664 + $0x10] sm:$0xf]
    %v4667 = vld [vmem:[%s1664 + $0x14] sm:$0xf]
    %v4668 = vld [vmem:[%s1664 + $0x18] sm:$0xf]
    %v4669 = vld [vmem:[%s1664 + $0x1c] sm:$0xf]
    %v4670 = vld [vmem:[%s1664 + $0x20] sm:$0xf]
    %v4671 = vld [vmem:[%s1664 + $0x24] sm:$0xf]
    %v4672 = vld [vmem:[%s1664 + $0x28] sm:$0xf]
    %v4673 = vld [vmem:[%s1664 + $0x2c] sm:$0xf]
    %v4674 = vld [vmem:[%s1664 + $0x30] sm:$0xf]
    %v4675 = vld [vmem:[%s1664 + $0x34] sm:$0xf]
    %v4676 = vld [vmem:[%s1664 + $0x38] sm:$0xf]
    %v4677 = vld [vmem:[%s1664 + $0x3c] sm:$0xf]
    %v4679 = vunpack.c.l.b16 %v4661
    %v4680 = vpack.c.b16 %v4679, %v4142
    %v4682 = vshrl.u32 %v4460, 16
    %v4684 = vshll.u32 %v4460, 16
    %v4686 = vrot.slane %v4684, 1
    %v4687 = vor.u32 %v4682, %v4686
    %v4689 = vshll.u32 %v4461, 16
    %v4691 = vrot.slane %v4689, 1
    %v4692 = vsel %vm1736, %v4687, %v4691
    %v4693 = vshrl.u32 %v4461, 16
    %v4695 = vor.u32 %v4693, %v4691
    %v4697 = vshll.u32 %v4462, 16
    %v4699 = vrot.slane %v4697, 1
    %v4700 = vsel %vm1736, %v4695, %v4699
    %v4701 = vshrl.u32 %v4462, 16
    %v4703 = vor.u32 %v4701, %v4699
    %v4705 = vshll.u32 %v4463, 16
    %v4707 = vrot.slane %v4705, 1
    %v4708 = vsel %vm1736, %v4703, %v4707
    %v4709 = vshrl.u32 %v4463, 16
    %v4711 = vor.u32 %v4709, %v4707
    %v4713 = vshll.u32 %v4464, 16
    %v4715 = vrot.slane %v4713, 1
    %v4716 = vsel %vm1736, %v4711, %v4715
    %v4717 = vshrl.u32 %v4464, 16
    %v4719 = vor.u32 %v4717, %v4715
    %v4721 = vshll.u32 %v4465, 16
    %v4723 = vrot.slane %v4721, 1
    %v4724 = vsel %vm1736, %v4719, %v4723
    %v4725 = vshrl.u32 %v4465, 16
    %v4727 = vor.u32 %v4725, %v4723
    %v4729 = vshll.u32 %v4466, 16
    %v4731 = vrot.slane %v4729, 1
    %v4732 = vsel %vm1736, %v4727, %v4731
    %v4733 = vshrl.u32 %v4466, 16
    %v4735 = vor.u32 %v4733, %v4731
    %v4737 = vshll.u32 %v4467, 16
    %v4739 = vrot.slane %v4737, 1
    %v4740 = vsel %vm1736, %v4735, %v4739
    %v4741 = vshrl.u32 %v4467, 16
    %v4743 = vor.u32 %v4741, %v4739
    %v4745 = vshll.u32 %v4468, 16
    %v4747 = vrot.slane %v4745, 1
    %v4748 = vsel %vm1736, %v4743, %v4747
    %v4749 = vshrl.u32 %v4468, 16
    %v4751 = vor.u32 %v4749, %v4747
    %v4753 = vshll.u32 %v4680, 16
    %v4755 = vrot.slane %v4753, 1
    %v4756 = vsel %vm1736, %v4751, %v4755
    %v4757 = vshrl.u32 %v4680, 16
    %v4759 = vor.u32 %v4757, %v4755
    %v4786 = vunpack.c.l.b16 %v4662
    %v4787 = vunpack.c.l.b16 %v4663
    %v4788 = vunpack.c.l.b16 %v4664
    %v4789 = vunpack.c.l.b16 %v4665
    %v4790 = vunpack.c.l.b16 %v4666
    %v4791 = vunpack.c.l.b16 %v4667
    %v4792 = vunpack.c.l.b16 %v4668
    %v4793 = vunpack.c.l.b16 %v4669
    %v4794 = vunpack.c.l.b16 %v4670
    %v4795 = vunpack.c.l.b16 %v4671
    %v4796 = vunpack.c.l.b16 %v4672
    %v4797 = vunpack.c.l.b16 %v4673
    %v4798 = vunpack.c.l.b16 %v4674
    %v4799 = vunpack.c.l.b16 %v4675
    %v4800 = vunpack.c.l.b16 %v4676
    %v4801 = vunpack.c.l.b16 %v4677
    %v4802 = vpack.c.b16 %v4787, %v4786
    %v4803 = vpack.c.b16 %v4789, %v4788
    %v4804 = vpack.c.b16 %v4791, %v4790
    %v4805 = vpack.c.b16 %v4793, %v4792
    %v4806 = vpack.c.b16 %v4795, %v4794
    %v4807 = vpack.c.b16 %v4797, %v4796
    %v4808 = vpack.c.b16 %v4799, %v4798
    %v4809 = vpack.c.b16 %v4801, %v4800
    %4818 = vmatprep.subr.bf16.mxu0 0
    %4819 = vmatpush1.bf16.msra.mxu0 %v4809
    %4820 = vmatprep.subr.bf16.mxu0 0
    %4821 = vmatpush1.bf16.msra.mxu0 %v4808
    %4822 = vmatprep.subr.bf16.mxu0 0
    %4823 = vmatpush1.bf16.msra.mxu0 %v4807
    %4824 = vmatprep.subr.bf16.mxu0 0
    %4825 = vmatpush1.bf16.msra.mxu0 %v4806
    %4826 = vmatprep.subr.bf16.mxu0 0
    %4827 = vmatpush1.bf16.msra.mxu0 %v4805
    %4828 = vmatprep.subr.bf16.mxu0 0
    %4829 = vmatpush1.bf16.msra.mxu0 %v4804
    %4830 = vmatprep.subr.bf16.mxu0 0
    %4831 = vmatpush1.bf16.msra.mxu0 %v4803
    %4832 = vmatprep.subr.bf16.mxu0 0
    %4833 = vmatpush1.bf16.msra.mxu0 %v4802
    %4834 = vmatprep.subr.bf16.mxu0 0
    %4835 = vmatpush2.bf16.msra.mxu0 0
    %4836 = vmatprep.subr.bf16.mxu0 0
    %4837 = vmatpush2.bf16.msra.mxu0 0
    %4838 = vmatprep.subr.bf16.mxu0 0
    %4839 = vmatpush2.bf16.msra.mxu0 0
    %4840 = vmatprep.subr.bf16.mxu0 0
    %4841 = vmatpush2.bf16.msra.mxu0 0
    %4842 = vmatprep.subr.bf16.mxu0 0
    %4843 = vmatpush2.bf16.msra.mxu0 0
    %4844 = vmatprep.subr.bf16.mxu0 0
    %4845 = vmatpush2.bf16.msra.mxu0 0
    %4846 = vmatprep.subr.bf16.mxu0 0
    %4847 = vmatpush2.bf16.msra.mxu0 0
    %4848 = vmatprep.subr.bf16.mxu0 0
    %4849 = vmatpush2.bf16.msra.mxu0 0
    %4850 = vmatprep.mubr.bf16.mxu0 0
    %4851 = vmatmul.mubr.bf16.gmra.mxu0 %v4692
    %v4852 = vpop.f32.mrf.mxu0
    %v4853 = vadd.f32 0.0, %v4852
    %v4854 = vpop.f32.mrf.mxu0
    %v4855 = vpop.f32.mrf.mxu0
    %v4856 = vadd.f32 0.0, %v4855
    %v4857 = vpop.f32.mrf.mxu0
    %4858 = vmatprep.mubr.bf16.mxu0 0
    %4859 = vmatmul.mubr.bf16.gmra.mxu0 %v4700
    %v4860 = vpop.f32.mrf.mxu0
    %v4861 = vadd.f32 0.0, %v4860
    %v4862 = vpop.f32.mrf.mxu0
    %v4863 = vpop.f32.mrf.mxu0
    %v4864 = vadd.f32 0.0, %v4863
    %v4865 = vpop.f32.mrf.mxu0
    %4866 = vmatprep.mubr.bf16.mxu0 0
    %4867 = vmatmul.mubr.bf16.gmra.mxu0 %v4708
    %v4868 = vpop.f32.mrf.mxu0
    %v4869 = vadd.f32 0.0, %v4868
    %v4870 = vpop.f32.mrf.mxu0
    %v4871 = vpop.f32.mrf.mxu0
    %v4872 = vadd.f32 0.0, %v4871
    %v4873 = vpop.f32.mrf.mxu0
    %4874 = vmatprep.mubr.bf16.mxu0 0
    %4875 = vmatmul.mubr.bf16.gmra.mxu0 %v4716
    %v4876 = vpop.f32.mrf.mxu0
    %v4877 = vadd.f32 0.0, %v4876
    %v4878 = vpop.f32.mrf.mxu0
    %v4879 = vpop.f32.mrf.mxu0
    %v4880 = vadd.f32 0.0, %v4879
    %v4881 = vpop.f32.mrf.mxu0
    %4882 = vmatprep.mubr.bf16.mxu0 0
    %4883 = vmatmul.mubr.bf16.gmra.mxu0 %v4724
    %v4884 = vpop.f32.mrf.mxu0
    %v4885 = vadd.f32 0.0, %v4884
    %v4886 = vpop.f32.mrf.mxu0
    %v4887 = vpop.f32.mrf.mxu0
    %v4888 = vadd.f32 0.0, %v4887
    %v4889 = vpop.f32.mrf.mxu0
    %4890 = vmatprep.mubr.bf16.mxu0 0
    %4891 = vmatmul.mubr.bf16.gmra.mxu0 %v4732
    %v4892 = vpop.f32.mrf.mxu0
    %v4893 = vadd.f32 0.0, %v4892
    %v4894 = vpop.f32.mrf.mxu0
    %v4895 = vpop.f32.mrf.mxu0
    %v4896 = vadd.f32 0.0, %v4895
    %v4897 = vpop.f32.mrf.mxu0
    %4898 = vmatprep.mubr.bf16.mxu0 0
    %4899 = vmatmul.mubr.bf16.gmra.mxu0 %v4740
    %v4900 = vpop.f32.mrf.mxu0
    %v4901 = vadd.f32 0.0, %v4900
    %v4902 = vpop.f32.mrf.mxu0
    %v4903 = vpop.f32.mrf.mxu0
    %v4904 = vadd.f32 0.0, %v4903
    %v4905 = vpop.f32.mrf.mxu0
    %4906 = vmatprep.mubr.bf16.mxu0 0
    %4907 = vmatmul.mubr.bf16.gmra.mxu0 %v4748
    %v4908 = vpop.f32.mrf.mxu0
    %v4909 = vadd.f32 0.0, %v4908
    %v4910 = vpop.f32.mrf.mxu0
    %v4911 = vpop.f32.mrf.mxu0
    %v4912 = vadd.f32 0.0, %v4911
    %v4913 = vpop.f32.mrf.mxu0
    %4914 = vmatprep.mubr.bf16.mxu0 0
    %4915 = vmatmul.mubr.bf16.gmra.mxu0 %v4756
    %v4916 = vpop.f32.mrf.mxu0
    %v4917 = vadd.f32 0.0, %v4916
    %v4918 = vpop.f32.mrf.mxu0
    %v4919 = vpop.f32.mrf.mxu0
    %v4920 = vadd.f32 0.0, %v4919
    %v4921 = vpop.f32.mrf.mxu0
    %4922 = vmatprep.mubr.bf16.mxu0 0
    %4923 = vmatmul.mubr.bf16.gmra.mxu0 %v4759
    %v4924 = vpop.f32.mrf.mxu0
    %v4925 = vadd.f32 0.0, %v4924
    %v4926 = vpop.f32.mrf.mxu0
    %v4927 = vpop.f32.mrf.mxu0
    %v4928 = vadd.f32 0.0, %v4927
    %v4929 = vpop.f32.mrf.mxu0
    %4930 = vdwg.mxu0
    %v4931 = vadd.f32 %v4641, %v4853
    %v4932 = vadd.f32 %v4642, %v4856
    %v4933 = vadd.f32 %v4643, %v4861
    %v4934 = vadd.f32 %v4644, %v4864
    %v4935 = vadd.f32 %v4645, %v4869
    %v4936 = vadd.f32 %v4646, %v4872
    %v4937 = vadd.f32 %v4647, %v4877
    %v4938 = vadd.f32 %v4648, %v4880
    %v4939 = vadd.f32 %v4649, %v4885
    %v4940 = vadd.f32 %v4650, %v4888
    %v4941 = vadd.f32 %v4651, %v4893
    %v4942 = vadd.f32 %v4652, %v4896
    %v4943 = vadd.f32 %v4653, %v4901
    %v4944 = vadd.f32 %v4654, %v4904
    %v4945 = vadd.f32 %v4655, %v4909
    %v4946 = vadd.f32 %v4656, %v4912
    %v4947 = vadd.f32 %v4657, %v4917
    %v4948 = vadd.f32 %v4658, %v4920
    %v4949 = vadd.f32 %v4659, %v4925
    %v4950 = vadd.f32 %v4660, %v4928
    %v4951 = vld [vmem:[%s135 + $0x68] sm:$0xf]
    %v4952 = vld [vmem:[%s135 + $0x6c] sm:$0xf]
    %v4953 = vld [vmem:[%s135 + $0x70] sm:$0xf]
    %v4954 = vld [vmem:[%s135 + $0x74] sm:$0xf]
    %v4955 = vld [vmem:[%s135 + $0x78] sm:$0xf]
    %v4956 = vld [vmem:[%s135 + $0x7c] sm:$0xf]
    %v4957 = vld [vmem:[%s135 + $0x80] sm:$0xf]
    %v4958 = vld [vmem:[%s135 + $0x84] sm:$0xf]
    %v4959 = vld [vmem:[%s135 + $0x88] sm:$0xf]
    %v4960 = vld [vmem:[%s135 + $0x8c] sm:$0xf]
    %v4961 = vld [vmem:[%s135 + $0x90] sm:$0xf]
    %v4962 = vld [vmem:[%s135 + $0x94] sm:$0xf]
    %v4963 = vld [vmem:[%s135 + $0x98] sm:$0xf]
    %v4964 = vld [vmem:[%s135 + $0x9c] sm:$0xf]
    %v4965 = vld [vmem:[%s135 + $0xa0] sm:$0xf]
    %v4966 = vld [vmem:[%s135 + $0xa4] sm:$0xf]
    %v4967 = vld [vmem:[%s135 + $0xa8] sm:$0xf]
    %v4968 = vld [vmem:[%s135 + $0xac] sm:$0xf]
    %v4969 = vld [vmem:[%s135 + $0xb0] sm:$0xf]
    %v4970 = vld [vmem:[%s135 + $0xb4] sm:$0x7]
    %v4971 = vld [vmem:[%s2049] sm:$0xf]
    %v4972 = vld [vmem:[%s2049 + $0x4] sm:$0xf]
    %v4973 = vld [vmem:[%s2049 + $0x8] sm:$0xf]
    %v4974 = vld [vmem:[%s2049 + $0xc] sm:$0xf]
    %v4975 = vld [vmem:[%s2049 + $0x10] sm:$0xf]
    %v4976 = vld [vmem:[%s2049 + $0x14] sm:$0xf]
    %v4977 = vld [vmem:[%s2049 + $0x18] sm:$0xf]
    %v4978 = vld [vmem:[%s2049 + $0x1c] sm:$0xf]
    %v4979 = vld [vmem:[%s2049 + $0x20] sm:$0xf]
    %v4980 = vld [vmem:[%s2049 + $0x24] sm:$0xf]
    %v4981 = vld [vmem:[%s2049 + $0x28] sm:$0xf]
    %v4982 = vld [vmem:[%s2049 + $0x2c] sm:$0xf]
    %v4983 = vld [vmem:[%s2049 + $0x30] sm:$0xf]
    %v4984 = vld [vmem:[%s2049 + $0x34] sm:$0xf]
    %v4985 = vld [vmem:[%s2049 + $0x38] sm:$0xf]
    %v4986 = vld [vmem:[%s2049 + $0x3c] sm:$0xf]
    %v5007 = vunpack.c.l.b16 %v4951
    %v5008 = vunpack.c.l.b16 %v4952
    %v5009 = vunpack.c.l.b16 %v4953
    %v5010 = vunpack.c.l.b16 %v4954
    %v5011 = vunpack.c.l.b16 %v4955
    %v5012 = vunpack.c.l.b16 %v4956
    %v5013 = vunpack.c.l.b16 %v4957
    %v5014 = vunpack.c.l.b16 %v4958
    %v5015 = vunpack.c.l.b16 %v4959
    %v5016 = vunpack.c.l.b16 %v4960
    %v5017 = vunpack.c.l.b16 %v4961
    %v5018 = vunpack.c.l.b16 %v4962
    %v5019 = vunpack.c.l.b16 %v4963
    %v5020 = vunpack.c.l.b16 %v4964
    %v5021 = vunpack.c.l.b16 %v4965
    %v5022 = vunpack.c.l.b16 %v4966
    %v5023 = vunpack.c.l.b16 %v4967
    %v5024 = vunpack.c.l.b16 %v4968
    %v5025 = vunpack.c.l.b16 %v4969
    %v5026 = vunpack.c.l.b16 %v4970
    %v5027 = vpack.c.b16 %v5008, %v5007
    %v5028 = vpack.c.b16 %v5010, %v5009
    %v5029 = vpack.c.b16 %v5012, %v5011
    %v5030 = vpack.c.b16 %v5014, %v5013
    %v5031 = vpack.c.b16 %v5016, %v5015
    %v5032 = vpack.c.b16 %v5018, %v5017
    %v5033 = vpack.c.b16 %v5020, %v5019
    %v5034 = vpack.c.b16 %v5022, %v5021
    %v5035 = vpack.c.b16 %v5024, %v5023
    %v5036 = vpack.c.b16 %v5026, %v5025
    %v5038 = vshrl.u32 %v5027, 16
    %v5040 = vshll.u32 %v5027, 16
    %v5042 = vrot.slane %v5040, 1
    %v5043 = vor.u32 %v5038, %v5042
    %v5045 = vshll.u32 %v5028, 16
    %v5047 = vrot.slane %v5045, 1
    %v5048 = vsel %vm1736, %v5043, %v5047
    %v5049 = vshrl.u32 %v5028, 16
    %v5051 = vor.u32 %v5049, %v5047
    %v5053 = vshll.u32 %v5029, 16
    %v5055 = vrot.slane %v5053, 1
    %v5056 = vsel %vm1736, %v5051, %v5055
    %v5057 = vshrl.u32 %v5029, 16
    %v5059 = vor.u32 %v5057, %v5055
    %v5061 = vshll.u32 %v5030, 16
    %v5063 = vrot.slane %v5061, 1
    %v5064 = vsel %vm1736, %v5059, %v5063
    %v5065 = vshrl.u32 %v5030, 16
    %v5067 = vor.u32 %v5065, %v5063
    %v5069 = vshll.u32 %v5031, 16
    %v5071 = vrot.slane %v5069, 1
    %v5072 = vsel %vm1736, %v5067, %v5071
    %v5073 = vshrl.u32 %v5031, 16
    %v5075 = vor.u32 %v5073, %v5071
    %v5077 = vshll.u32 %v5032, 16
    %v5079 = vrot.slane %v5077, 1
    %v5080 = vsel %vm1736, %v5075, %v5079
    %v5081 = vshrl.u32 %v5032, 16
    %v5083 = vor.u32 %v5081, %v5079
    %v5085 = vshll.u32 %v5033, 16
    %v5087 = vrot.slane %v5085, 1
    %v5088 = vsel %vm1736, %v5083, %v5087
    %v5089 = vshrl.u32 %v5033, 16
    %v5091 = vor.u32 %v5089, %v5087
    %v5093 = vshll.u32 %v5034, 16
    %v5095 = vrot.slane %v5093, 1
    %v5096 = vsel %vm1736, %v5091, %v5095
    %v5097 = vshrl.u32 %v5034, 16
    %v5099 = vor.u32 %v5097, %v5095
    %v5101 = vshll.u32 %v5035, 16
    %v5103 = vrot.slane %v5101, 1
    %v5104 = vsel %vm1736, %v5099, %v5103
    %v5105 = vshrl.u32 %v5035, 16
    %v5107 = vor.u32 %v5105, %v5103
    %v5109 = vshll.u32 %v5036, 16
    %v5111 = vrot.slane %v5109, 1
    %v5112 = vsel %vm1736, %v5107, %v5111
    %v5113 = vshrl.u32 %v5036, 16
    %v5115 = vor.u32 %v5113, %v5111
    %v5142 = vunpack.c.l.b16 %v4971
    %v5143 = vunpack.c.l.b16 %v4972
    %v5144 = vunpack.c.l.b16 %v4973
    %v5145 = vunpack.c.l.b16 %v4974
    %v5146 = vunpack.c.l.b16 %v4975
    %v5147 = vunpack.c.l.b16 %v4976
    %v5148 = vunpack.c.l.b16 %v4977
    %v5149 = vunpack.c.l.b16 %v4978
    %v5150 = vunpack.c.l.b16 %v4979
    %v5151 = vunpack.c.l.b16 %v4980
    %v5152 = vunpack.c.l.b16 %v4981
    %v5153 = vunpack.c.l.b16 %v4982
    %v5154 = vunpack.c.l.b16 %v4983
    %v5155 = vunpack.c.l.b16 %v4984
    %v5156 = vunpack.c.l.b16 %v4985
    %v5157 = vunpack.c.l.b16 %v4986
    %v5158 = vpack.c.b16 %v5143, %v5142
    %v5159 = vpack.c.b16 %v5145, %v5144
    %v5160 = vpack.c.b16 %v5147, %v5146
    %v5161 = vpack.c.b16 %v5149, %v5148
    %v5162 = vpack.c.b16 %v5151, %v5150
    %v5163 = vpack.c.b16 %v5153, %v5152
    %v5164 = vpack.c.b16 %v5155, %v5154
    %v5165 = vpack.c.b16 %v5157, %v5156
    %5174 = vmatprep.subr.bf16.mxu0 0
    %5175 = vmatpush1.bf16.msra.mxu0 %v5165
    %5176 = vmatprep.subr.bf16.mxu0 0
    %5177 = vmatpush1.bf16.msra.mxu0 %v5164
    %5178 = vmatprep.subr.bf16.mxu0 0
    %5179 = vmatpush1.bf16.msra.mxu0 %v5163
    %5180 = vmatprep.subr.bf16.mxu0 0
    %5181 = vmatpush1.bf16.msra.mxu0 %v5162
    %5182 = vmatprep.subr.bf16.mxu0 0
    %5183 = vmatpush1.bf16.msra.mxu0 %v5161
    %5184 = vmatprep.subr.bf16.mxu0 0
    %5185 = vmatpush1.bf16.msra.mxu0 %v5160
    %5186 = vmatprep.subr.bf16.mxu0 0
    %5187 = vmatpush1.bf16.msra.mxu0 %v5159
    %5188 = vmatprep.subr.bf16.mxu0 0
    %5189 = vmatpush1.bf16.msra.mxu0 %v5158
    %5190 = vmatprep.subr.bf16.mxu0 0
    %5191 = vmatpush2.bf16.msra.mxu0 0
    %5192 = vmatprep.subr.bf16.mxu0 0
    %5193 = vmatpush2.bf16.msra.mxu0 0
    %5194 = vmatprep.subr.bf16.mxu0 0
    %5195 = vmatpush2.bf16.msra.mxu0 0
    %5196 = vmatprep.subr.bf16.mxu0 0
    %5197 = vmatpush2.bf16.msra.mxu0 0
    %5198 = vmatprep.subr.bf16.mxu0 0
    %5199 = vmatpush2.bf16.msra.mxu0 0
    %5200 = vmatprep.subr.bf16.mxu0 0
    %5201 = vmatpush2.bf16.msra.mxu0 0
    %5202 = vmatprep.subr.bf16.mxu0 0
    %5203 = vmatpush2.bf16.msra.mxu0 0
    %5204 = vmatprep.subr.bf16.mxu0 0
    %5205 = vmatpush2.bf16.msra.mxu0 0
    %5206 = vmatprep.mubr.bf16.mxu0 0
    %5207 = vmatmul.mubr.bf16.gmra.mxu0 %v5048
    %v5208 = vpop.f32.mrf.mxu0
    %v5209 = vadd.f32 0.0, %v5208
    %v5210 = vpop.f32.mrf.mxu0
    %v5211 = vpop.f32.mrf.mxu0
    %v5212 = vadd.f32 0.0, %v5211
    %v5213 = vpop.f32.mrf.mxu0
    %5214 = vmatprep.mubr.bf16.mxu0 0
    %5215 = vmatmul.mubr.bf16.gmra.mxu0 %v5056
    %v5216 = vpop.f32.mrf.mxu0
    %v5217 = vadd.f32 0.0, %v5216
    %v5218 = vpop.f32.mrf.mxu0
    %v5219 = vpop.f32.mrf.mxu0
    %v5220 = vadd.f32 0.0, %v5219
    %v5221 = vpop.f32.mrf.mxu0
    %5222 = vmatprep.mubr.bf16.mxu0 0
    %5223 = vmatmul.mubr.bf16.gmra.mxu0 %v5064
    %v5224 = vpop.f32.mrf.mxu0
    %v5225 = vadd.f32 0.0, %v5224
    %v5226 = vpop.f32.mrf.mxu0
    %v5227 = vpop.f32.mrf.mxu0
    %v5228 = vadd.f32 0.0, %v5227
    %v5229 = vpop.f32.mrf.mxu0
    %5230 = vmatprep.mubr.bf16.mxu0 0
    %5231 = vmatmul.mubr.bf16.gmra.mxu0 %v5072
    %v5232 = vpop.f32.mrf.mxu0
    %v5233 = vadd.f32 0.0, %v5232
    %v5234 = vpop.f32.mrf.mxu0
    %v5235 = vpop.f32.mrf.mxu0
    %v5236 = vadd.f32 0.0, %v5235
    %v5237 = vpop.f32.mrf.mxu0
    %5238 = vmatprep.mubr.bf16.mxu0 0
    %5239 = vmatmul.mubr.bf16.gmra.mxu0 %v5080
    %v5240 = vpop.f32.mrf.mxu0
    %v5241 = vadd.f32 0.0, %v5240
    %v5242 = vpop.f32.mrf.mxu0
    %v5243 = vpop.f32.mrf.mxu0
    %v5244 = vadd.f32 0.0, %v5243
    %v5245 = vpop.f32.mrf.mxu0
    %5246 = vmatprep.mubr.bf16.mxu0 0
    %5247 = vmatmul.mubr.bf16.gmra.mxu0 %v5088
    %v5248 = vpop.f32.mrf.mxu0
    %v5249 = vadd.f32 0.0, %v5248
    %v5250 = vpop.f32.mrf.mxu0
    %v5251 = vpop.f32.mrf.mxu0
    %v5252 = vadd.f32 0.0, %v5251
    %v5253 = vpop.f32.mrf.mxu0
    %5254 = vmatprep.mubr.bf16.mxu0 0
    %5255 = vmatmul.mubr.bf16.gmra.mxu0 %v5096
    %v5256 = vpop.f32.mrf.mxu0
    %v5257 = vadd.f32 0.0, %v5256
    %v5258 = vpop.f32.mrf.mxu0
    %v5259 = vpop.f32.mrf.mxu0
    %v5260 = vadd.f32 0.0, %v5259
    %v5261 = vpop.f32.mrf.mxu0
    %5262 = vmatprep.mubr.bf16.mxu0 0
    %5263 = vmatmul.mubr.bf16.gmra.mxu0 %v5104
    %v5264 = vpop.f32.mrf.mxu0
    %v5265 = vadd.f32 0.0, %v5264
    %v5266 = vpop.f32.mrf.mxu0
    %v5267 = vpop.f32.mrf.mxu0
    %v5268 = vadd.f32 0.0, %v5267
    %v5269 = vpop.f32.mrf.mxu0
    %5270 = vmatprep.mubr.bf16.mxu0 0
    %5271 = vmatmul.mubr.bf16.gmra.mxu0 %v5112
    %v5272 = vpop.f32.mrf.mxu0
    %v5273 = vadd.f32 0.0, %v5272
    %v5274 = vpop.f32.mrf.mxu0
    %v5275 = vpop.f32.mrf.mxu0
    %v5276 = vadd.f32 0.0, %v5275
    %v5277 = vpop.f32.mrf.mxu0
    %5278 = vmatprep.mubr.bf16.mxu0 0
    %5279 = vmatmul.mubr.bf16.gmra.mxu0 %v5115
    %v5280 = vpop.f32.mrf.mxu0
    %v5281 = vadd.f32 0.0, %v5280
    %v5282 = vpop.f32.mrf.mxu0
    %v5283 = vpop.f32.mrf.mxu0
    %v5284 = vadd.f32 0.0, %v5283
    %v5285 = vpop.f32.mrf.mxu0
    %5286 = vdwg.mxu0
    %v5287 = vadd.f32 %v4931, %v5209
    %v5288 = vadd.f32 %v4932, %v5212
    %v5289 = vadd.f32 %v4933, %v5217
    %v5290 = vadd.f32 %v4934, %v5220
    %v5291 = vadd.f32 %v4935, %v5225
    %v5292 = vadd.f32 %v4936, %v5228
    %v5293 = vadd.f32 %v4937, %v5233
    %v5294 = vadd.f32 %v4938, %v5236
    %v5295 = vadd.f32 %v4939, %v5241
    %v5296 = vadd.f32 %v4940, %v5244
    %v5297 = vadd.f32 %v4941, %v5249
    %v5298 = vadd.f32 %v4942, %v5252
    %v5299 = vadd.f32 %v4943, %v5257
    %v5300 = vadd.f32 %v4944, %v5260
    %v5301 = vadd.f32 %v4945, %v5265
    %v5302 = vadd.f32 %v4946, %v5268
    %v5303 = vadd.f32 %v4947, %v5273
    %v5304 = vadd.f32 %v4948, %v5276
    %v5305 = vadd.f32 %v4949, %v5281
    %v5306 = vadd.f32 %v4950, %v5284
    %v5307 = vld [vmem:[%s135 + $0x68] sm:$0xe]
    %v5308 = vld [vmem:[%s2412] sm:$0xf]
    %v5309 = vld [vmem:[%s2412 + $0x4] sm:$0xf]
    %v5310 = vld [vmem:[%s2412 + $0x8] sm:$0xf]
    %v5311 = vld [vmem:[%s2412 + $0xc] sm:$0xf]
    %v5312 = vld [vmem:[%s2412 + $0x10] sm:$0xf]
    %v5313 = vld [vmem:[%s2412 + $0x14] sm:$0xf]
    %v5314 = vld [vmem:[%s2412 + $0x18] sm:$0xf]
    %v5315 = vld [vmem:[%s2412 + $0x1c] sm:$0xf]
    %v5316 = vld [vmem:[%s2412 + $0x20] sm:$0xf]
    %v5317 = vld [vmem:[%s2412 + $0x24] sm:$0xf]
    %v5318 = vld [vmem:[%s2412 + $0x28] sm:$0xf]
    %v5319 = vld [vmem:[%s2412 + $0x2c] sm:$0xf]
    %v5320 = vld [vmem:[%s2412 + $0x30] sm:$0xf]
    %v5321 = vld [vmem:[%s2412 + $0x34] sm:$0xf]
    %v5322 = vld [vmem:[%s2412 + $0x38] sm:$0xf]
    %v5323 = vld [vmem:[%s2412 + $0x3c] sm:$0xf]
    %v5325 = vunpack.c.l.b16 %v5307
    %v5326 = vpack.c.b16 %v5008, %v5325
    %v5327 = vrot.slane %v5326, 1
    %v5328 = vrot.slane %v5028, 1
    %v5329 = vsel %vm2432, %v5327, %v5328
    %v5330 = vrot.slane %v5029, 1
    %v5331 = vsel %vm2432, %v5328, %v5330
    %v5332 = vrot.slane %v5030, 1
    %v5333 = vsel %vm2432, %v5330, %v5332
    %v5334 = vrot.slane %v5031, 1
    %v5335 = vsel %vm2432, %v5332, %v5334
    %v5336 = vrot.slane %v5032, 1
    %v5337 = vsel %vm2432, %v5334, %v5336
    %v5338 = vrot.slane %v5033, 1
    %v5339 = vsel %vm2432, %v5336, %v5338
    %v5340 = vrot.slane %v5034, 1
    %v5341 = vsel %vm2432, %v5338, %v5340
    %v5342 = vrot.slane %v5035, 1
    %v5343 = vsel %vm2432, %v5340, %v5342
    %v5344 = vrot.slane %v5036, 1
    %v5345 = vsel %vm2432, %v5342, %v5344
    %v5372 = vunpack.c.l.b16 %v5308
    %v5373 = vunpack.c.l.b16 %v5309
    %v5374 = vunpack.c.l.b16 %v5310
    %v5375 = vunpack.c.l.b16 %v5311
    %v5376 = vunpack.c.l.b16 %v5312
    %v5377 = vunpack.c.l.b16 %v5313
    %v5378 = vunpack.c.l.b16 %v5314
    %v5379 = vunpack.c.l.b16 %v5315
    %v5380 = vunpack.c.l.b16 %v5316
    %v5381 = vunpack.c.l.b16 %v5317
    %v5382 = vunpack.c.l.b16 %v5318
    %v5383 = vunpack.c.l.b16 %v5319
    %v5384 = vunpack.c.l.b16 %v5320
    %v5385 = vunpack.c.l.b16 %v5321
    %v5386 = vunpack.c.l.b16 %v5322
    %v5387 = vunpack.c.l.b16 %v5323
    %v5388 = vpack.c.b16 %v5373, %v5372
    %v5389 = vpack.c.b16 %v5375, %v5374
    %v5390 = vpack.c.b16 %v5377, %v5376
    %v5391 = vpack.c.b16 %v5379, %v5378
    %v5392 = vpack.c.b16 %v5381, %v5380
    %v5393 = vpack.c.b16 %v5383, %v5382
    %v5394 = vpack.c.b16 %v5385, %v5384
    %v5395 = vpack.c.b16 %v5387, %v5386
    %5404 = vmatprep.subr.bf16.mxu0 0
    %5405 = vmatpush1.bf16.msra.mxu0 %v5395
    %5406 = vmatprep.subr.bf16.mxu0 0
    %5407 = vmatpush1.bf16.msra.mxu0 %v5394
    %5408 = vmatprep.subr.bf16.mxu0 0
    %5409 = vmatpush1.bf16.msra.mxu0 %v5393
    %5410 = vmatprep.subr.bf16.mxu0 0
    %5411 = vmatpush1.bf16.msra.mxu0 %v5392
    %5412 = vmatprep.subr.bf16.mxu0 0
    %5413 = vmatpush1.bf16.msra.mxu0 %v5391
    %5414 = vmatprep.subr.bf16.mxu0 0
    %5415 = vmatpush1.bf16.msra.mxu0 %v5390
    %5416 = vmatprep.subr.bf16.mxu0 0
    %5417 = vmatpush1.bf16.msra.mxu0 %v5389
    %5418 = vmatprep.subr.bf16.mxu0 0
    %5419 = vmatpush1.bf16.msra.mxu0 %v5388
    %5420 = vmatprep.subr.bf16.mxu0 0
    %5421 = vmatpush2.bf16.msra.mxu0 0
    %5422 = vmatprep.subr.bf16.mxu0 0
    %5423 = vmatpush2.bf16.msra.mxu0 0
    %5424 = vmatprep.subr.bf16.mxu0 0
    %5425 = vmatpush2.bf16.msra.mxu0 0
    %5426 = vmatprep.subr.bf16.mxu0 0
    %5427 = vmatpush2.bf16.msra.mxu0 0
    %5428 = vmatprep.subr.bf16.mxu0 0
    %5429 = vmatpush2.bf16.msra.mxu0 0
    %5430 = vmatprep.subr.bf16.mxu0 0
    %5431 = vmatpush2.bf16.msra.mxu0 0
    %5432 = vmatprep.subr.bf16.mxu0 0
    %5433 = vmatpush2.bf16.msra.mxu0 0
    %5434 = vmatprep.subr.bf16.mxu0 0
    %5435 = vmatpush2.bf16.msra.mxu0 0
    %5436 = vmatprep.mubr.bf16.mxu0 0
    %5437 = vmatmul.mubr.bf16.gmra.mxu0 %v5329
    %v5438 = vpop.f32.mrf.mxu0
    %v5439 = vadd.f32 0.0, %v5438
    %v5440 = vpop.f32.mrf.mxu0
    %v5441 = vpop.f32.mrf.mxu0
    %v5442 = vadd.f32 0.0, %v5441
    %v5443 = vpop.f32.mrf.mxu0
    %5444 = vmatprep.mubr.bf16.mxu0 0
    %5445 = vmatmul.mubr.bf16.gmra.mxu0 %v5331
    %v5446 = vpop.f32.mrf.mxu0
    %v5447 = vadd.f32 0.0, %v5446
    %v5448 = vpop.f32.mrf.mxu0
    %v5449 = vpop.f32.mrf.mxu0
    %v5450 = vadd.f32 0.0, %v5449
    %v5451 = vpop.f32.mrf.mxu0
    %5452 = vmatprep.mubr.bf16.mxu0 0
    %5453 = vmatmul.mubr.bf16.gmra.mxu0 %v5333
    %v5454 = vpop.f32.mrf.mxu0
    %v5455 = vadd.f32 0.0, %v5454
    %v5456 = vpop.f32.mrf.mxu0
    %v5457 = vpop.f32.mrf.mxu0
    %v5458 = vadd.f32 0.0, %v5457
    %v5459 = vpop.f32.mrf.mxu0
    %5460 = vmatprep.mubr.bf16.mxu0 0
    %5461 = vmatmul.mubr.bf16.gmra.mxu0 %v5335
    %v5462 = vpop.f32.mrf.mxu0
    %v5463 = vadd.f32 0.0, %v5462
    %v5464 = vpop.f32.mrf.mxu0
    %v5465 = vpop.f32.mrf.mxu0
    %v5466 = vadd.f32 0.0, %v5465
    %v5467 = vpop.f32.mrf.mxu0
    %5468 = vmatprep.mubr.bf16.mxu0 0
    %5469 = vmatmul.mubr.bf16.gmra.mxu0 %v5337
    %v5470 = vpop.f32.mrf.mxu0
    %v5471 = vadd.f32 0.0, %v5470
    %v5472 = vpop.f32.mrf.mxu0
    %v5473 = vpop.f32.mrf.mxu0
    %v5474 = vadd.f32 0.0, %v5473
    %v5475 = vpop.f32.mrf.mxu0
    %5476 = vmatprep.mubr.bf16.mxu0 0
    %5477 = vmatmul.mubr.bf16.gmra.mxu0 %v5339
    %v5478 = vpop.f32.mrf.mxu0
    %v5479 = vadd.f32 0.0, %v5478
    %v5480 = vpop.f32.mrf.mxu0
    %v5481 = vpop.f32.mrf.mxu0
    %v5482 = vadd.f32 0.0, %v5481
    %v5483 = vpop.f32.mrf.mxu0
    %5484 = vmatprep.mubr.bf16.mxu0 0
    %5485 = vmatmul.mubr.bf16.gmra.mxu0 %v5341
    %v5486 = vpop.f32.mrf.mxu0
    %v5487 = vadd.f32 0.0, %v5486
    %v5488 = vpop.f32.mrf.mxu0
    %v5489 = vpop.f32.mrf.mxu0
    %v5490 = vadd.f32 0.0, %v5489
    %v5491 = vpop.f32.mrf.mxu0
    %5492 = vmatprep.mubr.bf16.mxu0 0
    %5493 = vmatmul.mubr.bf16.gmra.mxu0 %v5343
    %v5494 = vpop.f32.mrf.mxu0
    %v5495 = vadd.f32 0.0, %v5494
    %v5496 = vpop.f32.mrf.mxu0
    %v5497 = vpop.f32.mrf.mxu0
    %v5498 = vadd.f32 0.0, %v5497
    %v5499 = vpop.f32.mrf.mxu0
    %5500 = vmatprep.mubr.bf16.mxu0 0
    %5501 = vmatmul.mubr.bf16.gmra.mxu0 %v5345
    %v5502 = vpop.f32.mrf.mxu0
    %v5503 = vadd.f32 0.0, %v5502
    %v5504 = vpop.f32.mrf.mxu0
    %v5505 = vpop.f32.mrf.mxu0
    %v5506 = vadd.f32 0.0, %v5505
    %v5507 = vpop.f32.mrf.mxu0
    %5508 = vmatprep.mubr.bf16.mxu0 0
    %5509 = vmatmul.mubr.bf16.gmra.mxu0 %v5344
    %v5510 = vpop.f32.mrf.mxu0
    %v5511 = vadd.f32 0.0, %v5510
    %v5512 = vpop.f32.mrf.mxu0
    %v5513 = vpop.f32.mrf.mxu0
    %v5514 = vadd.f32 0.0, %v5513
    %v5515 = vpop.f32.mrf.mxu0
    %5516 = vdwg.mxu0
    %v5517 = vadd.f32 %v5287, %v5439
    %v5518 = vadd.f32 %v5288, %v5442
    %v5519 = vadd.f32 %v5289, %v5447
    %v5520 = vadd.f32 %v5290, %v5450
    %v5521 = vadd.f32 %v5291, %v5455
    %v5522 = vadd.f32 %v5292, %v5458
    %v5523 = vadd.f32 %v5293, %v5463
    %v5524 = vadd.f32 %v5294, %v5466
    %v5525 = vadd.f32 %v5295, %v5471
    %v5526 = vadd.f32 %v5296, %v5474
    %v5527 = vadd.f32 %v5297, %v5479
    %v5528 = vadd.f32 %v5298, %v5482
    %v5529 = vadd.f32 %v5299, %v5487
    %v5530 = vadd.f32 %v5300, %v5490
    %v5531 = vadd.f32 %v5301, %v5495
    %v5532 = vadd.f32 %v5302, %v5498
    %v5533 = vadd.f32 %v5303, %v5503
    %v5534 = vadd.f32 %v5304, %v5506
    %v5535 = vadd.f32 %v5305, %v5511
    %v5536 = vadd.f32 %v5306, %v5514
    %v5537 = vld [vmem:[%s135 + $0xb4] sm:$0xf]
    %v5538 = vld [vmem:[%s2658] sm:$0xf]
    %v5539 = vld [vmem:[%s2658 + $0x4] sm:$0xf]
    %v5540 = vld [vmem:[%s2658 + $0x8] sm:$0xf]
    %v5541 = vld [vmem:[%s2658 + $0xc] sm:$0xf]
    %v5542 = vld [vmem:[%s2658 + $0x10] sm:$0xf]
    %v5543 = vld [vmem:[%s2658 + $0x14] sm:$0xf]
    %v5544 = vld [vmem:[%s2658 + $0x18] sm:$0xf]
    %v5545 = vld [vmem:[%s2658 + $0x1c] sm:$0xf]
    %v5546 = vld [vmem:[%s2658 + $0x20] sm:$0xf]
    %v5547 = vld [vmem:[%s2658 + $0x24] sm:$0xf]
    %v5548 = vld [vmem:[%s2658 + $0x28] sm:$0xf]
    %v5549 = vld [vmem:[%s2658 + $0x2c] sm:$0xf]
    %v5550 = vld [vmem:[%s2658 + $0x30] sm:$0xf]
    %v5551 = vld [vmem:[%s2658 + $0x34] sm:$0xf]
    %v5552 = vld [vmem:[%s2658 + $0x38] sm:$0xf]
    %v5553 = vld [vmem:[%s2658 + $0x3c] sm:$0xf]
    %v5555 = vunpack.c.l.b16 %v5537
    %v5556 = vpack.c.b16 %v5555, %v5025
    %v5558 = vshrl.u32 %v5326, 16
    %v5560 = vrot.slane %v5558, 1
    %v5561 = vshll.u32 %v5326, 16
    %v5563 = vrot.slane %v5561, 2
    %v5564 = vor.u32 %v5560, %v5563
    %v5565 = vrot.slane %v5049, 1
    %v5566 = vrot.slane %v5045, 2
    %v5567 = vor.u32 %v5565, %v5566
    %v5568 = vsel %vm2678, %v5564, %v5567
    %v5569 = vrot.slane %v5057, 1
    %v5570 = vrot.slane %v5053, 2
    %v5571 = vor.u32 %v5569, %v5570
    %v5572 = vsel %vm2678, %v5567, %v5571
    %v5573 = vrot.slane %v5065, 1
    %v5574 = vrot.slane %v5061, 2
    %v5575 = vor.u32 %v5573, %v5574
    %v5576 = vsel %vm2678, %v5571, %v5575
    %v5577 = vrot.slane %v5073, 1
    %v5578 = vrot.slane %v5069, 2
    %v5579 = vor.u32 %v5577, %v5578
    %v5580 = vsel %vm2678, %v5575, %v5579
    %v5581 = vrot.slane %v5081, 1
    %v5582 = vrot.slane %v5077, 2
    %v5583 = vor.u32 %v5581, %v5582
    %v5584 = vsel %vm2678, %v5579, %v5583
    %v5585 = vrot.slane %v5089, 1
    %v5586 = vrot.slane %v5085, 2
    %v5587 = vor.u32 %v5585, %v5586
    %v5588 = vsel %vm2678, %v5583, %v5587
    %v5589 = vrot.slane %v5097, 1
    %v5590 = vrot.slane %v5093, 2
    %v5591 = vor.u32 %v5589, %v5590
    %v5592 = vsel %vm2678, %v5587, %v5591
    %v5593 = vrot.slane %v5105, 1
    %v5594 = vrot.slane %v5101, 2
    %v5595 = vor.u32 %v5593, %v5594
    %v5596 = vsel %vm2678, %v5591, %v5595
    %v5598 = vshrl.u32 %v5556, 16
    %v5600 = vrot.slane %v5598, 1
    %v5601 = vshll.u32 %v5556, 16
    %v5603 = vrot.slane %v5601, 2
    %v5604 = vor.u32 %v5600, %v5603
    %v5605 = vsel %vm2678, %v5595, %v5604
    %v5632 = vunpack.c.l.b16 %v5538
    %v5633 = vunpack.c.l.b16 %v5539
    %v5634 = vunpack.c.l.b16 %v5540
    %v5635 = vunpack.c.l.b16 %v5541
    %v5636 = vunpack.c.l.b16 %v5542
    %v5637 = vunpack.c.l.b16 %v5543
    %v5638 = vunpack.c.l.b16 %v5544
    %v5639 = vunpack.c.l.b16 %v5545
    %v5640 = vunpack.c.l.b16 %v5546
    %v5641 = vunpack.c.l.b16 %v5547
    %v5642 = vunpack.c.l.b16 %v5548
    %v5643 = vunpack.c.l.b16 %v5549
    %v5644 = vunpack.c.l.b16 %v5550
    %v5645 = vunpack.c.l.b16 %v5551
    %v5646 = vunpack.c.l.b16 %v5552
    %v5647 = vunpack.c.l.b16 %v5553
    %v5648 = vpack.c.b16 %v5633, %v5632
    %v5649 = vpack.c.b16 %v5635, %v5634
    %v5650 = vpack.c.b16 %v5637, %v5636
    %v5651 = vpack.c.b16 %v5639, %v5638
    %v5652 = vpack.c.b16 %v5641, %v5640
    %v5653 = vpack.c.b16 %v5643, %v5642
    %v5654 = vpack.c.b16 %v5645, %v5644
    %v5655 = vpack.c.b16 %v5647, %v5646
    %5664 = vmatprep.subr.bf16.mxu0 0
    %5665 = vmatpush1.bf16.msra.mxu0 %v5655
    %5666 = vmatprep.subr.bf16.mxu0 0
    %5667 = vmatpush1.bf16.msra.mxu0 %v5654
    %5668 = vmatprep.subr.bf16.mxu0 0
    %5669 = vmatpush1.bf16.msra.mxu0 %v5653
    %5670 = vmatprep.subr.bf16.mxu0 0
    %5671 = vmatpush1.bf16.msra.mxu0 %v5652
    %5672 = vmatprep.subr.bf16.mxu0 0
    %5673 = vmatpush1.bf16.msra.mxu0 %v5651
    %5674 = vmatprep.subr.bf16.mxu0 0
    %5675 = vmatpush1.bf16.msra.mxu0 %v5650
    %5676 = vmatprep.subr.bf16.mxu0 0
    %5677 = vmatpush1.bf16.msra.mxu0 %v5649
    %5678 = vmatprep.subr.bf16.mxu0 0
    %5679 = vmatpush1.bf16.msra.mxu0 %v5648
    %5680 = vmatprep.subr.bf16.mxu0 0
    %5681 = vmatpush2.bf16.msra.mxu0 0
    %5682 = vmatprep.subr.bf16.mxu0 0
    %5683 = vmatpush2.bf16.msra.mxu0 0
    %5684 = vmatprep.subr.bf16.mxu0 0
    %5685 = vmatpush2.bf16.msra.mxu0 0
    %5686 = vmatprep.subr.bf16.mxu0 0
    %5687 = vmatpush2.bf16.msra.mxu0 0
    %5688 = vmatprep.subr.bf16.mxu0 0
    %5689 = vmatpush2.bf16.msra.mxu0 0
    %5690 = vmatprep.subr.bf16.mxu0 0
    %5691 = vmatpush2.bf16.msra.mxu0 0
    %5692 = vmatprep.subr.bf16.mxu0 0
    %5693 = vmatpush2.bf16.msra.mxu0 0
    %5694 = vmatprep.subr.bf16.mxu0 0
    %5695 = vmatpush2.bf16.msra.mxu0 0
    %5696 = vmatprep.mubr.bf16.mxu0 0
    %5697 = vmatmul.mubr.bf16.gmra.mxu0 %v5568
    %v5698 = vpop.f32.mrf.mxu0
    %v5699 = vadd.f32 0.0, %v5698
    %v5700 = vpop.f32.mrf.mxu0
    %v5701 = vpop.f32.mrf.mxu0
    %v5702 = vadd.f32 0.0, %v5701
    %v5703 = vpop.f32.mrf.mxu0
    %5704 = vmatprep.mubr.bf16.mxu0 0
    %5705 = vmatmul.mubr.bf16.gmra.mxu0 %v5572
    %v5706 = vpop.f32.mrf.mxu0
    %v5707 = vadd.f32 0.0, %v5706
    %v5708 = vpop.f32.mrf.mxu0
    %v5709 = vpop.f32.mrf.mxu0
    %v5710 = vadd.f32 0.0, %v5709
    %v5711 = vpop.f32.mrf.mxu0
    %5712 = vmatprep.mubr.bf16.mxu0 0
    %5713 = vmatmul.mubr.bf16.gmra.mxu0 %v5576
    %v5714 = vpop.f32.mrf.mxu0
    %v5715 = vadd.f32 0.0, %v5714
    %v5716 = vpop.f32.mrf.mxu0
    %v5717 = vpop.f32.mrf.mxu0
    %v5718 = vadd.f32 0.0, %v5717
    %v5719 = vpop.f32.mrf.mxu0
    %5720 = vmatprep.mubr.bf16.mxu0 0
    %5721 = vmatmul.mubr.bf16.gmra.mxu0 %v5580
    %v5722 = vpop.f32.mrf.mxu0
    %v5723 = vadd.f32 0.0, %v5722
    %v5724 = vpop.f32.mrf.mxu0
    %v5725 = vpop.f32.mrf.mxu0
    %v5726 = vadd.f32 0.0, %v5725
    %v5727 = vpop.f32.mrf.mxu0
    %5728 = vmatprep.mubr.bf16.mxu0 0
    %5729 = vmatmul.mubr.bf16.gmra.mxu0 %v5584
    %v5730 = vpop.f32.mrf.mxu0
    %v5731 = vadd.f32 0.0, %v5730
    %v5732 = vpop.f32.mrf.mxu0
    %v5733 = vpop.f32.mrf.mxu0
    %v5734 = vadd.f32 0.0, %v5733
    %v5735 = vpop.f32.mrf.mxu0
    %5736 = vmatprep.mubr.bf16.mxu0 0
    %5737 = vmatmul.mubr.bf16.gmra.mxu0 %v5588
    %v5738 = vpop.f32.mrf.mxu0
    %v5739 = vadd.f32 0.0, %v5738
    %v5740 = vpop.f32.mrf.mxu0
    %v5741 = vpop.f32.mrf.mxu0
    %v5742 = vadd.f32 0.0, %v5741
    %v5743 = vpop.f32.mrf.mxu0
    %5744 = vmatprep.mubr.bf16.mxu0 0
    %5745 = vmatmul.mubr.bf16.gmra.mxu0 %v5592
    %v5746 = vpop.f32.mrf.mxu0
    %v5747 = vadd.f32 0.0, %v5746
    %v5748 = vpop.f32.mrf.mxu0
    %v5749 = vpop.f32.mrf.mxu0
    %v5750 = vadd.f32 0.0, %v5749
    %v5751 = vpop.f32.mrf.mxu0
    %5752 = vmatprep.mubr.bf16.mxu0 0
    %5753 = vmatmul.mubr.bf16.gmra.mxu0 %v5596
    %v5754 = vpop.f32.mrf.mxu0
    %v5755 = vadd.f32 0.0, %v5754
    %v5756 = vpop.f32.mrf.mxu0
    %v5757 = vpop.f32.mrf.mxu0
    %v5758 = vadd.f32 0.0, %v5757
    %v5759 = vpop.f32.mrf.mxu0
    %5760 = vmatprep.mubr.bf16.mxu0 0
    %5761 = vmatmul.mubr.bf16.gmra.mxu0 %v5605
    %v5762 = vpop.f32.mrf.mxu0
    %v5763 = vadd.f32 0.0, %v5762
    %v5764 = vpop.f32.mrf.mxu0
    %v5765 = vpop.f32.mrf.mxu0
    %v5766 = vadd.f32 0.0, %v5765
    %v5767 = vpop.f32.mrf.mxu0
    %5768 = vmatprep.mubr.bf16.mxu0 0
    %5769 = vmatmul.mubr.bf16.gmra.mxu0 %v5604
    %v5770 = vpop.f32.mrf.mxu0
    %v5771 = vadd.f32 0.0, %v5770
    %v5772 = vpop.f32.mrf.mxu0
    %v5773 = vpop.f32.mrf.mxu0
    %v5774 = vadd.f32 0.0, %v5773
    %v5775 = vpop.f32.mrf.mxu0
    %5776 = vdwg.mxu0
    %v5777 = vadd.f32 %v5517, %v5699
    %v5778 = vadd.f32 %v5518, %v5702
    %v5779 = vadd.f32 %v5519, %v5707
    %v5780 = vadd.f32 %v5520, %v5710
    %v5781 = vadd.f32 %v5521, %v5715
    %v5782 = vadd.f32 %v5522, %v5718
    %v5783 = vadd.f32 %v5523, %v5723
    %v5784 = vadd.f32 %v5524, %v5726
    %v5785 = vadd.f32 %v5525, %v5731
    %v5786 = vadd.f32 %v5526, %v5734
    %v5787 = vadd.f32 %v5527, %v5739
    %v5788 = vadd.f32 %v5528, %v5742
    %v5789 = vadd.f32 %v5529, %v5747
    %v5790 = vadd.f32 %v5530, %v5750
    %v5791 = vadd.f32 %v5531, %v5755
    %v5792 = vadd.f32 %v5532, %v5758
    %v5793 = vadd.f32 %v5533, %v5763
    %v5794 = vadd.f32 %v5534, %v5766
    %v5795 = vadd.f32 %v5535, %v5771
    %v5796 = vadd.f32 %v5536, %v5774
    %v5797 = vld [vmem:[%s3 + $0xc0] sm:$0xff]
    %v5798 = vld [vmem:[%s3 + $0xc8] sm:$0xff]
    %v5799 = vld [vmem:[%s3 + $0xd0] sm:$0xff]
    %v5800 = vld [vmem:[%s3 + $0xd8] sm:$0xff]
    %v5801 = vld [vmem:[%s3 + $0xe0] sm:$0xff]
    %v5802 = vld [vmem:[%s3 + $0xe8] sm:$0xff]
    %v5803 = vld [vmem:[%s3 + $0xf0] sm:$0xff]
    %v5804 = vld [vmem:[%s3 + $0xf8] sm:$0xff]
    %v5805 = vld [vmem:[%s3 + $0x100] sm:$0xff]
    %v5806 = vld [vmem:[%s3 + $0x108] sm:$0xff]
    %v5807 = vld [vmem:[%s3 + $0x110] sm:$0xff]
    %v5808 = vld [vmem:[%s3 + $0x118] sm:$0xff]
    %v5809 = vld [vmem:[%s3 + $0x120] sm:$0xff]
    %v5810 = vld [vmem:[%s3 + $0x128] sm:$0xff]
    %v5811 = vld [vmem:[%s3 + $0x130] sm:$0xff]
    %v5812 = vld [vmem:[%s3 + $0x138] sm:$0xff]
    %v5813 = vld [vmem:[%s3 + $0x140] sm:$0xff]
    %v5814 = vld [vmem:[%s3 + $0x148] sm:$0xff]
    %v5815 = vld [vmem:[%s3 + $0x150] sm:$0xff]
    %v5816 = vld [vmem:[%s3 + $0x158] sm:$0xf]
    %v5817 = vadd.f32 %v5777, %v2956
    %v5818 = vadd.f32 %v5778, %v2956
    %v5819 = vadd.f32 %v5779, %v2956
    %v5820 = vadd.f32 %v5780, %v2956
    %v5821 = vadd.f32 %v5781, %v2956
    %v5822 = vadd.f32 %v5782, %v2956
    %v5823 = vadd.f32 %v5783, %v2956
    %v5824 = vadd.f32 %v5784, %v2956
    %v5825 = vadd.f32 %v5785, %v2956
    %v5826 = vadd.f32 %v5786, %v2956
    %v5827 = vadd.f32 %v5787, %v2956
    %v5828 = vadd.f32 %v5788, %v2956
    %v5829 = vadd.f32 %v5789, %v2956
    %v5830 = vadd.f32 %v5790, %v2956
    %v5831 = vadd.f32 %v5791, %v2956
    %v5832 = vadd.f32 %v5792, %v2956
    %v5833 = vadd.f32 %v5793, %v2956
    %v5834 = vadd.f32 %v5794, %v2956
    %v5835 = vadd.f32 %v5795, %v2956
    %v5836 = vadd.f32 %v5796, %v2956
    %v5837 = vmax.f32 %v5817, 0.0
    %v5838 = vmax.f32 %v5818, 0.0
    %v5839 = vmax.f32 %v5819, 0.0
    %v5840 = vmax.f32 %v5820, 0.0
    %v5841 = vmax.f32 %v5821, 0.0
    %v5842 = vmax.f32 %v5822, 0.0
    %v5843 = vmax.f32 %v5823, 0.0
    %v5844 = vmax.f32 %v5824, 0.0
    %v5845 = vmax.f32 %v5825, 0.0
    %v5846 = vmax.f32 %v5826, 0.0
    %v5847 = vmax.f32 %v5827, 0.0
    %v5848 = vmax.f32 %v5828, 0.0
    %v5849 = vmax.f32 %v5829, 0.0
    %v5850 = vmax.f32 %v5830, 0.0
    %v5851 = vmax.f32 %v5831, 0.0
    %v5852 = vmax.f32 %v5832, 0.0
    %v5853 = vmax.f32 %v5833, 0.0
    %v5854 = vmax.f32 %v5834, 0.0
    %v5855 = vmax.f32 %v5835, 0.0
    %v5856 = vmax.f32 %v5836, 0.0
    %5858 = vset.pattern.permute.xlu0 0
    %5859 = vperm.xlu0 %5858, %v5797
    %v5860 = vpop.permute.xlu0 %5859
    %5863 = vset.pattern.permute.xlu0 0
    %5864 = vperm.xlu0 %5863, %v5798
    %v5865 = vpop.permute.xlu0 %5864
    %5868 = vset.pattern.permute.xlu0 0
    %5869 = vperm.xlu0 %5868, %v5799
    %v5870 = vpop.permute.xlu0 %5869
    %5873 = vset.pattern.permute.xlu0 0
    %5874 = vperm.xlu0 %5873, %v5800
    %v5875 = vpop.permute.xlu0 %5874
    %5878 = vset.pattern.permute.xlu0 0
    %5879 = vperm.xlu0 %5878, %v5801
    %v5880 = vpop.permute.xlu0 %5879
    %5883 = vset.pattern.permute.xlu0 0
    %5884 = vperm.xlu0 %5883, %v5802
    %v5885 = vpop.permute.xlu0 %5884
    %5888 = vset.pattern.permute.xlu0 0
    %5889 = vperm.xlu0 %5888, %v5803
    %v5890 = vpop.permute.xlu0 %5889
    %5893 = vset.pattern.permute.xlu0 0
    %5894 = vperm.xlu0 %5893, %v5804
    %v5895 = vpop.permute.xlu0 %5894
    %5898 = vset.pattern.permute.xlu0 0
    %5899 = vperm.xlu0 %5898, %v5805
    %v5900 = vpop.permute.xlu0 %5899
    %5903 = vset.pattern.permute.xlu0 0
    %5904 = vperm.xlu0 %5903, %v5806
    %v5905 = vpop.permute.xlu0 %5904
    %5908 = vset.pattern.permute.xlu0 0
    %5909 = vperm.xlu0 %5908, %v5807
    %v5910 = vpop.permute.xlu0 %5909
    %5913 = vset.pattern.permute.xlu0 0
    %5914 = vperm.xlu0 %5913, %v5808
    %v5915 = vpop.permute.xlu0 %5914
    %5918 = vset.pattern.permute.xlu0 0
    %5919 = vperm.xlu0 %5918, %v5809
    %v5920 = vpop.permute.xlu0 %5919
    %5923 = vset.pattern.permute.xlu0 0
    %5924 = vperm.xlu0 %5923, %v5810
    %v5925 = vpop.permute.xlu0 %5924
    %5928 = vset.pattern.permute.xlu0 0
    %5929 = vperm.xlu0 %5928, %v5811
    %v5930 = vpop.permute.xlu0 %5929
    %5933 = vset.pattern.permute.xlu0 0
    %5934 = vperm.xlu0 %5933, %v5812
    %v5935 = vpop.permute.xlu0 %5934
    %5938 = vset.pattern.permute.xlu0 0
    %5939 = vperm.xlu0 %5938, %v5813
    %v5940 = vpop.permute.xlu0 %5939
    %5943 = vset.pattern.permute.xlu0 0
    %5944 = vperm.xlu0 %5943, %v5814
    %v5945 = vpop.permute.xlu0 %5944
    %5948 = vset.pattern.permute.xlu0 0
    %5949 = vperm.xlu0 %5948, %v5815
    %v5950 = vpop.permute.xlu0 %5949
    %5953 = vset.pattern.permute.xlu0 0
    %5954 = vperm.xlu0 %5953, %v5816
    %v5955 = vpop.permute.xlu0 %5954
    %v5957 = vmul.f32 %v5837, %v5860
    %v5958 = vmul.f32 %v5838, %v5865
    %v5959 = vmul.f32 %v5839, %v5870
    %v5960 = vmul.f32 %v5840, %v5875
    %v5961 = vmul.f32 %v5841, %v5880
    %v5962 = vmul.f32 %v5842, %v5885
    %v5963 = vmul.f32 %v5843, %v5890
    %v5964 = vmul.f32 %v5844, %v5895
    %v5965 = vmul.f32 %v5845, %v5900
    %v5966 = vmul.f32 %v5846, %v5905
    %v5967 = vmul.f32 %v5847, %v5910
    %v5968 = vmul.f32 %v5848, %v5915
    %v5969 = vmul.f32 %v5849, %v5920
    %v5970 = vmul.f32 %v5850, %v5925
    %v5971 = vmul.f32 %v5851, %v5930
    %v5972 = vmul.f32 %v5852, %v5935
    %v5973 = vmul.f32 %v5853, %v5940
    %v5974 = vmul.f32 %v5854, %v5945
    %v5975 = vmul.f32 %v5855, %v5950
    %v5976 = vmul.f32 %v5856, %v5955
    %v5977 = vpack.c.bf16 %v5958, %v5957
    %v5978 = vpack.c.bf16 %v5960, %v5959
    %v5979 = vpack.c.bf16 %v5962, %v5961
    %v5980 = vpack.c.bf16 %v5964, %v5963
    %v5981 = vpack.c.bf16 %v5966, %v5965
    %v5982 = vpack.c.bf16 %v5968, %v5967
    %v5983 = vpack.c.bf16 %v5970, %v5969
    %v5984 = vpack.c.bf16 %v5972, %v5971
    %v5985 = vpack.c.bf16 %v5974, %v5973
    %v5986 = vpack.c.bf16 %v5976, %v5975
    %v5997 = vunpack.c.l.b16 %v5977
    %v5998 = vunpack.c.h.b16 %v5977
    %v5999 = vunpack.c.l.b16 %v5978
    %v6000 = vunpack.c.h.b16 %v5978
    %v6001 = vunpack.c.l.b16 %v5979
    %v6002 = vunpack.c.h.b16 %v5979
    %v6003 = vunpack.c.l.b16 %v5980
    %v6004 = vunpack.c.h.b16 %v5980
    %v6005 = vunpack.c.l.b16 %v5981
    %v6006 = vunpack.c.h.b16 %v5981
    %v6007 = vunpack.c.l.b16 %v5982
    %v6008 = vunpack.c.h.b16 %v5982
    %v6009 = vunpack.c.l.b16 %v5983
    %v6010 = vunpack.c.h.b16 %v5983
    %v6011 = vunpack.c.l.b16 %v5984
    %v6012 = vunpack.c.h.b16 %v5984
    %v6013 = vunpack.c.l.b16 %v5985
    %v6014 = vunpack.c.h.b16 %v5985
    %v6015 = vunpack.c.l.b16 %v5986
    %v6016 = vunpack.c.h.b16 %v5986
    %v6017 = vpack.c.b16 %v5997, %v5997
    %v6018 = vpack.c.b16 %v5998, %v5998
    %v6019 = vpack.c.b16 %v5999, %v5999
    %v6020 = vpack.c.b16 %v6000, %v6000
    %v6021 = vpack.c.b16 %v6001, %v6001
    %v6022 = vpack.c.b16 %v6002, %v6002
    %v6023 = vpack.c.b16 %v6003, %v6003
    %v6024 = vpack.c.b16 %v6004, %v6004
    %v6025 = vpack.c.b16 %v6005, %v6005
    %v6026 = vpack.c.b16 %v6006, %v6006
    %v6027 = vpack.c.b16 %v6007, %v6007
    %v6028 = vpack.c.b16 %v6008, %v6008
    %v6029 = vpack.c.b16 %v6009, %v6009
    %v6030 = vpack.c.b16 %v6010, %v6010
    %v6031 = vpack.c.b16 %v6011, %v6011
    %v6032 = vpack.c.b16 %v6012, %v6012
    %v6033 = vpack.c.b16 %v6013, %v6013
    %v6034 = vpack.c.b16 %v6014, %v6014
    %v6035 = vpack.c.b16 %v6015, %v6015
    %v6036 = vpack.c.b16 %v6016, %v6016
    %6057 = vst [vmem:[%s3138 + $0x60] sm:$0xf] %v6017
    %6058 = vst [vmem:[%s3138 + $0x64] sm:$0xf] %v6018
    %6059 = vst [vmem:[%s3138 + $0x68] sm:$0xf] %v6019
    %6060 = vst [vmem:[%s3138 + $0x6c] sm:$0xf] %v6020
    %6061 = vst [vmem:[%s3138 + $0x70] sm:$0xf] %v6021
    %6062 = vst [vmem:[%s3138 + $0x74] sm:$0xf] %v6022
    %6063 = vst [vmem:[%s3138 + $0x78] sm:$0xf] %v6023
    %6064 = vst [vmem:[%s3138 + $0x7c] sm:$0xf] %v6024
    %6065 = vst [vmem:[%s3138 + $0x80] sm:$0xf] %v6025
    %6066 = vst [vmem:[%s3138 + $0x84] sm:$0xf] %v6026
    %6067 = vst [vmem:[%s3138 + $0x88] sm:$0xf] %v6027
    %6068 = vst [vmem:[%s3138 + $0x8c] sm:$0xf] %v6028
    %6069 = vst [vmem:[%s3138 + $0x90] sm:$0xf] %v6029
    %6070 = vst [vmem:[%s3138 + $0x94] sm:$0xf] %v6030
    %6071 = vst [vmem:[%s3138 + $0x98] sm:$0xf] %v6031
    %6072 = vst [vmem:[%s3138 + $0x9c] sm:$0xf] %v6032
    %6073 = vst [vmem:[%s3138 + $0xa0] sm:$0xf] %v6033
    %6074 = vst [vmem:[%s3138 + $0xa4] sm:$0xf] %v6034
    %6075 = vst [vmem:[%s3138 + $0xa8] sm:$0xf] %v6035
    %6076 = vst [vmem:[%s3138 + $0xac] sm:$0x3] %v6036
  $region22: #{pathnet_forward.1} parent=0 // loop_footer
    %s122 = sadd.s32 1, %s118
  $region23: #{pathnet_forward.1} parent=0 // loop_footer_branch
    %117 = sbr.rel target = $region19
  $region24: #{pathnet_forward.1} parent=0 // loop_exit
    _
  %v6077 = vld [vmem:[%s2 + $0x14] sm:$0x1]
  %v6078 = vld [vmem:[#allocation2] sm:$0xc]
  %v6079 = vld [vmem:[#allocation2 + $0x4] sm:$0xf]
  %v6080 = vld [vmem:[#allocation2 + $0x8] sm:$0xf]
  %v6081 = vld [vmem:[#allocation2 + $0xc] sm:$0xf]
  %v6082 = vld [vmem:[#allocation2 + $0x10] sm:$0xf]
  %v6083 = vld [vmem:[#allocation2 + $0x14] sm:$0xf]
  %v6084 = vld [vmem:[#allocation2 + $0x18] sm:$0xf]
  %v6085 = vld [vmem:[#allocation2 + $0x1c] sm:$0xf]
  %v6086 = vld [vmem:[#allocation2 + $0x20] sm:$0xf]
  %v6087 = vld [vmem:[#allocation2 + $0x24] sm:$0xf]
  %v6088 = vld [vmem:[#allocation2 + $0x28] sm:$0xf]
  %v6089 = vld [vmem:[#allocation2 + $0x2c] sm:$0xf]
  %v6090 = vld [vmem:[#allocation2 + $0x30] sm:$0xf]
  %v6091 = vld [vmem:[#allocation2 + $0x34] sm:$0xf]
  %v6092 = vld [vmem:[#allocation2 + $0x38] sm:$0xf]
  %v6093 = vld [vmem:[#allocation2 + $0x3c] sm:$0xf]
  %v6094 = vld [vmem:[#allocation2 + $0x40] sm:$0xf]
  %v6095 = vld [vmem:[#allocation2 + $0x44] sm:$0xf]
  %v6096 = vld [vmem:[#allocation2 + $0x48] sm:$0xf]
  %v6097 = vld [vmem:[#allocation2 + $0x4c] sm:$0xf]
  %v6098 = vld [vmem:[#allocation2 + $0x50] sm:$0xf]
  %v6099 = vld [vmem:[#allocation2 + $0x54] sm:$0x7]
  %s6100 = scalar_lea.vmem %s1, 11520
  %v6101 = vld [vmem:[%s6100] sm:$0xf]
  %v6102 = vld [vmem:[%s6100 + $0x4] sm:$0xf]
  %v6103 = vld [vmem:[%s6100 + $0x8] sm:$0xf]
  %v6104 = vld [vmem:[%s6100 + $0xc] sm:$0xf]
  %v6105 = vld [vmem:[%s6100 + $0x10] sm:$0xf]
  %v6106 = vld [vmem:[%s6100 + $0x14] sm:$0xf]
  %v6107 = vld [vmem:[%s6100 + $0x18] sm:$0xf]
  %v6108 = vld [vmem:[%s6100 + $0x1c] sm:$0xf]
  %v6109 = vld [vmem:[%s6100 + $0x20] sm:$0xf]
  %v6110 = vld [vmem:[%s6100 + $0x24] sm:$0xf]
  %v6111 = vld [vmem:[%s6100 + $0x28] sm:$0xf]
  %v6112 = vld [vmem:[%s6100 + $0x2c] sm:$0xf]
  %v6113 = vld [vmem:[%s6100 + $0x30] sm:$0xf]
  %v6114 = vld [vmem:[%s6100 + $0x34] sm:$0xf]
  %v6115 = vld [vmem:[%s6100 + $0x38] sm:$0xf]
  %v6116 = vld [vmem:[%s6100 + $0x3c] sm:$0xf]
  %v6117 = vld [vmem:[#allocation2] sm:$0x8]
  %s6118 = scalar_lea.vmem %s1, 11584
  %v6119 = vld [vmem:[%s6118] sm:$0xf]
  %v6120 = vld [vmem:[%s6118 + $0x4] sm:$0xf]
  %v6121 = vld [vmem:[%s6118 + $0x8] sm:$0xf]
  %v6122 = vld [vmem:[%s6118 + $0xc] sm:$0xf]
  %v6123 = vld [vmem:[%s6118 + $0x10] sm:$0xf]
  %v6124 = vld [vmem:[%s6118 + $0x14] sm:$0xf]
  %v6125 = vld [vmem:[%s6118 + $0x18] sm:$0xf]
  %v6126 = vld [vmem:[%s6118 + $0x1c] sm:$0xf]
  %v6127 = vld [vmem:[%s6118 + $0x20] sm:$0xf]
  %v6128 = vld [vmem:[%s6118 + $0x24] sm:$0xf]
  %v6129 = vld [vmem:[%s6118 + $0x28] sm:$0xf]
  %v6130 = vld [vmem:[%s6118 + $0x2c] sm:$0xf]
  %v6131 = vld [vmem:[%s6118 + $0x30] sm:$0xf]
  %v6132 = vld [vmem:[%s6118 + $0x34] sm:$0xf]
  %v6133 = vld [vmem:[%s6118 + $0x38] sm:$0xf]
  %v6134 = vld [vmem:[%s6118 + $0x3c] sm:$0xf]
  %v6157 = vunpack.c.l.b16 %v6117
  %v6158 = vunpack.c.l.b16 %v6079
  %v6159 = vunpack.c.l.b16 %v6080
  %v6160 = vunpack.c.l.b16 %v6081
  %v6161 = vunpack.c.l.b16 %v6082
  %v6162 = vunpack.c.l.b16 %v6083
  %v6163 = vunpack.c.l.b16 %v6084
  %v6164 = vunpack.c.l.b16 %v6085
  %v6165 = vunpack.c.l.b16 %v6086
  %v6166 = vunpack.c.l.b16 %v6087
  %v6167 = vunpack.c.l.b16 %v6088
  %v6168 = vunpack.c.l.b16 %v6089
  %v6169 = vunpack.c.l.b16 %v6090
  %v6170 = vunpack.c.l.b16 %v6091
  %v6171 = vunpack.c.l.b16 %v6092
  %v6172 = vunpack.c.l.b16 %v6093
  %v6173 = vunpack.c.l.b16 %v6094
  %v6174 = vunpack.c.l.b16 %v6095
  %v6175 = vunpack.c.l.b16 %v6096
  %v6176 = vunpack.c.l.b16 %v6097
  %v6177 = vunpack.c.l.b16 %v6098
  %v6178 = vunpack.c.l.b16 %v6099
  %v6179 = vpack.c.b16 %v6158, %v6157
  %v6180 = vpack.c.b16 %v6160, %v6159
  %v6181 = vpack.c.b16 %v6162, %v6161
  %v6182 = vpack.c.b16 %v6164, %v6163
  %v6183 = vpack.c.b16 %v6166, %v6165
  %v6184 = vpack.c.b16 %v6168, %v6167
  %v6185 = vpack.c.b16 %v6170, %v6169
  %v6186 = vpack.c.b16 %v6172, %v6171
  %v6187 = vpack.c.b16 %v6174, %v6173
  %v6188 = vpack.c.b16 %v6176, %v6175
  %v6189 = vpack.c.b16 %v6178, %v6177
  %vm6190 = vcmask 1044480
  %v6191 = vrot.slane %v6179, 3
  %v6192 = vrot.slane %v6180, 3
  %v6193 = vsel %vm6190, %v6191, %v6192
  %v6194 = vrot.slane %v6181, 3
  %v6195 = vsel %vm6190, %v6192, %v6194
  %v6196 = vrot.slane %v6182, 3
  %v6197 = vsel %vm6190, %v6194, %v6196
  %v6198 = vrot.slane %v6183, 3
  %v6199 = vsel %vm6190, %v6196, %v6198
  %v6200 = vrot.slane %v6184, 3
  %v6201 = vsel %vm6190, %v6198, %v6200
  %v6202 = vrot.slane %v6185, 3
  %v6203 = vsel %vm6190, %v6200, %v6202
  %v6204 = vrot.slane %v6186, 3
  %v6205 = vsel %vm6190, %v6202, %v6204
  %v6206 = vrot.slane %v6187, 3
  %v6207 = vsel %vm6190, %v6204, %v6206
  %v6208 = vrot.slane %v6188, 3
  %v6209 = vsel %vm6190, %v6206, %v6208
  %v6210 = vrot.slane %v6189, 3
  %v6211 = vsel %vm6190, %v6208, %v6210
  %v6239 = vunpack.c.l.b16 %v6119
  %v6240 = vunpack.c.l.b16 %v6120
  %v6241 = vunpack.c.l.b16 %v6121
  %v6242 = vunpack.c.l.b16 %v6122
  %v6243 = vunpack.c.l.b16 %v6123
  %v6244 = vunpack.c.l.b16 %v6124
  %v6245 = vunpack.c.l.b16 %v6125
  %v6246 = vunpack.c.l.b16 %v6126
  %v6247 = vunpack.c.l.b16 %v6127
  %v6248 = vunpack.c.l.b16 %v6128
  %v6249 = vunpack.c.l.b16 %v6129
  %v6250 = vunpack.c.l.b16 %v6130
  %v6251 = vunpack.c.l.b16 %v6131
  %v6252 = vunpack.c.l.b16 %v6132
  %v6253 = vunpack.c.l.b16 %v6133
  %v6254 = vunpack.c.l.b16 %v6134
  %v6255 = vpack.c.b16 %v6240, %v6239
  %v6256 = vpack.c.b16 %v6242, %v6241
  %v6257 = vpack.c.b16 %v6244, %v6243
  %v6258 = vpack.c.b16 %v6246, %v6245
  %v6259 = vpack.c.b16 %v6248, %v6247
  %v6260 = vpack.c.b16 %v6250, %v6249
  %v6261 = vpack.c.b16 %v6252, %v6251
  %v6262 = vpack.c.b16 %v6254, %v6253
  %6271 = vmatprep.subr.bf16.mxu0 0
  %6272 = vmatpush1.bf16.msra.mxu0 %v6262
  %6273 = vmatprep.subr.bf16.mxu0 0
  %6274 = vmatpush1.bf16.msra.mxu0 %v6261
  %6275 = vmatprep.subr.bf16.mxu0 0
  %6276 = vmatpush1.bf16.msra.mxu0 %v6260
  %6277 = vmatprep.subr.bf16.mxu0 0
  %6278 = vmatpush1.bf16.msra.mxu0 %v6259
  %6279 = vmatprep.subr.bf16.mxu0 0
  %6280 = vmatpush1.bf16.msra.mxu0 %v6258
  %6281 = vmatprep.subr.bf16.mxu0 0
  %6282 = vmatpush1.bf16.msra.mxu0 %v6257
  %6283 = vmatprep.subr.bf16.mxu0 0
  %6284 = vmatpush1.bf16.msra.mxu0 %v6256
  %6285 = vmatprep.subr.bf16.mxu0 0
  %6286 = vmatpush1.bf16.msra.mxu0 %v6255
  %6287 = vmatprep.subr.bf16.mxu0 0
  %6288 = vmatpush2.bf16.msra.mxu0 0
  %6289 = vmatprep.subr.bf16.mxu0 0
  %6290 = vmatpush2.bf16.msra.mxu0 0
  %6291 = vmatprep.subr.bf16.mxu0 0
  %6292 = vmatpush2.bf16.msra.mxu0 0
  %6293 = vmatprep.subr.bf16.mxu0 0
  %6294 = vmatpush2.bf16.msra.mxu0 0
  %6295 = vmatprep.subr.bf16.mxu0 0
  %6296 = vmatpush2.bf16.msra.mxu0 0
  %6297 = vmatprep.subr.bf16.mxu0 0
  %6298 = vmatpush2.bf16.msra.mxu0 0
  %6299 = vmatprep.subr.bf16.mxu0 0
  %6300 = vmatpush2.bf16.msra.mxu0 0
  %6301 = vmatprep.subr.bf16.mxu0 0
  %6302 = vmatpush2.bf16.msra.mxu0 0
  %6303 = vmatprep.mubr.bf16.mxu0 0
  %6304 = vmatmul.mubr.bf16.gmra.mxu0 %v6193
  %v6305 = vpop.f32.mrf.mxu0
  %v6306 = vadd.f32 0.0, %v6305
  %v6307 = vpop.f32.mrf.mxu0
  %v6308 = vpop.f32.mrf.mxu0
  %v6309 = vadd.f32 0.0, %v6308
  %v6310 = vpop.f32.mrf.mxu0
  %6311 = vmatprep.mubr.bf16.mxu0 0
  %6312 = vmatmul.mubr.bf16.gmra.mxu0 %v6195
  %v6313 = vpop.f32.mrf.mxu0
  %v6314 = vadd.f32 0.0, %v6313
  %v6315 = vpop.f32.mrf.mxu0
  %v6316 = vpop.f32.mrf.mxu0
  %v6317 = vadd.f32 0.0, %v6316
  %v6318 = vpop.f32.mrf.mxu0
  %6319 = vmatprep.mubr.bf16.mxu0 0
  %6320 = vmatmul.mubr.bf16.gmra.mxu0 %v6197
  %v6321 = vpop.f32.mrf.mxu0
  %v6322 = vadd.f32 0.0, %v6321
  %v6323 = vpop.f32.mrf.mxu0
  %v6324 = vpop.f32.mrf.mxu0
  %v6325 = vadd.f32 0.0, %v6324
  %v6326 = vpop.f32.mrf.mxu0
  %6327 = vmatprep.mubr.bf16.mxu0 0
  %6328 = vmatmul.mubr.bf16.gmra.mxu0 %v6199
  %v6329 = vpop.f32.mrf.mxu0
  %v6330 = vadd.f32 0.0, %v6329
  %v6331 = vpop.f32.mrf.mxu0
  %v6332 = vpop.f32.mrf.mxu0
  %v6333 = vadd.f32 0.0, %v6332
  %v6334 = vpop.f32.mrf.mxu0
  %6335 = vmatprep.mubr.bf16.mxu0 0
  %6336 = vmatmul.mubr.bf16.gmra.mxu0 %v6201
  %v6337 = vpop.f32.mrf.mxu0
  %v6338 = vadd.f32 0.0, %v6337
  %v6339 = vpop.f32.mrf.mxu0
  %v6340 = vpop.f32.mrf.mxu0
  %v6341 = vadd.f32 0.0, %v6340
  %v6342 = vpop.f32.mrf.mxu0
  %6343 = vmatprep.mubr.bf16.mxu0 0
  %6344 = vmatmul.mubr.bf16.gmra.mxu0 %v6203
  %v6345 = vpop.f32.mrf.mxu0
  %v6346 = vadd.f32 0.0, %v6345
  %v6347 = vpop.f32.mrf.mxu0
  %v6348 = vpop.f32.mrf.mxu0
  %v6349 = vadd.f32 0.0, %v6348
  %v6350 = vpop.f32.mrf.mxu0
  %6351 = vmatprep.mubr.bf16.mxu0 0
  %6352 = vmatmul.mubr.bf16.gmra.mxu0 %v6205
  %v6353 = vpop.f32.mrf.mxu0
  %v6354 = vadd.f32 0.0, %v6353
  %v6355 = vpop.f32.mrf.mxu0
  %v6356 = vpop.f32.mrf.mxu0
  %v6357 = vadd.f32 0.0, %v6356
  %v6358 = vpop.f32.mrf.mxu0
  %6359 = vmatprep.mubr.bf16.mxu0 0
  %6360 = vmatmul.mubr.bf16.gmra.mxu0 %v6207
  %v6361 = vpop.f32.mrf.mxu0
  %v6362 = vadd.f32 0.0, %v6361
  %v6363 = vpop.f32.mrf.mxu0
  %v6364 = vpop.f32.mrf.mxu0
  %v6365 = vadd.f32 0.0, %v6364
  %v6366 = vpop.f32.mrf.mxu0
  %6367 = vmatprep.mubr.bf16.mxu0 0
  %6368 = vmatmul.mubr.bf16.gmra.mxu0 %v6209
  %v6369 = vpop.f32.mrf.mxu0
  %v6370 = vadd.f32 0.0, %v6369
  %v6371 = vpop.f32.mrf.mxu0
  %v6372 = vpop.f32.mrf.mxu0
  %v6373 = vadd.f32 0.0, %v6372
  %v6374 = vpop.f32.mrf.mxu0
  %6375 = vmatprep.mubr.bf16.mxu0 0
  %6376 = vmatmul.mubr.bf16.gmra.mxu0 %v6211
  %v6377 = vpop.f32.mrf.mxu0
  %v6378 = vadd.f32 0.0, %v6377
  %v6379 = vpop.f32.mrf.mxu0
  %v6380 = vpop.f32.mrf.mxu0
  %v6381 = vadd.f32 0.0, %v6380
  %v6382 = vpop.f32.mrf.mxu0
  %6383 = vmatprep.mubr.bf16.mxu0 0
  %6384 = vmatmul.mubr.bf16.gmra.mxu0 %v6210
  %v6385 = vpop.f32.mrf.mxu0
  %v6386 = vadd.f32 0.0, %v6385
  %v6387 = vpop.f32.mrf.mxu0
  %v6388 = vpop.f32.mrf.mxu0
  %v6389 = vpop.f32.mrf.mxu0
  %6390 = vdwg.mxu0
  %v6392 = vunpack.c.l.b16 %v6078
  %v6393 = vpack.c.b16 %v6158, %v6392
  %vm6394 = vsmask.f32 5376
  %v6396 = vshrl.u32 %v6393, 16
  %v6398 = vrot.slane %v6396, 2
  %v6399 = vshll.u32 %v6393, 16
  %v6401 = vrot.slane %v6399, 3
  %v6402 = vor.u32 %v6398, %v6401
  %v6404 = vshrl.u32 %v6180, 16
  %v6406 = vrot.slane %v6404, 2
  %v6407 = vshll.u32 %v6180, 16
  %v6409 = vrot.slane %v6407, 3
  %v6410 = vor.u32 %v6406, %v6409
  %v6411 = vsel %vm6394, %v6402, %v6410
  %v6413 = vshrl.u32 %v6181, 16
  %v6415 = vrot.slane %v6413, 2
  %v6416 = vshll.u32 %v6181, 16
  %v6418 = vrot.slane %v6416, 3
  %v6419 = vor.u32 %v6415, %v6418
  %v6420 = vsel %vm6394, %v6410, %v6419
  %v6422 = vshrl.u32 %v6182, 16
  %v6424 = vrot.slane %v6422, 2
  %v6425 = vshll.u32 %v6182, 16
  %v6427 = vrot.slane %v6425, 3
  %v6428 = vor.u32 %v6424, %v6427
  %v6429 = vsel %vm6394, %v6419, %v6428
  %v6431 = vshrl.u32 %v6183, 16
  %v6433 = vrot.slane %v6431, 2
  %v6434 = vshll.u32 %v6183, 16
  %v6436 = vrot.slane %v6434, 3
  %v6437 = vor.u32 %v6433, %v6436
  %v6438 = vsel %vm6394, %v6428, %v6437
  %v6440 = vshrl.u32 %v6184, 16
  %v6442 = vrot.slane %v6440, 2
  %v6443 = vshll.u32 %v6184, 16
  %v6445 = vrot.slane %v6443, 3
  %v6446 = vor.u32 %v6442, %v6445
  %v6447 = vsel %vm6394, %v6437, %v6446
  %v6449 = vshrl.u32 %v6185, 16
  %v6451 = vrot.slane %v6449, 2
  %v6452 = vshll.u32 %v6185, 16
  %v6454 = vrot.slane %v6452, 3
  %v6455 = vor.u32 %v6451, %v6454
  %v6456 = vsel %vm6394, %v6446, %v6455
  %v6458 = vshrl.u32 %v6186, 16
  %v6460 = vrot.slane %v6458, 2
  %v6461 = vshll.u32 %v6186, 16
  %v6463 = vrot.slane %v6461, 3
  %v6464 = vor.u32 %v6460, %v6463
  %v6465 = vsel %vm6394, %v6455, %v6464
  %v6467 = vshrl.u32 %v6187, 16
  %v6469 = vrot.slane %v6467, 2
  %v6470 = vshll.u32 %v6187, 16
  %v6472 = vrot.slane %v6470, 3
  %v6473 = vor.u32 %v6469, %v6472
  %v6474 = vsel %vm6394, %v6464, %v6473
  %v6476 = vshrl.u32 %v6188, 16
  %v6478 = vrot.slane %v6476, 2
  %v6479 = vshll.u32 %v6188, 16
  %v6481 = vrot.slane %v6479, 3
  %v6482 = vor.u32 %v6478, %v6481
  %v6483 = vsel %vm6394, %v6473, %v6482
  %v6485 = vshrl.u32 %v6189, 16
  %v6487 = vrot.slane %v6485, 2
  %v6488 = vshll.u32 %v6189, 16
  %v6490 = vrot.slane %v6488, 3
  %v6491 = vor.u32 %v6487, %v6490
  %v6492 = vsel %vm6394, %v6482, %v6491
  %v6520 = vunpack.c.l.b16 %v6101
  %v6521 = vunpack.c.l.b16 %v6102
  %v6522 = vunpack.c.l.b16 %v6103
  %v6523 = vunpack.c.l.b16 %v6104
  %v6524 = vunpack.c.l.b16 %v6105
  %v6525 = vunpack.c.l.b16 %v6106
  %v6526 = vunpack.c.l.b16 %v6107
  %v6527 = vunpack.c.l.b16 %v6108
  %v6528 = vunpack.c.l.b16 %v6109
  %v6529 = vunpack.c.l.b16 %v6110
  %v6530 = vunpack.c.l.b16 %v6111
  %v6531 = vunpack.c.l.b16 %v6112
  %v6532 = vunpack.c.l.b16 %v6113
  %v6533 = vunpack.c.l.b16 %v6114
  %v6534 = vunpack.c.l.b16 %v6115
  %v6535 = vunpack.c.l.b16 %v6116
  %v6536 = vpack.c.b16 %v6521, %v6520
  %v6537 = vpack.c.b16 %v6523, %v6522
  %v6538 = vpack.c.b16 %v6525, %v6524
  %v6539 = vpack.c.b16 %v6527, %v6526
  %v6540 = vpack.c.b16 %v6529, %v6528
  %v6541 = vpack.c.b16 %v6531, %v6530
  %v6542 = vpack.c.b16 %v6533, %v6532
  %v6543 = vpack.c.b16 %v6535, %v6534
  %6552 = vmatprep.subr.bf16.mxu0 0
  %6553 = vmatpush1.bf16.msra.mxu0 %v6543
  %6554 = vmatprep.subr.bf16.mxu0 0
  %6555 = vmatpush1.bf16.msra.mxu0 %v6542
  %6556 = vmatprep.subr.bf16.mxu0 0
  %6557 = vmatpush1.bf16.msra.mxu0 %v6541
  %6558 = vmatprep.subr.bf16.mxu0 0
  %6559 = vmatpush1.bf16.msra.mxu0 %v6540
  %6560 = vmatprep.subr.bf16.mxu0 0
  %6561 = vmatpush1.bf16.msra.mxu0 %v6539
  %6562 = vmatprep.subr.bf16.mxu0 0
  %6563 = vmatpush1.bf16.msra.mxu0 %v6538
  %6564 = vmatprep.subr.bf16.mxu0 0
  %6565 = vmatpush1.bf16.msra.mxu0 %v6537
  %6566 = vmatprep.subr.bf16.mxu0 0
  %6567 = vmatpush1.bf16.msra.mxu0 %v6536
  %6568 = vmatprep.subr.bf16.mxu0 0
  %6569 = vmatpush2.bf16.msra.mxu0 0
  %6570 = vmatprep.subr.bf16.mxu0 0
  %6571 = vmatpush2.bf16.msra.mxu0 0
  %6572 = vmatprep.subr.bf16.mxu0 0
  %6573 = vmatpush2.bf16.msra.mxu0 0
  %6574 = vmatprep.subr.bf16.mxu0 0
  %6575 = vmatpush2.bf16.msra.mxu0 0
  %6576 = vmatprep.subr.bf16.mxu0 0
  %6577 = vmatpush2.bf16.msra.mxu0 0
  %6578 = vmatprep.subr.bf16.mxu0 0
  %6579 = vmatpush2.bf16.msra.mxu0 0
  %6580 = vmatprep.subr.bf16.mxu0 0
  %6581 = vmatpush2.bf16.msra.mxu0 0
  %6582 = vmatprep.subr.bf16.mxu0 0
  %6583 = vmatpush2.bf16.msra.mxu0 0
  %6584 = vmatprep.mubr.bf16.mxu0 0
  %6585 = vmatmul.mubr.bf16.gmra.mxu0 %v6411
  %v6586 = vpop.f32.mrf.mxu0
  %v6587 = vadd.f32 %v6306, %v6586
  %v6588 = vpop.f32.mrf.mxu0
  %v6589 = vpop.f32.mrf.mxu0
  %v6590 = vadd.f32 %v6309, %v6589
  %v6591 = vpop.f32.mrf.mxu0
  %6592 = vmatprep.mubr.bf16.mxu0 0
  %6593 = vmatmul.mubr.bf16.gmra.mxu0 %v6420
  %v6594 = vpop.f32.mrf.mxu0
  %v6595 = vadd.f32 %v6314, %v6594
  %v6596 = vpop.f32.mrf.mxu0
  %v6597 = vpop.f32.mrf.mxu0
  %v6598 = vadd.f32 %v6317, %v6597
  %v6599 = vpop.f32.mrf.mxu0
  %6600 = vmatprep.mubr.bf16.mxu0 0
  %6601 = vmatmul.mubr.bf16.gmra.mxu0 %v6429
  %v6602 = vpop.f32.mrf.mxu0
  %v6603 = vadd.f32 %v6322, %v6602
  %v6604 = vpop.f32.mrf.mxu0
  %v6605 = vpop.f32.mrf.mxu0
  %v6606 = vadd.f32 %v6325, %v6605
  %v6607 = vpop.f32.mrf.mxu0
  %6608 = vmatprep.mubr.bf16.mxu0 0
  %6609 = vmatmul.mubr.bf16.gmra.mxu0 %v6438
  %v6610 = vpop.f32.mrf.mxu0
  %v6611 = vadd.f32 %v6330, %v6610
  %v6612 = vpop.f32.mrf.mxu0
  %v6613 = vpop.f32.mrf.mxu0
  %v6614 = vadd.f32 %v6333, %v6613
  %v6615 = vpop.f32.mrf.mxu0
  %6616 = vmatprep.mubr.bf16.mxu0 0
  %6617 = vmatmul.mubr.bf16.gmra.mxu0 %v6447
  %v6618 = vpop.f32.mrf.mxu0
  %v6619 = vadd.f32 %v6338, %v6618
  %v6620 = vpop.f32.mrf.mxu0
  %v6621 = vpop.f32.mrf.mxu0
  %v6622 = vadd.f32 %v6341, %v6621
  %v6623 = vpop.f32.mrf.mxu0
  %6624 = vmatprep.mubr.bf16.mxu0 0
  %6625 = vmatmul.mubr.bf16.gmra.mxu0 %v6456
  %v6626 = vpop.f32.mrf.mxu0
  %v6627 = vadd.f32 %v6346, %v6626
  %v6628 = vpop.f32.mrf.mxu0
  %v6629 = vpop.f32.mrf.mxu0
  %v6630 = vadd.f32 %v6349, %v6629
  %v6631 = vpop.f32.mrf.mxu0
  %6632 = vmatprep.mubr.bf16.mxu0 0
  %6633 = vmatmul.mubr.bf16.gmra.mxu0 %v6465
  %v6634 = vpop.f32.mrf.mxu0
  %v6635 = vadd.f32 %v6354, %v6634
  %v6636 = vpop.f32.mrf.mxu0
  %v6637 = vpop.f32.mrf.mxu0
  %v6638 = vadd.f32 %v6357, %v6637
  %v6639 = vpop.f32.mrf.mxu0
  %6640 = vmatprep.mubr.bf16.mxu0 0
  %6641 = vmatmul.mubr.bf16.gmra.mxu0 %v6474
  %v6642 = vpop.f32.mrf.mxu0
  %v6643 = vadd.f32 %v6362, %v6642
  %v6644 = vpop.f32.mrf.mxu0
  %v6645 = vpop.f32.mrf.mxu0
  %v6646 = vadd.f32 %v6365, %v6645
  %v6647 = vpop.f32.mrf.mxu0
  %6648 = vmatprep.mubr.bf16.mxu0 0
  %6649 = vmatmul.mubr.bf16.gmra.mxu0 %v6483
  %v6650 = vpop.f32.mrf.mxu0
  %v6651 = vadd.f32 %v6370, %v6650
  %v6652 = vpop.f32.mrf.mxu0
  %v6653 = vpop.f32.mrf.mxu0
  %v6654 = vadd.f32 %v6373, %v6653
  %v6655 = vpop.f32.mrf.mxu0
  %6656 = vmatprep.mubr.bf16.mxu0 0
  %6657 = vmatmul.mubr.bf16.gmra.mxu0 %v6492
  %v6658 = vpop.f32.mrf.mxu0
  %v6659 = vadd.f32 %v6378, %v6658
  %v6660 = vpop.f32.mrf.mxu0
  %v6661 = vpop.f32.mrf.mxu0
  %v6662 = vadd.f32 %v6381, %v6661
  %v6663 = vpop.f32.mrf.mxu0
  %6664 = vmatprep.mubr.bf16.mxu0 0
  %6665 = vmatmul.mubr.bf16.gmra.mxu0 %v6491
  %v6666 = vpop.f32.mrf.mxu0
  %v6667 = vadd.f32 %v6386, %v6666
  %v6668 = vpop.f32.mrf.mxu0
  %v6669 = vpop.f32.mrf.mxu0
  %v6670 = vpop.f32.mrf.mxu0
  %6671 = vdwg.mxu0
  %v6672 = vld [vmem:[#allocation2 + $0x54] sm:$0xf]
  %s6673 = scalar_lea.vmem %s1, 11648
  %v6674 = vld [vmem:[%s6673] sm:$0xf]
  %v6675 = vld [vmem:[%s6673 + $0x4] sm:$0xf]
  %v6676 = vld [vmem:[%s6673 + $0x8] sm:$0xf]
  %v6677 = vld [vmem:[%s6673 + $0xc] sm:$0xf]
  %v6678 = vld [vmem:[%s6673 + $0x10] sm:$0xf]
  %v6679 = vld [vmem:[%s6673 + $0x14] sm:$0xf]
  %v6680 = vld [vmem:[%s6673 + $0x18] sm:$0xf]
  %v6681 = vld [vmem:[%s6673 + $0x1c] sm:$0xf]
  %v6682 = vld [vmem:[%s6673 + $0x20] sm:$0xf]
  %v6683 = vld [vmem:[%s6673 + $0x24] sm:$0xf]
  %v6684 = vld [vmem:[%s6673 + $0x28] sm:$0xf]
  %v6685 = vld [vmem:[%s6673 + $0x2c] sm:$0xf]
  %v6686 = vld [vmem:[%s6673 + $0x30] sm:$0xf]
  %v6687 = vld [vmem:[%s6673 + $0x34] sm:$0xf]
  %v6688 = vld [vmem:[%s6673 + $0x38] sm:$0xf]
  %v6689 = vld [vmem:[%s6673 + $0x3c] sm:$0xf]
  %v6691 = vunpack.c.l.b16 %v6672
  %v6692 = vpack.c.b16 %v6691, %v6177
  %vm6693 = vsmask.f32 4352
  %v6695 = vshrl.u32 %v6179, 16
  %v6697 = vrot.slane %v6695, 3
  %v6698 = vshll.u32 %v6179, 16
  %v6700 = vrot.slane %v6698, 4
  %v6701 = vor.u32 %v6697, %v6700
  %v6702 = vrot.slane %v6404, 3
  %v6703 = vrot.slane %v6407, 4
  %v6704 = vor.u32 %v6702, %v6703
  %v6705 = vsel %vm6693, %v6701, %v6704
  %v6706 = vrot.slane %v6413, 3
  %v6707 = vrot.slane %v6416, 4
  %v6708 = vor.u32 %v6706, %v6707
  %v6709 = vsel %vm6693, %v6704, %v6708
  %v6710 = vrot.slane %v6422, 3
  %v6711 = vrot.slane %v6425, 4
  %v6712 = vor.u32 %v6710, %v6711
  %v6713 = vsel %vm6693, %v6708, %v6712
  %v6714 = vrot.slane %v6431, 3
  %v6715 = vrot.slane %v6434, 4
  %v6716 = vor.u32 %v6714, %v6715
  %v6717 = vsel %vm6693, %v6712, %v6716
  %v6718 = vrot.slane %v6440, 3
  %v6719 = vrot.slane %v6443, 4
  %v6720 = vor.u32 %v6718, %v6719
  %v6721 = vsel %vm6693, %v6716, %v6720
  %v6722 = vrot.slane %v6449, 3
  %v6723 = vrot.slane %v6452, 4
  %v6724 = vor.u32 %v6722, %v6723
  %v6725 = vsel %vm6693, %v6720, %v6724
  %v6726 = vrot.slane %v6458, 3
  %v6727 = vrot.slane %v6461, 4
  %v6728 = vor.u32 %v6726, %v6727
  %v6729 = vsel %vm6693, %v6724, %v6728
  %v6730 = vrot.slane %v6467, 3
  %v6731 = vrot.slane %v6470, 4
  %v6732 = vor.u32 %v6730, %v6731
  %v6733 = vsel %vm6693, %v6728, %v6732
  %v6734 = vrot.slane %v6476, 3
  %v6735 = vrot.slane %v6479, 4
  %v6736 = vor.u32 %v6734, %v6735
  %v6737 = vsel %vm6693, %v6732, %v6736
  %v6739 = vshrl.u32 %v6692, 16
  %v6741 = vrot.slane %v6739, 3
  %v6742 = vshll.u32 %v6692, 16
  %v6744 = vrot.slane %v6742, 4
  %v6745 = vor.u32 %v6741, %v6744
  %v6746 = vsel %vm6693, %v6736, %v6745
  %v6774 = vunpack.c.l.b16 %v6674
  %v6775 = vunpack.c.l.b16 %v6675
  %v6776 = vunpack.c.l.b16 %v6676
  %v6777 = vunpack.c.l.b16 %v6677
  %v6778 = vunpack.c.l.b16 %v6678
  %v6779 = vunpack.c.l.b16 %v6679
  %v6780 = vunpack.c.l.b16 %v6680
  %v6781 = vunpack.c.l.b16 %v6681
  %v6782 = vunpack.c.l.b16 %v6682
  %v6783 = vunpack.c.l.b16 %v6683
  %v6784 = vunpack.c.l.b16 %v6684
  %v6785 = vunpack.c.l.b16 %v6685
  %v6786 = vunpack.c.l.b16 %v6686
  %v6787 = vunpack.c.l.b16 %v6687
  %v6788 = vunpack.c.l.b16 %v6688
  %v6789 = vunpack.c.l.b16 %v6689
  %v6790 = vpack.c.b16 %v6775, %v6774
  %v6791 = vpack.c.b16 %v6777, %v6776
  %v6792 = vpack.c.b16 %v6779, %v6778
  %v6793 = vpack.c.b16 %v6781, %v6780
  %v6794 = vpack.c.b16 %v6783, %v6782
  %v6795 = vpack.c.b16 %v6785, %v6784
  %v6796 = vpack.c.b16 %v6787, %v6786
  %v6797 = vpack.c.b16 %v6789, %v6788
  %6806 = vmatprep.subr.bf16.mxu0 0
  %6807 = vmatpush1.bf16.msra.mxu0 %v6797
  %6808 = vmatprep.subr.bf16.mxu0 0
  %6809 = vmatpush1.bf16.msra.mxu0 %v6796
  %6810 = vmatprep.subr.bf16.mxu0 0
  %6811 = vmatpush1.bf16.msra.mxu0 %v6795
  %6812 = vmatprep.subr.bf16.mxu0 0
  %6813 = vmatpush1.bf16.msra.mxu0 %v6794
  %6814 = vmatprep.subr.bf16.mxu0 0
  %6815 = vmatpush1.bf16.msra.mxu0 %v6793
  %6816 = vmatprep.subr.bf16.mxu0 0
  %6817 = vmatpush1.bf16.msra.mxu0 %v6792
  %6818 = vmatprep.subr.bf16.mxu0 0
  %6819 = vmatpush1.bf16.msra.mxu0 %v6791
  %6820 = vmatprep.subr.bf16.mxu0 0
  %6821 = vmatpush1.bf16.msra.mxu0 %v6790
  %6822 = vmatprep.subr.bf16.mxu0 0
  %6823 = vmatpush2.bf16.msra.mxu0 0
  %6824 = vmatprep.subr.bf16.mxu0 0
  %6825 = vmatpush2.bf16.msra.mxu0 0
  %6826 = vmatprep.subr.bf16.mxu0 0
  %6827 = vmatpush2.bf16.msra.mxu0 0
  %6828 = vmatprep.subr.bf16.mxu0 0
  %6829 = vmatpush2.bf16.msra.mxu0 0
  %6830 = vmatprep.subr.bf16.mxu0 0
  %6831 = vmatpush2.bf16.msra.mxu0 0
  %6832 = vmatprep.subr.bf16.mxu0 0
  %6833 = vmatpush2.bf16.msra.mxu0 0
  %6834 = vmatprep.subr.bf16.mxu0 0
  %6835 = vmatpush2.bf16.msra.mxu0 0
  %6836 = vmatprep.subr.bf16.mxu0 0
  %6837 = vmatpush2.bf16.msra.mxu0 0
  %6838 = vmatprep.mubr.bf16.mxu0 0
  %6839 = vmatmul.mubr.bf16.gmra.mxu0 %v6705
  %v6840 = vpop.f32.mrf.mxu0
  %v6841 = vadd.f32 0.0, %v6840
  %v6842 = vpop.f32.mrf.mxu0
  %v6843 = vpop.f32.mrf.mxu0
  %v6844 = vadd.f32 0.0, %v6843
  %v6845 = vpop.f32.mrf.mxu0
  %6846 = vmatprep.mubr.bf16.mxu0 0
  %6847 = vmatmul.mubr.bf16.gmra.mxu0 %v6709
  %v6848 = vpop.f32.mrf.mxu0
  %v6849 = vadd.f32 0.0, %v6848
  %v6850 = vpop.f32.mrf.mxu0
  %v6851 = vpop.f32.mrf.mxu0
  %v6852 = vadd.f32 0.0, %v6851
  %v6853 = vpop.f32.mrf.mxu0
  %6854 = vmatprep.mubr.bf16.mxu0 0
  %6855 = vmatmul.mubr.bf16.gmra.mxu0 %v6713
  %v6856 = vpop.f32.mrf.mxu0
  %v6857 = vadd.f32 0.0, %v6856
  %v6858 = vpop.f32.mrf.mxu0
  %v6859 = vpop.f32.mrf.mxu0
  %v6860 = vadd.f32 0.0, %v6859
  %v6861 = vpop.f32.mrf.mxu0
  %6862 = vmatprep.mubr.bf16.mxu0 0
  %6863 = vmatmul.mubr.bf16.gmra.mxu0 %v6717
  %v6864 = vpop.f32.mrf.mxu0
  %v6865 = vadd.f32 0.0, %v6864
  %v6866 = vpop.f32.mrf.mxu0
  %v6867 = vpop.f32.mrf.mxu0
  %v6868 = vadd.f32 0.0, %v6867
  %v6869 = vpop.f32.mrf.mxu0
  %6870 = vmatprep.mubr.bf16.mxu0 0
  %6871 = vmatmul.mubr.bf16.gmra.mxu0 %v6721
  %v6872 = vpop.f32.mrf.mxu0
  %v6873 = vadd.f32 0.0, %v6872
  %v6874 = vpop.f32.mrf.mxu0
  %v6875 = vpop.f32.mrf.mxu0
  %v6876 = vadd.f32 0.0, %v6875
  %v6877 = vpop.f32.mrf.mxu0
  %6878 = vmatprep.mubr.bf16.mxu0 0
  %6879 = vmatmul.mubr.bf16.gmra.mxu0 %v6725
  %v6880 = vpop.f32.mrf.mxu0
  %v6881 = vadd.f32 0.0, %v6880
  %v6882 = vpop.f32.mrf.mxu0
  %v6883 = vpop.f32.mrf.mxu0
  %v6884 = vadd.f32 0.0, %v6883
  %v6885 = vpop.f32.mrf.mxu0
  %6886 = vmatprep.mubr.bf16.mxu0 0
  %6887 = vmatmul.mubr.bf16.gmra.mxu0 %v6729
  %v6888 = vpop.f32.mrf.mxu0
  %v6889 = vadd.f32 0.0, %v6888
  %v6890 = vpop.f32.mrf.mxu0
  %v6891 = vpop.f32.mrf.mxu0
  %v6892 = vadd.f32 0.0, %v6891
  %v6893 = vpop.f32.mrf.mxu0
  %6894 = vmatprep.mubr.bf16.mxu0 0
  %6895 = vmatmul.mubr.bf16.gmra.mxu0 %v6733
  %v6896 = vpop.f32.mrf.mxu0
  %v6897 = vadd.f32 0.0, %v6896
  %v6898 = vpop.f32.mrf.mxu0
  %v6899 = vpop.f32.mrf.mxu0
  %v6900 = vadd.f32 0.0, %v6899
  %v6901 = vpop.f32.mrf.mxu0
  %6902 = vmatprep.mubr.bf16.mxu0 0
  %6903 = vmatmul.mubr.bf16.gmra.mxu0 %v6737
  %v6904 = vpop.f32.mrf.mxu0
  %v6905 = vadd.f32 0.0, %v6904
  %v6906 = vpop.f32.mrf.mxu0
  %v6907 = vpop.f32.mrf.mxu0
  %v6908 = vadd.f32 0.0, %v6907
  %v6909 = vpop.f32.mrf.mxu0
  %6910 = vmatprep.mubr.bf16.mxu0 0
  %6911 = vmatmul.mubr.bf16.gmra.mxu0 %v6746
  %v6912 = vpop.f32.mrf.mxu0
  %v6913 = vadd.f32 0.0, %v6912
  %v6914 = vpop.f32.mrf.mxu0
  %v6915 = vpop.f32.mrf.mxu0
  %v6916 = vadd.f32 0.0, %v6915
  %v6917 = vpop.f32.mrf.mxu0
  %6918 = vmatprep.mubr.bf16.mxu0 0
  %6919 = vmatmul.mubr.bf16.gmra.mxu0 %v6745
  %v6920 = vpop.f32.mrf.mxu0
  %v6921 = vadd.f32 0.0, %v6920
  %v6922 = vpop.f32.mrf.mxu0
  %v6923 = vpop.f32.mrf.mxu0
  %v6924 = vpop.f32.mrf.mxu0
  %6925 = vdwg.mxu0
  %v6926 = vadd.f32 %v6587, %v6841
  %v6927 = vadd.f32 %v6590, %v6844
  %v6928 = vadd.f32 %v6595, %v6849
  %v6929 = vadd.f32 %v6598, %v6852
  %v6930 = vadd.f32 %v6603, %v6857
  %v6931 = vadd.f32 %v6606, %v6860
  %v6932 = vadd.f32 %v6611, %v6865
  %v6933 = vadd.f32 %v6614, %v6868
  %v6934 = vadd.f32 %v6619, %v6873
  %v6935 = vadd.f32 %v6622, %v6876
  %v6936 = vadd.f32 %v6627, %v6881
  %v6937 = vadd.f32 %v6630, %v6884
  %v6938 = vadd.f32 %v6635, %v6889
  %v6939 = vadd.f32 %v6638, %v6892
  %v6940 = vadd.f32 %v6643, %v6897
  %v6941 = vadd.f32 %v6646, %v6900
  %v6942 = vadd.f32 %v6651, %v6905
  %v6943 = vadd.f32 %v6654, %v6908
  %v6944 = vadd.f32 %v6659, %v6913
  %v6945 = vadd.f32 %v6662, %v6916
  %v6946 = vadd.f32 %v6667, %v6921
  %v6947 = vld [vmem:[#allocation2 + $0x8] sm:$0x8]
  %v6948 = vld [vmem:[#allocation2 + $0xc] sm:$0xf]
  %v6949 = vld [vmem:[#allocation2 + $0x10] sm:$0xf]
  %v6950 = vld [vmem:[#allocation2 + $0x14] sm:$0xf]
  %v6951 = vld [vmem:[#allocation2 + $0x18] sm:$0xf]
  %v6952 = vld [vmem:[#allocation2 + $0x1c] sm:$0xf]
  %v6953 = vld [vmem:[#allocation2 + $0x20] sm:$0xf]
  %v6954 = vld [vmem:[#allocation2 + $0x24] sm:$0xf]
  %v6955 = vld [vmem:[#allocation2 + $0x28] sm:$0xf]
  %v6956 = vld [vmem:[#allocation2 + $0x2c] sm:$0xf]
  %v6957 = vld [vmem:[#allocation2 + $0x30] sm:$0xf]
  %v6958 = vld [vmem:[#allocation2 + $0x34] sm:$0xf]
  %v6959 = vld [vmem:[#allocation2 + $0x38] sm:$0xf]
  %v6960 = vld [vmem:[#allocation2 + $0x3c] sm:$0xf]
  %v6961 = vld [vmem:[#allocation2 + $0x40] sm:$0xf]
  %v6962 = vld [vmem:[#allocation2 + $0x44] sm:$0xf]
  %v6963 = vld [vmem:[#allocation2 + $0x48] sm:$0xf]
  %v6964 = vld [vmem:[#allocation2 + $0x4c] sm:$0xf]
  %v6965 = vld [vmem:[#allocation2 + $0x50] sm:$0xf]
  %v6966 = vld [vmem:[#allocation2 + $0x54] sm:$0xf]
  %v6967 = vld [vmem:[#allocation2 + $0x58] sm:$0xf]
  %v6968 = vld [vmem:[#allocation2 + $0x5c] sm:$0xf]
  %s6969 = scalar_lea.vmem %s1, 11712
  %v6970 = vld [vmem:[%s6969] sm:$0xf]
  %v6971 = vld [vmem:[%s6969 + $0x4] sm:$0xf]
  %v6972 = vld [vmem:[%s6969 + $0x8] sm:$0xf]
  %v6973 = vld [vmem:[%s6969 + $0xc] sm:$0xf]
  %v6974 = vld [vmem:[%s6969 + $0x10] sm:$0xf]
  %v6975 = vld [vmem:[%s6969 + $0x14] sm:$0xf]
  %v6976 = vld [vmem:[%s6969 + $0x18] sm:$0xf]
  %v6977 = vld [vmem:[%s6969 + $0x1c] sm:$0xf]
  %v6978 = vld [vmem:[%s6969 + $0x20] sm:$0xf]
  %v6979 = vld [vmem:[%s6969 + $0x24] sm:$0xf]
  %v6980 = vld [vmem:[%s6969 + $0x28] sm:$0xf]
  %v6981 = vld [vmem:[%s6969 + $0x2c] sm:$0xf]
  %v6982 = vld [vmem:[%s6969 + $0x30] sm:$0xf]
  %v6983 = vld [vmem:[%s6969 + $0x34] sm:$0xf]
  %v6984 = vld [vmem:[%s6969 + $0x38] sm:$0xf]
  %v6985 = vld [vmem:[%s6969 + $0x3c] sm:$0xf]
  %v7008 = vunpack.c.l.b16 %v6947
  %v7009 = vunpack.c.l.b16 %v6948
  %v7010 = vunpack.c.l.b16 %v6949
  %v7011 = vunpack.c.l.b16 %v6950
  %v7012 = vunpack.c.l.b16 %v6951
  %v7013 = vunpack.c.l.b16 %v6952
  %v7014 = vunpack.c.l.b16 %v6953
  %v7015 = vunpack.c.l.b16 %v6954
  %v7016 = vunpack.c.l.b16 %v6955
  %v7017 = vunpack.c.l.b16 %v6956
  %v7018 = vunpack.c.l.b16 %v6957
  %v7019 = vunpack.c.l.b16 %v6958
  %v7020 = vunpack.c.l.b16 %v6959
  %v7021 = vunpack.c.l.b16 %v6960
  %v7022 = vunpack.c.l.b16 %v6961
  %v7023 = vunpack.c.l.b16 %v6962
  %v7024 = vunpack.c.l.b16 %v6963
  %v7025 = vunpack.c.l.b16 %v6964
  %v7026 = vunpack.c.l.b16 %v6965
  %v7027 = vunpack.c.l.b16 %v6966
  %v7028 = vunpack.c.l.b16 %v6967
  %v7029 = vunpack.c.l.b16 %v6968
  %v7030 = vpack.c.b16 %v7009, %v7008
  %v7031 = vpack.c.b16 %v7011, %v7010
  %v7032 = vpack.c.b16 %v7013, %v7012
  %v7033 = vpack.c.b16 %v7015, %v7014
  %v7034 = vpack.c.b16 %v7017, %v7016
  %v7035 = vpack.c.b16 %v7019, %v7018
  %v7036 = vpack.c.b16 %v7021, %v7020
  %v7037 = vpack.c.b16 %v7023, %v7022
  %v7038 = vpack.c.b16 %v7025, %v7024
  %v7039 = vpack.c.b16 %v7027, %v7026
  %v7040 = vpack.c.b16 %v7029, %v7028
  %v7042 = vshrl.u32 %v7030, 16
  %v7044 = vrot.slane %v7042, 3
  %v7045 = vshll.u32 %v7030, 16
  %v7047 = vrot.slane %v7045, 4
  %v7048 = vor.u32 %v7044, %v7047
  %v7050 = vshrl.u32 %v7031, 16
  %v7052 = vrot.slane %v7050, 3
  %v7053 = vshll.u32 %v7031, 16
  %v7055 = vrot.slane %v7053, 4
  %v7056 = vor.u32 %v7052, %v7055
  %v7057 = vsel %vm6693, %v7048, %v7056
  %v7059 = vshrl.u32 %v7032, 16
  %v7061 = vrot.slane %v7059, 3
  %v7062 = vshll.u32 %v7032, 16
  %v7064 = vrot.slane %v7062, 4
  %v7065 = vor.u32 %v7061, %v7064
  %v7066 = vsel %vm6693, %v7056, %v7065
  %v7068 = vshrl.u32 %v7033, 16
  %v7070 = vrot.slane %v7068, 3
  %v7071 = vshll.u32 %v7033, 16
  %v7073 = vrot.slane %v7071, 4
  %v7074 = vor.u32 %v7070, %v7073
  %v7075 = vsel %vm6693, %v7065, %v7074
  %v7077 = vshrl.u32 %v7034, 16
  %v7079 = vrot.slane %v7077, 3
  %v7080 = vshll.u32 %v7034, 16
  %v7082 = vrot.slane %v7080, 4
  %v7083 = vor.u32 %v7079, %v7082
  %v7084 = vsel %vm6693, %v7074, %v7083
  %v7086 = vshrl.u32 %v7035, 16
  %v7088 = vrot.slane %v7086, 3
  %v7089 = vshll.u32 %v7035, 16
  %v7091 = vrot.slane %v7089, 4
  %v7092 = vor.u32 %v7088, %v7091
  %v7093 = vsel %vm6693, %v7083, %v7092
  %v7095 = vshrl.u32 %v7036, 16
  %v7097 = vrot.slane %v7095, 3
  %v7098 = vshll.u32 %v7036, 16
  %v7100 = vrot.slane %v7098, 4
  %v7101 = vor.u32 %v7097, %v7100
  %v7102 = vsel %vm6693, %v7092, %v7101
  %v7104 = vshrl.u32 %v7037, 16
  %v7106 = vrot.slane %v7104, 3
  %v7107 = vshll.u32 %v7037, 16
  %v7109 = vrot.slane %v7107, 4
  %v7110 = vor.u32 %v7106, %v7109
  %v7111 = vsel %vm6693, %v7101, %v7110
  %v7113 = vshrl.u32 %v7038, 16
  %v7115 = vrot.slane %v7113, 3
  %v7116 = vshll.u32 %v7038, 16
  %v7118 = vrot.slane %v7116, 4
  %v7119 = vor.u32 %v7115, %v7118
  %v7120 = vsel %vm6693, %v7110, %v7119
  %v7122 = vshrl.u32 %v7039, 16
  %v7124 = vrot.slane %v7122, 3
  %v7125 = vshll.u32 %v7039, 16
  %v7127 = vrot.slane %v7125, 4
  %v7128 = vor.u32 %v7124, %v7127
  %v7129 = vsel %vm6693, %v7119, %v7128
  %v7131 = vshrl.u32 %v7040, 16
  %v7133 = vrot.slane %v7131, 3
  %v7134 = vshll.u32 %v7040, 16
  %v7136 = vrot.slane %v7134, 4
  %v7137 = vor.u32 %v7133, %v7136
  %v7138 = vsel %vm6693, %v7128, %v7137
  %v7166 = vunpack.c.l.b16 %v6970
  %v7167 = vunpack.c.l.b16 %v6971
  %v7168 = vunpack.c.l.b16 %v6972
  %v7169 = vunpack.c.l.b16 %v6973
  %v7170 = vunpack.c.l.b16 %v6974
  %v7171 = vunpack.c.l.b16 %v6975
  %v7172 = vunpack.c.l.b16 %v6976
  %v7173 = vunpack.c.l.b16 %v6977
  %v7174 = vunpack.c.l.b16 %v6978
  %v7175 = vunpack.c.l.b16 %v6979
  %v7176 = vunpack.c.l.b16 %v6980
  %v7177 = vunpack.c.l.b16 %v6981
  %v7178 = vunpack.c.l.b16 %v6982
  %v7179 = vunpack.c.l.b16 %v6983
  %v7180 = vunpack.c.l.b16 %v6984
  %v7181 = vunpack.c.l.b16 %v6985
  %v7182 = vpack.c.b16 %v7167, %v7166
  %v7183 = vpack.c.b16 %v7169, %v7168
  %v7184 = vpack.c.b16 %v7171, %v7170
  %v7185 = vpack.c.b16 %v7173, %v7172
  %v7186 = vpack.c.b16 %v7175, %v7174
  %v7187 = vpack.c.b16 %v7177, %v7176
  %v7188 = vpack.c.b16 %v7179, %v7178
  %v7189 = vpack.c.b16 %v7181, %v7180
  %7198 = vmatprep.subr.bf16.mxu0 0
  %7199 = vmatpush1.bf16.msra.mxu0 %v7189
  %7200 = vmatprep.subr.bf16.mxu0 0
  %7201 = vmatpush1.bf16.msra.mxu0 %v7188
  %7202 = vmatprep.subr.bf16.mxu0 0
  %7203 = vmatpush1.bf16.msra.mxu0 %v7187
  %7204 = vmatprep.subr.bf16.mxu0 0
  %7205 = vmatpush1.bf16.msra.mxu0 %v7186
  %7206 = vmatprep.subr.bf16.mxu0 0
  %7207 = vmatpush1.bf16.msra.mxu0 %v7185
  %7208 = vmatprep.subr.bf16.mxu0 0
  %7209 = vmatpush1.bf16.msra.mxu0 %v7184
  %7210 = vmatprep.subr.bf16.mxu0 0
  %7211 = vmatpush1.bf16.msra.mxu0 %v7183
  %7212 = vmatprep.subr.bf16.mxu0 0
  %7213 = vmatpush1.bf16.msra.mxu0 %v7182
  %7214 = vmatprep.subr.bf16.mxu0 0
  %7215 = vmatpush2.bf16.msra.mxu0 0
  %7216 = vmatprep.subr.bf16.mxu0 0
  %7217 = vmatpush2.bf16.msra.mxu0 0
  %7218 = vmatprep.subr.bf16.mxu0 0
  %7219 = vmatpush2.bf16.msra.mxu0 0
  %7220 = vmatprep.subr.bf16.mxu0 0
  %7221 = vmatpush2.bf16.msra.mxu0 0
  %7222 = vmatprep.subr.bf16.mxu0 0
  %7223 = vmatpush2.bf16.msra.mxu0 0
  %7224 = vmatprep.subr.bf16.mxu0 0
  %7225 = vmatpush2.bf16.msra.mxu0 0
  %7226 = vmatprep.subr.bf16.mxu0 0
  %7227 = vmatpush2.bf16.msra.mxu0 0
  %7228 = vmatprep.subr.bf16.mxu0 0
  %7229 = vmatpush2.bf16.msra.mxu0 0
  %7230 = vmatprep.mubr.bf16.mxu0 0
  %7231 = vmatmul.mubr.bf16.gmra.mxu0 %v7057
  %v7232 = vpop.f32.mrf.mxu0
  %v7233 = vadd.f32 0.0, %v7232
  %v7234 = vpop.f32.mrf.mxu0
  %v7235 = vpop.f32.mrf.mxu0
  %v7236 = vadd.f32 0.0, %v7235
  %v7237 = vpop.f32.mrf.mxu0
  %7238 = vmatprep.mubr.bf16.mxu0 0
  %7239 = vmatmul.mubr.bf16.gmra.mxu0 %v7066
  %v7240 = vpop.f32.mrf.mxu0
  %v7241 = vadd.f32 0.0, %v7240
  %v7242 = vpop.f32.mrf.mxu0
  %v7243 = vpop.f32.mrf.mxu0
  %v7244 = vadd.f32 0.0, %v7243
  %v7245 = vpop.f32.mrf.mxu0
  %7246 = vmatprep.mubr.bf16.mxu0 0
  %7247 = vmatmul.mubr.bf16.gmra.mxu0 %v7075
  %v7248 = vpop.f32.mrf.mxu0
  %v7249 = vadd.f32 0.0, %v7248
  %v7250 = vpop.f32.mrf.mxu0
  %v7251 = vpop.f32.mrf.mxu0
  %v7252 = vadd.f32 0.0, %v7251
  %v7253 = vpop.f32.mrf.mxu0
  %7254 = vmatprep.mubr.bf16.mxu0 0
  %7255 = vmatmul.mubr.bf16.gmra.mxu0 %v7084
  %v7256 = vpop.f32.mrf.mxu0
  %v7257 = vadd.f32 0.0, %v7256
  %v7258 = vpop.f32.mrf.mxu0
  %v7259 = vpop.f32.mrf.mxu0
  %v7260 = vadd.f32 0.0, %v7259
  %v7261 = vpop.f32.mrf.mxu0
  %7262 = vmatprep.mubr.bf16.mxu0 0
  %7263 = vmatmul.mubr.bf16.gmra.mxu0 %v7093
  %v7264 = vpop.f32.mrf.mxu0
  %v7265 = vadd.f32 0.0, %v7264
  %v7266 = vpop.f32.mrf.mxu0
  %v7267 = vpop.f32.mrf.mxu0
  %v7268 = vadd.f32 0.0, %v7267
  %v7269 = vpop.f32.mrf.mxu0
  %7270 = vmatprep.mubr.bf16.mxu0 0
  %7271 = vmatmul.mubr.bf16.gmra.mxu0 %v7102
  %v7272 = vpop.f32.mrf.mxu0
  %v7273 = vadd.f32 0.0, %v7272
  %v7274 = vpop.f32.mrf.mxu0
  %v7275 = vpop.f32.mrf.mxu0
  %v7276 = vadd.f32 0.0, %v7275
  %v7277 = vpop.f32.mrf.mxu0
  %7278 = vmatprep.mubr.bf16.mxu0 0
  %7279 = vmatmul.mubr.bf16.gmra.mxu0 %v7111
  %v7280 = vpop.f32.mrf.mxu0
  %v7281 = vadd.f32 0.0, %v7280
  %v7282 = vpop.f32.mrf.mxu0
  %v7283 = vpop.f32.mrf.mxu0
  %v7284 = vadd.f32 0.0, %v7283
  %v7285 = vpop.f32.mrf.mxu0
  %7286 = vmatprep.mubr.bf16.mxu0 0
  %7287 = vmatmul.mubr.bf16.gmra.mxu0 %v7120
  %v7288 = vpop.f32.mrf.mxu0
  %v7289 = vadd.f32 0.0, %v7288
  %v7290 = vpop.f32.mrf.mxu0
  %v7291 = vpop.f32.mrf.mxu0
  %v7292 = vadd.f32 0.0, %v7291
  %v7293 = vpop.f32.mrf.mxu0
  %7294 = vmatprep.mubr.bf16.mxu0 0
  %7295 = vmatmul.mubr.bf16.gmra.mxu0 %v7129
  %v7296 = vpop.f32.mrf.mxu0
  %v7297 = vadd.f32 0.0, %v7296
  %v7298 = vpop.f32.mrf.mxu0
  %v7299 = vpop.f32.mrf.mxu0
  %v7300 = vadd.f32 0.0, %v7299
  %v7301 = vpop.f32.mrf.mxu0
  %7302 = vmatprep.mubr.bf16.mxu0 0
  %7303 = vmatmul.mubr.bf16.gmra.mxu0 %v7138
  %v7304 = vpop.f32.mrf.mxu0
  %v7305 = vadd.f32 0.0, %v7304
  %v7306 = vpop.f32.mrf.mxu0
  %v7307 = vpop.f32.mrf.mxu0
  %v7308 = vadd.f32 0.0, %v7307
  %v7309 = vpop.f32.mrf.mxu0
  %7310 = vmatprep.mubr.bf16.mxu0 0
  %7311 = vmatmul.mubr.bf16.gmra.mxu0 %v7137
  %v7312 = vpop.f32.mrf.mxu0
  %v7313 = vadd.f32 0.0, %v7312
  %v7314 = vpop.f32.mrf.mxu0
  %v7315 = vpop.f32.mrf.mxu0
  %v7316 = vpop.f32.mrf.mxu0
  %7317 = vdwg.mxu0
  %v7318 = vadd.f32 %v6926, %v7233
  %v7319 = vadd.f32 %v6927, %v7236
  %v7320 = vadd.f32 %v6928, %v7241
  %v7321 = vadd.f32 %v6929, %v7244
  %v7322 = vadd.f32 %v6930, %v7249
  %v7323 = vadd.f32 %v6931, %v7252
  %v7324 = vadd.f32 %v6932, %v7257
  %v7325 = vadd.f32 %v6933, %v7260
  %v7326 = vadd.f32 %v6934, %v7265
  %v7327 = vadd.f32 %v6935, %v7268
  %v7328 = vadd.f32 %v6936, %v7273
  %v7329 = vadd.f32 %v6937, %v7276
  %v7330 = vadd.f32 %v6938, %v7281
  %v7331 = vadd.f32 %v6939, %v7284
  %v7332 = vadd.f32 %v6940, %v7289
  %v7333 = vadd.f32 %v6941, %v7292
  %v7334 = vadd.f32 %v6942, %v7297
  %v7335 = vadd.f32 %v6943, %v7300
  %v7336 = vadd.f32 %v6944, %v7305
  %v7337 = vadd.f32 %v6945, %v7308
  %v7338 = vadd.f32 %v6946, %v7313
  %s7339 = scalar_lea.vmem %s1, 11776
  %v7340 = vld [vmem:[%s7339] sm:$0xf]
  %v7341 = vld [vmem:[%s7339 + $0x4] sm:$0xf]
  %v7342 = vld [vmem:[%s7339 + $0x8] sm:$0xf]
  %v7343 = vld [vmem:[%s7339 + $0xc] sm:$0xf]
  %v7344 = vld [vmem:[%s7339 + $0x10] sm:$0xf]
  %v7345 = vld [vmem:[%s7339 + $0x14] sm:$0xf]
  %v7346 = vld [vmem:[%s7339 + $0x18] sm:$0xf]
  %v7347 = vld [vmem:[%s7339 + $0x1c] sm:$0xf]
  %v7348 = vld [vmem:[%s7339 + $0x20] sm:$0xf]
  %v7349 = vld [vmem:[%s7339 + $0x24] sm:$0xf]
  %v7350 = vld [vmem:[%s7339 + $0x28] sm:$0xf]
  %v7351 = vld [vmem:[%s7339 + $0x2c] sm:$0xf]
  %v7352 = vld [vmem:[%s7339 + $0x30] sm:$0xf]
  %v7353 = vld [vmem:[%s7339 + $0x34] sm:$0xf]
  %v7354 = vld [vmem:[%s7339 + $0x38] sm:$0xf]
  %v7355 = vld [vmem:[%s7339 + $0x3c] sm:$0xf]
  %v7356 = vpack.c.b16 %v7010, %v7009
  %v7357 = vpack.c.b16 %v7012, %v7011
  %v7358 = vpack.c.b16 %v7014, %v7013
  %v7359 = vpack.c.b16 %v7016, %v7015
  %v7360 = vpack.c.b16 %v7018, %v7017
  %v7361 = vpack.c.b16 %v7020, %v7019
  %v7362 = vpack.c.b16 %v7022, %v7021
  %v7363 = vpack.c.b16 %v7024, %v7023
  %v7364 = vpack.c.b16 %v7026, %v7025
  %v7365 = vpack.c.b16 %v7028, %v7027
  %v7366 = vpack.c.b16 %v7029, %v7029
  %v7394 = vunpack.c.l.b16 %v7340
  %v7395 = vunpack.c.l.b16 %v7341
  %v7396 = vunpack.c.l.b16 %v7342
  %v7397 = vunpack.c.l.b16 %v7343
  %v7398 = vunpack.c.l.b16 %v7344
  %v7399 = vunpack.c.l.b16 %v7345
  %v7400 = vunpack.c.l.b16 %v7346
  %v7401 = vunpack.c.l.b16 %v7347
  %v7402 = vunpack.c.l.b16 %v7348
  %v7403 = vunpack.c.l.b16 %v7349
  %v7404 = vunpack.c.l.b16 %v7350
  %v7405 = vunpack.c.l.b16 %v7351
  %v7406 = vunpack.c.l.b16 %v7352
  %v7407 = vunpack.c.l.b16 %v7353
  %v7408 = vunpack.c.l.b16 %v7354
  %v7409 = vunpack.c.l.b16 %v7355
  %v7410 = vpack.c.b16 %v7395, %v7394
  %v7411 = vpack.c.b16 %v7397, %v7396
  %v7412 = vpack.c.b16 %v7399, %v7398
  %v7413 = vpack.c.b16 %v7401, %v7400
  %v7414 = vpack.c.b16 %v7403, %v7402
  %v7415 = vpack.c.b16 %v7405, %v7404
  %v7416 = vpack.c.b16 %v7407, %v7406
  %v7417 = vpack.c.b16 %v7409, %v7408
  %7426 = vmatprep.subr.bf16.mxu0 0
  %7427 = vmatpush1.bf16.msra.mxu0 %v7417
  %7428 = vmatprep.subr.bf16.mxu0 0
  %7429 = vmatpush1.bf16.msra.mxu0 %v7416
  %7430 = vmatprep.subr.bf16.mxu0 0
  %7431 = vmatpush1.bf16.msra.mxu0 %v7415
  %7432 = vmatprep.subr.bf16.mxu0 0
  %7433 = vmatpush1.bf16.msra.mxu0 %v7414
  %7434 = vmatprep.subr.bf16.mxu0 0
  %7435 = vmatpush1.bf16.msra.mxu0 %v7413
  %7436 = vmatprep.subr.bf16.mxu0 0
  %7437 = vmatpush1.bf16.msra.mxu0 %v7412
  %7438 = vmatprep.subr.bf16.mxu0 0
  %7439 = vmatpush1.bf16.msra.mxu0 %v7411
  %7440 = vmatprep.subr.bf16.mxu0 0
  %7441 = vmatpush1.bf16.msra.mxu0 %v7410
  %7442 = vmatprep.subr.bf16.mxu0 0
  %7443 = vmatpush2.bf16.msra.mxu0 0
  %7444 = vmatprep.subr.bf16.mxu0 0
  %7445 = vmatpush2.bf16.msra.mxu0 0
  %7446 = vmatprep.subr.bf16.mxu0 0
  %7447 = vmatpush2.bf16.msra.mxu0 0
  %7448 = vmatprep.subr.bf16.mxu0 0
  %7449 = vmatpush2.bf16.msra.mxu0 0
  %7450 = vmatprep.subr.bf16.mxu0 0
  %7451 = vmatpush2.bf16.msra.mxu0 0
  %7452 = vmatprep.subr.bf16.mxu0 0
  %7453 = vmatpush2.bf16.msra.mxu0 0
  %7454 = vmatprep.subr.bf16.mxu0 0
  %7455 = vmatpush2.bf16.msra.mxu0 0
  %7456 = vmatprep.subr.bf16.mxu0 0
  %7457 = vmatpush2.bf16.msra.mxu0 0
  %7458 = vmatprep.mubr.bf16.mxu0 0
  %7459 = vmatmul.mubr.bf16.gmra.mxu0 %v7356
  %v7460 = vpop.f32.mrf.mxu0
  %v7461 = vadd.f32 0.0, %v7460
  %v7462 = vpop.f32.mrf.mxu0
  %v7463 = vpop.f32.mrf.mxu0
  %v7464 = vadd.f32 0.0, %v7463
  %v7465 = vpop.f32.mrf.mxu0
  %7466 = vmatprep.mubr.bf16.mxu0 0
  %7467 = vmatmul.mubr.bf16.gmra.mxu0 %v7357
  %v7468 = vpop.f32.mrf.mxu0
  %v7469 = vadd.f32 0.0, %v7468
  %v7470 = vpop.f32.mrf.mxu0
  %v7471 = vpop.f32.mrf.mxu0
  %v7472 = vadd.f32 0.0, %v7471
  %v7473 = vpop.f32.mrf.mxu0
  %7474 = vmatprep.mubr.bf16.mxu0 0
  %7475 = vmatmul.mubr.bf16.gmra.mxu0 %v7358
  %v7476 = vpop.f32.mrf.mxu0
  %v7477 = vadd.f32 0.0, %v7476
  %v7478 = vpop.f32.mrf.mxu0
  %v7479 = vpop.f32.mrf.mxu0
  %v7480 = vadd.f32 0.0, %v7479
  %v7481 = vpop.f32.mrf.mxu0
  %7482 = vmatprep.mubr.bf16.mxu0 0
  %7483 = vmatmul.mubr.bf16.gmra.mxu0 %v7359
  %v7484 = vpop.f32.mrf.mxu0
  %v7485 = vadd.f32 0.0, %v7484
  %v7486 = vpop.f32.mrf.mxu0
  %v7487 = vpop.f32.mrf.mxu0
  %v7488 = vadd.f32 0.0, %v7487
  %v7489 = vpop.f32.mrf.mxu0
  %7490 = vmatprep.mubr.bf16.mxu0 0
  %7491 = vmatmul.mubr.bf16.gmra.mxu0 %v7360
  %v7492 = vpop.f32.mrf.mxu0
  %v7493 = vadd.f32 0.0, %v7492
  %v7494 = vpop.f32.mrf.mxu0
  %v7495 = vpop.f32.mrf.mxu0
  %v7496 = vadd.f32 0.0, %v7495
  %v7497 = vpop.f32.mrf.mxu0
  %7498 = vmatprep.mubr.bf16.mxu0 0
  %7499 = vmatmul.mubr.bf16.gmra.mxu0 %v7361
  %v7500 = vpop.f32.mrf.mxu0
  %v7501 = vadd.f32 0.0, %v7500
  %v7502 = vpop.f32.mrf.mxu0
  %v7503 = vpop.f32.mrf.mxu0
  %v7504 = vadd.f32 0.0, %v7503
  %v7505 = vpop.f32.mrf.mxu0
  %7506 = vmatprep.mubr.bf16.mxu0 0
  %7507 = vmatmul.mubr.bf16.gmra.mxu0 %v7362
  %v7508 = vpop.f32.mrf.mxu0
  %v7509 = vadd.f32 0.0, %v7508
  %v7510 = vpop.f32.mrf.mxu0
  %v7511 = vpop.f32.mrf.mxu0
  %v7512 = vadd.f32 0.0, %v7511
  %v7513 = vpop.f32.mrf.mxu0
  %7514 = vmatprep.mubr.bf16.mxu0 0
  %7515 = vmatmul.mubr.bf16.gmra.mxu0 %v7363
  %v7516 = vpop.f32.mrf.mxu0
  %v7517 = vadd.f32 0.0, %v7516
  %v7518 = vpop.f32.mrf.mxu0
  %v7519 = vpop.f32.mrf.mxu0
  %v7520 = vadd.f32 0.0, %v7519
  %v7521 = vpop.f32.mrf.mxu0
  %7522 = vmatprep.mubr.bf16.mxu0 0
  %7523 = vmatmul.mubr.bf16.gmra.mxu0 %v7364
  %v7524 = vpop.f32.mrf.mxu0
  %v7525 = vadd.f32 0.0, %v7524
  %v7526 = vpop.f32.mrf.mxu0
  %v7527 = vpop.f32.mrf.mxu0
  %v7528 = vadd.f32 0.0, %v7527
  %v7529 = vpop.f32.mrf.mxu0
  %7530 = vmatprep.mubr.bf16.mxu0 0
  %7531 = vmatmul.mubr.bf16.gmra.mxu0 %v7365
  %v7532 = vpop.f32.mrf.mxu0
  %v7533 = vadd.f32 0.0, %v7532
  %v7534 = vpop.f32.mrf.mxu0
  %v7535 = vpop.f32.mrf.mxu0
  %v7536 = vadd.f32 0.0, %v7535
  %v7537 = vpop.f32.mrf.mxu0
  %7538 = vmatprep.mubr.bf16.mxu0 0
  %7539 = vmatmul.mubr.bf16.gmra.mxu0 %v7366
  %v7540 = vpop.f32.mrf.mxu0
  %v7541 = vadd.f32 0.0, %v7540
  %v7542 = vpop.f32.mrf.mxu0
  %v7543 = vpop.f32.mrf.mxu0
  %v7544 = vpop.f32.mrf.mxu0
  %7545 = vdwg.mxu0
  %v7546 = vadd.f32 %v7318, %v7461
  %v7547 = vadd.f32 %v7319, %v7464
  %v7548 = vadd.f32 %v7320, %v7469
  %v7549 = vadd.f32 %v7321, %v7472
  %v7550 = vadd.f32 %v7322, %v7477
  %v7551 = vadd.f32 %v7323, %v7480
  %v7552 = vadd.f32 %v7324, %v7485
  %v7553 = vadd.f32 %v7325, %v7488
  %v7554 = vadd.f32 %v7326, %v7493
  %v7555 = vadd.f32 %v7327, %v7496
  %v7556 = vadd.f32 %v7328, %v7501
  %v7557 = vadd.f32 %v7329, %v7504
  %v7558 = vadd.f32 %v7330, %v7509
  %v7559 = vadd.f32 %v7331, %v7512
  %v7560 = vadd.f32 %v7332, %v7517
  %v7561 = vadd.f32 %v7333, %v7520
  %v7562 = vadd.f32 %v7334, %v7525
  %v7563 = vadd.f32 %v7335, %v7528
  %v7564 = vadd.f32 %v7336, %v7533
  %v7565 = vadd.f32 %v7337, %v7536
  %v7566 = vadd.f32 %v7338, %v7541
  %v7567 = vld [vmem:[#allocation2 + $0xc] sm:$0xf]
  %v7568 = vld [vmem:[#allocation2 + $0x10] sm:$0xf]
  %v7569 = vld [vmem:[#allocation2 + $0x14] sm:$0xf]
  %v7570 = vld [vmem:[#allocation2 + $0x18] sm:$0xf]
  %v7571 = vld [vmem:[#allocation2 + $0x1c] sm:$0xf]
  %v7572 = vld [vmem:[#allocation2 + $0x20] sm:$0xf]
  %v7573 = vld [vmem:[#allocation2 + $0x24] sm:$0xf]
  %v7574 = vld [vmem:[#allocation2 + $0x28] sm:$0xf]
  %v7575 = vld [vmem:[#allocation2 + $0x2c] sm:$0xf]
  %v7576 = vld [vmem:[#allocation2 + $0x30] sm:$0xf]
  %v7577 = vld [vmem:[#allocation2 + $0x34] sm:$0xf]
  %v7578 = vld [vmem:[#allocation2 + $0x38] sm:$0xf]
  %v7579 = vld [vmem:[#allocation2 + $0x3c] sm:$0xf]
  %v7580 = vld [vmem:[#allocation2 + $0x40] sm:$0xf]
  %v7581 = vld [vmem:[#allocation2 + $0x44] sm:$0xf]
  %v7582 = vld [vmem:[#allocation2 + $0x48] sm:$0xf]
  %v7583 = vld [vmem:[#allocation2 + $0x4c] sm:$0xf]
  %v7584 = vld [vmem:[#allocation2 + $0x50] sm:$0xf]
  %v7585 = vld [vmem:[#allocation2 + $0x54] sm:$0xf]
  %v7586 = vld [vmem:[#allocation2 + $0x58] sm:$0xf]
  %v7587 = vld [vmem:[#allocation2 + $0x5c] sm:$0xf]
  %v7588 = vld [vmem:[#allocation2 + $0x60] sm:$0x1]
  %s7589 = scalar_lea.vmem %s1, 11840
  %v7590 = vld [vmem:[%s7589] sm:$0xf]
  %v7591 = vld [vmem:[%s7589 + $0x4] sm:$0xf]
  %v7592 = vld [vmem:[%s7589 + $0x8] sm:$0xf]
  %v7593 = vld [vmem:[%s7589 + $0xc] sm:$0xf]
  %v7594 = vld [vmem:[%s7589 + $0x10] sm:$0xf]
  %v7595 = vld [vmem:[%s7589 + $0x14] sm:$0xf]
  %v7596 = vld [vmem:[%s7589 + $0x18] sm:$0xf]
  %v7597 = vld [vmem:[%s7589 + $0x1c] sm:$0xf]
  %v7598 = vld [vmem:[%s7589 + $0x20] sm:$0xf]
  %v7599 = vld [vmem:[%s7589 + $0x24] sm:$0xf]
  %v7600 = vld [vmem:[%s7589 + $0x28] sm:$0xf]
  %v7601 = vld [vmem:[%s7589 + $0x2c] sm:$0xf]
  %v7602 = vld [vmem:[%s7589 + $0x30] sm:$0xf]
  %v7603 = vld [vmem:[%s7589 + $0x34] sm:$0xf]
  %v7604 = vld [vmem:[%s7589 + $0x38] sm:$0xf]
  %v7605 = vld [vmem:[%s7589 + $0x3c] sm:$0xf]
  %v7628 = vunpack.c.l.b16 %v7567
  %v7629 = vunpack.c.l.b16 %v7568
  %v7630 = vunpack.c.l.b16 %v7569
  %v7631 = vunpack.c.l.b16 %v7570
  %v7632 = vunpack.c.l.b16 %v7571
  %v7633 = vunpack.c.l.b16 %v7572
  %v7634 = vunpack.c.l.b16 %v7573
  %v7635 = vunpack.c.l.b16 %v7574
  %v7636 = vunpack.c.l.b16 %v7575
  %v7637 = vunpack.c.l.b16 %v7576
  %v7638 = vunpack.c.l.b16 %v7577
  %v7639 = vunpack.c.l.b16 %v7578
  %v7640 = vunpack.c.l.b16 %v7579
  %v7641 = vunpack.c.l.b16 %v7580
  %v7642 = vunpack.c.l.b16 %v7581
  %v7643 = vunpack.c.l.b16 %v7582
  %v7644 = vunpack.c.l.b16 %v7583
  %v7645 = vunpack.c.l.b16 %v7584
  %v7646 = vunpack.c.l.b16 %v7585
  %v7647 = vunpack.c.l.b16 %v7586
  %v7648 = vunpack.c.l.b16 %v7587
  %v7649 = vunpack.c.l.b16 %v7588
  %v7650 = vpack.c.b16 %v7629, %v7628
  %v7651 = vpack.c.b16 %v7631, %v7630
  %v7652 = vpack.c.b16 %v7633, %v7632
  %v7653 = vpack.c.b16 %v7635, %v7634
  %v7654 = vpack.c.b16 %v7637, %v7636
  %v7655 = vpack.c.b16 %v7639, %v7638
  %v7656 = vpack.c.b16 %v7641, %v7640
  %v7657 = vpack.c.b16 %v7643, %v7642
  %v7658 = vpack.c.b16 %v7645, %v7644
  %v7659 = vpack.c.b16 %v7647, %v7646
  %v7660 = vpack.c.b16 %v7649, %v7648
  %vm7661 = vsmask.f32 7424
  %v7663 = vshrl.u32 %v7650, 16
  %v7665 = vshll.u32 %v7650, 16
  %v7667 = vrot.slane %v7665, 1
  %v7668 = vor.u32 %v7663, %v7667
  %v7670 = vshll.u32 %v7651, 16
  %v7672 = vrot.slane %v7670, 1
  %v7673 = vsel %vm7661, %v7668, %v7672
  %v7674 = vshrl.u32 %v7651, 16
  %v7676 = vor.u32 %v7674, %v7672
  %v7678 = vshll.u32 %v7652, 16
  %v7680 = vrot.slane %v7678, 1
  %v7681 = vsel %vm7661, %v7676, %v7680
  %v7682 = vshrl.u32 %v7652, 16
  %v7684 = vor.u32 %v7682, %v7680
  %v7686 = vshll.u32 %v7653, 16
  %v7688 = vrot.slane %v7686, 1
  %v7689 = vsel %vm7661, %v7684, %v7688
  %v7690 = vshrl.u32 %v7653, 16
  %v7692 = vor.u32 %v7690, %v7688
  %v7694 = vshll.u32 %v7654, 16
  %v7696 = vrot.slane %v7694, 1
  %v7697 = vsel %vm7661, %v7692, %v7696
  %v7698 = vshrl.u32 %v7654, 16
  %v7700 = vor.u32 %v7698, %v7696
  %v7702 = vshll.u32 %v7655, 16
  %v7704 = vrot.slane %v7702, 1
  %v7705 = vsel %vm7661, %v7700, %v7704
  %v7706 = vshrl.u32 %v7655, 16
  %v7708 = vor.u32 %v7706, %v7704
  %v7710 = vshll.u32 %v7656, 16
  %v7712 = vrot.slane %v7710, 1
  %v7713 = vsel %vm7661, %v7708, %v7712
  %v7714 = vshrl.u32 %v7656, 16
  %v7716 = vor.u32 %v7714, %v7712
  %v7718 = vshll.u32 %v7657, 16
  %v7720 = vrot.slane %v7718, 1
  %v7721 = vsel %vm7661, %v7716, %v7720
  %v7722 = vshrl.u32 %v7657, 16
  %v7724 = vor.u32 %v7722, %v7720
  %v7726 = vshll.u32 %v7658, 16
  %v7728 = vrot.slane %v7726, 1
  %v7729 = vsel %vm7661, %v7724, %v7728
  %v7730 = vshrl.u32 %v7658, 16
  %v7732 = vor.u32 %v7730, %v7728
  %v7734 = vshll.u32 %v7659, 16
  %v7736 = vrot.slane %v7734, 1
  %v7737 = vsel %vm7661, %v7732, %v7736
  %v7738 = vshrl.u32 %v7659, 16
  %v7740 = vor.u32 %v7738, %v7736
  %v7742 = vshll.u32 %v7660, 16
  %v7744 = vrot.slane %v7742, 1
  %v7745 = vsel %vm7661, %v7740, %v7744
  %v7746 = vshrl.u32 %v7660, 16
  %v7748 = vor.u32 %v7746, %v7744
  %v7776 = vunpack.c.l.b16 %v7590
  %v7777 = vunpack.c.l.b16 %v7591
  %v7778 = vunpack.c.l.b16 %v7592
  %v7779 = vunpack.c.l.b16 %v7593
  %v7780 = vunpack.c.l.b16 %v7594
  %v7781 = vunpack.c.l.b16 %v7595
  %v7782 = vunpack.c.l.b16 %v7596
  %v7783 = vunpack.c.l.b16 %v7597
  %v7784 = vunpack.c.l.b16 %v7598
  %v7785 = vunpack.c.l.b16 %v7599
  %v7786 = vunpack.c.l.b16 %v7600
  %v7787 = vunpack.c.l.b16 %v7601
  %v7788 = vunpack.c.l.b16 %v7602
  %v7789 = vunpack.c.l.b16 %v7603
  %v7790 = vunpack.c.l.b16 %v7604
  %v7791 = vunpack.c.l.b16 %v7605
  %v7792 = vpack.c.b16 %v7777, %v7776
  %v7793 = vpack.c.b16 %v7779, %v7778
  %v7794 = vpack.c.b16 %v7781, %v7780
  %v7795 = vpack.c.b16 %v7783, %v7782
  %v7796 = vpack.c.b16 %v7785, %v7784
  %v7797 = vpack.c.b16 %v7787, %v7786
  %v7798 = vpack.c.b16 %v7789, %v7788
  %v7799 = vpack.c.b16 %v7791, %v7790
  %7808 = vmatprep.subr.bf16.mxu0 0
  %7809 = vmatpush1.bf16.msra.mxu0 %v7799
  %7810 = vmatprep.subr.bf16.mxu0 0
  %7811 = vmatpush1.bf16.msra.mxu0 %v7798
  %7812 = vmatprep.subr.bf16.mxu0 0
  %7813 = vmatpush1.bf16.msra.mxu0 %v7797
  %7814 = vmatprep.subr.bf16.mxu0 0
  %7815 = vmatpush1.bf16.msra.mxu0 %v7796
  %7816 = vmatprep.subr.bf16.mxu0 0
  %7817 = vmatpush1.bf16.msra.mxu0 %v7795
  %7818 = vmatprep.subr.bf16.mxu0 0
  %7819 = vmatpush1.bf16.msra.mxu0 %v7794
  %7820 = vmatprep.subr.bf16.mxu0 0
  %7821 = vmatpush1.bf16.msra.mxu0 %v7793
  %7822 = vmatprep.subr.bf16.mxu0 0
  %7823 = vmatpush1.bf16.msra.mxu0 %v7792
  %7824 = vmatprep.subr.bf16.mxu0 0
  %7825 = vmatpush2.bf16.msra.mxu0 0
  %7826 = vmatprep.subr.bf16.mxu0 0
  %7827 = vmatpush2.bf16.msra.mxu0 0
  %7828 = vmatprep.subr.bf16.mxu0 0
  %7829 = vmatpush2.bf16.msra.mxu0 0
  %7830 = vmatprep.subr.bf16.mxu0 0
  %7831 = vmatpush2.bf16.msra.mxu0 0
  %7832 = vmatprep.subr.bf16.mxu0 0
  %7833 = vmatpush2.bf16.msra.mxu0 0
  %7834 = vmatprep.subr.bf16.mxu0 0
  %7835 = vmatpush2.bf16.msra.mxu0 0
  %7836 = vmatprep.subr.bf16.mxu0 0
  %7837 = vmatpush2.bf16.msra.mxu0 0
  %7838 = vmatprep.subr.bf16.mxu0 0
  %7839 = vmatpush2.bf16.msra.mxu0 0
  %7840 = vmatprep.mubr.bf16.mxu0 0
  %7841 = vmatmul.mubr.bf16.gmra.mxu0 %v7673
  %v7842 = vpop.f32.mrf.mxu0
  %v7843 = vadd.f32 0.0, %v7842
  %v7844 = vpop.f32.mrf.mxu0
  %v7845 = vpop.f32.mrf.mxu0
  %v7846 = vadd.f32 0.0, %v7845
  %v7847 = vpop.f32.mrf.mxu0
  %7848 = vmatprep.mubr.bf16.mxu0 0
  %7849 = vmatmul.mubr.bf16.gmra.mxu0 %v7681
  %v7850 = vpop.f32.mrf.mxu0
  %v7851 = vadd.f32 0.0, %v7850
  %v7852 = vpop.f32.mrf.mxu0
  %v7853 = vpop.f32.mrf.mxu0
  %v7854 = vadd.f32 0.0, %v7853
  %v7855 = vpop.f32.mrf.mxu0
  %7856 = vmatprep.mubr.bf16.mxu0 0
  %7857 = vmatmul.mubr.bf16.gmra.mxu0 %v7689
  %v7858 = vpop.f32.mrf.mxu0
  %v7859 = vadd.f32 0.0, %v7858
  %v7860 = vpop.f32.mrf.mxu0
  %v7861 = vpop.f32.mrf.mxu0
  %v7862 = vadd.f32 0.0, %v7861
  %v7863 = vpop.f32.mrf.mxu0
  %7864 = vmatprep.mubr.bf16.mxu0 0
  %7865 = vmatmul.mubr.bf16.gmra.mxu0 %v7697
  %v7866 = vpop.f32.mrf.mxu0
  %v7867 = vadd.f32 0.0, %v7866
  %v7868 = vpop.f32.mrf.mxu0
  %v7869 = vpop.f32.mrf.mxu0
  %v7870 = vadd.f32 0.0, %v7869
  %v7871 = vpop.f32.mrf.mxu0
  %7872 = vmatprep.mubr.bf16.mxu0 0
  %7873 = vmatmul.mubr.bf16.gmra.mxu0 %v7705
  %v7874 = vpop.f32.mrf.mxu0
  %v7875 = vadd.f32 0.0, %v7874
  %v7876 = vpop.f32.mrf.mxu0
  %v7877 = vpop.f32.mrf.mxu0
  %v7878 = vadd.f32 0.0, %v7877
  %v7879 = vpop.f32.mrf.mxu0
  %7880 = vmatprep.mubr.bf16.mxu0 0
  %7881 = vmatmul.mubr.bf16.gmra.mxu0 %v7713
  %v7882 = vpop.f32.mrf.mxu0
  %v7883 = vadd.f32 0.0, %v7882
  %v7884 = vpop.f32.mrf.mxu0
  %v7885 = vpop.f32.mrf.mxu0
  %v7886 = vadd.f32 0.0, %v7885
  %v7887 = vpop.f32.mrf.mxu0
  %7888 = vmatprep.mubr.bf16.mxu0 0
  %7889 = vmatmul.mubr.bf16.gmra.mxu0 %v7721
  %v7890 = vpop.f32.mrf.mxu0
  %v7891 = vadd.f32 0.0, %v7890
  %v7892 = vpop.f32.mrf.mxu0
  %v7893 = vpop.f32.mrf.mxu0
  %v7894 = vadd.f32 0.0, %v7893
  %v7895 = vpop.f32.mrf.mxu0
  %7896 = vmatprep.mubr.bf16.mxu0 0
  %7897 = vmatmul.mubr.bf16.gmra.mxu0 %v7729
  %v7898 = vpop.f32.mrf.mxu0
  %v7899 = vadd.f32 0.0, %v7898
  %v7900 = vpop.f32.mrf.mxu0
  %v7901 = vpop.f32.mrf.mxu0
  %v7902 = vadd.f32 0.0, %v7901
  %v7903 = vpop.f32.mrf.mxu0
  %7904 = vmatprep.mubr.bf16.mxu0 0
  %7905 = vmatmul.mubr.bf16.gmra.mxu0 %v7737
  %v7906 = vpop.f32.mrf.mxu0
  %v7907 = vadd.f32 0.0, %v7906
  %v7908 = vpop.f32.mrf.mxu0
  %v7909 = vpop.f32.mrf.mxu0
  %v7910 = vadd.f32 0.0, %v7909
  %v7911 = vpop.f32.mrf.mxu0
  %7912 = vmatprep.mubr.bf16.mxu0 0
  %7913 = vmatmul.mubr.bf16.gmra.mxu0 %v7745
  %v7914 = vpop.f32.mrf.mxu0
  %v7915 = vadd.f32 0.0, %v7914
  %v7916 = vpop.f32.mrf.mxu0
  %v7917 = vpop.f32.mrf.mxu0
  %v7918 = vadd.f32 0.0, %v7917
  %v7919 = vpop.f32.mrf.mxu0
  %7920 = vmatprep.mubr.bf16.mxu0 0
  %7921 = vmatmul.mubr.bf16.gmra.mxu0 %v7748
  %v7922 = vpop.f32.mrf.mxu0
  %v7923 = vadd.f32 0.0, %v7922
  %v7924 = vpop.f32.mrf.mxu0
  %v7925 = vpop.f32.mrf.mxu0
  %v7926 = vpop.f32.mrf.mxu0
  %7927 = vdwg.mxu0
  %v7928 = vadd.f32 %v7546, %v7843
  %v7929 = vadd.f32 %v7547, %v7846
  %v7930 = vadd.f32 %v7548, %v7851
  %v7931 = vadd.f32 %v7549, %v7854
  %v7932 = vadd.f32 %v7550, %v7859
  %v7933 = vadd.f32 %v7551, %v7862
  %v7934 = vadd.f32 %v7552, %v7867
  %v7935 = vadd.f32 %v7553, %v7870
  %v7936 = vadd.f32 %v7554, %v7875
  %v7937 = vadd.f32 %v7555, %v7878
  %v7938 = vadd.f32 %v7556, %v7883
  %v7939 = vadd.f32 %v7557, %v7886
  %v7940 = vadd.f32 %v7558, %v7891
  %v7941 = vadd.f32 %v7559, %v7894
  %v7942 = vadd.f32 %v7560, %v7899
  %v7943 = vadd.f32 %v7561, %v7902
  %v7944 = vadd.f32 %v7562, %v7907
  %v7945 = vadd.f32 %v7563, %v7910
  %v7946 = vadd.f32 %v7564, %v7915
  %v7947 = vadd.f32 %v7565, %v7918
  %v7948 = vadd.f32 %v7566, %v7923
  %v7949 = vld [vmem:[#allocation2 + $0x14] sm:$0xf]
  %v7950 = vld [vmem:[#allocation2 + $0x18] sm:$0xf]
  %v7951 = vld [vmem:[#allocation2 + $0x1c] sm:$0xf]
  %v7952 = vld [vmem:[#allocation2 + $0x20] sm:$0xf]
  %v7953 = vld [vmem:[#allocation2 + $0x24] sm:$0xf]
  %v7954 = vld [vmem:[#allocation2 + $0x28] sm:$0xf]
  %v7955 = vld [vmem:[#allocation2 + $0x2c] sm:$0xf]
  %v7956 = vld [vmem:[#allocation2 + $0x30] sm:$0xf]
  %v7957 = vld [vmem:[#allocation2 + $0x34] sm:$0xf]
  %v7958 = vld [vmem:[#allocation2 + $0x38] sm:$0xf]
  %v7959 = vld [vmem:[#allocation2 + $0x3c] sm:$0xf]
  %v7960 = vld [vmem:[#allocation2 + $0x40] sm:$0xf]
  %v7961 = vld [vmem:[#allocation2 + $0x44] sm:$0xf]
  %v7962 = vld [vmem:[#allocation2 + $0x48] sm:$0xf]
  %v7963 = vld [vmem:[#allocation2 + $0x4c] sm:$0xf]
  %v7964 = vld [vmem:[#allocation2 + $0x50] sm:$0xf]
  %v7965 = vld [vmem:[#allocation2 + $0x54] sm:$0xf]
  %v7966 = vld [vmem:[#allocation2 + $0x58] sm:$0xf]
  %v7967 = vld [vmem:[#allocation2 + $0x5c] sm:$0xf]
  %v7968 = vld [vmem:[#allocation2 + $0x60] sm:$0xf]
  %v7969 = vld [vmem:[#allocation2 + $0x64] sm:$0xf]
  %v7970 = vld [vmem:[#allocation2 + $0x68] sm:$0x1]
  %s7971 = scalar_lea.vmem %s1, 11904
  %v7972 = vld [vmem:[%s7971] sm:$0xf]
  %v7973 = vld [vmem:[%s7971 + $0x4] sm:$0xf]
  %v7974 = vld [vmem:[%s7971 + $0x8] sm:$0xf]
  %v7975 = vld [vmem:[%s7971 + $0xc] sm:$0xf]
  %v7976 = vld [vmem:[%s7971 + $0x10] sm:$0xf]
  %v7977 = vld [vmem:[%s7971 + $0x14] sm:$0xf]
  %v7978 = vld [vmem:[%s7971 + $0x18] sm:$0xf]
  %v7979 = vld [vmem:[%s7971 + $0x1c] sm:$0xf]
  %v7980 = vld [vmem:[%s7971 + $0x20] sm:$0xf]
  %v7981 = vld [vmem:[%s7971 + $0x24] sm:$0xf]
  %v7982 = vld [vmem:[%s7971 + $0x28] sm:$0xf]
  %v7983 = vld [vmem:[%s7971 + $0x2c] sm:$0xf]
  %v7984 = vld [vmem:[%s7971 + $0x30] sm:$0xf]
  %v7985 = vld [vmem:[%s7971 + $0x34] sm:$0xf]
  %v7986 = vld [vmem:[%s7971 + $0x38] sm:$0xf]
  %v7987 = vld [vmem:[%s7971 + $0x3c] sm:$0xf]
  %v8010 = vunpack.c.l.b16 %v7949
  %v8011 = vunpack.c.l.b16 %v7950
  %v8012 = vunpack.c.l.b16 %v7951
  %v8013 = vunpack.c.l.b16 %v7952
  %v8014 = vunpack.c.l.b16 %v7953
  %v8015 = vunpack.c.l.b16 %v7954
  %v8016 = vunpack.c.l.b16 %v7955
  %v8017 = vunpack.c.l.b16 %v7956
  %v8018 = vunpack.c.l.b16 %v7957
  %v8019 = vunpack.c.l.b16 %v7958
  %v8020 = vunpack.c.l.b16 %v7959
  %v8021 = vunpack.c.l.b16 %v7960
  %v8022 = vunpack.c.l.b16 %v7961
  %v8023 = vunpack.c.l.b16 %v7962
  %v8024 = vunpack.c.l.b16 %v7963
  %v8025 = vunpack.c.l.b16 %v7964
  %v8026 = vunpack.c.l.b16 %v7965
  %v8027 = vunpack.c.l.b16 %v7966
  %v8028 = vunpack.c.l.b16 %v7967
  %v8029 = vunpack.c.l.b16 %v7968
  %v8030 = vunpack.c.l.b16 %v7969
  %v8031 = vunpack.c.l.b16 %v7970
  %v8032 = vpack.c.b16 %v8011, %v8010
  %v8033 = vpack.c.b16 %v8013, %v8012
  %v8034 = vpack.c.b16 %v8015, %v8014
  %v8035 = vpack.c.b16 %v8017, %v8016
  %v8036 = vpack.c.b16 %v8019, %v8018
  %v8037 = vpack.c.b16 %v8021, %v8020
  %v8038 = vpack.c.b16 %v8023, %v8022
  %v8039 = vpack.c.b16 %v8025, %v8024
  %v8040 = vpack.c.b16 %v8027, %v8026
  %v8041 = vpack.c.b16 %v8029, %v8028
  %v8042 = vpack.c.b16 %v8031, %v8030
  %v8044 = vshrl.u32 %v8032, 16
  %v8046 = vshll.u32 %v8032, 16
  %v8048 = vrot.slane %v8046, 1
  %v8049 = vor.u32 %v8044, %v8048
  %v8051 = vshll.u32 %v8033, 16
  %v8053 = vrot.slane %v8051, 1
  %v8054 = vsel %vm7661, %v8049, %v8053
  %v8055 = vshrl.u32 %v8033, 16
  %v8057 = vor.u32 %v8055, %v8053
  %v8059 = vshll.u32 %v8034, 16
  %v8061 = vrot.slane %v8059, 1
  %v8062 = vsel %vm7661, %v8057, %v8061
  %v8063 = vshrl.u32 %v8034, 16
  %v8065 = vor.u32 %v8063, %v8061
  %v8067 = vshll.u32 %v8035, 16
  %v8069 = vrot.slane %v8067, 1
  %v8070 = vsel %vm7661, %v8065, %v8069
  %v8071 = vshrl.u32 %v8035, 16
  %v8073 = vor.u32 %v8071, %v8069
  %v8075 = vshll.u32 %v8036, 16
  %v8077 = vrot.slane %v8075, 1
  %v8078 = vsel %vm7661, %v8073, %v8077
  %v8079 = vshrl.u32 %v8036, 16
  %v8081 = vor.u32 %v8079, %v8077
  %v8083 = vshll.u32 %v8037, 16
  %v8085 = vrot.slane %v8083, 1
  %v8086 = vsel %vm7661, %v8081, %v8085
  %v8087 = vshrl.u32 %v8037, 16
  %v8089 = vor.u32 %v8087, %v8085
  %v8091 = vshll.u32 %v8038, 16
  %v8093 = vrot.slane %v8091, 1
  %v8094 = vsel %vm7661, %v8089, %v8093
  %v8095 = vshrl.u32 %v8038, 16
  %v8097 = vor.u32 %v8095, %v8093
  %v8099 = vshll.u32 %v8039, 16
  %v8101 = vrot.slane %v8099, 1
  %v8102 = vsel %vm7661, %v8097, %v8101
  %v8103 = vshrl.u32 %v8039, 16
  %v8105 = vor.u32 %v8103, %v8101
  %v8107 = vshll.u32 %v8040, 16
  %v8109 = vrot.slane %v8107, 1
  %v8110 = vsel %vm7661, %v8105, %v8109
  %v8111 = vshrl.u32 %v8040, 16
  %v8113 = vor.u32 %v8111, %v8109
  %v8115 = vshll.u32 %v8041, 16
  %v8117 = vrot.slane %v8115, 1
  %v8118 = vsel %vm7661, %v8113, %v8117
  %v8119 = vshrl.u32 %v8041, 16
  %v8121 = vor.u32 %v8119, %v8117
  %v8123 = vshll.u32 %v8042, 16
  %v8125 = vrot.slane %v8123, 1
  %v8126 = vsel %vm7661, %v8121, %v8125
  %v8127 = vshrl.u32 %v8042, 16
  %v8129 = vor.u32 %v8127, %v8125
  %v8157 = vunpack.c.l.b16 %v7972
  %v8158 = vunpack.c.l.b16 %v7973
  %v8159 = vunpack.c.l.b16 %v7974
  %v8160 = vunpack.c.l.b16 %v7975
  %v8161 = vunpack.c.l.b16 %v7976
  %v8162 = vunpack.c.l.b16 %v7977
  %v8163 = vunpack.c.l.b16 %v7978
  %v8164 = vunpack.c.l.b16 %v7979
  %v8165 = vunpack.c.l.b16 %v7980
  %v8166 = vunpack.c.l.b16 %v7981
  %v8167 = vunpack.c.l.b16 %v7982
  %v8168 = vunpack.c.l.b16 %v7983
  %v8169 = vunpack.c.l.b16 %v7984
  %v8170 = vunpack.c.l.b16 %v7985
  %v8171 = vunpack.c.l.b16 %v7986
  %v8172 = vunpack.c.l.b16 %v7987
  %v8173 = vpack.c.b16 %v8158, %v8157
  %v8174 = vpack.c.b16 %v8160, %v8159
  %v8175 = vpack.c.b16 %v8162, %v8161
  %v8176 = vpack.c.b16 %v8164, %v8163
  %v8177 = vpack.c.b16 %v8166, %v8165
  %v8178 = vpack.c.b16 %v8168, %v8167
  %v8179 = vpack.c.b16 %v8170, %v8169
  %v8180 = vpack.c.b16 %v8172, %v8171
  %8189 = vmatprep.subr.bf16.mxu0 0
  %8190 = vmatpush1.bf16.msra.mxu0 %v8180
  %8191 = vmatprep.subr.bf16.mxu0 0
  %8192 = vmatpush1.bf16.msra.mxu0 %v8179
  %8193 = vmatprep.subr.bf16.mxu0 0
  %8194 = vmatpush1.bf16.msra.mxu0 %v8178
  %8195 = vmatprep.subr.bf16.mxu0 0
  %8196 = vmatpush1.bf16.msra.mxu0 %v8177
  %8197 = vmatprep.subr.bf16.mxu0 0
  %8198 = vmatpush1.bf16.msra.mxu0 %v8176
  %8199 = vmatprep.subr.bf16.mxu0 0
  %8200 = vmatpush1.bf16.msra.mxu0 %v8175
  %8201 = vmatprep.subr.bf16.mxu0 0
  %8202 = vmatpush1.bf16.msra.mxu0 %v8174
  %8203 = vmatprep.subr.bf16.mxu0 0
  %8204 = vmatpush1.bf16.msra.mxu0 %v8173
  %8205 = vmatprep.subr.bf16.mxu0 0
  %8206 = vmatpush2.bf16.msra.mxu0 0
  %8207 = vmatprep.subr.bf16.mxu0 0
  %8208 = vmatpush2.bf16.msra.mxu0 0
  %8209 = vmatprep.subr.bf16.mxu0 0
  %8210 = vmatpush2.bf16.msra.mxu0 0
  %8211 = vmatprep.subr.bf16.mxu0 0
  %8212 = vmatpush2.bf16.msra.mxu0 0
  %8213 = vmatprep.subr.bf16.mxu0 0
  %8214 = vmatpush2.bf16.msra.mxu0 0
  %8215 = vmatprep.subr.bf16.mxu0 0
  %8216 = vmatpush2.bf16.msra.mxu0 0
  %8217 = vmatprep.subr.bf16.mxu0 0
  %8218 = vmatpush2.bf16.msra.mxu0 0
  %8219 = vmatprep.subr.bf16.mxu0 0
  %8220 = vmatpush2.bf16.msra.mxu0 0
  %8221 = vmatprep.mubr.bf16.mxu0 0
  %8222 = vmatmul.mubr.bf16.gmra.mxu0 %v8054
  %v8223 = vpop.f32.mrf.mxu0
  %v8224 = vadd.f32 0.0, %v8223
  %v8225 = vpop.f32.mrf.mxu0
  %v8226 = vpop.f32.mrf.mxu0
  %v8227 = vadd.f32 0.0, %v8226
  %v8228 = vpop.f32.mrf.mxu0
  %8229 = vmatprep.mubr.bf16.mxu0 0
  %8230 = vmatmul.mubr.bf16.gmra.mxu0 %v8062
  %v8231 = vpop.f32.mrf.mxu0
  %v8232 = vadd.f32 0.0, %v8231
  %v8233 = vpop.f32.mrf.mxu0
  %v8234 = vpop.f32.mrf.mxu0
  %v8235 = vadd.f32 0.0, %v8234
  %v8236 = vpop.f32.mrf.mxu0
  %8237 = vmatprep.mubr.bf16.mxu0 0
  %8238 = vmatmul.mubr.bf16.gmra.mxu0 %v8070
  %v8239 = vpop.f32.mrf.mxu0
  %v8240 = vadd.f32 0.0, %v8239
  %v8241 = vpop.f32.mrf.mxu0
  %v8242 = vpop.f32.mrf.mxu0
  %v8243 = vadd.f32 0.0, %v8242
  %v8244 = vpop.f32.mrf.mxu0
  %8245 = vmatprep.mubr.bf16.mxu0 0
  %8246 = vmatmul.mubr.bf16.gmra.mxu0 %v8078
  %v8247 = vpop.f32.mrf.mxu0
  %v8248 = vadd.f32 0.0, %v8247
  %v8249 = vpop.f32.mrf.mxu0
  %v8250 = vpop.f32.mrf.mxu0
  %v8251 = vadd.f32 0.0, %v8250
  %v8252 = vpop.f32.mrf.mxu0
  %8253 = vmatprep.mubr.bf16.mxu0 0
  %8254 = vmatmul.mubr.bf16.gmra.mxu0 %v8086
  %v8255 = vpop.f32.mrf.mxu0
  %v8256 = vadd.f32 0.0, %v8255
  %v8257 = vpop.f32.mrf.mxu0
  %v8258 = vpop.f32.mrf.mxu0
  %v8259 = vadd.f32 0.0, %v8258
  %v8260 = vpop.f32.mrf.mxu0
  %8261 = vmatprep.mubr.bf16.mxu0 0
  %8262 = vmatmul.mubr.bf16.gmra.mxu0 %v8094
  %v8263 = vpop.f32.mrf.mxu0
  %v8264 = vadd.f32 0.0, %v8263
  %v8265 = vpop.f32.mrf.mxu0
  %v8266 = vpop.f32.mrf.mxu0
  %v8267 = vadd.f32 0.0, %v8266
  %v8268 = vpop.f32.mrf.mxu0
  %8269 = vmatprep.mubr.bf16.mxu0 0
  %8270 = vmatmul.mubr.bf16.gmra.mxu0 %v8102
  %v8271 = vpop.f32.mrf.mxu0
  %v8272 = vadd.f32 0.0, %v8271
  %v8273 = vpop.f32.mrf.mxu0
  %v8274 = vpop.f32.mrf.mxu0
  %v8275 = vadd.f32 0.0, %v8274
  %v8276 = vpop.f32.mrf.mxu0
  %8277 = vmatprep.mubr.bf16.mxu0 0
  %8278 = vmatmul.mubr.bf16.gmra.mxu0 %v8110
  %v8279 = vpop.f32.mrf.mxu0
  %v8280 = vadd.f32 0.0, %v8279
  %v8281 = vpop.f32.mrf.mxu0
  %v8282 = vpop.f32.mrf.mxu0
  %v8283 = vadd.f32 0.0, %v8282
  %v8284 = vpop.f32.mrf.mxu0
  %8285 = vmatprep.mubr.bf16.mxu0 0
  %8286 = vmatmul.mubr.bf16.gmra.mxu0 %v8118
  %v8287 = vpop.f32.mrf.mxu0
  %v8288 = vadd.f32 0.0, %v8287
  %v8289 = vpop.f32.mrf.mxu0
  %v8290 = vpop.f32.mrf.mxu0
  %v8291 = vadd.f32 0.0, %v8290
  %v8292 = vpop.f32.mrf.mxu0
  %8293 = vmatprep.mubr.bf16.mxu0 0
  %8294 = vmatmul.mubr.bf16.gmra.mxu0 %v8126
  %v8295 = vpop.f32.mrf.mxu0
  %v8296 = vadd.f32 0.0, %v8295
  %v8297 = vpop.f32.mrf.mxu0
  %v8298 = vpop.f32.mrf.mxu0
  %v8299 = vadd.f32 0.0, %v8298
  %v8300 = vpop.f32.mrf.mxu0
  %8301 = vmatprep.mubr.bf16.mxu0 0
  %8302 = vmatmul.mubr.bf16.gmra.mxu0 %v8129
  %v8303 = vpop.f32.mrf.mxu0
  %v8304 = vadd.f32 0.0, %v8303
  %v8305 = vpop.f32.mrf.mxu0
  %v8306 = vpop.f32.mrf.mxu0
  %v8307 = vpop.f32.mrf.mxu0
  %8308 = vdwg.mxu0
  %v8309 = vadd.f32 %v7928, %v8224
  %v8310 = vadd.f32 %v7929, %v8227
  %v8311 = vadd.f32 %v7930, %v8232
  %v8312 = vadd.f32 %v7931, %v8235
  %v8313 = vadd.f32 %v7932, %v8240
  %v8314 = vadd.f32 %v7933, %v8243
  %v8315 = vadd.f32 %v7934, %v8248
  %v8316 = vadd.f32 %v7935, %v8251
  %v8317 = vadd.f32 %v7936, %v8256
  %v8318 = vadd.f32 %v7937, %v8259
  %v8319 = vadd.f32 %v7938, %v8264
  %v8320 = vadd.f32 %v7939, %v8267
  %v8321 = vadd.f32 %v7940, %v8272
  %v8322 = vadd.f32 %v7941, %v8275
  %v8323 = vadd.f32 %v7942, %v8280
  %v8324 = vadd.f32 %v7943, %v8283
  %v8325 = vadd.f32 %v7944, %v8288
  %v8326 = vadd.f32 %v7945, %v8291
  %v8327 = vadd.f32 %v7946, %v8296
  %v8328 = vadd.f32 %v7947, %v8299
  %v8329 = vadd.f32 %v7948, %v8304
  %v8330 = vld [vmem:[#allocation2 + $0x14] sm:$0xe]
  %s8331 = scalar_lea.vmem %s1, 11968
  %v8332 = vld [vmem:[%s8331] sm:$0xf]
  %v8333 = vld [vmem:[%s8331 + $0x4] sm:$0xf]
  %v8334 = vld [vmem:[%s8331 + $0x8] sm:$0xf]
  %v8335 = vld [vmem:[%s8331 + $0xc] sm:$0xf]
  %v8336 = vld [vmem:[%s8331 + $0x10] sm:$0xf]
  %v8337 = vld [vmem:[%s8331 + $0x14] sm:$0xf]
  %v8338 = vld [vmem:[%s8331 + $0x18] sm:$0xf]
  %v8339 = vld [vmem:[%s8331 + $0x1c] sm:$0xf]
  %v8340 = vld [vmem:[%s8331 + $0x20] sm:$0xf]
  %v8341 = vld [vmem:[%s8331 + $0x24] sm:$0xf]
  %v8342 = vld [vmem:[%s8331 + $0x28] sm:$0xf]
  %v8343 = vld [vmem:[%s8331 + $0x2c] sm:$0xf]
  %v8344 = vld [vmem:[%s8331 + $0x30] sm:$0xf]
  %v8345 = vld [vmem:[%s8331 + $0x34] sm:$0xf]
  %v8346 = vld [vmem:[%s8331 + $0x38] sm:$0xf]
  %v8347 = vld [vmem:[%s8331 + $0x3c] sm:$0xf]
  %v8349 = vunpack.c.l.b16 %v8330
  %v8350 = vpack.c.b16 %v8011, %v8349
  %vm8351 = vcmask 1046528
  %v8352 = vrot.slane %v8350, 1
  %v8353 = vrot.slane %v8033, 1
  %v8354 = vsel %vm8351, %v8352, %v8353
  %v8355 = vrot.slane %v8034, 1
  %v8356 = vsel %vm8351, %v8353, %v8355
  %v8357 = vrot.slane %v8035, 1
  %v8358 = vsel %vm8351, %v8355, %v8357
  %v8359 = vrot.slane %v8036, 1
  %v8360 = vsel %vm8351, %v8357, %v8359
  %v8361 = vrot.slane %v8037, 1
  %v8362 = vsel %vm8351, %v8359, %v8361
  %v8363 = vrot.slane %v8038, 1
  %v8364 = vsel %vm8351, %v8361, %v8363
  %v8365 = vrot.slane %v8039, 1
  %v8366 = vsel %vm8351, %v8363, %v8365
  %v8367 = vrot.slane %v8040, 1
  %v8368 = vsel %vm8351, %v8365, %v8367
  %v8369 = vrot.slane %v8041, 1
  %v8370 = vsel %vm8351, %v8367, %v8369
  %v8371 = vrot.slane %v8042, 1
  %v8372 = vsel %vm8351, %v8369, %v8371
  %v8400 = vunpack.c.l.b16 %v8332
  %v8401 = vunpack.c.l.b16 %v8333
  %v8402 = vunpack.c.l.b16 %v8334
  %v8403 = vunpack.c.l.b16 %v8335
  %v8404 = vunpack.c.l.b16 %v8336
  %v8405 = vunpack.c.l.b16 %v8337
  %v8406 = vunpack.c.l.b16 %v8338
  %v8407 = vunpack.c.l.b16 %v8339
  %v8408 = vunpack.c.l.b16 %v8340
  %v8409 = vunpack.c.l.b16 %v8341
  %v8410 = vunpack.c.l.b16 %v8342
  %v8411 = vunpack.c.l.b16 %v8343
  %v8412 = vunpack.c.l.b16 %v8344
  %v8413 = vunpack.c.l.b16 %v8345
  %v8414 = vunpack.c.l.b16 %v8346
  %v8415 = vunpack.c.l.b16 %v8347
  %v8416 = vpack.c.b16 %v8401, %v8400
  %v8417 = vpack.c.b16 %v8403, %v8402
  %v8418 = vpack.c.b16 %v8405, %v8404
  %v8419 = vpack.c.b16 %v8407, %v8406
  %v8420 = vpack.c.b16 %v8409, %v8408
  %v8421 = vpack.c.b16 %v8411, %v8410
  %v8422 = vpack.c.b16 %v8413, %v8412
  %v8423 = vpack.c.b16 %v8415, %v8414
  %8432 = vmatprep.subr.bf16.mxu0 0
  %8433 = vmatpush1.bf16.msra.mxu0 %v8423
  %8434 = vmatprep.subr.bf16.mxu0 0
  %8435 = vmatpush1.bf16.msra.mxu0 %v8422
  %8436 = vmatprep.subr.bf16.mxu0 0
  %8437 = vmatpush1.bf16.msra.mxu0 %v8421
  %8438 = vmatprep.subr.bf16.mxu0 0
  %8439 = vmatpush1.bf16.msra.mxu0 %v8420
  %8440 = vmatprep.subr.bf16.mxu0 0
  %8441 = vmatpush1.bf16.msra.mxu0 %v8419
  %8442 = vmatprep.subr.bf16.mxu0 0
  %8443 = vmatpush1.bf16.msra.mxu0 %v8418
  %8444 = vmatprep.subr.bf16.mxu0 0
  %8445 = vmatpush1.bf16.msra.mxu0 %v8417
  %8446 = vmatprep.subr.bf16.mxu0 0
  %8447 = vmatpush1.bf16.msra.mxu0 %v8416
  %8448 = vmatprep.subr.bf16.mxu0 0
  %8449 = vmatpush2.bf16.msra.mxu0 0
  %8450 = vmatprep.subr.bf16.mxu0 0
  %8451 = vmatpush2.bf16.msra.mxu0 0
  %8452 = vmatprep.subr.bf16.mxu0 0
  %8453 = vmatpush2.bf16.msra.mxu0 0
  %8454 = vmatprep.subr.bf16.mxu0 0
  %8455 = vmatpush2.bf16.msra.mxu0 0
  %8456 = vmatprep.subr.bf16.mxu0 0
  %8457 = vmatpush2.bf16.msra.mxu0 0
  %8458 = vmatprep.subr.bf16.mxu0 0
  %8459 = vmatpush2.bf16.msra.mxu0 0
  %8460 = vmatprep.subr.bf16.mxu0 0
  %8461 = vmatpush2.bf16.msra.mxu0 0
  %8462 = vmatprep.subr.bf16.mxu0 0
  %8463 = vmatpush2.bf16.msra.mxu0 0
  %8464 = vmatprep.mubr.bf16.mxu0 0
  %8465 = vmatmul.mubr.bf16.gmra.mxu0 %v8354
  %v8466 = vpop.f32.mrf.mxu0
  %v8467 = vadd.f32 0.0, %v8466
  %v8468 = vpop.f32.mrf.mxu0
  %v8469 = vpop.f32.mrf.mxu0
  %v8470 = vadd.f32 0.0, %v8469
  %v8471 = vpop.f32.mrf.mxu0
  %8472 = vmatprep.mubr.bf16.mxu0 0
  %8473 = vmatmul.mubr.bf16.gmra.mxu0 %v8356
  %v8474 = vpop.f32.mrf.mxu0
  %v8475 = vadd.f32 0.0, %v8474
  %v8476 = vpop.f32.mrf.mxu0
  %v8477 = vpop.f32.mrf.mxu0
  %v8478 = vadd.f32 0.0, %v8477
  %v8479 = vpop.f32.mrf.mxu0
  %8480 = vmatprep.mubr.bf16.mxu0 0
  %8481 = vmatmul.mubr.bf16.gmra.mxu0 %v8358
  %v8482 = vpop.f32.mrf.mxu0
  %v8483 = vadd.f32 0.0, %v8482
  %v8484 = vpop.f32.mrf.mxu0
  %v8485 = vpop.f32.mrf.mxu0
  %v8486 = vadd.f32 0.0, %v8485
  %v8487 = vpop.f32.mrf.mxu0
  %8488 = vmatprep.mubr.bf16.mxu0 0
  %8489 = vmatmul.mubr.bf16.gmra.mxu0 %v8360
  %v8490 = vpop.f32.mrf.mxu0
  %v8491 = vadd.f32 0.0, %v8490
  %v8492 = vpop.f32.mrf.mxu0
  %v8493 = vpop.f32.mrf.mxu0
  %v8494 = vadd.f32 0.0, %v8493
  %v8495 = vpop.f32.mrf.mxu0
  %8496 = vmatprep.mubr.bf16.mxu0 0
  %8497 = vmatmul.mubr.bf16.gmra.mxu0 %v8362
  %v8498 = vpop.f32.mrf.mxu0
  %v8499 = vadd.f32 0.0, %v8498
  %v8500 = vpop.f32.mrf.mxu0
  %v8501 = vpop.f32.mrf.mxu0
  %v8502 = vadd.f32 0.0, %v8501
  %v8503 = vpop.f32.mrf.mxu0
  %8504 = vmatprep.mubr.bf16.mxu0 0
  %8505 = vmatmul.mubr.bf16.gmra.mxu0 %v8364
  %v8506 = vpop.f32.mrf.mxu0
  %v8507 = vadd.f32 0.0, %v8506
  %v8508 = vpop.f32.mrf.mxu0
  %v8509 = vpop.f32.mrf.mxu0
  %v8510 = vadd.f32 0.0, %v8509
  %v8511 = vpop.f32.mrf.mxu0
  %8512 = vmatprep.mubr.bf16.mxu0 0
  %8513 = vmatmul.mubr.bf16.gmra.mxu0 %v8366
  %v8514 = vpop.f32.mrf.mxu0
  %v8515 = vadd.f32 0.0, %v8514
  %v8516 = vpop.f32.mrf.mxu0
  %v8517 = vpop.f32.mrf.mxu0
  %v8518 = vadd.f32 0.0, %v8517
  %v8519 = vpop.f32.mrf.mxu0
  %8520 = vmatprep.mubr.bf16.mxu0 0
  %8521 = vmatmul.mubr.bf16.gmra.mxu0 %v8368
  %v8522 = vpop.f32.mrf.mxu0
  %v8523 = vadd.f32 0.0, %v8522
  %v8524 = vpop.f32.mrf.mxu0
  %v8525 = vpop.f32.mrf.mxu0
  %v8526 = vadd.f32 0.0, %v8525
  %v8527 = vpop.f32.mrf.mxu0
  %8528 = vmatprep.mubr.bf16.mxu0 0
  %8529 = vmatmul.mubr.bf16.gmra.mxu0 %v8370
  %v8530 = vpop.f32.mrf.mxu0
  %v8531 = vadd.f32 0.0, %v8530
  %v8532 = vpop.f32.mrf.mxu0
  %v8533 = vpop.f32.mrf.mxu0
  %v8534 = vadd.f32 0.0, %v8533
  %v8535 = vpop.f32.mrf.mxu0
  %8536 = vmatprep.mubr.bf16.mxu0 0
  %8537 = vmatmul.mubr.bf16.gmra.mxu0 %v8372
  %v8538 = vpop.f32.mrf.mxu0
  %v8539 = vadd.f32 0.0, %v8538
  %v8540 = vpop.f32.mrf.mxu0
  %v8541 = vpop.f32.mrf.mxu0
  %v8542 = vadd.f32 0.0, %v8541
  %v8543 = vpop.f32.mrf.mxu0
  %8544 = vmatprep.mubr.bf16.mxu0 0
  %8545 = vmatmul.mubr.bf16.gmra.mxu0 %v8371
  %v8546 = vpop.f32.mrf.mxu0
  %v8547 = vadd.f32 0.0, %v8546
  %v8548 = vpop.f32.mrf.mxu0
  %v8549 = vpop.f32.mrf.mxu0
  %v8550 = vpop.f32.mrf.mxu0
  %8551 = vdwg.mxu0
  %v8552 = vadd.f32 %v8309, %v8467
  %v8553 = vadd.f32 %v8310, %v8470
  %v8554 = vadd.f32 %v8311, %v8475
  %v8555 = vadd.f32 %v8312, %v8478
  %v8556 = vadd.f32 %v8313, %v8483
  %v8557 = vadd.f32 %v8314, %v8486
  %v8558 = vadd.f32 %v8315, %v8491
  %v8559 = vadd.f32 %v8316, %v8494
  %v8560 = vadd.f32 %v8317, %v8499
  %v8561 = vadd.f32 %v8318, %v8502
  %v8562 = vadd.f32 %v8319, %v8507
  %v8563 = vadd.f32 %v8320, %v8510
  %v8564 = vadd.f32 %v8321, %v8515
  %v8565 = vadd.f32 %v8322, %v8518
  %v8566 = vadd.f32 %v8323, %v8523
  %v8567 = vadd.f32 %v8324, %v8526
  %v8568 = vadd.f32 %v8325, %v8531
  %v8569 = vadd.f32 %v8326, %v8534
  %v8570 = vadd.f32 %v8327, %v8539
  %v8571 = vadd.f32 %v8328, %v8542
  %v8572 = vadd.f32 %v8329, %v8547
  %v8573 = vld [vmem:[#allocation2 + $0x68] sm:$0x3]
  %s8574 = scalar_lea.vmem %s1, 12032
  %v8575 = vld [vmem:[%s8574] sm:$0xf]
  %v8576 = vld [vmem:[%s8574 + $0x4] sm:$0xf]
  %v8577 = vld [vmem:[%s8574 + $0x8] sm:$0xf]
  %v8578 = vld [vmem:[%s8574 + $0xc] sm:$0xf]
  %v8579 = vld [vmem:[%s8574 + $0x10] sm:$0xf]
  %v8580 = vld [vmem:[%s8574 + $0x14] sm:$0xf]
  %v8581 = vld [vmem:[%s8574 + $0x18] sm:$0xf]
  %v8582 = vld [vmem:[%s8574 + $0x1c] sm:$0xf]
  %v8583 = vld [vmem:[%s8574 + $0x20] sm:$0xf]
  %v8584 = vld [vmem:[%s8574 + $0x24] sm:$0xf]
  %v8585 = vld [vmem:[%s8574 + $0x28] sm:$0xf]
  %v8586 = vld [vmem:[%s8574 + $0x2c] sm:$0xf]
  %v8587 = vld [vmem:[%s8574 + $0x30] sm:$0xf]
  %v8588 = vld [vmem:[%s8574 + $0x34] sm:$0xf]
  %v8589 = vld [vmem:[%s8574 + $0x38] sm:$0xf]
  %v8590 = vld [vmem:[%s8574 + $0x3c] sm:$0xf]
  %v8592 = vunpack.c.l.b16 %v8573
  %v8593 = vpack.c.b16 %v8592, %v8030
  %vm8594 = vsmask.f32 6400
  %v8596 = vshrl.u32 %v8350, 16
  %v8598 = vrot.slane %v8596, 1
  %v8599 = vshll.u32 %v8350, 16
  %v8601 = vrot.slane %v8599, 2
  %v8602 = vor.u32 %v8598, %v8601
  %v8603 = vrot.slane %v8055, 1
  %v8604 = vrot.slane %v8051, 2
  %v8605 = vor.u32 %v8603, %v8604
  %v8606 = vsel %vm8594, %v8602, %v8605
  %v8607 = vrot.slane %v8063, 1
  %v8608 = vrot.slane %v8059, 2
  %v8609 = vor.u32 %v8607, %v8608
  %v8610 = vsel %vm8594, %v8605, %v8609
  %v8611 = vrot.slane %v8071, 1
  %v8612 = vrot.slane %v8067, 2
  %v8613 = vor.u32 %v8611, %v8612
  %v8614 = vsel %vm8594, %v8609, %v8613
  %v8615 = vrot.slane %v8079, 1
  %v8616 = vrot.slane %v8075, 2
  %v8617 = vor.u32 %v8615, %v8616
  %v8618 = vsel %vm8594, %v8613, %v8617
  %v8619 = vrot.slane %v8087, 1
  %v8620 = vrot.slane %v8083, 2
  %v8621 = vor.u32 %v8619, %v8620
  %v8622 = vsel %vm8594, %v8617, %v8621
  %v8623 = vrot.slane %v8095, 1
  %v8624 = vrot.slane %v8091, 2
  %v8625 = vor.u32 %v8623, %v8624
  %v8626 = vsel %vm8594, %v8621, %v8625
  %v8627 = vrot.slane %v8103, 1
  %v8628 = vrot.slane %v8099, 2
  %v8629 = vor.u32 %v8627, %v8628
  %v8630 = vsel %vm8594, %v8625, %v8629
  %v8631 = vrot.slane %v8111, 1
  %v8632 = vrot.slane %v8107, 2
  %v8633 = vor.u32 %v8631, %v8632
  %v8634 = vsel %vm8594, %v8629, %v8633
  %v8635 = vrot.slane %v8119, 1
  %v8636 = vrot.slane %v8115, 2
  %v8637 = vor.u32 %v8635, %v8636
  %v8638 = vsel %vm8594, %v8633, %v8637
  %v8640 = vshrl.u32 %v8593, 16
  %v8642 = vrot.slane %v8640, 1
  %v8643 = vshll.u32 %v8593, 16
  %v8645 = vrot.slane %v8643, 2
  %v8646 = vor.u32 %v8642, %v8645
  %v8647 = vsel %vm8594, %v8637, %v8646
  %v8675 = vunpack.c.l.b16 %v8575
  %v8676 = vunpack.c.l.b16 %v8576
  %v8677 = vunpack.c.l.b16 %v8577
  %v8678 = vunpack.c.l.b16 %v8578
  %v8679 = vunpack.c.l.b16 %v8579
  %v8680 = vunpack.c.l.b16 %v8580
  %v8681 = vunpack.c.l.b16 %v8581
  %v8682 = vunpack.c.l.b16 %v8582
  %v8683 = vunpack.c.l.b16 %v8583
  %v8684 = vunpack.c.l.b16 %v8584
  %v8685 = vunpack.c.l.b16 %v8585
  %v8686 = vunpack.c.l.b16 %v8586
  %v8687 = vunpack.c.l.b16 %v8587
  %v8688 = vunpack.c.l.b16 %v8588
  %v8689 = vunpack.c.l.b16 %v8589
  %v8690 = vunpack.c.l.b16 %v8590
  %v8691 = vpack.c.b16 %v8676, %v8675
  %v8692 = vpack.c.b16 %v8678, %v8677
  %v8693 = vpack.c.b16 %v8680, %v8679
  %v8694 = vpack.c.b16 %v8682, %v8681
  %v8695 = vpack.c.b16 %v8684, %v8683
  %v8696 = vpack.c.b16 %v8686, %v8685
  %v8697 = vpack.c.b16 %v8688, %v8687
  %v8698 = vpack.c.b16 %v8690, %v8689
  %8707 = vmatprep.subr.bf16.mxu0 0
  %8708 = vmatpush1.bf16.msra.mxu0 %v8698
  %8709 = vmatprep.subr.bf16.mxu0 0
  %8710 = vmatpush1.bf16.msra.mxu0 %v8697
  %8711 = vmatprep.subr.bf16.mxu0 0
  %8712 = vmatpush1.bf16.msra.mxu0 %v8696
  %8713 = vmatprep.subr.bf16.mxu0 0
  %8714 = vmatpush1.bf16.msra.mxu0 %v8695
  %8715 = vmatprep.subr.bf16.mxu0 0
  %8716 = vmatpush1.bf16.msra.mxu0 %v8694
  %8717 = vmatprep.subr.bf16.mxu0 0
  %8718 = vmatpush1.bf16.msra.mxu0 %v8693
  %8719 = vmatprep.subr.bf16.mxu0 0
  %8720 = vmatpush1.bf16.msra.mxu0 %v8692
  %8721 = vmatprep.subr.bf16.mxu0 0
  %8722 = vmatpush1.bf16.msra.mxu0 %v8691
  %8723 = vmatprep.subr.bf16.mxu0 0
  %8724 = vmatpush2.bf16.msra.mxu0 0
  %8725 = vmatprep.subr.bf16.mxu0 0
  %8726 = vmatpush2.bf16.msra.mxu0 0
  %8727 = vmatprep.subr.bf16.mxu0 0
  %8728 = vmatpush2.bf16.msra.mxu0 0
  %8729 = vmatprep.subr.bf16.mxu0 0
  %8730 = vmatpush2.bf16.msra.mxu0 0
  %8731 = vmatprep.subr.bf16.mxu0 0
  %8732 = vmatpush2.bf16.msra.mxu0 0
  %8733 = vmatprep.subr.bf16.mxu0 0
  %8734 = vmatpush2.bf16.msra.mxu0 0
  %8735 = vmatprep.subr.bf16.mxu0 0
  %8736 = vmatpush2.bf16.msra.mxu0 0
  %8737 = vmatprep.subr.bf16.mxu0 0
  %8738 = vmatpush2.bf16.msra.mxu0 0
  %8739 = vmatprep.mubr.bf16.mxu0 0
  %8740 = vmatmul.mubr.bf16.gmra.mxu0 %v8606
  %v8741 = vpop.f32.mrf.mxu0
  %v8742 = vadd.f32 0.0, %v8741
  %v8743 = vpop.f32.mrf.mxu0
  %v8744 = vpop.f32.mrf.mxu0
  %v8745 = vadd.f32 0.0, %v8744
  %v8746 = vpop.f32.mrf.mxu0
  %8747 = vmatprep.mubr.bf16.mxu0 0
  %8748 = vmatmul.mubr.bf16.gmra.mxu0 %v8610
  %v8749 = vpop.f32.mrf.mxu0
  %v8750 = vadd.f32 0.0, %v8749
  %v8751 = vpop.f32.mrf.mxu0
  %v8752 = vpop.f32.mrf.mxu0
  %v8753 = vadd.f32 0.0, %v8752
  %v8754 = vpop.f32.mrf.mxu0
  %8755 = vmatprep.mubr.bf16.mxu0 0
  %8756 = vmatmul.mubr.bf16.gmra.mxu0 %v8614
  %v8757 = vpop.f32.mrf.mxu0
  %v8758 = vadd.f32 0.0, %v8757
  %v8759 = vpop.f32.mrf.mxu0
  %v8760 = vpop.f32.mrf.mxu0
  %v8761 = vadd.f32 0.0, %v8760
  %v8762 = vpop.f32.mrf.mxu0
  %8763 = vmatprep.mubr.bf16.mxu0 0
  %8764 = vmatmul.mubr.bf16.gmra.mxu0 %v8618
  %v8765 = vpop.f32.mrf.mxu0
  %v8766 = vadd.f32 0.0, %v8765
  %v8767 = vpop.f32.mrf.mxu0
  %v8768 = vpop.f32.mrf.mxu0
  %v8769 = vadd.f32 0.0, %v8768
  %v8770 = vpop.f32.mrf.mxu0
  %8771 = vmatprep.mubr.bf16.mxu0 0
  %8772 = vmatmul.mubr.bf16.gmra.mxu0 %v8622
  %v8773 = vpop.f32.mrf.mxu0
  %v8774 = vadd.f32 0.0, %v8773
  %v8775 = vpop.f32.mrf.mxu0
  %v8776 = vpop.f32.mrf.mxu0
  %v8777 = vadd.f32 0.0, %v8776
  %v8778 = vpop.f32.mrf.mxu0
  %8779 = vmatprep.mubr.bf16.mxu0 0
  %8780 = vmatmul.mubr.bf16.gmra.mxu0 %v8626
  %v8781 = vpop.f32.mrf.mxu0
  %v8782 = vadd.f32 0.0, %v8781
  %v8783 = vpop.f32.mrf.mxu0
  %v8784 = vpop.f32.mrf.mxu0
  %v8785 = vadd.f32 0.0, %v8784
  %v8786 = vpop.f32.mrf.mxu0
  %8787 = vmatprep.mubr.bf16.mxu0 0
  %8788 = vmatmul.mubr.bf16.gmra.mxu0 %v8630
  %v8789 = vpop.f32.mrf.mxu0
  %v8790 = vadd.f32 0.0, %v8789
  %v8791 = vpop.f32.mrf.mxu0
  %v8792 = vpop.f32.mrf.mxu0
  %v8793 = vadd.f32 0.0, %v8792
  %v8794 = vpop.f32.mrf.mxu0
  %8795 = vmatprep.mubr.bf16.mxu0 0
  %8796 = vmatmul.mubr.bf16.gmra.mxu0 %v8634
  %v8797 = vpop.f32.mrf.mxu0
  %v8798 = vadd.f32 0.0, %v8797
  %v8799 = vpop.f32.mrf.mxu0
  %v8800 = vpop.f32.mrf.mxu0
  %v8801 = vadd.f32 0.0, %v8800
  %v8802 = vpop.f32.mrf.mxu0
  %8803 = vmatprep.mubr.bf16.mxu0 0
  %8804 = vmatmul.mubr.bf16.gmra.mxu0 %v8638
  %v8805 = vpop.f32.mrf.mxu0
  %v8806 = vadd.f32 0.0, %v8805
  %v8807 = vpop.f32.mrf.mxu0
  %v8808 = vpop.f32.mrf.mxu0
  %v8809 = vadd.f32 0.0, %v8808
  %v8810 = vpop.f32.mrf.mxu0
  %8811 = vmatprep.mubr.bf16.mxu0 0
  %8812 = vmatmul.mubr.bf16.gmra.mxu0 %v8647
  %v8813 = vpop.f32.mrf.mxu0
  %v8814 = vadd.f32 0.0, %v8813
  %v8815 = vpop.f32.mrf.mxu0
  %v8816 = vpop.f32.mrf.mxu0
  %v8817 = vadd.f32 0.0, %v8816
  %v8818 = vpop.f32.mrf.mxu0
  %8819 = vmatprep.mubr.bf16.mxu0 0
  %8820 = vmatmul.mubr.bf16.gmra.mxu0 %v8646
  %v8821 = vpop.f32.mrf.mxu0
  %v8822 = vadd.f32 0.0, %v8821
  %v8823 = vpop.f32.mrf.mxu0
  %v8824 = vpop.f32.mrf.mxu0
  %v8825 = vpop.f32.mrf.mxu0
  %8826 = vdwg.mxu0
  %v8827 = vadd.f32 %v8552, %v8742
  %v8828 = vadd.f32 %v8553, %v8745
  %v8829 = vadd.f32 %v8554, %v8750
  %v8830 = vadd.f32 %v8555, %v8753
  %v8831 = vadd.f32 %v8556, %v8758
  %v8832 = vadd.f32 %v8557, %v8761
  %v8833 = vadd.f32 %v8558, %v8766
  %v8834 = vadd.f32 %v8559, %v8769
  %v8835 = vadd.f32 %v8560, %v8774
  %v8836 = vadd.f32 %v8561, %v8777
  %v8837 = vadd.f32 %v8562, %v8782
  %v8838 = vadd.f32 %v8563, %v8785
  %v8839 = vadd.f32 %v8564, %v8790
  %v8840 = vadd.f32 %v8565, %v8793
  %v8841 = vadd.f32 %v8566, %v8798
  %v8842 = vadd.f32 %v8567, %v8801
  %v8843 = vadd.f32 %v8568, %v8806
  %v8844 = vadd.f32 %v8569, %v8809
  %v8845 = vadd.f32 %v8570, %v8814
  %v8846 = vadd.f32 %v8571, %v8817
  %v8847 = vadd.f32 %v8572, %v8822
  %v8848 = vlaneseq
  %v8849 = vshrl.u32 %v8848, 7
  %v8850 = vsub.s32 0, %v8849
  %v8851 = vrot.slane %v6077, %v8850
  %v8852 = vadd.f32 %v8827, %v8851
  %v8853 = vadd.f32 %v8828, %v8851
  %v8854 = vadd.f32 %v8829, %v8851
  %v8855 = vadd.f32 %v8830, %v8851
  %v8856 = vadd.f32 %v8831, %v8851
  %v8857 = vadd.f32 %v8832, %v8851
  %v8858 = vadd.f32 %v8833, %v8851
  %v8859 = vadd.f32 %v8834, %v8851
  %v8860 = vadd.f32 %v8835, %v8851
  %v8861 = vadd.f32 %v8836, %v8851
  %v8862 = vadd.f32 %v8837, %v8851
  %v8863 = vadd.f32 %v8838, %v8851
  %v8864 = vadd.f32 %v8839, %v8851
  %v8865 = vadd.f32 %v8840, %v8851
  %v8866 = vadd.f32 %v8841, %v8851
  %v8867 = vadd.f32 %v8842, %v8851
  %v8868 = vadd.f32 %v8843, %v8851
  %v8869 = vadd.f32 %v8844, %v8851
  %v8870 = vadd.f32 %v8845, %v8851
  %v8871 = vadd.f32 %v8846, %v8851
  %v8872 = vadd.f32 %v8847, %v8851
  %v8873 = vmax.f32 %v8852, 0.0
  %v8874 = vmax.f32 %v8853, 0.0
  %v8875 = vmax.f32 %v8854, 0.0
  %v8876 = vmax.f32 %v8855, 0.0
  %v8877 = vmax.f32 %v8856, 0.0
  %v8878 = vmax.f32 %v8857, 0.0
  %v8879 = vmax.f32 %v8858, 0.0
  %v8880 = vmax.f32 %v8859, 0.0
  %v8881 = vmax.f32 %v8860, 0.0
  %v8882 = vmax.f32 %v8861, 0.0
  %v8883 = vmax.f32 %v8862, 0.0
  %v8884 = vmax.f32 %v8863, 0.0
  %v8885 = vmax.f32 %v8864, 0.0
  %v8886 = vmax.f32 %v8865, 0.0
  %v8887 = vmax.f32 %v8866, 0.0
  %v8888 = vmax.f32 %v8867, 0.0
  %v8889 = vmax.f32 %v8868, 0.0
  %v8890 = vmax.f32 %v8869, 0.0
  %v8891 = vmax.f32 %v8870, 0.0
  %v8892 = vmax.f32 %v8871, 0.0
  %v8893 = vmax.f32 %v8872, 0.0
  %v8894 = vmin.f32 %v8873, 1.0
  %v8895 = vmin.f32 %v8874, 1.0
  %v8896 = vmin.f32 %v8875, 1.0
  %v8897 = vmin.f32 %v8876, 1.0
  %v8898 = vmin.f32 %v8877, 1.0
  %v8899 = vmin.f32 %v8878, 1.0
  %v8900 = vmin.f32 %v8879, 1.0
  %v8901 = vmin.f32 %v8880, 1.0
  %v8902 = vmin.f32 %v8881, 1.0
  %v8903 = vmin.f32 %v8882, 1.0
  %v8904 = vmin.f32 %v8883, 1.0
  %v8905 = vmin.f32 %v8884, 1.0
  %v8906 = vmin.f32 %v8885, 1.0
  %v8907 = vmin.f32 %v8886, 1.0
  %v8908 = vmin.f32 %v8887, 1.0
  %v8909 = vmin.f32 %v8888, 1.0
  %v8910 = vmin.f32 %v8889, 1.0
  %v8911 = vmin.f32 %v8890, 1.0
  %v8912 = vmin.f32 %v8891, 1.0
  %v8913 = vmin.f32 %v8892, 1.0
  %v8914 = vmin.f32 %v8893, 1.0
  %8915 = vst [vmem:[%s4 + $0x18] sm:$0xff] %v8894
  %8916 = vst [vmem:[%s4 + $0x20] sm:$0xff] %v8895
  %8917 = vst [vmem:[%s4 + $0x28] sm:$0xff] %v8896
  %8918 = vst [vmem:[%s4 + $0x30] sm:$0xff] %v8897
  %8919 = vst [vmem:[%s4 + $0x38] sm:$0xff] %v8898
  %8920 = vst [vmem:[%s4 + $0x40] sm:$0xff] %v8899
  %8921 = vst [vmem:[%s4 + $0x48] sm:$0xff] %v8900
  %8922 = vst [vmem:[%s4 + $0x50] sm:$0xff] %v8901
  %8923 = vst [vmem:[%s4 + $0x58] sm:$0xff] %v8902
  %8924 = vst [vmem:[%s4 + $0x60] sm:$0xff] %v8903
  %8925 = vst [vmem:[%s4 + $0x68] sm:$0xff] %v8904
  %8926 = vst [vmem:[%s4 + $0x70] sm:$0xff] %v8905
  %8927 = vst [vmem:[%s4 + $0x78] sm:$0xff] %v8906
  %8928 = vst [vmem:[%s4 + $0x80] sm:$0xff] %v8907
  %8929 = vst [vmem:[%s4 + $0x88] sm:$0xff] %v8908
  %8930 = vst [vmem:[%s4 + $0x90] sm:$0xff] %v8909
  %8931 = vst [vmem:[%s4 + $0x98] sm:$0xff] %v8910
  %8932 = vst [vmem:[%s4 + $0xa0] sm:$0xff] %v8911
  %8933 = vst [vmem:[%s4 + $0xa8] sm:$0xff] %v8912
  %8934 = vst [vmem:[%s4 + $0xb0] sm:$0xff] %v8913
  %8935 = vst [vmem:[%s4 + $0xb8] sm:$0xff] %v8914
  %v8936 = vld [vmem:[#allocation2 + $0x54] sm:$0xc]
  %v8937 = vld [vmem:[#allocation2 + $0x58] sm:$0xf]
  %v8938 = vld [vmem:[#allocation2 + $0x5c] sm:$0xf]
  %v8939 = vld [vmem:[#allocation2 + $0x60] sm:$0xf]
  %v8940 = vld [vmem:[#allocation2 + $0x64] sm:$0xf]
  %v8941 = vld [vmem:[#allocation2 + $0x68] sm:$0xf]
  %v8942 = vld [vmem:[#allocation2 + $0x6c] sm:$0xf]
  %v8943 = vld [vmem:[#allocation2 + $0x70] sm:$0xf]
  %v8944 = vld [vmem:[#allocation2 + $0x74] sm:$0xf]
  %v8945 = vld [vmem:[#allocation2 + $0x78] sm:$0xf]
  %v8946 = vld [vmem:[#allocation2 + $0x7c] sm:$0xf]
  %v8947 = vld [vmem:[#allocation2 + $0x80] sm:$0xf]
  %v8948 = vld [vmem:[#allocation2 + $0x84] sm:$0xf]
  %v8949 = vld [vmem:[#allocation2 + $0x88] sm:$0xf]
  %v8950 = vld [vmem:[#allocation2 + $0x8c] sm:$0xf]
  %v8951 = vld [vmem:[#allocation2 + $0x90] sm:$0xf]
  %v8952 = vld [vmem:[#allocation2 + $0x94] sm:$0xf]
  %v8953 = vld [vmem:[#allocation2 + $0x98] sm:$0xf]
  %v8954 = vld [vmem:[#allocation2 + $0x9c] sm:$0xf]
  %v8955 = vld [vmem:[#allocation2 + $0xa0] sm:$0xf]
  %v8956 = vld [vmem:[#allocation2 + $0xa4] sm:$0x1]
  %v8957 = vld [vmem:[%s6100] sm:$0xf]
  %v8958 = vld [vmem:[%s6100 + $0x4] sm:$0xf]
  %v8959 = vld [vmem:[%s6100 + $0x8] sm:$0xf]
  %v8960 = vld [vmem:[%s6100 + $0xc] sm:$0xf]
  %v8961 = vld [vmem:[%s6100 + $0x10] sm:$0xf]
  %v8962 = vld [vmem:[%s6100 + $0x14] sm:$0xf]
  %v8963 = vld [vmem:[%s6100 + $0x18] sm:$0xf]
  %v8964 = vld [vmem:[%s6100 + $0x1c] sm:$0xf]
  %v8965 = vld [vmem:[%s6100 + $0x20] sm:$0xf]
  %v8966 = vld [vmem:[%s6100 + $0x24] sm:$0xf]
  %v8967 = vld [vmem:[%s6100 + $0x28] sm:$0xf]
  %v8968 = vld [vmem:[%s6100 + $0x2c] sm:$0xf]
  %v8969 = vld [vmem:[%s6100 + $0x30] sm:$0xf]
  %v8970 = vld [vmem:[%s6100 + $0x34] sm:$0xf]
  %v8971 = vld [vmem:[%s6100 + $0x38] sm:$0xf]
  %v8972 = vld [vmem:[%s6100 + $0x3c] sm:$0xf]
  %v8973 = vld [vmem:[#allocation2 + $0x54] sm:$0x8]
  %v8974 = vld [vmem:[%s6118] sm:$0xf]
  %v8975 = vld [vmem:[%s6118 + $0x4] sm:$0xf]
  %v8976 = vld [vmem:[%s6118 + $0x8] sm:$0xf]
  %v8977 = vld [vmem:[%s6118 + $0xc] sm:$0xf]
  %v8978 = vld [vmem:[%s6118 + $0x10] sm:$0xf]
  %v8979 = vld [vmem:[%s6118 + $0x14] sm:$0xf]
  %v8980 = vld [vmem:[%s6118 + $0x18] sm:$0xf]
  %v8981 = vld [vmem:[%s6118 + $0x1c] sm:$0xf]
  %v8982 = vld [vmem:[%s6118 + $0x20] sm:$0xf]
  %v8983 = vld [vmem:[%s6118 + $0x24] sm:$0xf]
  %v8984 = vld [vmem:[%s6118 + $0x28] sm:$0xf]
  %v8985 = vld [vmem:[%s6118 + $0x2c] sm:$0xf]
  %v8986 = vld [vmem:[%s6118 + $0x30] sm:$0xf]
  %v8987 = vld [vmem:[%s6118 + $0x34] sm:$0xf]
  %v8988 = vld [vmem:[%s6118 + $0x38] sm:$0xf]
  %v8989 = vld [vmem:[%s6118 + $0x3c] sm:$0xf]
  %v9011 = vunpack.c.l.b16 %v8973
  %v9012 = vunpack.c.l.b16 %v8937
  %v9013 = vunpack.c.l.b16 %v8938
  %v9014 = vunpack.c.l.b16 %v8939
  %v9015 = vunpack.c.l.b16 %v8940
  %v9016 = vunpack.c.l.b16 %v8941
  %v9017 = vunpack.c.l.b16 %v8942
  %v9018 = vunpack.c.l.b16 %v8943
  %v9019 = vunpack.c.l.b16 %v8944
  %v9020 = vunpack.c.l.b16 %v8945
  %v9021 = vunpack.c.l.b16 %v8946
  %v9022 = vunpack.c.l.b16 %v8947
  %v9023 = vunpack.c.l.b16 %v8948
  %v9024 = vunpack.c.l.b16 %v8949
  %v9025 = vunpack.c.l.b16 %v8950
  %v9026 = vunpack.c.l.b16 %v8951
  %v9027 = vunpack.c.l.b16 %v8952
  %v9028 = vunpack.c.l.b16 %v8953
  %v9029 = vunpack.c.l.b16 %v8954
  %v9030 = vunpack.c.l.b16 %v8955
  %v9031 = vunpack.c.l.b16 %v8956
  %v9032 = vpack.c.b16 %v9012, %v9011
  %v9033 = vpack.c.b16 %v9014, %v9013
  %v9034 = vpack.c.b16 %v9016, %v9015
  %v9035 = vpack.c.b16 %v9018, %v9017
  %v9036 = vpack.c.b16 %v9020, %v9019
  %v9037 = vpack.c.b16 %v9022, %v9021
  %v9038 = vpack.c.b16 %v9024, %v9023
  %v9039 = vpack.c.b16 %v9026, %v9025
  %v9040 = vpack.c.b16 %v9028, %v9027
  %v9041 = vpack.c.b16 %v9030, %v9029
  %v9042 = vpack.c.b16 %v9031, %v9031
  %v9043 = vrot.slane %v9032, 3
  %v9044 = vrot.slane %v9033, 3
  %v9045 = vsel %vm6190, %v9043, %v9044
  %v9046 = vrot.slane %v9034, 3
  %v9047 = vsel %vm6190, %v9044, %v9046
  %v9048 = vrot.slane %v9035, 3
  %v9049 = vsel %vm6190, %v9046, %v9048
  %v9050 = vrot.slane %v9036, 3
  %v9051 = vsel %vm6190, %v9048, %v9050
  %v9052 = vrot.slane %v9037, 3
  %v9053 = vsel %vm6190, %v9050, %v9052
  %v9054 = vrot.slane %v9038, 3
  %v9055 = vsel %vm6190, %v9052, %v9054
  %v9056 = vrot.slane %v9039, 3
  %v9057 = vsel %vm6190, %v9054, %v9056
  %v9058 = vrot.slane %v9040, 3
  %v9059 = vsel %vm6190, %v9056, %v9058
  %v9060 = vrot.slane %v9041, 3
  %v9061 = vsel %vm6190, %v9058, %v9060
  %v9062 = vrot.slane %v9042, 3
  %v9063 = vsel %vm6190, %v9060, %v9062
  %v9090 = vunpack.c.l.b16 %v8974
  %v9091 = vunpack.c.l.b16 %v8975
  %v9092 = vunpack.c.l.b16 %v8976
  %v9093 = vunpack.c.l.b16 %v8977
  %v9094 = vunpack.c.l.b16 %v8978
  %v9095 = vunpack.c.l.b16 %v8979
  %v9096 = vunpack.c.l.b16 %v8980
  %v9097 = vunpack.c.l.b16 %v8981
  %v9098 = vunpack.c.l.b16 %v8982
  %v9099 = vunpack.c.l.b16 %v8983
  %v9100 = vunpack.c.l.b16 %v8984
  %v9101 = vunpack.c.l.b16 %v8985
  %v9102 = vunpack.c.l.b16 %v8986
  %v9103 = vunpack.c.l.b16 %v8987
  %v9104 = vunpack.c.l.b16 %v8988
  %v9105 = vunpack.c.l.b16 %v8989
  %v9106 = vpack.c.b16 %v9091, %v9090
  %v9107 = vpack.c.b16 %v9093, %v9092
  %v9108 = vpack.c.b16 %v9095, %v9094
  %v9109 = vpack.c.b16 %v9097, %v9096
  %v9110 = vpack.c.b16 %v9099, %v9098
  %v9111 = vpack.c.b16 %v9101, %v9100
  %v9112 = vpack.c.b16 %v9103, %v9102
  %v9113 = vpack.c.b16 %v9105, %v9104
  %9122 = vmatprep.subr.bf16.mxu0 0
  %9123 = vmatpush1.bf16.msra.mxu0 %v9113
  %9124 = vmatprep.subr.bf16.mxu0 0
  %9125 = vmatpush1.bf16.msra.mxu0 %v9112
  %9126 = vmatprep.subr.bf16.mxu0 0
  %9127 = vmatpush1.bf16.msra.mxu0 %v9111
  %9128 = vmatprep.subr.bf16.mxu0 0
  %9129 = vmatpush1.bf16.msra.mxu0 %v9110
  %9130 = vmatprep.subr.bf16.mxu0 0
  %9131 = vmatpush1.bf16.msra.mxu0 %v9109
  %9132 = vmatprep.subr.bf16.mxu0 0
  %9133 = vmatpush1.bf16.msra.mxu0 %v9108
  %9134 = vmatprep.subr.bf16.mxu0 0
  %9135 = vmatpush1.bf16.msra.mxu0 %v9107
  %9136 = vmatprep.subr.bf16.mxu0 0
  %9137 = vmatpush1.bf16.msra.mxu0 %v9106
  %9138 = vmatprep.subr.bf16.mxu0 0
  %9139 = vmatpush2.bf16.msra.mxu0 0
  %9140 = vmatprep.subr.bf16.mxu0 0
  %9141 = vmatpush2.bf16.msra.mxu0 0
  %9142 = vmatprep.subr.bf16.mxu0 0
  %9143 = vmatpush2.bf16.msra.mxu0 0
  %9144 = vmatprep.subr.bf16.mxu0 0
  %9145 = vmatpush2.bf16.msra.mxu0 0
  %9146 = vmatprep.subr.bf16.mxu0 0
  %9147 = vmatpush2.bf16.msra.mxu0 0
  %9148 = vmatprep.subr.bf16.mxu0 0
  %9149 = vmatpush2.bf16.msra.mxu0 0
  %9150 = vmatprep.subr.bf16.mxu0 0
  %9151 = vmatpush2.bf16.msra.mxu0 0
  %9152 = vmatprep.subr.bf16.mxu0 0
  %9153 = vmatpush2.bf16.msra.mxu0 0
  %9154 = vmatprep.mubr.bf16.mxu0 0
  %9155 = vmatmul.mubr.bf16.gmra.mxu0 %v9045
  %v9156 = vpop.f32.mrf.mxu0
  %v9157 = vadd.f32 0.0, %v9156
  %v9158 = vpop.f32.mrf.mxu0
  %v9159 = vpop.f32.mrf.mxu0
  %v9160 = vadd.f32 0.0, %v9159
  %v9161 = vpop.f32.mrf.mxu0
  %9162 = vmatprep.mubr.bf16.mxu0 0
  %9163 = vmatmul.mubr.bf16.gmra.mxu0 %v9047
  %v9164 = vpop.f32.mrf.mxu0
  %v9165 = vadd.f32 0.0, %v9164
  %v9166 = vpop.f32.mrf.mxu0
  %v9167 = vpop.f32.mrf.mxu0
  %v9168 = vadd.f32 0.0, %v9167
  %v9169 = vpop.f32.mrf.mxu0
  %9170 = vmatprep.mubr.bf16.mxu0 0
  %9171 = vmatmul.mubr.bf16.gmra.mxu0 %v9049
  %v9172 = vpop.f32.mrf.mxu0
  %v9173 = vadd.f32 0.0, %v9172
  %v9174 = vpop.f32.mrf.mxu0
  %v9175 = vpop.f32.mrf.mxu0
  %v9176 = vadd.f32 0.0, %v9175
  %v9177 = vpop.f32.mrf.mxu0
  %9178 = vmatprep.mubr.bf16.mxu0 0
  %9179 = vmatmul.mubr.bf16.gmra.mxu0 %v9051
  %v9180 = vpop.f32.mrf.mxu0
  %v9181 = vadd.f32 0.0, %v9180
  %v9182 = vpop.f32.mrf.mxu0
  %v9183 = vpop.f32.mrf.mxu0
  %v9184 = vadd.f32 0.0, %v9183
  %v9185 = vpop.f32.mrf.mxu0
  %9186 = vmatprep.mubr.bf16.mxu0 0
  %9187 = vmatmul.mubr.bf16.gmra.mxu0 %v9053
  %v9188 = vpop.f32.mrf.mxu0
  %v9189 = vadd.f32 0.0, %v9188
  %v9190 = vpop.f32.mrf.mxu0
  %v9191 = vpop.f32.mrf.mxu0
  %v9192 = vadd.f32 0.0, %v9191
  %v9193 = vpop.f32.mrf.mxu0
  %9194 = vmatprep.mubr.bf16.mxu0 0
  %9195 = vmatmul.mubr.bf16.gmra.mxu0 %v9055
  %v9196 = vpop.f32.mrf.mxu0
  %v9197 = vadd.f32 0.0, %v9196
  %v9198 = vpop.f32.mrf.mxu0
  %v9199 = vpop.f32.mrf.mxu0
  %v9200 = vadd.f32 0.0, %v9199
  %v9201 = vpop.f32.mrf.mxu0
  %9202 = vmatprep.mubr.bf16.mxu0 0
  %9203 = vmatmul.mubr.bf16.gmra.mxu0 %v9057
  %v9204 = vpop.f32.mrf.mxu0
  %v9205 = vadd.f32 0.0, %v9204
  %v9206 = vpop.f32.mrf.mxu0
  %v9207 = vpop.f32.mrf.mxu0
  %v9208 = vadd.f32 0.0, %v9207
  %v9209 = vpop.f32.mrf.mxu0
  %9210 = vmatprep.mubr.bf16.mxu0 0
  %9211 = vmatmul.mubr.bf16.gmra.mxu0 %v9059
  %v9212 = vpop.f32.mrf.mxu0
  %v9213 = vadd.f32 0.0, %v9212
  %v9214 = vpop.f32.mrf.mxu0
  %v9215 = vpop.f32.mrf.mxu0
  %v9216 = vadd.f32 0.0, %v9215
  %v9217 = vpop.f32.mrf.mxu0
  %9218 = vmatprep.mubr.bf16.mxu0 0
  %9219 = vmatmul.mubr.bf16.gmra.mxu0 %v9061
  %v9220 = vpop.f32.mrf.mxu0
  %v9221 = vadd.f32 0.0, %v9220
  %v9222 = vpop.f32.mrf.mxu0
  %v9223 = vpop.f32.mrf.mxu0
  %v9224 = vadd.f32 0.0, %v9223
  %v9225 = vpop.f32.mrf.mxu0
  %9226 = vmatprep.mubr.bf16.mxu0 0
  %9227 = vmatmul.mubr.bf16.gmra.mxu0 %v9063
  %v9228 = vpop.f32.mrf.mxu0
  %v9229 = vadd.f32 0.0, %v9228
  %v9230 = vpop.f32.mrf.mxu0
  %v9231 = vpop.f32.mrf.mxu0
  %v9232 = vadd.f32 0.0, %v9231
  %v9233 = vpop.f32.mrf.mxu0
  %9234 = vdwg.mxu0
  %v9236 = vunpack.c.l.b16 %v8936
  %v9237 = vpack.c.b16 %v9012, %v9236
  %v9239 = vshrl.u32 %v9237, 16
  %v9241 = vrot.slane %v9239, 2
  %v9242 = vshll.u32 %v9237, 16
  %v9244 = vrot.slane %v9242, 3
  %v9245 = vor.u32 %v9241, %v9244
  %v9247 = vshrl.u32 %v9033, 16
  %v9249 = vrot.slane %v9247, 2
  %v9250 = vshll.u32 %v9033, 16
  %v9252 = vrot.slane %v9250, 3
  %v9253 = vor.u32 %v9249, %v9252
  %v9254 = vsel %vm6394, %v9245, %v9253
  %v9256 = vshrl.u32 %v9034, 16
  %v9258 = vrot.slane %v9256, 2
  %v9259 = vshll.u32 %v9034, 16
  %v9261 = vrot.slane %v9259, 3
  %v9262 = vor.u32 %v9258, %v9261
  %v9263 = vsel %vm6394, %v9253, %v9262
  %v9265 = vshrl.u32 %v9035, 16
  %v9267 = vrot.slane %v9265, 2
  %v9268 = vshll.u32 %v9035, 16
  %v9270 = vrot.slane %v9268, 3
  %v9271 = vor.u32 %v9267, %v9270
  %v9272 = vsel %vm6394, %v9262, %v9271
  %v9274 = vshrl.u32 %v9036, 16
  %v9276 = vrot.slane %v9274, 2
  %v9277 = vshll.u32 %v9036, 16
  %v9279 = vrot.slane %v9277, 3
  %v9280 = vor.u32 %v9276, %v9279
  %v9281 = vsel %vm6394, %v9271, %v9280
  %v9283 = vshrl.u32 %v9037, 16
  %v9285 = vrot.slane %v9283, 2
  %v9286 = vshll.u32 %v9037, 16
  %v9288 = vrot.slane %v9286, 3
  %v9289 = vor.u32 %v9285, %v9288
  %v9290 = vsel %vm6394, %v9280, %v9289
  %v9292 = vshrl.u32 %v9038, 16
  %v9294 = vrot.slane %v9292, 2
  %v9295 = vshll.u32 %v9038, 16
  %v9297 = vrot.slane %v9295, 3
  %v9298 = vor.u32 %v9294, %v9297
  %v9299 = vsel %vm6394, %v9289, %v9298
  %v9301 = vshrl.u32 %v9039, 16
  %v9303 = vrot.slane %v9301, 2
  %v9304 = vshll.u32 %v9039, 16
  %v9306 = vrot.slane %v9304, 3
  %v9307 = vor.u32 %v9303, %v9306
  %v9308 = vsel %vm6394, %v9298, %v9307
  %v9310 = vshrl.u32 %v9040, 16
  %v9312 = vrot.slane %v9310, 2
  %v9313 = vshll.u32 %v9040, 16
  %v9315 = vrot.slane %v9313, 3
  %v9316 = vor.u32 %v9312, %v9315
  %v9317 = vsel %vm6394, %v9307, %v9316
  %v9319 = vshrl.u32 %v9041, 16
  %v9321 = vrot.slane %v9319, 2
  %v9322 = vshll.u32 %v9041, 16
  %v9324 = vrot.slane %v9322, 3
  %v9325 = vor.u32 %v9321, %v9324
  %v9326 = vsel %vm6394, %v9316, %v9325
  %v9328 = vshll.u32 %v9042, 16
  %v9330 = vrot.slane %v9328, 3
  %v9331 = vsel %vm6394, %v9325, %v9330
  %v9358 = vunpack.c.l.b16 %v8957
  %v9359 = vunpack.c.l.b16 %v8958
  %v9360 = vunpack.c.l.b16 %v8959
  %v9361 = vunpack.c.l.b16 %v8960
  %v9362 = vunpack.c.l.b16 %v8961
  %v9363 = vunpack.c.l.b16 %v8962
  %v9364 = vunpack.c.l.b16 %v8963
  %v9365 = vunpack.c.l.b16 %v8964
  %v9366 = vunpack.c.l.b16 %v8965
  %v9367 = vunpack.c.l.b16 %v8966
  %v9368 = vunpack.c.l.b16 %v8967
  %v9369 = vunpack.c.l.b16 %v8968
  %v9370 = vunpack.c.l.b16 %v8969
  %v9371 = vunpack.c.l.b16 %v8970
  %v9372 = vunpack.c.l.b16 %v8971
  %v9373 = vunpack.c.l.b16 %v8972
  %v9374 = vpack.c.b16 %v9359, %v9358
  %v9375 = vpack.c.b16 %v9361, %v9360
  %v9376 = vpack.c.b16 %v9363, %v9362
  %v9377 = vpack.c.b16 %v9365, %v9364
  %v9378 = vpack.c.b16 %v9367, %v9366
  %v9379 = vpack.c.b16 %v9369, %v9368
  %v9380 = vpack.c.b16 %v9371, %v9370
  %v9381 = vpack.c.b16 %v9373, %v9372
  %9390 = vmatprep.subr.bf16.mxu0 0
  %9391 = vmatpush1.bf16.msra.mxu0 %v9381
  %9392 = vmatprep.subr.bf16.mxu0 0
  %9393 = vmatpush1.bf16.msra.mxu0 %v9380
  %9394 = vmatprep.subr.bf16.mxu0 0
  %9395 = vmatpush1.bf16.msra.mxu0 %v9379
  %9396 = vmatprep.subr.bf16.mxu0 0
  %9397 = vmatpush1.bf16.msra.mxu0 %v9378
  %9398 = vmatprep.subr.bf16.mxu0 0
  %9399 = vmatpush1.bf16.msra.mxu0 %v9377
  %9400 = vmatprep.subr.bf16.mxu0 0
  %9401 = vmatpush1.bf16.msra.mxu0 %v9376
  %9402 = vmatprep.subr.bf16.mxu0 0
  %9403 = vmatpush1.bf16.msra.mxu0 %v9375
  %9404 = vmatprep.subr.bf16.mxu0 0
  %9405 = vmatpush1.bf16.msra.mxu0 %v9374
  %9406 = vmatprep.subr.bf16.mxu0 0
  %9407 = vmatpush2.bf16.msra.mxu0 0
  %9408 = vmatprep.subr.bf16.mxu0 0
  %9409 = vmatpush2.bf16.msra.mxu0 0
  %9410 = vmatprep.subr.bf16.mxu0 0
  %9411 = vmatpush2.bf16.msra.mxu0 0
  %9412 = vmatprep.subr.bf16.mxu0 0
  %9413 = vmatpush2.bf16.msra.mxu0 0
  %9414 = vmatprep.subr.bf16.mxu0 0
  %9415 = vmatpush2.bf16.msra.mxu0 0
  %9416 = vmatprep.subr.bf16.mxu0 0
  %9417 = vmatpush2.bf16.msra.mxu0 0
  %9418 = vmatprep.subr.bf16.mxu0 0
  %9419 = vmatpush2.bf16.msra.mxu0 0
  %9420 = vmatprep.subr.bf16.mxu0 0
  %9421 = vmatpush2.bf16.msra.mxu0 0
  %9422 = vmatprep.mubr.bf16.mxu0 0
  %9423 = vmatmul.mubr.bf16.gmra.mxu0 %v9254
  %v9424 = vpop.f32.mrf.mxu0
  %v9425 = vadd.f32 %v9157, %v9424
  %v9426 = vpop.f32.mrf.mxu0
  %v9427 = vpop.f32.mrf.mxu0
  %v9428 = vadd.f32 %v9160, %v9427
  %v9429 = vpop.f32.mrf.mxu0
  %9430 = vmatprep.mubr.bf16.mxu0 0
  %9431 = vmatmul.mubr.bf16.gmra.mxu0 %v9263
  %v9432 = vpop.f32.mrf.mxu0
  %v9433 = vadd.f32 %v9165, %v9432
  %v9434 = vpop.f32.mrf.mxu0
  %v9435 = vpop.f32.mrf.mxu0
  %v9436 = vadd.f32 %v9168, %v9435
  %v9437 = vpop.f32.mrf.mxu0
  %9438 = vmatprep.mubr.bf16.mxu0 0
  %9439 = vmatmul.mubr.bf16.gmra.mxu0 %v9272
  %v9440 = vpop.f32.mrf.mxu0
  %v9441 = vadd.f32 %v9173, %v9440
  %v9442 = vpop.f32.mrf.mxu0
  %v9443 = vpop.f32.mrf.mxu0
  %v9444 = vadd.f32 %v9176, %v9443
  %v9445 = vpop.f32.mrf.mxu0
  %9446 = vmatprep.mubr.bf16.mxu0 0
  %9447 = vmatmul.mubr.bf16.gmra.mxu0 %v9281
  %v9448 = vpop.f32.mrf.mxu0
  %v9449 = vadd.f32 %v9181, %v9448
  %v9450 = vpop.f32.mrf.mxu0
  %v9451 = vpop.f32.mrf.mxu0
  %v9452 = vadd.f32 %v9184, %v9451
  %v9453 = vpop.f32.mrf.mxu0
  %9454 = vmatprep.mubr.bf16.mxu0 0
  %9455 = vmatmul.mubr.bf16.gmra.mxu0 %v9290
  %v9456 = vpop.f32.mrf.mxu0
  %v9457 = vadd.f32 %v9189, %v9456
  %v9458 = vpop.f32.mrf.mxu0
  %v9459 = vpop.f32.mrf.mxu0
  %v9460 = vadd.f32 %v9192, %v9459
  %v9461 = vpop.f32.mrf.mxu0
  %9462 = vmatprep.mubr.bf16.mxu0 0
  %9463 = vmatmul.mubr.bf16.gmra.mxu0 %v9299
  %v9464 = vpop.f32.mrf.mxu0
  %v9465 = vadd.f32 %v9197, %v9464
  %v9466 = vpop.f32.mrf.mxu0
  %v9467 = vpop.f32.mrf.mxu0
  %v9468 = vadd.f32 %v9200, %v9467
  %v9469 = vpop.f32.mrf.mxu0
  %9470 = vmatprep.mubr.bf16.mxu0 0
  %9471 = vmatmul.mubr.bf16.gmra.mxu0 %v9308
  %v9472 = vpop.f32.mrf.mxu0
  %v9473 = vadd.f32 %v9205, %v9472
  %v9474 = vpop.f32.mrf.mxu0
  %v9475 = vpop.f32.mrf.mxu0
  %v9476 = vadd.f32 %v9208, %v9475
  %v9477 = vpop.f32.mrf.mxu0
  %9478 = vmatprep.mubr.bf16.mxu0 0
  %9479 = vmatmul.mubr.bf16.gmra.mxu0 %v9317
  %v9480 = vpop.f32.mrf.mxu0
  %v9481 = vadd.f32 %v9213, %v9480
  %v9482 = vpop.f32.mrf.mxu0
  %v9483 = vpop.f32.mrf.mxu0
  %v9484 = vadd.f32 %v9216, %v9483
  %v9485 = vpop.f32.mrf.mxu0
  %9486 = vmatprep.mubr.bf16.mxu0 0
  %9487 = vmatmul.mubr.bf16.gmra.mxu0 %v9326
  %v9488 = vpop.f32.mrf.mxu0
  %v9489 = vadd.f32 %v9221, %v9488
  %v9490 = vpop.f32.mrf.mxu0
  %v9491 = vpop.f32.mrf.mxu0
  %v9492 = vadd.f32 %v9224, %v9491
  %v9493 = vpop.f32.mrf.mxu0
  %9494 = vmatprep.mubr.bf16.mxu0 0
  %9495 = vmatmul.mubr.bf16.gmra.mxu0 %v9331
  %v9496 = vpop.f32.mrf.mxu0
  %v9497 = vadd.f32 %v9229, %v9496
  %v9498 = vpop.f32.mrf.mxu0
  %v9499 = vpop.f32.mrf.mxu0
  %v9500 = vadd.f32 %v9232, %v9499
  %v9501 = vpop.f32.mrf.mxu0
  %9502 = vdwg.mxu0
  %v9503 = vld [vmem:[#allocation2 + $0xa4] sm:$0x3]
  %v9504 = vld [vmem:[%s6673] sm:$0xf]
  %v9505 = vld [vmem:[%s6673 + $0x4] sm:$0xf]
  %v9506 = vld [vmem:[%s6673 + $0x8] sm:$0xf]
  %v9507 = vld [vmem:[%s6673 + $0xc] sm:$0xf]
  %v9508 = vld [vmem:[%s6673 + $0x10] sm:$0xf]
  %v9509 = vld [vmem:[%s6673 + $0x14] sm:$0xf]
  %v9510 = vld [vmem:[%s6673 + $0x18] sm:$0xf]
  %v9511 = vld [vmem:[%s6673 + $0x1c] sm:$0xf]
  %v9512 = vld [vmem:[%s6673 + $0x20] sm:$0xf]
  %v9513 = vld [vmem:[%s6673 + $0x24] sm:$0xf]
  %v9514 = vld [vmem:[%s6673 + $0x28] sm:$0xf]
  %v9515 = vld [vmem:[%s6673 + $0x2c] sm:$0xf]
  %v9516 = vld [vmem:[%s6673 + $0x30] sm:$0xf]
  %v9517 = vld [vmem:[%s6673 + $0x34] sm:$0xf]
  %v9518 = vld [vmem:[%s6673 + $0x38] sm:$0xf]
  %v9519 = vld [vmem:[%s6673 + $0x3c] sm:$0xf]
  %v9521 = vunpack.c.l.b16 %v9503
  %v9522 = vpack.c.b16 %v9521, %v9521
  %v9524 = vshrl.u32 %v9032, 16
  %v9526 = vrot.slane %v9524, 3
  %v9527 = vshll.u32 %v9032, 16
  %v9529 = vrot.slane %v9527, 4
  %v9530 = vor.u32 %v9526, %v9529
  %v9531 = vrot.slane %v9247, 3
  %v9532 = vrot.slane %v9250, 4
  %v9533 = vor.u32 %v9531, %v9532
  %v9534 = vsel %vm6693, %v9530, %v9533
  %v9535 = vrot.slane %v9256, 3
  %v9536 = vrot.slane %v9259, 4
  %v9537 = vor.u32 %v9535, %v9536
  %v9538 = vsel %vm6693, %v9533, %v9537
  %v9539 = vrot.slane %v9265, 3
  %v9540 = vrot.slane %v9268, 4
  %v9541 = vor.u32 %v9539, %v9540
  %v9542 = vsel %vm6693, %v9537, %v9541
  %v9543 = vrot.slane %v9274, 3
  %v9544 = vrot.slane %v9277, 4
  %v9545 = vor.u32 %v9543, %v9544
  %v9546 = vsel %vm6693, %v9541, %v9545
  %v9547 = vrot.slane %v9283, 3
  %v9548 = vrot.slane %v9286, 4
  %v9549 = vor.u32 %v9547, %v9548
  %v9550 = vsel %vm6693, %v9545, %v9549
  %v9551 = vrot.slane %v9292, 3
  %v9552 = vrot.slane %v9295, 4
  %v9553 = vor.u32 %v9551, %v9552
  %v9554 = vsel %vm6693, %v9549, %v9553
  %v9555 = vrot.slane %v9301, 3
  %v9556 = vrot.slane %v9304, 4
  %v9557 = vor.u32 %v9555, %v9556
  %v9558 = vsel %vm6693, %v9553, %v9557
  %v9559 = vrot.slane %v9310, 3
  %v9560 = vrot.slane %v9313, 4
  %v9561 = vor.u32 %v9559, %v9560
  %v9562 = vsel %vm6693, %v9557, %v9561
  %v9563 = vrot.slane %v9319, 3
  %v9564 = vrot.slane %v9322, 4
  %v9565 = vor.u32 %v9563, %v9564
  %v9566 = vsel %vm6693, %v9561, %v9565
  %v9568 = vshrl.u32 %v9522, 16
  %v9570 = vrot.slane %v9568, 3
  %v9571 = vshll.u32 %v9522, 16
  %v9573 = vrot.slane %v9571, 4
  %v9574 = vor.u32 %v9570, %v9573
  %v9575 = vsel %vm6693, %v9565, %v9574
  %v9602 = vunpack.c.l.b16 %v9504
  %v9603 = vunpack.c.l.b16 %v9505
  %v9604 = vunpack.c.l.b16 %v9506
  %v9605 = vunpack.c.l.b16 %v9507
  %v9606 = vunpack.c.l.b16 %v9508
  %v9607 = vunpack.c.l.b16 %v9509
  %v9608 = vunpack.c.l.b16 %v9510
  %v9609 = vunpack.c.l.b16 %v9511
  %v9610 = vunpack.c.l.b16 %v9512
  %v9611 = vunpack.c.l.b16 %v9513
  %v9612 = vunpack.c.l.b16 %v9514
  %v9613 = vunpack.c.l.b16 %v9515
  %v9614 = vunpack.c.l.b16 %v9516
  %v9615 = vunpack.c.l.b16 %v9517
  %v9616 = vunpack.c.l.b16 %v9518
  %v9617 = vunpack.c.l.b16 %v9519
  %v9618 = vpack.c.b16 %v9603, %v9602
  %v9619 = vpack.c.b16 %v9605, %v9604
  %v9620 = vpack.c.b16 %v9607, %v9606
  %v9621 = vpack.c.b16 %v9609, %v9608
  %v9622 = vpack.c.b16 %v9611, %v9610
  %v9623 = vpack.c.b16 %v9613, %v9612
  %v9624 = vpack.c.b16 %v9615, %v9614
  %v9625 = vpack.c.b16 %v9617, %v9616
  %9634 = vmatprep.subr.bf16.mxu0 0
  %9635 = vmatpush1.bf16.msra.mxu0 %v9625
  %9636 = vmatprep.subr.bf16.mxu0 0
  %9637 = vmatpush1.bf16.msra.mxu0 %v9624
  %9638 = vmatprep.subr.bf16.mxu0 0
  %9639 = vmatpush1.bf16.msra.mxu0 %v9623
  %9640 = vmatprep.subr.bf16.mxu0 0
  %9641 = vmatpush1.bf16.msra.mxu0 %v9622
  %9642 = vmatprep.subr.bf16.mxu0 0
  %9643 = vmatpush1.bf16.msra.mxu0 %v9621
  %9644 = vmatprep.subr.bf16.mxu0 0
  %9645 = vmatpush1.bf16.msra.mxu0 %v9620
  %9646 = vmatprep.subr.bf16.mxu0 0
  %9647 = vmatpush1.bf16.msra.mxu0 %v9619
  %9648 = vmatprep.subr.bf16.mxu0 0
  %9649 = vmatpush1.bf16.msra.mxu0 %v9618
  %9650 = vmatprep.subr.bf16.mxu0 0
  %9651 = vmatpush2.bf16.msra.mxu0 0
  %9652 = vmatprep.subr.bf16.mxu0 0
  %9653 = vmatpush2.bf16.msra.mxu0 0
  %9654 = vmatprep.subr.bf16.mxu0 0
  %9655 = vmatpush2.bf16.msra.mxu0 0
  %9656 = vmatprep.subr.bf16.mxu0 0
  %9657 = vmatpush2.bf16.msra.mxu0 0
  %9658 = vmatprep.subr.bf16.mxu0 0
  %9659 = vmatpush2.bf16.msra.mxu0 0
  %9660 = vmatprep.subr.bf16.mxu0 0
  %9661 = vmatpush2.bf16.msra.mxu0 0
  %9662 = vmatprep.subr.bf16.mxu0 0
  %9663 = vmatpush2.bf16.msra.mxu0 0
  %9664 = vmatprep.subr.bf16.mxu0 0
  %9665 = vmatpush2.bf16.msra.mxu0 0
  %9666 = vmatprep.mubr.bf16.mxu0 0
  %9667 = vmatmul.mubr.bf16.gmra.mxu0 %v9534
  %v9668 = vpop.f32.mrf.mxu0
  %v9669 = vadd.f32 0.0, %v9668
  %v9670 = vpop.f32.mrf.mxu0
  %v9671 = vpop.f32.mrf.mxu0
  %v9672 = vadd.f32 0.0, %v9671
  %v9673 = vpop.f32.mrf.mxu0
  %9674 = vmatprep.mubr.bf16.mxu0 0
  %9675 = vmatmul.mubr.bf16.gmra.mxu0 %v9538
  %v9676 = vpop.f32.mrf.mxu0
  %v9677 = vadd.f32 0.0, %v9676
  %v9678 = vpop.f32.mrf.mxu0
  %v9679 = vpop.f32.mrf.mxu0
  %v9680 = vadd.f32 0.0, %v9679
  %v9681 = vpop.f32.mrf.mxu0
  %9682 = vmatprep.mubr.bf16.mxu0 0
  %9683 = vmatmul.mubr.bf16.gmra.mxu0 %v9542
  %v9684 = vpop.f32.mrf.mxu0
  %v9685 = vadd.f32 0.0, %v9684
  %v9686 = vpop.f32.mrf.mxu0
  %v9687 = vpop.f32.mrf.mxu0
  %v9688 = vadd.f32 0.0, %v9687
  %v9689 = vpop.f32.mrf.mxu0
  %9690 = vmatprep.mubr.bf16.mxu0 0
  %9691 = vmatmul.mubr.bf16.gmra.mxu0 %v9546
  %v9692 = vpop.f32.mrf.mxu0
  %v9693 = vadd.f32 0.0, %v9692
  %v9694 = vpop.f32.mrf.mxu0
  %v9695 = vpop.f32.mrf.mxu0
  %v9696 = vadd.f32 0.0, %v9695
  %v9697 = vpop.f32.mrf.mxu0
  %9698 = vmatprep.mubr.bf16.mxu0 0
  %9699 = vmatmul.mubr.bf16.gmra.mxu0 %v9550
  %v9700 = vpop.f32.mrf.mxu0
  %v9701 = vadd.f32 0.0, %v9700
  %v9702 = vpop.f32.mrf.mxu0
  %v9703 = vpop.f32.mrf.mxu0
  %v9704 = vadd.f32 0.0, %v9703
  %v9705 = vpop.f32.mrf.mxu0
  %9706 = vmatprep.mubr.bf16.mxu0 0
  %9707 = vmatmul.mubr.bf16.gmra.mxu0 %v9554
  %v9708 = vpop.f32.mrf.mxu0
  %v9709 = vadd.f32 0.0, %v9708
  %v9710 = vpop.f32.mrf.mxu0
  %v9711 = vpop.f32.mrf.mxu0
  %v9712 = vadd.f32 0.0, %v9711
  %v9713 = vpop.f32.mrf.mxu0
  %9714 = vmatprep.mubr.bf16.mxu0 0
  %9715 = vmatmul.mubr.bf16.gmra.mxu0 %v9558
  %v9716 = vpop.f32.mrf.mxu0
  %v9717 = vadd.f32 0.0, %v9716
  %v9718 = vpop.f32.mrf.mxu0
  %v9719 = vpop.f32.mrf.mxu0
  %v9720 = vadd.f32 0.0, %v9719
  %v9721 = vpop.f32.mrf.mxu0
  %9722 = vmatprep.mubr.bf16.mxu0 0
  %9723 = vmatmul.mubr.bf16.gmra.mxu0 %v9562
  %v9724 = vpop.f32.mrf.mxu0
  %v9725 = vadd.f32 0.0, %v9724
  %v9726 = vpop.f32.mrf.mxu0
  %v9727 = vpop.f32.mrf.mxu0
  %v9728 = vadd.f32 0.0, %v9727
  %v9729 = vpop.f32.mrf.mxu0
  %9730 = vmatprep.mubr.bf16.mxu0 0
  %9731 = vmatmul.mubr.bf16.gmra.mxu0 %v9566
  %v9732 = vpop.f32.mrf.mxu0
  %v9733 = vadd.f32 0.0, %v9732
  %v9734 = vpop.f32.mrf.mxu0
  %v9735 = vpop.f32.mrf.mxu0
  %v9736 = vadd.f32 0.0, %v9735
  %v9737 = vpop.f32.mrf.mxu0
  %9738 = vmatprep.mubr.bf16.mxu0 0
  %9739 = vmatmul.mubr.bf16.gmra.mxu0 %v9575
  %v9740 = vpop.f32.mrf.mxu0
  %v9741 = vadd.f32 0.0, %v9740
  %v9742 = vpop.f32.mrf.mxu0
  %v9743 = vpop.f32.mrf.mxu0
  %v9744 = vadd.f32 0.0, %v9743
  %v9745 = vpop.f32.mrf.mxu0
  %9746 = vdwg.mxu0
  %v9747 = vadd.f32 %v9425, %v9669
  %v9748 = vadd.f32 %v9428, %v9672
  %v9749 = vadd.f32 %v9433, %v9677
  %v9750 = vadd.f32 %v9436, %v9680
  %v9751 = vadd.f32 %v9441, %v9685
  %v9752 = vadd.f32 %v9444, %v9688
  %v9753 = vadd.f32 %v9449, %v9693
  %v9754 = vadd.f32 %v9452, %v9696
  %v9755 = vadd.f32 %v9457, %v9701
  %v9756 = vadd.f32 %v9460, %v9704
  %v9757 = vadd.f32 %v9465, %v9709
  %v9758 = vadd.f32 %v9468, %v9712
  %v9759 = vadd.f32 %v9473, %v9717
  %v9760 = vadd.f32 %v9476, %v9720
  %v9761 = vadd.f32 %v9481, %v9725
  %v9762 = vadd.f32 %v9484, %v9728
  %v9763 = vadd.f32 %v9489, %v9733
  %v9764 = vadd.f32 %v9492, %v9736
  %v9765 = vadd.f32 %v9497, %v9741
  %v9766 = vadd.f32 %v9500, %v9744
  %v9767 = vld [vmem:[#allocation2 + $0x5c] sm:$0x8]
  %v9768 = vld [vmem:[#allocation2 + $0x60] sm:$0xf]
  %v9769 = vld [vmem:[#allocation2 + $0x64] sm:$0xf]
  %v9770 = vld [vmem:[#allocation2 + $0x68] sm:$0xf]
  %v9771 = vld [vmem:[#allocation2 + $0x6c] sm:$0xf]
  %v9772 = vld [vmem:[#allocation2 + $0x70] sm:$0xf]
  %v9773 = vld [vmem:[#allocation2 + $0x74] sm:$0xf]
  %v9774 = vld [vmem:[#allocation2 + $0x78] sm:$0xf]
  %v9775 = vld [vmem:[#allocation2 + $0x7c] sm:$0xf]
  %v9776 = vld [vmem:[#allocation2 + $0x80] sm:$0xf]
  %v9777 = vld [vmem:[#allocation2 + $0x84] sm:$0xf]
  %v9778 = vld [vmem:[#allocation2 + $0x88] sm:$0xf]
  %v9779 = vld [vmem:[#allocation2 + $0x8c] sm:$0xf]
  %v9780 = vld [vmem:[#allocation2 + $0x90] sm:$0xf]
  %v9781 = vld [vmem:[#allocation2 + $0x94] sm:$0xf]
  %v9782 = vld [vmem:[#allocation2 + $0x98] sm:$0xf]
  %v9783 = vld [vmem:[#allocation2 + $0x9c] sm:$0xf]
  %v9784 = vld [vmem:[#allocation2 + $0xa0] sm:$0xf]
  %v9785 = vld [vmem:[#allocation2 + $0xa4] sm:$0xf]
  %v9786 = vld [vmem:[#allocation2 + $0xa8] sm:$0xf]
  %v9787 = vld [vmem:[#allocation2 + $0xac] sm:$0x3]
  %v9788 = vld [vmem:[%s6969] sm:$0xf]
  %v9789 = vld [vmem:[%s6969 + $0x4] sm:$0xf]
  %v9790 = vld [vmem:[%s6969 + $0x8] sm:$0xf]
  %v9791 = vld [vmem:[%s6969 + $0xc] sm:$0xf]
  %v9792 = vld [vmem:[%s6969 + $0x10] sm:$0xf]
  %v9793 = vld [vmem:[%s6969 + $0x14] sm:$0xf]
  %v9794 = vld [vmem:[%s6969 + $0x18] sm:$0xf]
  %v9795 = vld [vmem:[%s6969 + $0x1c] sm:$0xf]
  %v9796 = vld [vmem:[%s6969 + $0x20] sm:$0xf]
  %v9797 = vld [vmem:[%s6969 + $0x24] sm:$0xf]
  %v9798 = vld [vmem:[%s6969 + $0x28] sm:$0xf]
  %v9799 = vld [vmem:[%s6969 + $0x2c] sm:$0xf]
  %v9800 = vld [vmem:[%s6969 + $0x30] sm:$0xf]
  %v9801 = vld [vmem:[%s6969 + $0x34] sm:$0xf]
  %v9802 = vld [vmem:[%s6969 + $0x38] sm:$0xf]
  %v9803 = vld [vmem:[%s6969 + $0x3c] sm:$0xf]
  %v9825 = vunpack.c.l.b16 %v9767
  %v9826 = vunpack.c.l.b16 %v9768
  %v9827 = vunpack.c.l.b16 %v9769
  %v9828 = vunpack.c.l.b16 %v9770
  %v9829 = vunpack.c.l.b16 %v9771
  %v9830 = vunpack.c.l.b16 %v9772
  %v9831 = vunpack.c.l.b16 %v9773
  %v9832 = vunpack.c.l.b16 %v9774
  %v9833 = vunpack.c.l.b16 %v9775
  %v9834 = vunpack.c.l.b16 %v9776
  %v9835 = vunpack.c.l.b16 %v9777
  %v9836 = vunpack.c.l.b16 %v9778
  %v9837 = vunpack.c.l.b16 %v9779
  %v9838 = vunpack.c.l.b16 %v9780
  %v9839 = vunpack.c.l.b16 %v9781
  %v9840 = vunpack.c.l.b16 %v9782
  %v9841 = vunpack.c.l.b16 %v9783
  %v9842 = vunpack.c.l.b16 %v9784
  %v9843 = vunpack.c.l.b16 %v9785
  %v9844 = vunpack.c.l.b16 %v9786
  %v9845 = vunpack.c.l.b16 %v9787
  %v9846 = vpack.c.b16 %v9826, %v9825
  %v9847 = vpack.c.b16 %v9828, %v9827
  %v9848 = vpack.c.b16 %v9830, %v9829
  %v9849 = vpack.c.b16 %v9832, %v9831
  %v9850 = vpack.c.b16 %v9834, %v9833
  %v9851 = vpack.c.b16 %v9836, %v9835
  %v9852 = vpack.c.b16 %v9838, %v9837
  %v9853 = vpack.c.b16 %v9840, %v9839
  %v9854 = vpack.c.b16 %v9842, %v9841
  %v9855 = vpack.c.b16 %v9844, %v9843
  %v9856 = vpack.c.b16 %v9845, %v9845
  %v9858 = vshrl.u32 %v9846, 16
  %v9860 = vrot.slane %v9858, 3
  %v9861 = vshll.u32 %v9846, 16
  %v9863 = vrot.slane %v9861, 4
  %v9864 = vor.u32 %v9860, %v9863
  %v9866 = vshrl.u32 %v9847, 16
  %v9868 = vrot.slane %v9866, 3
  %v9869 = vshll.u32 %v9847, 16
  %v9871 = vrot.slane %v9869, 4
  %v9872 = vor.u32 %v9868, %v9871
  %v9873 = vsel %vm6693, %v9864, %v9872
  %v9875 = vshrl.u32 %v9848, 16
  %v9877 = vrot.slane %v9875, 3
  %v9878 = vshll.u32 %v9848, 16
  %v9880 = vrot.slane %v9878, 4
  %v9881 = vor.u32 %v9877, %v9880
  %v9882 = vsel %vm6693, %v9872, %v9881
  %v9884 = vshrl.u32 %v9849, 16
  %v9886 = vrot.slane %v9884, 3
  %v9887 = vshll.u32 %v9849, 16
  %v9889 = vrot.slane %v9887, 4
  %v9890 = vor.u32 %v9886, %v9889
  %v9891 = vsel %vm6693, %v9881, %v9890
  %v9893 = vshrl.u32 %v9850, 16
  %v9895 = vrot.slane %v9893, 3
  %v9896 = vshll.u32 %v9850, 16
  %v9898 = vrot.slane %v9896, 4
  %v9899 = vor.u32 %v9895, %v9898
  %v9900 = vsel %vm6693, %v9890, %v9899
  %v9902 = vshrl.u32 %v9851, 16
  %v9904 = vrot.slane %v9902, 3
  %v9905 = vshll.u32 %v9851, 16
  %v9907 = vrot.slane %v9905, 4
  %v9908 = vor.u32 %v9904, %v9907
  %v9909 = vsel %vm6693, %v9899, %v9908
  %v9911 = vshrl.u32 %v9852, 16
  %v9913 = vrot.slane %v9911, 3
  %v9914 = vshll.u32 %v9852, 16
  %v9916 = vrot.slane %v9914, 4
  %v9917 = vor.u32 %v9913, %v9916
  %v9918 = vsel %vm6693, %v9908, %v9917
  %v9920 = vshrl.u32 %v9853, 16
  %v9922 = vrot.slane %v9920, 3
  %v9923 = vshll.u32 %v9853, 16
  %v9925 = vrot.slane %v9923, 4
  %v9926 = vor.u32 %v9922, %v9925
  %v9927 = vsel %vm6693, %v9917, %v9926
  %v9929 = vshrl.u32 %v9854, 16
  %v9931 = vrot.slane %v9929, 3
  %v9932 = vshll.u32 %v9854, 16
  %v9934 = vrot.slane %v9932, 4
  %v9935 = vor.u32 %v9931, %v9934
  %v9936 = vsel %vm6693, %v9926, %v9935
  %v9938 = vshrl.u32 %v9855, 16
  %v9940 = vrot.slane %v9938, 3
  %v9941 = vshll.u32 %v9855, 16
  %v9943 = vrot.slane %v9941, 4
  %v9944 = vor.u32 %v9940, %v9943
  %v9945 = vsel %vm6693, %v9935, %v9944
  %v9947 = vshrl.u32 %v9856, 16
  %v9949 = vrot.slane %v9947, 3
  %v9950 = vshll.u32 %v9856, 16
  %v9952 = vrot.slane %v9950, 4
  %v9953 = vor.u32 %v9949, %v9952
  %v9954 = vsel %vm6693, %v9944, %v9953
  %v9981 = vunpack.c.l.b16 %v9788
  %v9982 = vunpack.c.l.b16 %v9789
  %v9983 = vunpack.c.l.b16 %v9790
  %v9984 = vunpack.c.l.b16 %v9791
  %v9985 = vunpack.c.l.b16 %v9792
  %v9986 = vunpack.c.l.b16 %v9793
  %v9987 = vunpack.c.l.b16 %v9794
  %v9988 = vunpack.c.l.b16 %v9795
  %v9989 = vunpack.c.l.b16 %v9796
  %v9990 = vunpack.c.l.b16 %v9797
  %v9991 = vunpack.c.l.b16 %v9798
  %v9992 = vunpack.c.l.b16 %v9799
  %v9993 = vunpack.c.l.b16 %v9800
  %v9994 = vunpack.c.l.b16 %v9801
  %v9995 = vunpack.c.l.b16 %v9802
  %v9996 = vunpack.c.l.b16 %v9803
  %v9997 = vpack.c.b16 %v9982, %v9981
  %v9998 = vpack.c.b16 %v9984, %v9983
  %v9999 = vpack.c.b16 %v9986, %v9985
  %v10000 = vpack.c.b16 %v9988, %v9987
  %v10001 = vpack.c.b16 %v9990, %v9989
  %v10002 = vpack.c.b16 %v9992, %v9991
  %v10003 = vpack.c.b16 %v9994, %v9993
  %v10004 = vpack.c.b16 %v9996, %v9995
  %10013 = vmatprep.subr.bf16.mxu0 0
  %10014 = vmatpush1.bf16.msra.mxu0 %v10004
  %10015 = vmatprep.subr.bf16.mxu0 0
  %10016 = vmatpush1.bf16.msra.mxu0 %v10003
  %10017 = vmatprep.subr.bf16.mxu0 0
  %10018 = vmatpush1.bf16.msra.mxu0 %v10002
  %10019 = vmatprep.subr.bf16.mxu0 0
  %10020 = vmatpush1.bf16.msra.mxu0 %v10001
  %10021 = vmatprep.subr.bf16.mxu0 0
  %10022 = vmatpush1.bf16.msra.mxu0 %v10000
  %10023 = vmatprep.subr.bf16.mxu0 0
  %10024 = vmatpush1.bf16.msra.mxu0 %v9999
  %10025 = vmatprep.subr.bf16.mxu0 0
  %10026 = vmatpush1.bf16.msra.mxu0 %v9998
  %10027 = vmatprep.subr.bf16.mxu0 0
  %10028 = vmatpush1.bf16.msra.mxu0 %v9997
  %10029 = vmatprep.subr.bf16.mxu0 0
  %10030 = vmatpush2.bf16.msra.mxu0 0
  %10031 = vmatprep.subr.bf16.mxu0 0
  %10032 = vmatpush2.bf16.msra.mxu0 0
  %10033 = vmatprep.subr.bf16.mxu0 0
  %10034 = vmatpush2.bf16.msra.mxu0 0
  %10035 = vmatprep.subr.bf16.mxu0 0
  %10036 = vmatpush2.bf16.msra.mxu0 0
  %10037 = vmatprep.subr.bf16.mxu0 0
  %10038 = vmatpush2.bf16.msra.mxu0 0
  %10039 = vmatprep.subr.bf16.mxu0 0
  %10040 = vmatpush2.bf16.msra.mxu0 0
  %10041 = vmatprep.subr.bf16.mxu0 0
  %10042 = vmatpush2.bf16.msra.mxu0 0
  %10043 = vmatprep.subr.bf16.mxu0 0
  %10044 = vmatpush2.bf16.msra.mxu0 0
  %10045 = vmatprep.mubr.bf16.mxu0 0
  %10046 = vmatmul.mubr.bf16.gmra.mxu0 %v9873
  %v10047 = vpop.f32.mrf.mxu0
  %v10048 = vadd.f32 0.0, %v10047
  %v10049 = vpop.f32.mrf.mxu0
  %v10050 = vpop.f32.mrf.mxu0
  %v10051 = vadd.f32 0.0, %v10050
  %v10052 = vpop.f32.mrf.mxu0
  %10053 = vmatprep.mubr.bf16.mxu0 0
  %10054 = vmatmul.mubr.bf16.gmra.mxu0 %v9882
  %v10055 = vpop.f32.mrf.mxu0
  %v10056 = vadd.f32 0.0, %v10055
  %v10057 = vpop.f32.mrf.mxu0
  %v10058 = vpop.f32.mrf.mxu0
  %v10059 = vadd.f32 0.0, %v10058
  %v10060 = vpop.f32.mrf.mxu0
  %10061 = vmatprep.mubr.bf16.mxu0 0
  %10062 = vmatmul.mubr.bf16.gmra.mxu0 %v9891
  %v10063 = vpop.f32.mrf.mxu0
  %v10064 = vadd.f32 0.0, %v10063
  %v10065 = vpop.f32.mrf.mxu0
  %v10066 = vpop.f32.mrf.mxu0
  %v10067 = vadd.f32 0.0, %v10066
  %v10068 = vpop.f32.mrf.mxu0
  %10069 = vmatprep.mubr.bf16.mxu0 0
  %10070 = vmatmul.mubr.bf16.gmra.mxu0 %v9900
  %v10071 = vpop.f32.mrf.mxu0
  %v10072 = vadd.f32 0.0, %v10071
  %v10073 = vpop.f32.mrf.mxu0
  %v10074 = vpop.f32.mrf.mxu0
  %v10075 = vadd.f32 0.0, %v10074
  %v10076 = vpop.f32.mrf.mxu0
  %10077 = vmatprep.mubr.bf16.mxu0 0
  %10078 = vmatmul.mubr.bf16.gmra.mxu0 %v9909
  %v10079 = vpop.f32.mrf.mxu0
  %v10080 = vadd.f32 0.0, %v10079
  %v10081 = vpop.f32.mrf.mxu0
  %v10082 = vpop.f32.mrf.mxu0
  %v10083 = vadd.f32 0.0, %v10082
  %v10084 = vpop.f32.mrf.mxu0
  %10085 = vmatprep.mubr.bf16.mxu0 0
  %10086 = vmatmul.mubr.bf16.gmra.mxu0 %v9918
  %v10087 = vpop.f32.mrf.mxu0
  %v10088 = vadd.f32 0.0, %v10087
  %v10089 = vpop.f32.mrf.mxu0
  %v10090 = vpop.f32.mrf.mxu0
  %v10091 = vadd.f32 0.0, %v10090
  %v10092 = vpop.f32.mrf.mxu0
  %10093 = vmatprep.mubr.bf16.mxu0 0
  %10094 = vmatmul.mubr.bf16.gmra.mxu0 %v9927
  %v10095 = vpop.f32.mrf.mxu0
  %v10096 = vadd.f32 0.0, %v10095
  %v10097 = vpop.f32.mrf.mxu0
  %v10098 = vpop.f32.mrf.mxu0
  %v10099 = vadd.f32 0.0, %v10098
  %v10100 = vpop.f32.mrf.mxu0
  %10101 = vmatprep.mubr.bf16.mxu0 0
  %10102 = vmatmul.mubr.bf16.gmra.mxu0 %v9936
  %v10103 = vpop.f32.mrf.mxu0
  %v10104 = vadd.f32 0.0, %v10103
  %v10105 = vpop.f32.mrf.mxu0
  %v10106 = vpop.f32.mrf.mxu0
  %v10107 = vadd.f32 0.0, %v10106
  %v10108 = vpop.f32.mrf.mxu0
  %10109 = vmatprep.mubr.bf16.mxu0 0
  %10110 = vmatmul.mubr.bf16.gmra.mxu0 %v9945
  %v10111 = vpop.f32.mrf.mxu0
  %v10112 = vadd.f32 0.0, %v10111
  %v10113 = vpop.f32.mrf.mxu0
  %v10114 = vpop.f32.mrf.mxu0
  %v10115 = vadd.f32 0.0, %v10114
  %v10116 = vpop.f32.mrf.mxu0
  %10117 = vmatprep.mubr.bf16.mxu0 0
  %10118 = vmatmul.mubr.bf16.gmra.mxu0 %v9954
  %v10119 = vpop.f32.mrf.mxu0
  %v10120 = vadd.f32 0.0, %v10119
  %v10121 = vpop.f32.mrf.mxu0
  %v10122 = vpop.f32.mrf.mxu0
  %v10123 = vadd.f32 0.0, %v10122
  %v10124 = vpop.f32.mrf.mxu0
  %10125 = vdwg.mxu0
  %v10126 = vadd.f32 %v9747, %v10048
  %v10127 = vadd.f32 %v9748, %v10051
  %v10128 = vadd.f32 %v9749, %v10056
  %v10129 = vadd.f32 %v9750, %v10059
  %v10130 = vadd.f32 %v9751, %v10064
  %v10131 = vadd.f32 %v9752, %v10067
  %v10132 = vadd.f32 %v9753, %v10072
  %v10133 = vadd.f32 %v9754, %v10075
  %v10134 = vadd.f32 %v9755, %v10080
  %v10135 = vadd.f32 %v9756, %v10083
  %v10136 = vadd.f32 %v9757, %v10088
  %v10137 = vadd.f32 %v9758, %v10091
  %v10138 = vadd.f32 %v9759, %v10096
  %v10139 = vadd.f32 %v9760, %v10099
  %v10140 = vadd.f32 %v9761, %v10104
  %v10141 = vadd.f32 %v9762, %v10107
  %v10142 = vadd.f32 %v9763, %v10112
  %v10143 = vadd.f32 %v9764, %v10115
  %v10144 = vadd.f32 %v9765, %v10120
  %v10145 = vadd.f32 %v9766, %v10123
  %v10146 = vld [vmem:[%s7339] sm:$0xf]
  %v10147 = vld [vmem:[%s7339 + $0x4] sm:$0xf]
  %v10148 = vld [vmem:[%s7339 + $0x8] sm:$0xf]
  %v10149 = vld [vmem:[%s7339 + $0xc] sm:$0xf]
  %v10150 = vld [vmem:[%s7339 + $0x10] sm:$0xf]
  %v10151 = vld [vmem:[%s7339 + $0x14] sm:$0xf]
  %v10152 = vld [vmem:[%s7339 + $0x18] sm:$0xf]
  %v10153 = vld [vmem:[%s7339 + $0x1c] sm:$0xf]
  %v10154 = vld [vmem:[%s7339 + $0x20] sm:$0xf]
  %v10155 = vld [vmem:[%s7339 + $0x24] sm:$0xf]
  %v10156 = vld [vmem:[%s7339 + $0x28] sm:$0xf]
  %v10157 = vld [vmem:[%s7339 + $0x2c] sm:$0xf]
  %v10158 = vld [vmem:[%s7339 + $0x30] sm:$0xf]
  %v10159 = vld [vmem:[%s7339 + $0x34] sm:$0xf]
  %v10160 = vld [vmem:[%s7339 + $0x38] sm:$0xf]
  %v10161 = vld [vmem:[%s7339 + $0x3c] sm:$0xf]
  %v10162 = vpack.c.b16 %v9827, %v9826
  %v10163 = vpack.c.b16 %v9829, %v9828
  %v10164 = vpack.c.b16 %v9831, %v9830
  %v10165 = vpack.c.b16 %v9833, %v9832
  %v10166 = vpack.c.b16 %v9835, %v9834
  %v10167 = vpack.c.b16 %v9837, %v9836
  %v10168 = vpack.c.b16 %v9839, %v9838
  %v10169 = vpack.c.b16 %v9841, %v9840
  %v10170 = vpack.c.b16 %v9843, %v9842
  %v10171 = vpack.c.b16 %v9845, %v9844
  %v10198 = vunpack.c.l.b16 %v10146
  %v10199 = vunpack.c.l.b16 %v10147
  %v10200 = vunpack.c.l.b16 %v10148
  %v10201 = vunpack.c.l.b16 %v10149
  %v10202 = vunpack.c.l.b16 %v10150
  %v10203 = vunpack.c.l.b16 %v10151
  %v10204 = vunpack.c.l.b16 %v10152
  %v10205 = vunpack.c.l.b16 %v10153
  %v10206 = vunpack.c.l.b16 %v10154
  %v10207 = vunpack.c.l.b16 %v10155
  %v10208 = vunpack.c.l.b16 %v10156
  %v10209 = vunpack.c.l.b16 %v10157
  %v10210 = vunpack.c.l.b16 %v10158
  %v10211 = vunpack.c.l.b16 %v10159
  %v10212 = vunpack.c.l.b16 %v10160
  %v10213 = vunpack.c.l.b16 %v10161
  %v10214 = vpack.c.b16 %v10199, %v10198
  %v10215 = vpack.c.b16 %v10201, %v10200
  %v10216 = vpack.c.b16 %v10203, %v10202
  %v10217 = vpack.c.b16 %v10205, %v10204
  %v10218 = vpack.c.b16 %v10207, %v10206
  %v10219 = vpack.c.b16 %v10209, %v10208
  %v10220 = vpack.c.b16 %v10211, %v10210
  %v10221 = vpack.c.b16 %v10213, %v10212
  %10230 = vmatprep.subr.bf16.mxu0 0
  %10231 = vmatpush1.bf16.msra.mxu0 %v10221
  %10232 = vmatprep.subr.bf16.mxu0 0
  %10233 = vmatpush1.bf16.msra.mxu0 %v10220
  %10234 = vmatprep.subr.bf16.mxu0 0
  %10235 = vmatpush1.bf16.msra.mxu0 %v10219
  %10236 = vmatprep.subr.bf16.mxu0 0
  %10237 = vmatpush1.bf16.msra.mxu0 %v10218
  %10238 = vmatprep.subr.bf16.mxu0 0
  %10239 = vmatpush1.bf16.msra.mxu0 %v10217
  %10240 = vmatprep.subr.bf16.mxu0 0
  %10241 = vmatpush1.bf16.msra.mxu0 %v10216
  %10242 = vmatprep.subr.bf16.mxu0 0
  %10243 = vmatpush1.bf16.msra.mxu0 %v10215
  %10244 = vmatprep.subr.bf16.mxu0 0
  %10245 = vmatpush1.bf16.msra.mxu0 %v10214
  %10246 = vmatprep.subr.bf16.mxu0 0
  %10247 = vmatpush2.bf16.msra.mxu0 0
  %10248 = vmatprep.subr.bf16.mxu0 0
  %10249 = vmatpush2.bf16.msra.mxu0 0
  %10250 = vmatprep.subr.bf16.mxu0 0
  %10251 = vmatpush2.bf16.msra.mxu0 0
  %10252 = vmatprep.subr.bf16.mxu0 0
  %10253 = vmatpush2.bf16.msra.mxu0 0
  %10254 = vmatprep.subr.bf16.mxu0 0
  %10255 = vmatpush2.bf16.msra.mxu0 0
  %10256 = vmatprep.subr.bf16.mxu0 0
  %10257 = vmatpush2.bf16.msra.mxu0 0
  %10258 = vmatprep.subr.bf16.mxu0 0
  %10259 = vmatpush2.bf16.msra.mxu0 0
  %10260 = vmatprep.subr.bf16.mxu0 0
  %10261 = vmatpush2.bf16.msra.mxu0 0
  %10262 = vmatprep.mubr.bf16.mxu0 0
  %10263 = vmatmul.mubr.bf16.gmra.mxu0 %v10162
  %v10264 = vpop.f32.mrf.mxu0
  %v10265 = vadd.f32 0.0, %v10264
  %v10266 = vpop.f32.mrf.mxu0
  %v10267 = vpop.f32.mrf.mxu0
  %v10268 = vadd.f32 0.0, %v10267
  %v10269 = vpop.f32.mrf.mxu0
  %10270 = vmatprep.mubr.bf16.mxu0 0
  %10271 = vmatmul.mubr.bf16.gmra.mxu0 %v10163
  %v10272 = vpop.f32.mrf.mxu0
  %v10273 = vadd.f32 0.0, %v10272
  %v10274 = vpop.f32.mrf.mxu0
  %v10275 = vpop.f32.mrf.mxu0
  %v10276 = vadd.f32 0.0, %v10275
  %v10277 = vpop.f32.mrf.mxu0
  %10278 = vmatprep.mubr.bf16.mxu0 0
  %10279 = vmatmul.mubr.bf16.gmra.mxu0 %v10164
  %v10280 = vpop.f32.mrf.mxu0
  %v10281 = vadd.f32 0.0, %v10280
  %v10282 = vpop.f32.mrf.mxu0
  %v10283 = vpop.f32.mrf.mxu0
  %v10284 = vadd.f32 0.0, %v10283
  %v10285 = vpop.f32.mrf.mxu0
  %10286 = vmatprep.mubr.bf16.mxu0 0
  %10287 = vmatmul.mubr.bf16.gmra.mxu0 %v10165
  %v10288 = vpop.f32.mrf.mxu0
  %v10289 = vadd.f32 0.0, %v10288
  %v10290 = vpop.f32.mrf.mxu0
  %v10291 = vpop.f32.mrf.mxu0
  %v10292 = vadd.f32 0.0, %v10291
  %v10293 = vpop.f32.mrf.mxu0
  %10294 = vmatprep.mubr.bf16.mxu0 0
  %10295 = vmatmul.mubr.bf16.gmra.mxu0 %v10166
  %v10296 = vpop.f32.mrf.mxu0
  %v10297 = vadd.f32 0.0, %v10296
  %v10298 = vpop.f32.mrf.mxu0
  %v10299 = vpop.f32.mrf.mxu0
  %v10300 = vadd.f32 0.0, %v10299
  %v10301 = vpop.f32.mrf.mxu0
  %10302 = vmatprep.mubr.bf16.mxu0 0
  %10303 = vmatmul.mubr.bf16.gmra.mxu0 %v10167
  %v10304 = vpop.f32.mrf.mxu0
  %v10305 = vadd.f32 0.0, %v10304
  %v10306 = vpop.f32.mrf.mxu0
  %v10307 = vpop.f32.mrf.mxu0
  %v10308 = vadd.f32 0.0, %v10307
  %v10309 = vpop.f32.mrf.mxu0
  %10310 = vmatprep.mubr.bf16.mxu0 0
  %10311 = vmatmul.mubr.bf16.gmra.mxu0 %v10168
  %v10312 = vpop.f32.mrf.mxu0
  %v10313 = vadd.f32 0.0, %v10312
  %v10314 = vpop.f32.mrf.mxu0
  %v10315 = vpop.f32.mrf.mxu0
  %v10316 = vadd.f32 0.0, %v10315
  %v10317 = vpop.f32.mrf.mxu0
  %10318 = vmatprep.mubr.bf16.mxu0 0
  %10319 = vmatmul.mubr.bf16.gmra.mxu0 %v10169
  %v10320 = vpop.f32.mrf.mxu0
  %v10321 = vadd.f32 0.0, %v10320
  %v10322 = vpop.f32.mrf.mxu0
  %v10323 = vpop.f32.mrf.mxu0
  %v10324 = vadd.f32 0.0, %v10323
  %v10325 = vpop.f32.mrf.mxu0
  %10326 = vmatprep.mubr.bf16.mxu0 0
  %10327 = vmatmul.mubr.bf16.gmra.mxu0 %v10170
  %v10328 = vpop.f32.mrf.mxu0
  %v10329 = vadd.f32 0.0, %v10328
  %v10330 = vpop.f32.mrf.mxu0
  %v10331 = vpop.f32.mrf.mxu0
  %v10332 = vadd.f32 0.0, %v10331
  %v10333 = vpop.f32.mrf.mxu0
  %10334 = vmatprep.mubr.bf16.mxu0 0
  %10335 = vmatmul.mubr.bf16.gmra.mxu0 %v10171
  %v10336 = vpop.f32.mrf.mxu0
  %v10337 = vadd.f32 0.0, %v10336
  %v10338 = vpop.f32.mrf.mxu0
  %v10339 = vpop.f32.mrf.mxu0
  %v10340 = vadd.f32 0.0, %v10339
  %v10341 = vpop.f32.mrf.mxu0
  %10342 = vdwg.mxu0
  %v10343 = vadd.f32 %v10126, %v10265
  %v10344 = vadd.f32 %v10127, %v10268
  %v10345 = vadd.f32 %v10128, %v10273
  %v10346 = vadd.f32 %v10129, %v10276
  %v10347 = vadd.f32 %v10130, %v10281
  %v10348 = vadd.f32 %v10131, %v10284
  %v10349 = vadd.f32 %v10132, %v10289
  %v10350 = vadd.f32 %v10133, %v10292
  %v10351 = vadd.f32 %v10134, %v10297
  %v10352 = vadd.f32 %v10135, %v10300
  %v10353 = vadd.f32 %v10136, %v10305
  %v10354 = vadd.f32 %v10137, %v10308
  %v10355 = vadd.f32 %v10138, %v10313
  %v10356 = vadd.f32 %v10139, %v10316
  %v10357 = vadd.f32 %v10140, %v10321
  %v10358 = vadd.f32 %v10141, %v10324
  %v10359 = vadd.f32 %v10142, %v10329
  %v10360 = vadd.f32 %v10143, %v10332
  %v10361 = vadd.f32 %v10144, %v10337
  %v10362 = vadd.f32 %v10145, %v10340
  %v10363 = vld [vmem:[#allocation2 + $0xac] sm:$0x7]
  %v10364 = vld [vmem:[%s7589] sm:$0xf]
  %v10365 = vld [vmem:[%s7589 + $0x4] sm:$0xf]
  %v10366 = vld [vmem:[%s7589 + $0x8] sm:$0xf]
  %v10367 = vld [vmem:[%s7589 + $0xc] sm:$0xf]
  %v10368 = vld [vmem:[%s7589 + $0x10] sm:$0xf]
  %v10369 = vld [vmem:[%s7589 + $0x14] sm:$0xf]
  %v10370 = vld [vmem:[%s7589 + $0x18] sm:$0xf]
  %v10371 = vld [vmem:[%s7589 + $0x1c] sm:$0xf]
  %v10372 = vld [vmem:[%s7589 + $0x20] sm:$0xf]
  %v10373 = vld [vmem:[%s7589 + $0x24] sm:$0xf]
  %v10374 = vld [vmem:[%s7589 + $0x28] sm:$0xf]
  %v10375 = vld [vmem:[%s7589 + $0x2c] sm:$0xf]
  %v10376 = vld [vmem:[%s7589 + $0x30] sm:$0xf]
  %v10377 = vld [vmem:[%s7589 + $0x34] sm:$0xf]
  %v10378 = vld [vmem:[%s7589 + $0x38] sm:$0xf]
  %v10379 = vld [vmem:[%s7589 + $0x3c] sm:$0xf]
  %v10381 = vunpack.c.l.b16 %v10363
  %v10382 = vpack.c.b16 %v10381, %v9844
  %v10384 = vshrl.u32 %v10162, 16
  %v10386 = vshll.u32 %v10162, 16
  %v10388 = vrot.slane %v10386, 1
  %v10389 = vor.u32 %v10384, %v10388
  %v10391 = vshll.u32 %v10163, 16
  %v10393 = vrot.slane %v10391, 1
  %v10394 = vsel %vm7661, %v10389, %v10393
  %v10395 = vshrl.u32 %v10163, 16
  %v10397 = vor.u32 %v10395, %v10393
  %v10399 = vshll.u32 %v10164, 16
  %v10401 = vrot.slane %v10399, 1
  %v10402 = vsel %vm7661, %v10397, %v10401
  %v10403 = vshrl.u32 %v10164, 16
  %v10405 = vor.u32 %v10403, %v10401
  %v10407 = vshll.u32 %v10165, 16
  %v10409 = vrot.slane %v10407, 1
  %v10410 = vsel %vm7661, %v10405, %v10409
  %v10411 = vshrl.u32 %v10165, 16
  %v10413 = vor.u32 %v10411, %v10409
  %v10415 = vshll.u32 %v10166, 16
  %v10417 = vrot.slane %v10415, 1
  %v10418 = vsel %vm7661, %v10413, %v10417
  %v10419 = vshrl.u32 %v10166, 16
  %v10421 = vor.u32 %v10419, %v10417
  %v10423 = vshll.u32 %v10167, 16
  %v10425 = vrot.slane %v10423, 1
  %v10426 = vsel %vm7661, %v10421, %v10425
  %v10427 = vshrl.u32 %v10167, 16
  %v10429 = vor.u32 %v10427, %v10425
  %v10431 = vshll.u32 %v10168, 16
  %v10433 = vrot.slane %v10431, 1
  %v10434 = vsel %vm7661, %v10429, %v10433
  %v10435 = vshrl.u32 %v10168, 16
  %v10437 = vor.u32 %v10435, %v10433
  %v10439 = vshll.u32 %v10169, 16
  %v10441 = vrot.slane %v10439, 1
  %v10442 = vsel %vm7661, %v10437, %v10441
  %v10443 = vshrl.u32 %v10169, 16
  %v10445 = vor.u32 %v10443, %v10441
  %v10447 = vshll.u32 %v10170, 16
  %v10449 = vrot.slane %v10447, 1
  %v10450 = vsel %vm7661, %v10445, %v10449
  %v10451 = vshrl.u32 %v10170, 16
  %v10453 = vor.u32 %v10451, %v10449
  %v10455 = vshll.u32 %v10382, 16
  %v10457 = vrot.slane %v10455, 1
  %v10458 = vsel %vm7661, %v10453, %v10457
  %v10459 = vshrl.u32 %v10382, 16
  %v10461 = vor.u32 %v10459, %v10457
  %v10488 = vunpack.c.l.b16 %v10364
  %v10489 = vunpack.c.l.b16 %v10365
  %v10490 = vunpack.c.l.b16 %v10366
  %v10491 = vunpack.c.l.b16 %v10367
  %v10492 = vunpack.c.l.b16 %v10368
  %v10493 = vunpack.c.l.b16 %v10369
  %v10494 = vunpack.c.l.b16 %v10370
  %v10495 = vunpack.c.l.b16 %v10371
  %v10496 = vunpack.c.l.b16 %v10372
  %v10497 = vunpack.c.l.b16 %v10373
  %v10498 = vunpack.c.l.b16 %v10374
  %v10499 = vunpack.c.l.b16 %v10375
  %v10500 = vunpack.c.l.b16 %v10376
  %v10501 = vunpack.c.l.b16 %v10377
  %v10502 = vunpack.c.l.b16 %v10378
  %v10503 = vunpack.c.l.b16 %v10379
  %v10504 = vpack.c.b16 %v10489, %v10488
  %v10505 = vpack.c.b16 %v10491, %v10490
  %v10506 = vpack.c.b16 %v10493, %v10492
  %v10507 = vpack.c.b16 %v10495, %v10494
  %v10508 = vpack.c.b16 %v10497, %v10496
  %v10509 = vpack.c.b16 %v10499, %v10498
  %v10510 = vpack.c.b16 %v10501, %v10500
  %v10511 = vpack.c.b16 %v10503, %v10502
  %10520 = vmatprep.subr.bf16.mxu0 0
  %10521 = vmatpush1.bf16.msra.mxu0 %v10511
  %10522 = vmatprep.subr.bf16.mxu0 0
  %10523 = vmatpush1.bf16.msra.mxu0 %v10510
  %10524 = vmatprep.subr.bf16.mxu0 0
  %10525 = vmatpush1.bf16.msra.mxu0 %v10509
  %10526 = vmatprep.subr.bf16.mxu0 0
  %10527 = vmatpush1.bf16.msra.mxu0 %v10508
  %10528 = vmatprep.subr.bf16.mxu0 0
  %10529 = vmatpush1.bf16.msra.mxu0 %v10507
  %10530 = vmatprep.subr.bf16.mxu0 0
  %10531 = vmatpush1.bf16.msra.mxu0 %v10506
  %10532 = vmatprep.subr.bf16.mxu0 0
  %10533 = vmatpush1.bf16.msra.mxu0 %v10505
  %10534 = vmatprep.subr.bf16.mxu0 0
  %10535 = vmatpush1.bf16.msra.mxu0 %v10504
  %10536 = vmatprep.subr.bf16.mxu0 0
  %10537 = vmatpush2.bf16.msra.mxu0 0
  %10538 = vmatprep.subr.bf16.mxu0 0
  %10539 = vmatpush2.bf16.msra.mxu0 0
  %10540 = vmatprep.subr.bf16.mxu0 0
  %10541 = vmatpush2.bf16.msra.mxu0 0
  %10542 = vmatprep.subr.bf16.mxu0 0
  %10543 = vmatpush2.bf16.msra.mxu0 0
  %10544 = vmatprep.subr.bf16.mxu0 0
  %10545 = vmatpush2.bf16.msra.mxu0 0
  %10546 = vmatprep.subr.bf16.mxu0 0
  %10547 = vmatpush2.bf16.msra.mxu0 0
  %10548 = vmatprep.subr.bf16.mxu0 0
  %10549 = vmatpush2.bf16.msra.mxu0 0
  %10550 = vmatprep.subr.bf16.mxu0 0
  %10551 = vmatpush2.bf16.msra.mxu0 0
  %10552 = vmatprep.mubr.bf16.mxu0 0
  %10553 = vmatmul.mubr.bf16.gmra.mxu0 %v10394
  %v10554 = vpop.f32.mrf.mxu0
  %v10555 = vadd.f32 0.0, %v10554
  %v10556 = vpop.f32.mrf.mxu0
  %v10557 = vpop.f32.mrf.mxu0
  %v10558 = vadd.f32 0.0, %v10557
  %v10559 = vpop.f32.mrf.mxu0
  %10560 = vmatprep.mubr.bf16.mxu0 0
  %10561 = vmatmul.mubr.bf16.gmra.mxu0 %v10402
  %v10562 = vpop.f32.mrf.mxu0
  %v10563 = vadd.f32 0.0, %v10562
  %v10564 = vpop.f32.mrf.mxu0
  %v10565 = vpop.f32.mrf.mxu0
  %v10566 = vadd.f32 0.0, %v10565
  %v10567 = vpop.f32.mrf.mxu0
  %10568 = vmatprep.mubr.bf16.mxu0 0
  %10569 = vmatmul.mubr.bf16.gmra.mxu0 %v10410
  %v10570 = vpop.f32.mrf.mxu0
  %v10571 = vadd.f32 0.0, %v10570
  %v10572 = vpop.f32.mrf.mxu0
  %v10573 = vpop.f32.mrf.mxu0
  %v10574 = vadd.f32 0.0, %v10573
  %v10575 = vpop.f32.mrf.mxu0
  %10576 = vmatprep.mubr.bf16.mxu0 0
  %10577 = vmatmul.mubr.bf16.gmra.mxu0 %v10418
  %v10578 = vpop.f32.mrf.mxu0
  %v10579 = vadd.f32 0.0, %v10578
  %v10580 = vpop.f32.mrf.mxu0
  %v10581 = vpop.f32.mrf.mxu0
  %v10582 = vadd.f32 0.0, %v10581
  %v10583 = vpop.f32.mrf.mxu0
  %10584 = vmatprep.mubr.bf16.mxu0 0
  %10585 = vmatmul.mubr.bf16.gmra.mxu0 %v10426
  %v10586 = vpop.f32.mrf.mxu0
  %v10587 = vadd.f32 0.0, %v10586
  %v10588 = vpop.f32.mrf.mxu0
  %v10589 = vpop.f32.mrf.mxu0
  %v10590 = vadd.f32 0.0, %v10589
  %v10591 = vpop.f32.mrf.mxu0
  %10592 = vmatprep.mubr.bf16.mxu0 0
  %10593 = vmatmul.mubr.bf16.gmra.mxu0 %v10434
  %v10594 = vpop.f32.mrf.mxu0
  %v10595 = vadd.f32 0.0, %v10594
  %v10596 = vpop.f32.mrf.mxu0
  %v10597 = vpop.f32.mrf.mxu0
  %v10598 = vadd.f32 0.0, %v10597
  %v10599 = vpop.f32.mrf.mxu0
  %10600 = vmatprep.mubr.bf16.mxu0 0
  %10601 = vmatmul.mubr.bf16.gmra.mxu0 %v10442
  %v10602 = vpop.f32.mrf.mxu0
  %v10603 = vadd.f32 0.0, %v10602
  %v10604 = vpop.f32.mrf.mxu0
  %v10605 = vpop.f32.mrf.mxu0
  %v10606 = vadd.f32 0.0, %v10605
  %v10607 = vpop.f32.mrf.mxu0
  %10608 = vmatprep.mubr.bf16.mxu0 0
  %10609 = vmatmul.mubr.bf16.gmra.mxu0 %v10450
  %v10610 = vpop.f32.mrf.mxu0
  %v10611 = vadd.f32 0.0, %v10610
  %v10612 = vpop.f32.mrf.mxu0
  %v10613 = vpop.f32.mrf.mxu0
  %v10614 = vadd.f32 0.0, %v10613
  %v10615 = vpop.f32.mrf.mxu0
  %10616 = vmatprep.mubr.bf16.mxu0 0
  %10617 = vmatmul.mubr.bf16.gmra.mxu0 %v10458
  %v10618 = vpop.f32.mrf.mxu0
  %v10619 = vadd.f32 0.0, %v10618
  %v10620 = vpop.f32.mrf.mxu0
  %v10621 = vpop.f32.mrf.mxu0
  %v10622 = vadd.f32 0.0, %v10621
  %v10623 = vpop.f32.mrf.mxu0
  %10624 = vmatprep.mubr.bf16.mxu0 0
  %10625 = vmatmul.mubr.bf16.gmra.mxu0 %v10461
  %v10626 = vpop.f32.mrf.mxu0
  %v10627 = vadd.f32 0.0, %v10626
  %v10628 = vpop.f32.mrf.mxu0
  %v10629 = vpop.f32.mrf.mxu0
  %v10630 = vadd.f32 0.0, %v10629
  %v10631 = vpop.f32.mrf.mxu0
  %10632 = vdwg.mxu0
  %v10633 = vadd.f32 %v10343, %v10555
  %v10634 = vadd.f32 %v10344, %v10558
  %v10635 = vadd.f32 %v10345, %v10563
  %v10636 = vadd.f32 %v10346, %v10566
  %v10637 = vadd.f32 %v10347, %v10571
  %v10638 = vadd.f32 %v10348, %v10574
  %v10639 = vadd.f32 %v10349, %v10579
  %v10640 = vadd.f32 %v10350, %v10582
  %v10641 = vadd.f32 %v10351, %v10587
  %v10642 = vadd.f32 %v10352, %v10590
  %v10643 = vadd.f32 %v10353, %v10595
  %v10644 = vadd.f32 %v10354, %v10598
  %v10645 = vadd.f32 %v10355, %v10603
  %v10646 = vadd.f32 %v10356, %v10606
  %v10647 = vadd.f32 %v10357, %v10611
  %v10648 = vadd.f32 %v10358, %v10614
  %v10649 = vadd.f32 %v10359, %v10619
  %v10650 = vadd.f32 %v10360, %v10622
  %v10651 = vadd.f32 %v10361, %v10627
  %v10652 = vadd.f32 %v10362, %v10630
  %v10653 = vld [vmem:[#allocation2 + $0x68] sm:$0xf]
  %v10654 = vld [vmem:[#allocation2 + $0x6c] sm:$0xf]
  %v10655 = vld [vmem:[#allocation2 + $0x70] sm:$0xf]
  %v10656 = vld [vmem:[#allocation2 + $0x74] sm:$0xf]
  %v10657 = vld [vmem:[#allocation2 + $0x78] sm:$0xf]
  %v10658 = vld [vmem:[#allocation2 + $0x7c] sm:$0xf]
  %v10659 = vld [vmem:[#allocation2 + $0x80] sm:$0xf]
  %v10660 = vld [vmem:[#allocation2 + $0x84] sm:$0xf]
  %v10661 = vld [vmem:[#allocation2 + $0x88] sm:$0xf]
  %v10662 = vld [vmem:[#allocation2 + $0x8c] sm:$0xf]
  %v10663 = vld [vmem:[#allocation2 + $0x90] sm:$0xf]
  %v10664 = vld [vmem:[#allocation2 + $0x94] sm:$0xf]
  %v10665 = vld [vmem:[#allocation2 + $0x98] sm:$0xf]
  %v10666 = vld [vmem:[#allocation2 + $0x9c] sm:$0xf]
  %v10667 = vld [vmem:[#allocation2 + $0xa0] sm:$0xf]
  %v10668 = vld [vmem:[#allocation2 + $0xa4] sm:$0xf]
  %v10669 = vld [vmem:[#allocation2 + $0xa8] sm:$0xf]
  %v10670 = vld [vmem:[#allocation2 + $0xac] sm:$0xf]
  %v10671 = vld [vmem:[#allocation2 + $0xb0] sm:$0xf]
  %v10672 = vld [vmem:[#allocation2 + $0xb4] sm:$0x7]
  %v10673 = vld [vmem:[%s7971] sm:$0xf]
  %v10674 = vld [vmem:[%s7971 + $0x4] sm:$0xf]
  %v10675 = vld [vmem:[%s7971 + $0x8] sm:$0xf]
  %v10676 = vld [vmem:[%s7971 + $0xc] sm:$0xf]
  %v10677 = vld [vmem:[%s7971 + $0x10] sm:$0xf]
  %v10678 = vld [vmem:[%s7971 + $0x14] sm:$0xf]
  %v10679 = vld [vmem:[%s7971 + $0x18] sm:$0xf]
  %v10680 = vld [vmem:[%s7971 + $0x1c] sm:$0xf]
  %v10681 = vld [vmem:[%s7971 + $0x20] sm:$0xf]
  %v10682 = vld [vmem:[%s7971 + $0x24] sm:$0xf]
  %v10683 = vld [vmem:[%s7971 + $0x28] sm:$0xf]
  %v10684 = vld [vmem:[%s7971 + $0x2c] sm:$0xf]
  %v10685 = vld [vmem:[%s7971 + $0x30] sm:$0xf]
  %v10686 = vld [vmem:[%s7971 + $0x34] sm:$0xf]
  %v10687 = vld [vmem:[%s7971 + $0x38] sm:$0xf]
  %v10688 = vld [vmem:[%s7971 + $0x3c] sm:$0xf]
  %v10709 = vunpack.c.l.b16 %v10653
  %v10710 = vunpack.c.l.b16 %v10654
  %v10711 = vunpack.c.l.b16 %v10655
  %v10712 = vunpack.c.l.b16 %v10656
  %v10713 = vunpack.c.l.b16 %v10657
  %v10714 = vunpack.c.l.b16 %v10658
  %v10715 = vunpack.c.l.b16 %v10659
  %v10716 = vunpack.c.l.b16 %v10660
  %v10717 = vunpack.c.l.b16 %v10661
  %v10718 = vunpack.c.l.b16 %v10662
  %v10719 = vunpack.c.l.b16 %v10663
  %v10720 = vunpack.c.l.b16 %v10664
  %v10721 = vunpack.c.l.b16 %v10665
  %v10722 = vunpack.c.l.b16 %v10666
  %v10723 = vunpack.c.l.b16 %v10667
  %v10724 = vunpack.c.l.b16 %v10668
  %v10725 = vunpack.c.l.b16 %v10669
  %v10726 = vunpack.c.l.b16 %v10670
  %v10727 = vunpack.c.l.b16 %v10671
  %v10728 = vunpack.c.l.b16 %v10672
  %v10729 = vpack.c.b16 %v10710, %v10709
  %v10730 = vpack.c.b16 %v10712, %v10711
  %v10731 = vpack.c.b16 %v10714, %v10713
  %v10732 = vpack.c.b16 %v10716, %v10715
  %v10733 = vpack.c.b16 %v10718, %v10717
  %v10734 = vpack.c.b16 %v10720, %v10719
  %v10735 = vpack.c.b16 %v10722, %v10721
  %v10736 = vpack.c.b16 %v10724, %v10723
  %v10737 = vpack.c.b16 %v10726, %v10725
  %v10738 = vpack.c.b16 %v10728, %v10727
  %v10740 = vshrl.u32 %v10729, 16
  %v10742 = vshll.u32 %v10729, 16
  %v10744 = vrot.slane %v10742, 1
  %v10745 = vor.u32 %v10740, %v10744
  %v10747 = vshll.u32 %v10730, 16
  %v10749 = vrot.slane %v10747, 1
  %v10750 = vsel %vm7661, %v10745, %v10749
  %v10751 = vshrl.u32 %v10730, 16
  %v10753 = vor.u32 %v10751, %v10749
  %v10755 = vshll.u32 %v10731, 16
  %v10757 = vrot.slane %v10755, 1
  %v10758 = vsel %vm7661, %v10753, %v10757
  %v10759 = vshrl.u32 %v10731, 16
  %v10761 = vor.u32 %v10759, %v10757
  %v10763 = vshll.u32 %v10732, 16
  %v10765 = vrot.slane %v10763, 1
  %v10766 = vsel %vm7661, %v10761, %v10765
  %v10767 = vshrl.u32 %v10732, 16
  %v10769 = vor.u32 %v10767, %v10765
  %v10771 = vshll.u32 %v10733, 16
  %v10773 = vrot.slane %v10771, 1
  %v10774 = vsel %vm7661, %v10769, %v10773
  %v10775 = vshrl.u32 %v10733, 16
  %v10777 = vor.u32 %v10775, %v10773
  %v10779 = vshll.u32 %v10734, 16
  %v10781 = vrot.slane %v10779, 1
  %v10782 = vsel %vm7661, %v10777, %v10781
  %v10783 = vshrl.u32 %v10734, 16
  %v10785 = vor.u32 %v10783, %v10781
  %v10787 = vshll.u32 %v10735, 16
  %v10789 = vrot.slane %v10787, 1
  %v10790 = vsel %vm7661, %v10785, %v10789
  %v10791 = vshrl.u32 %v10735, 16
  %v10793 = vor.u32 %v10791, %v10789
  %v10795 = vshll.u32 %v10736, 16
  %v10797 = vrot.slane %v10795, 1
  %v10798 = vsel %vm7661, %v10793, %v10797
  %v10799 = vshrl.u32 %v10736, 16
  %v10801 = vor.u32 %v10799, %v10797
  %v10803 = vshll.u32 %v10737, 16
  %v10805 = vrot.slane %v10803, 1
  %v10806 = vsel %vm7661, %v10801, %v10805
  %v10807 = vshrl.u32 %v10737, 16
  %v10809 = vor.u32 %v10807, %v10805
  %v10811 = vshll.u32 %v10738, 16
  %v10813 = vrot.slane %v10811, 1
  %v10814 = vsel %vm7661, %v10809, %v10813
  %v10815 = vshrl.u32 %v10738, 16
  %v10817 = vor.u32 %v10815, %v10813
  %v10844 = vunpack.c.l.b16 %v10673
  %v10845 = vunpack.c.l.b16 %v10674
  %v10846 = vunpack.c.l.b16 %v10675
  %v10847 = vunpack.c.l.b16 %v10676
  %v10848 = vunpack.c.l.b16 %v10677
  %v10849 = vunpack.c.l.b16 %v10678
  %v10850 = vunpack.c.l.b16 %v10679
  %v10851 = vunpack.c.l.b16 %v10680
  %v10852 = vunpack.c.l.b16 %v10681
  %v10853 = vunpack.c.l.b16 %v10682
  %v10854 = vunpack.c.l.b16 %v10683
  %v10855 = vunpack.c.l.b16 %v10684
  %v10856 = vunpack.c.l.b16 %v10685
  %v10857 = vunpack.c.l.b16 %v10686
  %v10858 = vunpack.c.l.b16 %v10687
  %v10859 = vunpack.c.l.b16 %v10688
  %v10860 = vpack.c.b16 %v10845, %v10844
  %v10861 = vpack.c.b16 %v10847, %v10846
  %v10862 = vpack.c.b16 %v10849, %v10848
  %v10863 = vpack.c.b16 %v10851, %v10850
  %v10864 = vpack.c.b16 %v10853, %v10852
  %v10865 = vpack.c.b16 %v10855, %v10854
  %v10866 = vpack.c.b16 %v10857, %v10856
  %v10867 = vpack.c.b16 %v10859, %v10858
  %10876 = vmatprep.subr.bf16.mxu0 0
  %10877 = vmatpush1.bf16.msra.mxu0 %v10867
  %10878 = vmatprep.subr.bf16.mxu0 0
  %10879 = vmatpush1.bf16.msra.mxu0 %v10866
  %10880 = vmatprep.subr.bf16.mxu0 0
  %10881 = vmatpush1.bf16.msra.mxu0 %v10865
  %10882 = vmatprep.subr.bf16.mxu0 0
  %10883 = vmatpush1.bf16.msra.mxu0 %v10864
  %10884 = vmatprep.subr.bf16.mxu0 0
  %10885 = vmatpush1.bf16.msra.mxu0 %v10863
  %10886 = vmatprep.subr.bf16.mxu0 0
  %10887 = vmatpush1.bf16.msra.mxu0 %v10862
  %10888 = vmatprep.subr.bf16.mxu0 0
  %10889 = vmatpush1.bf16.msra.mxu0 %v10861
  %10890 = vmatprep.subr.bf16.mxu0 0
  %10891 = vmatpush1.bf16.msra.mxu0 %v10860
  %10892 = vmatprep.subr.bf16.mxu0 0
  %10893 = vmatpush2.bf16.msra.mxu0 0
  %10894 = vmatprep.subr.bf16.mxu0 0
  %10895 = vmatpush2.bf16.msra.mxu0 0
  %10896 = vmatprep.subr.bf16.mxu0 0
  %10897 = vmatpush2.bf16.msra.mxu0 0
  %10898 = vmatprep.subr.bf16.mxu0 0
  %10899 = vmatpush2.bf16.msra.mxu0 0
  %10900 = vmatprep.subr.bf16.mxu0 0
  %10901 = vmatpush2.bf16.msra.mxu0 0
  %10902 = vmatprep.subr.bf16.mxu0 0
  %10903 = vmatpush2.bf16.msra.mxu0 0
  %10904 = vmatprep.subr.bf16.mxu0 0
  %10905 = vmatpush2.bf16.msra.mxu0 0
  %10906 = vmatprep.subr.bf16.mxu0 0
  %10907 = vmatpush2.bf16.msra.mxu0 0
  %10908 = vmatprep.mubr.bf16.mxu0 0
  %10909 = vmatmul.mubr.bf16.gmra.mxu0 %v10750
  %v10910 = vpop.f32.mrf.mxu0
  %v10911 = vadd.f32 0.0, %v10910
  %v10912 = vpop.f32.mrf.mxu0
  %v10913 = vpop.f32.mrf.mxu0
  %v10914 = vadd.f32 0.0, %v10913
  %v10915 = vpop.f32.mrf.mxu0
  %10916 = vmatprep.mubr.bf16.mxu0 0
  %10917 = vmatmul.mubr.bf16.gmra.mxu0 %v10758
  %v10918 = vpop.f32.mrf.mxu0
  %v10919 = vadd.f32 0.0, %v10918
  %v10920 = vpop.f32.mrf.mxu0
  %v10921 = vpop.f32.mrf.mxu0
  %v10922 = vadd.f32 0.0, %v10921
  %v10923 = vpop.f32.mrf.mxu0
  %10924 = vmatprep.mubr.bf16.mxu0 0
  %10925 = vmatmul.mubr.bf16.gmra.mxu0 %v10766
  %v10926 = vpop.f32.mrf.mxu0
  %v10927 = vadd.f32 0.0, %v10926
  %v10928 = vpop.f32.mrf.mxu0
  %v10929 = vpop.f32.mrf.mxu0
  %v10930 = vadd.f32 0.0, %v10929
  %v10931 = vpop.f32.mrf.mxu0
  %10932 = vmatprep.mubr.bf16.mxu0 0
  %10933 = vmatmul.mubr.bf16.gmra.mxu0 %v10774
  %v10934 = vpop.f32.mrf.mxu0
  %v10935 = vadd.f32 0.0, %v10934
  %v10936 = vpop.f32.mrf.mxu0
  %v10937 = vpop.f32.mrf.mxu0
  %v10938 = vadd.f32 0.0, %v10937
  %v10939 = vpop.f32.mrf.mxu0
  %10940 = vmatprep.mubr.bf16.mxu0 0
  %10941 = vmatmul.mubr.bf16.gmra.mxu0 %v10782
  %v10942 = vpop.f32.mrf.mxu0
  %v10943 = vadd.f32 0.0, %v10942
  %v10944 = vpop.f32.mrf.mxu0
  %v10945 = vpop.f32.mrf.mxu0
  %v10946 = vadd.f32 0.0, %v10945
  %v10947 = vpop.f32.mrf.mxu0
  %10948 = vmatprep.mubr.bf16.mxu0 0
  %10949 = vmatmul.mubr.bf16.gmra.mxu0 %v10790
  %v10950 = vpop.f32.mrf.mxu0
  %v10951 = vadd.f32 0.0, %v10950
  %v10952 = vpop.f32.mrf.mxu0
  %v10953 = vpop.f32.mrf.mxu0
  %v10954 = vadd.f32 0.0, %v10953
  %v10955 = vpop.f32.mrf.mxu0
  %10956 = vmatprep.mubr.bf16.mxu0 0
  %10957 = vmatmul.mubr.bf16.gmra.mxu0 %v10798
  %v10958 = vpop.f32.mrf.mxu0
  %v10959 = vadd.f32 0.0, %v10958
  %v10960 = vpop.f32.mrf.mxu0
  %v10961 = vpop.f32.mrf.mxu0
  %v10962 = vadd.f32 0.0, %v10961
  %v10963 = vpop.f32.mrf.mxu0
  %10964 = vmatprep.mubr.bf16.mxu0 0
  %10965 = vmatmul.mubr.bf16.gmra.mxu0 %v10806
  %v10966 = vpop.f32.mrf.mxu0
  %v10967 = vadd.f32 0.0, %v10966
  %v10968 = vpop.f32.mrf.mxu0
  %v10969 = vpop.f32.mrf.mxu0
  %v10970 = vadd.f32 0.0, %v10969
  %v10971 = vpop.f32.mrf.mxu0
  %10972 = vmatprep.mubr.bf16.mxu0 0
  %10973 = vmatmul.mubr.bf16.gmra.mxu0 %v10814
  %v10974 = vpop.f32.mrf.mxu0
  %v10975 = vadd.f32 0.0, %v10974
  %v10976 = vpop.f32.mrf.mxu0
  %v10977 = vpop.f32.mrf.mxu0
  %v10978 = vadd.f32 0.0, %v10977
  %v10979 = vpop.f32.mrf.mxu0
  %10980 = vmatprep.mubr.bf16.mxu0 0
  %10981 = vmatmul.mubr.bf16.gmra.mxu0 %v10817
  %v10982 = vpop.f32.mrf.mxu0
  %v10983 = vadd.f32 0.0, %v10982
  %v10984 = vpop.f32.mrf.mxu0
  %v10985 = vpop.f32.mrf.mxu0
  %v10986 = vadd.f32 0.0, %v10985
  %v10987 = vpop.f32.mrf.mxu0
  %10988 = vdwg.mxu0
  %v10989 = vadd.f32 %v10633, %v10911
  %v10990 = vadd.f32 %v10634, %v10914
  %v10991 = vadd.f32 %v10635, %v10919
  %v10992 = vadd.f32 %v10636, %v10922
  %v10993 = vadd.f32 %v10637, %v10927
  %v10994 = vadd.f32 %v10638, %v10930
  %v10995 = vadd.f32 %v10639, %v10935
  %v10996 = vadd.f32 %v10640, %v10938
  %v10997 = vadd.f32 %v10641, %v10943
  %v10998 = vadd.f32 %v10642, %v10946
  %v10999 = vadd.f32 %v10643, %v10951
  %v11000 = vadd.f32 %v10644, %v10954
  %v11001 = vadd.f32 %v10645, %v10959
  %v11002 = vadd.f32 %v10646, %v10962
  %v11003 = vadd.f32 %v10647, %v10967
  %v11004 = vadd.f32 %v10648, %v10970
  %v11005 = vadd.f32 %v10649, %v10975
  %v11006 = vadd.f32 %v10650, %v10978
  %v11007 = vadd.f32 %v10651, %v10983
  %v11008 = vadd.f32 %v10652, %v10986
  %v11009 = vld [vmem:[#allocation2 + $0x68] sm:$0xe]
  %v11010 = vld [vmem:[%s8331] sm:$0xf]
  %v11011 = vld [vmem:[%s8331 + $0x4] sm:$0xf]
  %v11012 = vld [vmem:[%s8331 + $0x8] sm:$0xf]
  %v11013 = vld [vmem:[%s8331 + $0xc] sm:$0xf]
  %v11014 = vld [vmem:[%s8331 + $0x10] sm:$0xf]
  %v11015 = vld [vmem:[%s8331 + $0x14] sm:$0xf]
  %v11016 = vld [vmem:[%s8331 + $0x18] sm:$0xf]
  %v11017 = vld [vmem:[%s8331 + $0x1c] sm:$0xf]
  %v11018 = vld [vmem:[%s8331 + $0x20] sm:$0xf]
  %v11019 = vld [vmem:[%s8331 + $0x24] sm:$0xf]
  %v11020 = vld [vmem:[%s8331 + $0x28] sm:$0xf]
  %v11021 = vld [vmem:[%s8331 + $0x2c] sm:$0xf]
  %v11022 = vld [vmem:[%s8331 + $0x30] sm:$0xf]
  %v11023 = vld [vmem:[%s8331 + $0x34] sm:$0xf]
  %v11024 = vld [vmem:[%s8331 + $0x38] sm:$0xf]
  %v11025 = vld [vmem:[%s8331 + $0x3c] sm:$0xf]
  %v11027 = vunpack.c.l.b16 %v11009
  %v11028 = vpack.c.b16 %v10710, %v11027
  %v11029 = vrot.slane %v11028, 1
  %v11030 = vrot.slane %v10730, 1
  %v11031 = vsel %vm8351, %v11029, %v11030
  %v11032 = vrot.slane %v10731, 1
  %v11033 = vsel %vm8351, %v11030, %v11032
  %v11034 = vrot.slane %v10732, 1
  %v11035 = vsel %vm8351, %v11032, %v11034
  %v11036 = vrot.slane %v10733, 1
  %v11037 = vsel %vm8351, %v11034, %v11036
  %v11038 = vrot.slane %v10734, 1
  %v11039 = vsel %vm8351, %v11036, %v11038
  %v11040 = vrot.slane %v10735, 1
  %v11041 = vsel %vm8351, %v11038, %v11040
  %v11042 = vrot.slane %v10736, 1
  %v11043 = vsel %vm8351, %v11040, %v11042
  %v11044 = vrot.slane %v10737, 1
  %v11045 = vsel %vm8351, %v11042, %v11044
  %v11046 = vrot.slane %v10738, 1
  %v11047 = vsel %vm8351, %v11044, %v11046
  %v11074 = vunpack.c.l.b16 %v11010
  %v11075 = vunpack.c.l.b16 %v11011
  %v11076 = vunpack.c.l.b16 %v11012
  %v11077 = vunpack.c.l.b16 %v11013
  %v11078 = vunpack.c.l.b16 %v11014
  %v11079 = vunpack.c.l.b16 %v11015
  %v11080 = vunpack.c.l.b16 %v11016
  %v11081 = vunpack.c.l.b16 %v11017
  %v11082 = vunpack.c.l.b16 %v11018
  %v11083 = vunpack.c.l.b16 %v11019
  %v11084 = vunpack.c.l.b16 %v11020
  %v11085 = vunpack.c.l.b16 %v11021
  %v11086 = vunpack.c.l.b16 %v11022
  %v11087 = vunpack.c.l.b16 %v11023
  %v11088 = vunpack.c.l.b16 %v11024
  %v11089 = vunpack.c.l.b16 %v11025
  %v11090 = vpack.c.b16 %v11075, %v11074
  %v11091 = vpack.c.b16 %v11077, %v11076
  %v11092 = vpack.c.b16 %v11079, %v11078
  %v11093 = vpack.c.b16 %v11081, %v11080
  %v11094 = vpack.c.b16 %v11083, %v11082
  %v11095 = vpack.c.b16 %v11085, %v11084
  %v11096 = vpack.c.b16 %v11087, %v11086
  %v11097 = vpack.c.b16 %v11089, %v11088
  %11106 = vmatprep.subr.bf16.mxu0 0
  %11107 = vmatpush1.bf16.msra.mxu0 %v11097
  %11108 = vmatprep.subr.bf16.mxu0 0
  %11109 = vmatpush1.bf16.msra.mxu0 %v11096
  %11110 = vmatprep.subr.bf16.mxu0 0
  %11111 = vmatpush1.bf16.msra.mxu0 %v11095
  %11112 = vmatprep.subr.bf16.mxu0 0
  %11113 = vmatpush1.bf16.msra.mxu0 %v11094
  %11114 = vmatprep.subr.bf16.mxu0 0
  %11115 = vmatpush1.bf16.msra.mxu0 %v11093
  %11116 = vmatprep.subr.bf16.mxu0 0
  %11117 = vmatpush1.bf16.msra.mxu0 %v11092
  %11118 = vmatprep.subr.bf16.mxu0 0
  %11119 = vmatpush1.bf16.msra.mxu0 %v11091
  %11120 = vmatprep.subr.bf16.mxu0 0
  %11121 = vmatpush1.bf16.msra.mxu0 %v11090
  %11122 = vmatprep.subr.bf16.mxu0 0
  %11123 = vmatpush2.bf16.msra.mxu0 0
  %11124 = vmatprep.subr.bf16.mxu0 0
  %11125 = vmatpush2.bf16.msra.mxu0 0
  %11126 = vmatprep.subr.bf16.mxu0 0
  %11127 = vmatpush2.bf16.msra.mxu0 0
  %11128 = vmatprep.subr.bf16.mxu0 0
  %11129 = vmatpush2.bf16.msra.mxu0 0
  %11130 = vmatprep.subr.bf16.mxu0 0
  %11131 = vmatpush2.bf16.msra.mxu0 0
  %11132 = vmatprep.subr.bf16.mxu0 0
  %11133 = vmatpush2.bf16.msra.mxu0 0
  %11134 = vmatprep.subr.bf16.mxu0 0
  %11135 = vmatpush2.bf16.msra.mxu0 0
  %11136 = vmatprep.subr.bf16.mxu0 0
  %11137 = vmatpush2.bf16.msra.mxu0 0
  %11138 = vmatprep.mubr.bf16.mxu0 0
  %11139 = vmatmul.mubr.bf16.gmra.mxu0 %v11031
  %v11140 = vpop.f32.mrf.mxu0
  %v11141 = vadd.f32 0.0, %v11140
  %v11142 = vpop.f32.mrf.mxu0
  %v11143 = vpop.f32.mrf.mxu0
  %v11144 = vadd.f32 0.0, %v11143
  %v11145 = vpop.f32.mrf.mxu0
  %11146 = vmatprep.mubr.bf16.mxu0 0
  %11147 = vmatmul.mubr.bf16.gmra.mxu0 %v11033
  %v11148 = vpop.f32.mrf.mxu0
  %v11149 = vadd.f32 0.0, %v11148
  %v11150 = vpop.f32.mrf.mxu0
  %v11151 = vpop.f32.mrf.mxu0
  %v11152 = vadd.f32 0.0, %v11151
  %v11153 = vpop.f32.mrf.mxu0
  %11154 = vmatprep.mubr.bf16.mxu0 0
  %11155 = vmatmul.mubr.bf16.gmra.mxu0 %v11035
  %v11156 = vpop.f32.mrf.mxu0
  %v11157 = vadd.f32 0.0, %v11156
  %v11158 = vpop.f32.mrf.mxu0
  %v11159 = vpop.f32.mrf.mxu0
  %v11160 = vadd.f32 0.0, %v11159
  %v11161 = vpop.f32.mrf.mxu0
  %11162 = vmatprep.mubr.bf16.mxu0 0
  %11163 = vmatmul.mubr.bf16.gmra.mxu0 %v11037
  %v11164 = vpop.f32.mrf.mxu0
  %v11165 = vadd.f32 0.0, %v11164
  %v11166 = vpop.f32.mrf.mxu0
  %v11167 = vpop.f32.mrf.mxu0
  %v11168 = vadd.f32 0.0, %v11167
  %v11169 = vpop.f32.mrf.mxu0
  %11170 = vmatprep.mubr.bf16.mxu0 0
  %11171 = vmatmul.mubr.bf16.gmra.mxu0 %v11039
  %v11172 = vpop.f32.mrf.mxu0
  %v11173 = vadd.f32 0.0, %v11172
  %v11174 = vpop.f32.mrf.mxu0
  %v11175 = vpop.f32.mrf.mxu0
  %v11176 = vadd.f32 0.0, %v11175
  %v11177 = vpop.f32.mrf.mxu0
  %11178 = vmatprep.mubr.bf16.mxu0 0
  %11179 = vmatmul.mubr.bf16.gmra.mxu0 %v11041
  %v11180 = vpop.f32.mrf.mxu0
  %v11181 = vadd.f32 0.0, %v11180
  %v11182 = vpop.f32.mrf.mxu0
  %v11183 = vpop.f32.mrf.mxu0
  %v11184 = vadd.f32 0.0, %v11183
  %v11185 = vpop.f32.mrf.mxu0
  %11186 = vmatprep.mubr.bf16.mxu0 0
  %11187 = vmatmul.mubr.bf16.gmra.mxu0 %v11043
  %v11188 = vpop.f32.mrf.mxu0
  %v11189 = vadd.f32 0.0, %v11188
  %v11190 = vpop.f32.mrf.mxu0
  %v11191 = vpop.f32.mrf.mxu0
  %v11192 = vadd.f32 0.0, %v11191
  %v11193 = vpop.f32.mrf.mxu0
  %11194 = vmatprep.mubr.bf16.mxu0 0
  %11195 = vmatmul.mubr.bf16.gmra.mxu0 %v11045
  %v11196 = vpop.f32.mrf.mxu0
  %v11197 = vadd.f32 0.0, %v11196
  %v11198 = vpop.f32.mrf.mxu0
  %v11199 = vpop.f32.mrf.mxu0
  %v11200 = vadd.f32 0.0, %v11199
  %v11201 = vpop.f32.mrf.mxu0
  %11202 = vmatprep.mubr.bf16.mxu0 0
  %11203 = vmatmul.mubr.bf16.gmra.mxu0 %v11047
  %v11204 = vpop.f32.mrf.mxu0
  %v11205 = vadd.f32 0.0, %v11204
  %v11206 = vpop.f32.mrf.mxu0
  %v11207 = vpop.f32.mrf.mxu0
  %v11208 = vadd.f32 0.0, %v11207
  %v11209 = vpop.f32.mrf.mxu0
  %11210 = vmatprep.mubr.bf16.mxu0 0
  %11211 = vmatmul.mubr.bf16.gmra.mxu0 %v11046
  %v11212 = vpop.f32.mrf.mxu0
  %v11213 = vadd.f32 0.0, %v11212
  %v11214 = vpop.f32.mrf.mxu0
  %v11215 = vpop.f32.mrf.mxu0
  %v11216 = vadd.f32 0.0, %v11215
  %v11217 = vpop.f32.mrf.mxu0
  %11218 = vdwg.mxu0
  %v11219 = vadd.f32 %v10989, %v11141
  %v11220 = vadd.f32 %v10990, %v11144
  %v11221 = vadd.f32 %v10991, %v11149
  %v11222 = vadd.f32 %v10992, %v11152
  %v11223 = vadd.f32 %v10993, %v11157
  %v11224 = vadd.f32 %v10994, %v11160
  %v11225 = vadd.f32 %v10995, %v11165
  %v11226 = vadd.f32 %v10996, %v11168
  %v11227 = vadd.f32 %v10997, %v11173
  %v11228 = vadd.f32 %v10998, %v11176
  %v11229 = vadd.f32 %v10999, %v11181
  %v11230 = vadd.f32 %v11000, %v11184
  %v11231 = vadd.f32 %v11001, %v11189
  %v11232 = vadd.f32 %v11002, %v11192
  %v11233 = vadd.f32 %v11003, %v11197
  %v11234 = vadd.f32 %v11004, %v11200
  %v11235 = vadd.f32 %v11005, %v11205
  %v11236 = vadd.f32 %v11006, %v11208
  %v11237 = vadd.f32 %v11007, %v11213
  %v11238 = vadd.f32 %v11008, %v11216
  %v11239 = vld [vmem:[#allocation2 + $0xb4] sm:$0xf]
  %v11240 = vld [vmem:[%s8574] sm:$0xf]
  %v11241 = vld [vmem:[%s8574 + $0x4] sm:$0xf]
  %v11242 = vld [vmem:[%s8574 + $0x8] sm:$0xf]
  %v11243 = vld [vmem:[%s8574 + $0xc] sm:$0xf]
  %v11244 = vld [vmem:[%s8574 + $0x10] sm:$0xf]
  %v11245 = vld [vmem:[%s8574 + $0x14] sm:$0xf]
  %v11246 = vld [vmem:[%s8574 + $0x18] sm:$0xf]
  %v11247 = vld [vmem:[%s8574 + $0x1c] sm:$0xf]
  %v11248 = vld [vmem:[%s8574 + $0x20] sm:$0xf]
  %v11249 = vld [vmem:[%s8574 + $0x24] sm:$0xf]
  %v11250 = vld [vmem:[%s8574 + $0x28] sm:$0xf]
  %v11251 = vld [vmem:[%s8574 + $0x2c] sm:$0xf]
  %v11252 = vld [vmem:[%s8574 + $0x30] sm:$0xf]
  %v11253 = vld [vmem:[%s8574 + $0x34] sm:$0xf]
  %v11254 = vld [vmem:[%s8574 + $0x38] sm:$0xf]
  %v11255 = vld [vmem:[%s8574 + $0x3c] sm:$0xf]
  %v11257 = vunpack.c.l.b16 %v11239
  %v11258 = vpack.c.b16 %v11257, %v10727
  %v11260 = vshrl.u32 %v11028, 16
  %v11262 = vrot.slane %v11260, 1
  %v11263 = vshll.u32 %v11028, 16
  %v11265 = vrot.slane %v11263, 2
  %v11266 = vor.u32 %v11262, %v11265
  %v11267 = vrot.slane %v10751, 1
  %v11268 = vrot.slane %v10747, 2
  %v11269 = vor.u32 %v11267, %v11268
  %v11270 = vsel %vm8594, %v11266, %v11269
  %v11271 = vrot.slane %v10759, 1
  %v11272 = vrot.slane %v10755, 2
  %v11273 = vor.u32 %v11271, %v11272
  %v11274 = vsel %vm8594, %v11269, %v11273
  %v11275 = vrot.slane %v10767, 1
  %v11276 = vrot.slane %v10763, 2
  %v11277 = vor.u32 %v11275, %v11276
  %v11278 = vsel %vm8594, %v11273, %v11277
  %v11279 = vrot.slane %v10775, 1
  %v11280 = vrot.slane %v10771, 2
  %v11281 = vor.u32 %v11279, %v11280
  %v11282 = vsel %vm8594, %v11277, %v11281
  %v11283 = vrot.slane %v10783, 1
  %v11284 = vrot.slane %v10779, 2
  %v11285 = vor.u32 %v11283, %v11284
  %v11286 = vsel %vm8594, %v11281, %v11285
  %v11287 = vrot.slane %v10791, 1
  %v11288 = vrot.slane %v10787, 2
  %v11289 = vor.u32 %v11287, %v11288
  %v11290 = vsel %vm8594, %v11285, %v11289
  %v11291 = vrot.slane %v10799, 1
  %v11292 = vrot.slane %v10795, 2
  %v11293 = vor.u32 %v11291, %v11292
  %v11294 = vsel %vm8594, %v11289, %v11293
  %v11295 = vrot.slane %v10807, 1
  %v11296 = vrot.slane %v10803, 2
  %v11297 = vor.u32 %v11295, %v11296
  %v11298 = vsel %vm8594, %v11293, %v11297
  %v11300 = vshrl.u32 %v11258, 16
  %v11302 = vrot.slane %v11300, 1
  %v11303 = vshll.u32 %v11258, 16
  %v11305 = vrot.slane %v11303, 2
  %v11306 = vor.u32 %v11302, %v11305
  %v11307 = vsel %vm8594, %v11297, %v11306
  %v11334 = vunpack.c.l.b16 %v11240
  %v11335 = vunpack.c.l.b16 %v11241
  %v11336 = vunpack.c.l.b16 %v11242
  %v11337 = vunpack.c.l.b16 %v11243
  %v11338 = vunpack.c.l.b16 %v11244
  %v11339 = vunpack.c.l.b16 %v11245
  %v11340 = vunpack.c.l.b16 %v11246
  %v11341 = vunpack.c.l.b16 %v11247
  %v11342 = vunpack.c.l.b16 %v11248
  %v11343 = vunpack.c.l.b16 %v11249
  %v11344 = vunpack.c.l.b16 %v11250
  %v11345 = vunpack.c.l.b16 %v11251
  %v11346 = vunpack.c.l.b16 %v11252
  %v11347 = vunpack.c.l.b16 %v11253
  %v11348 = vunpack.c.l.b16 %v11254
  %v11349 = vunpack.c.l.b16 %v11255
  %v11350 = vpack.c.b16 %v11335, %v11334
  %v11351 = vpack.c.b16 %v11337, %v11336
  %v11352 = vpack.c.b16 %v11339, %v11338
  %v11353 = vpack.c.b16 %v11341, %v11340
  %v11354 = vpack.c.b16 %v11343, %v11342
  %v11355 = vpack.c.b16 %v11345, %v11344
  %v11356 = vpack.c.b16 %v11347, %v11346
  %v11357 = vpack.c.b16 %v11349, %v11348
  %11366 = vmatprep.subr.bf16.mxu0 0
  %11367 = vmatpush1.bf16.msra.mxu0 %v11357
  %11368 = vmatprep.subr.bf16.mxu0 0
  %11369 = vmatpush1.bf16.msra.mxu0 %v11356
  %11370 = vmatprep.subr.bf16.mxu0 0
  %11371 = vmatpush1.bf16.msra.mxu0 %v11355
  %11372 = vmatprep.subr.bf16.mxu0 0
  %11373 = vmatpush1.bf16.msra.mxu0 %v11354
  %11374 = vmatprep.subr.bf16.mxu0 0
  %11375 = vmatpush1.bf16.msra.mxu0 %v11353
  %11376 = vmatprep.subr.bf16.mxu0 0
  %11377 = vmatpush1.bf16.msra.mxu0 %v11352
  %11378 = vmatprep.subr.bf16.mxu0 0
  %11379 = vmatpush1.bf16.msra.mxu0 %v11351
  %11380 = vmatprep.subr.bf16.mxu0 0
  %11381 = vmatpush1.bf16.msra.mxu0 %v11350
  %11382 = vmatprep.subr.bf16.mxu0 0
  %11383 = vmatpush2.bf16.msra.mxu0 0
  %11384 = vmatprep.subr.bf16.mxu0 0
  %11385 = vmatpush2.bf16.msra.mxu0 0
  %11386 = vmatprep.subr.bf16.mxu0 0
  %11387 = vmatpush2.bf16.msra.mxu0 0
  %11388 = vmatprep.subr.bf16.mxu0 0
  %11389 = vmatpush2.bf16.msra.mxu0 0
  %11390 = vmatprep.subr.bf16.mxu0 0
  %11391 = vmatpush2.bf16.msra.mxu0 0
  %11392 = vmatprep.subr.bf16.mxu0 0
  %11393 = vmatpush2.bf16.msra.mxu0 0
  %11394 = vmatprep.subr.bf16.mxu0 0
  %11395 = vmatpush2.bf16.msra.mxu0 0
  %11396 = vmatprep.subr.bf16.mxu0 0
  %11397 = vmatpush2.bf16.msra.mxu0 0
  %11398 = vmatprep.mubr.bf16.mxu0 0
  %11399 = vmatmul.mubr.bf16.gmra.mxu0 %v11270
  %v11400 = vpop.f32.mrf.mxu0
  %v11401 = vadd.f32 0.0, %v11400
  %v11402 = vpop.f32.mrf.mxu0
  %v11403 = vpop.f32.mrf.mxu0
  %v11404 = vadd.f32 0.0, %v11403
  %v11405 = vpop.f32.mrf.mxu0
  %11406 = vmatprep.mubr.bf16.mxu0 0
  %11407 = vmatmul.mubr.bf16.gmra.mxu0 %v11274
  %v11408 = vpop.f32.mrf.mxu0
  %v11409 = vadd.f32 0.0, %v11408
  %v11410 = vpop.f32.mrf.mxu0
  %v11411 = vpop.f32.mrf.mxu0
  %v11412 = vadd.f32 0.0, %v11411
  %v11413 = vpop.f32.mrf.mxu0
  %11414 = vmatprep.mubr.bf16.mxu0 0
  %11415 = vmatmul.mubr.bf16.gmra.mxu0 %v11278
  %v11416 = vpop.f32.mrf.mxu0
  %v11417 = vadd.f32 0.0, %v11416
  %v11418 = vpop.f32.mrf.mxu0
  %v11419 = vpop.f32.mrf.mxu0
  %v11420 = vadd.f32 0.0, %v11419
  %v11421 = vpop.f32.mrf.mxu0
  %11422 = vmatprep.mubr.bf16.mxu0 0
  %11423 = vmatmul.mubr.bf16.gmra.mxu0 %v11282
  %v11424 = vpop.f32.mrf.mxu0
  %v11425 = vadd.f32 0.0, %v11424
  %v11426 = vpop.f32.mrf.mxu0
  %v11427 = vpop.f32.mrf.mxu0
  %v11428 = vadd.f32 0.0, %v11427
  %v11429 = vpop.f32.mrf.mxu0
  %11430 = vmatprep.mubr.bf16.mxu0 0
  %11431 = vmatmul.mubr.bf16.gmra.mxu0 %v11286
  %v11432 = vpop.f32.mrf.mxu0
  %v11433 = vadd.f32 0.0, %v11432
  %v11434 = vpop.f32.mrf.mxu0
  %v11435 = vpop.f32.mrf.mxu0
  %v11436 = vadd.f32 0.0, %v11435
  %v11437 = vpop.f32.mrf.mxu0
  %11438 = vmatprep.mubr.bf16.mxu0 0
  %11439 = vmatmul.mubr.bf16.gmra.mxu0 %v11290
  %v11440 = vpop.f32.mrf.mxu0
  %v11441 = vadd.f32 0.0, %v11440
  %v11442 = vpop.f32.mrf.mxu0
  %v11443 = vpop.f32.mrf.mxu0
  %v11444 = vadd.f32 0.0, %v11443
  %v11445 = vpop.f32.mrf.mxu0
  %11446 = vmatprep.mubr.bf16.mxu0 0
  %11447 = vmatmul.mubr.bf16.gmra.mxu0 %v11294
  %v11448 = vpop.f32.mrf.mxu0
  %v11449 = vadd.f32 0.0, %v11448
  %v11450 = vpop.f32.mrf.mxu0
  %v11451 = vpop.f32.mrf.mxu0
  %v11452 = vadd.f32 0.0, %v11451
  %v11453 = vpop.f32.mrf.mxu0
  %11454 = vmatprep.mubr.bf16.mxu0 0
  %11455 = vmatmul.mubr.bf16.gmra.mxu0 %v11298
  %v11456 = vpop.f32.mrf.mxu0
  %v11457 = vadd.f32 0.0, %v11456
  %v11458 = vpop.f32.mrf.mxu0
  %v11459 = vpop.f32.mrf.mxu0
  %v11460 = vadd.f32 0.0, %v11459
  %v11461 = vpop.f32.mrf.mxu0
  %11462 = vmatprep.mubr.bf16.mxu0 0
  %11463 = vmatmul.mubr.bf16.gmra.mxu0 %v11307
  %v11464 = vpop.f32.mrf.mxu0
  %v11465 = vadd.f32 0.0, %v11464
  %v11466 = vpop.f32.mrf.mxu0
  %v11467 = vpop.f32.mrf.mxu0
  %v11468 = vadd.f32 0.0, %v11467
  %v11469 = vpop.f32.mrf.mxu0
  %11470 = vmatprep.mubr.bf16.mxu0 0
  %11471 = vmatmul.mubr.bf16.gmra.mxu0 %v11306
  %v11472 = vpop.f32.mrf.mxu0
  %v11473 = vadd.f32 0.0, %v11472
  %v11474 = vpop.f32.mrf.mxu0
  %v11475 = vpop.f32.mrf.mxu0
  %v11476 = vadd.f32 0.0, %v11475
  %v11477 = vpop.f32.mrf.mxu0
  %11478 = vdwg.mxu0
  %v11479 = vadd.f32 %v11219, %v11401
  %v11480 = vadd.f32 %v11220, %v11404
  %v11481 = vadd.f32 %v11221, %v11409
  %v11482 = vadd.f32 %v11222, %v11412
  %v11483 = vadd.f32 %v11223, %v11417
  %v11484 = vadd.f32 %v11224, %v11420
  %v11485 = vadd.f32 %v11225, %v11425
  %v11486 = vadd.f32 %v11226, %v11428
  %v11487 = vadd.f32 %v11227, %v11433
  %v11488 = vadd.f32 %v11228, %v11436
  %v11489 = vadd.f32 %v11229, %v11441
  %v11490 = vadd.f32 %v11230, %v11444
  %v11491 = vadd.f32 %v11231, %v11449
  %v11492 = vadd.f32 %v11232, %v11452
  %v11493 = vadd.f32 %v11233, %v11457
  %v11494 = vadd.f32 %v11234, %v11460
  %v11495 = vadd.f32 %v11235, %v11465
  %v11496 = vadd.f32 %v11236, %v11468
  %v11497 = vadd.f32 %v11237, %v11473
  %v11498 = vadd.f32 %v11238, %v11476
  %v11499 = vadd.f32 %v11479, %v8851
  %v11500 = vadd.f32 %v11480, %v8851
  %v11501 = vadd.f32 %v11481, %v8851
  %v11502 = vadd.f32 %v11482, %v8851
  %v11503 = vadd.f32 %v11483, %v8851
  %v11504 = vadd.f32 %v11484, %v8851
  %v11505 = vadd.f32 %v11485, %v8851
  %v11506 = vadd.f32 %v11486, %v8851
  %v11507 = vadd.f32 %v11487, %v8851
  %v11508 = vadd.f32 %v11488, %v8851
  %v11509 = vadd.f32 %v11489, %v8851
  %v11510 = vadd.f32 %v11490, %v8851
  %v11511 = vadd.f32 %v11491, %v8851
  %v11512 = vadd.f32 %v11492, %v8851
  %v11513 = vadd.f32 %v11493, %v8851
  %v11514 = vadd.f32 %v11494, %v8851
  %v11515 = vadd.f32 %v11495, %v8851
  %v11516 = vadd.f32 %v11496, %v8851
  %v11517 = vadd.f32 %v11497, %v8851
  %v11518 = vadd.f32 %v11498, %v8851
  %v11519 = vmax.f32 %v11499, 0.0
  %v11520 = vmax.f32 %v11500, 0.0
  %v11521 = vmax.f32 %v11501, 0.0
  %v11522 = vmax.f32 %v11502, 0.0
  %v11523 = vmax.f32 %v11503, 0.0
  %v11524 = vmax.f32 %v11504, 0.0
  %v11525 = vmax.f32 %v11505, 0.0
  %v11526 = vmax.f32 %v11506, 0.0
  %v11527 = vmax.f32 %v11507, 0.0
  %v11528 = vmax.f32 %v11508, 0.0
  %v11529 = vmax.f32 %v11509, 0.0
  %v11530 = vmax.f32 %v11510, 0.0
  %v11531 = vmax.f32 %v11511, 0.0
  %v11532 = vmax.f32 %v11512, 0.0
  %v11533 = vmax.f32 %v11513, 0.0
  %v11534 = vmax.f32 %v11514, 0.0
  %v11535 = vmax.f32 %v11515, 0.0
  %v11536 = vmax.f32 %v11516, 0.0
  %v11537 = vmax.f32 %v11517, 0.0
  %v11538 = vmax.f32 %v11518, 0.0
  %v11539 = vmin.f32 %v11519, 1.0
  %v11540 = vmin.f32 %v11520, 1.0
  %v11541 = vmin.f32 %v11521, 1.0
  %v11542 = vmin.f32 %v11522, 1.0
  %v11543 = vmin.f32 %v11523, 1.0
  %v11544 = vmin.f32 %v11524, 1.0
  %v11545 = vmin.f32 %v11525, 1.0
  %v11546 = vmin.f32 %v11526, 1.0
  %v11547 = vmin.f32 %v11527, 1.0
  %v11548 = vmin.f32 %v11528, 1.0
  %v11549 = vmin.f32 %v11529, 1.0
  %v11550 = vmin.f32 %v11530, 1.0
  %v11551 = vmin.f32 %v11531, 1.0
  %v11552 = vmin.f32 %v11532, 1.0
  %v11553 = vmin.f32 %v11533, 1.0
  %v11554 = vmin.f32 %v11534, 1.0
  %v11555 = vmin.f32 %v11535, 1.0
  %v11556 = vmin.f32 %v11536, 1.0
  %v11557 = vmin.f32 %v11537, 1.0
  %v11558 = vmin.f32 %v11538, 1.0
  %11559 = vst [vmem:[%s4 + $0xc0] sm:$0xff] %v11539
  %11560 = vst [vmem:[%s4 + $0xc8] sm:$0xff] %v11540
  %11561 = vst [vmem:[%s4 + $0xd0] sm:$0xff] %v11541
  %11562 = vst [vmem:[%s4 + $0xd8] sm:$0xff] %v11542
  %11563 = vst [vmem:[%s4 + $0xe0] sm:$0xff] %v11543
  %11564 = vst [vmem:[%s4 + $0xe8] sm:$0xff] %v11544
  %11565 = vst [vmem:[%s4 + $0xf0] sm:$0xff] %v11545
  %11566 = vst [vmem:[%s4 + $0xf8] sm:$0xff] %v11546
  %11567 = vst [vmem:[%s4 + $0x100] sm:$0xff] %v11547
  %11568 = vst [vmem:[%s4 + $0x108] sm:$0xff] %v11548
  %11569 = vst [vmem:[%s4 + $0x110] sm:$0xff] %v11549
  %11570 = vst [vmem:[%s4 + $0x118] sm:$0xff] %v11550
  %11571 = vst [vmem:[%s4 + $0x120] sm:$0xff] %v11551
  %11572 = vst [vmem:[%s4 + $0x128] sm:$0xff] %v11552
  %11573 = vst [vmem:[%s4 + $0x130] sm:$0xff] %v11553
  %11574 = vst [vmem:[%s4 + $0x138] sm:$0xff] %v11554
  %11575 = vst [vmem:[%s4 + $0x140] sm:$0xff] %v11555
  %11576 = vst [vmem:[%s4 + $0x148] sm:$0xff] %v11556
  %11577 = vst [vmem:[%s4 + $0x150] sm:$0xff] %v11557
  %11578 = vst [vmem:[%s4 + $0x158] sm:$0xf] %v11558
  // Predicated region
  $region25: #{pathnet_forward.1} parent=0 // pred_check
    _
  $region26: #{pathnet_forward.1} parent=0 // pred_check_branch
    %11580 = sbr.rel (0) target = $region28
  $region27: #{pathnet_forward.1} parent=0 // pred_region
    _
  $region28: #{pathnet_forward.1} parent=0 // pred_fallthru
    _
  // Predicated region
  $region29: #{pathnet_forward.1} parent=0 // pred_check
    _
  $region30: #{pathnet_forward.1} parent=0 // pred_check_branch
    %11582 = sbr.rel (0) target = $region32
  $region31: #{pathnet_forward.1} parent=0 // pred_region
    _
  $region32: #{pathnet_forward.1} parent=0 // pred_fallthru
    _

</llo_original>
